<compile_context>
chip_gen: v7x
topology: tpu7x:2x2x1
jax: 0.10.0
libtpu: 0.0.40
codegen_flags: <defaults>
</compile_context>

<pallas_src>
import functools

import jax
import jax.numpy as jnp
import numpy as np
from jax import lax
from jax.experimental import pallas as pl
from jax.experimental.pallas import tpu as pltpu


# ----------------------- fused attention kernel -----------------------

def _fused_attention_kernel(xq_ref, xkv_ref, wq_ref, wk_ref, wv_ref,
                            wo_ref, bo_ref, o_ref, *, heads):
    """Per-program: qkv projection + softmax attention + out-projection.

    Block shapes (per program):
      xq_ref : (1, tq, D)         query rows of this tile
      xkv_ref: (1, L,  D)         full sequence (source of keys/values)
      wq/wk/wv_ref: (heads, D, d) bf16; softmax scale pre-folded into wq
      wo_ref : (heads, d, dim)    bf16 per-head slice of the output projection
      bo_ref : (1, dim)           f32 output bias
      o_ref  : (1, tq, dim)
    """
    xq = xq_ref[0].astype(jnp.bfloat16)     # (tq, D)  bf16 MXU operand
    xkv = xkv_ref[0].astype(jnp.bfloat16)   # (L,  D)
    tq = xq_ref.shape[1]
    dim_out = wo_ref.shape[2]

    y = jnp.zeros((tq, dim_out), jnp.float32)   # f32 accumulator over heads

    for h in range(heads):   # static unroll (heads is small)
        # Per-head projections: weights are pre-split per head, so q/k/v are
        # produced directly at (rows, d) — no in-kernel 32-lane head slicing.
        qh = jnp.dot(xq, wq_ref[h], preferred_element_type=jnp.float32)   # (tq, d)
        kh = jnp.dot(xkv, wk_ref[h], preferred_element_type=jnp.float32)  # (L,  d)
        vh = jnp.dot(xkv, wv_ref[h], preferred_element_type=jnp.float32)  # (L,  d)

        # Scores q @ k^T as a contraction over d (no explicit transpose),
        # bf16 operands with f32 MXU accumulation.
        s = lax.dot_general(qh.astype(jnp.bfloat16), kh.astype(jnp.bfloat16),
                            (((1,), (1,)), ((), ())),
                            preferred_element_type=jnp.float32)           # (tq, L)

        # Single-pass softmax: the full kv extent is resident in VMEM, so no
        # online-softmax scratch / rescaling is needed.  The row max/sum run
        # once per head per program (not per kv step), so the XLU has slack;
        # the f32 sum also keeps the denominator numerically exact.
        m = jnp.max(s, axis=-1, keepdims=True)
        p = jnp.exp(s - m)                                                 # f32 EUP
        denom = jnp.sum(p, axis=-1, keepdims=True)                         # (tq, 1)

        p_bf = p.astype(jnp.bfloat16)
        oh = jnp.dot(p_bf, vh.astype(jnp.bfloat16),
                     preferred_element_type=jnp.float32)                   # (tq, d)
        oh = oh * pl.reciprocal(denom, approx=True)   # deferred norm on the EUP

        # Fused per-head output projection, accumulated in f32 (equivalent to
        # concatenating heads then multiplying by the full (inner, dim) weight,
        # but without building the lane-concatenated (tq, inner) slab).
        y = y + jnp.dot(oh.astype(jnp.bfloat16), wo_ref[h],
                        preferred_element_type=jnp.float32)                # (tq, dim)

    # dim_out (= 32 here) < 128 lanes -> masked store; padding the projection
    # to 128 output lanes would change the module's output contract, so the
    # natural shape is kept.
    o_ref[0] = (y + bo_ref[...]).astype(o_ref.dtype)


def _derive_vmem_limit(L, D, tq, heads, d, dim_out):
    """VMEM budget from actual tile sizes + headroom (v7x has 64 MiB only)."""
    f32, bf16, lane = 4, 2, 128
    # Double-buffered pipeline copies of every input/output block.
    blocks = 2 * (tq * D * f32                      # x_q tile
                  + L * D * f32                     # x_kv tile
                  + 3 * heads * D * d * bf16        # w_q, w_k, w_v
                  + heads * d * dim_out * bf16      # w_out
                  + dim_out * f32                   # bias
                  + tq * dim_out * f32)             # output tile
    # Dominant in-kernel intermediates (lane-padded where relevant).
    interm = (tq * L * f32                          # score matrix s
              + tq * L * bf16                       # p (bf16 copy)
              + 3 * L * max(d, lane) * f32          # per-head q/k/v
              + tq * max(dim_out, lane) * f32)      # y accumulator
    headroom = 16 << 20                             # compiler scratch / spill slack
    return int(blocks + interm + headroom)


def attention_forward(x, params, heads, dim_head):
    """Pallas implementation of Attention.forward. x: (B, L, dim)."""
    B, L, D = x.shape
    d = dim_head
    inner = heads * d
    scale = d ** (-0.5)

    w_qkv = params["w_qkv"]            # (D, 3*inner), torch weight pre-transposed
    w_out = params["w_out"]            # (inner, dim)
    b_out = params["b_out"]            # (1, dim)
    dim_out = w_out.shape[1]
    assert w_qkv.shape == (D, 3 * inner)
    assert w_out.shape[0] == inner

    # Parameter prep (tiny one-off XLA ops, outside the kernel):
    #  - split the fused qkv weight per head,
    #  - fold the softmax scale into the Q columns (no in-kernel multiply),
    #  - cast weights to bf16 for the native MXU path (f32 accumulation).
    w3 = jnp.transpose(w_qkv.reshape(D, 3, heads, d), (1, 2, 0, 3))  # (3, heads, D, d)
    wq = (w3[0] * scale).astype(jnp.bfloat16)
    wk = w3[1].astype(jnp.bfloat16)
    wv = w3[2].astype(jnp.bfloat16)
    wo = w_out.reshape(heads, d, dim_out).astype(jnp.bfloat16)        # (heads, d, dim)
    bo = b_out.astype(jnp.float32)

    # Grid: one q tile per batch element when B >= 2 (batch axis already gives
    # v7x's two TensorCores parallel work); split the q axis when B == 1.
    n_q = 1 if B >= 2 else 2
    if L % n_q != 0 or (L // n_q) % 8 != 0:
        n_q = 1
    tq = L // n_q
    grid = (B, n_q)

    kernel = functools.partial(_fused_attention_kernel, heads=heads)
    return pl.pallas_call(
        kernel,
        out_shape=jax.ShapeDtypeStruct((B, L, dim_out), x.dtype),
        grid=grid,
        in_specs=[
            pl.BlockSpec((1, tq, D), lambda b, qi: (b, qi, 0)),        # query rows
            pl.BlockSpec((1, L, D), lambda b, qi: (b, 0, 0)),          # full seq (k/v)
            pl.BlockSpec((heads, D, d), lambda b, qi: (0, 0, 0)),      # w_q (scaled)
            pl.BlockSpec((heads, D, d), lambda b, qi: (0, 0, 0)),      # w_k
            pl.BlockSpec((heads, D, d), lambda b, qi: (0, 0, 0)),      # w_v
            pl.BlockSpec((heads, d, dim_out), lambda b, qi: (0, 0, 0)),# w_out
            pl.BlockSpec((1, dim_out), lambda b, qi: (0, 0)),          # bias
        ],
        out_specs=pl.BlockSpec((1, tq, dim_out), lambda b, qi: (b, qi, 0)),
        compiler_params=pltpu.CompilerParams(
            dimension_semantics=("parallel", "parallel"),
            vmem_limit_bytes=_derive_vmem_limit(L, D, tq, heads, d, dim_out),
        ),
    )(x, x, wq, wk, wv, wo, bo)


# ---------------- reference (pure JAX, f32) for the sanity check ----------------

def attention_reference(x, params, heads, dim_head):
    B, L, dim = x.shape
    scale = dim_head ** (-0.5)
    qkv = x @ params["w_qkv"]
    q, k, v = jnp.split(qkv, 3, axis=-1)

    def sh(t):
        return jnp.transpose(t.reshape(B, L, heads, dim_head), (0, 2, 1, 3))

    q, k, v = map(sh, (q, k, v))
    attn = jnp.einsum("bhid,bhjd->bhij", q, k) * scale
    attn = jax.nn.softmax(attn, axis=-1)
    attned = jnp.einsum("bhij,bhjd->bhid", attn, v)
    attned = jnp.transpose(attned, (0, 2, 1, 3)).reshape(B, L, heads * dim_head)
    return attned @ params["w_out"] + params["b_out"][0]


# ---------------- main ----------------

if __name__ == "__main__":
    B, L, dim = 2, 256, 32
    heads, dim_head = 4, 32          # inner = 128
    inner = heads * dim_head

    key = jax.random.PRNGKey(0)
    k_x, k_qkv, k_out, k_b = jax.random.split(key, 4)

    x = jax.random.normal(k_x, (B, L, dim), dtype=jnp.float32)

    # torch Linear semantics y = x @ W^T + b; weights stored pre-transposed.
    params = {
        "w_qkv": jax.random.normal(k_qkv, (dim, inner * 3), jnp.float32) * 0.05,
        "w_out": jax.random.normal(k_out, (inner, dim), jnp.float32) * 0.05,
        "b_out": jax.random.normal(k_b, (1, dim), jnp.float32) * 0.05,
    }

    fwd = jax.jit(functools.partial(attention_forward,
                                    heads=heads, dim_head=dim_head))
    out = jax.block_until_ready(fwd(x, params))

    ref = attention_reference(x, params, heads, dim_head)
    # Tolerance covers bf16 MXU operands (f32 accumulation) plus the
    # approximate (EUP) reciprocal used for softmax normalization; the
    # reference is pure f32.
    np.testing.assert_allclose(np.asarray(out), np.asarray(ref),
                               rtol=1e-2, atol=1e-2)

    print("KERNEL_OK")
</pallas_src>

<mosaic_0001>
module attributes {stable_mosaic.version = 11 : i64} {
  func.func @_fused_attention_kernel(%arg0: i32, %arg1: i32, %arg2: memref<1x256x32xf32, #tpu.memory_space<vmem>>, %arg3: memref<1x256x32xf32, #tpu.memory_space<vmem>>, %arg4: memref<4x32x32xbf16, #tpu.memory_space<vmem>>, %arg5: memref<4x32x32xbf16, #tpu.memory_space<vmem>>, %arg6: memref<4x32x32xbf16, #tpu.memory_space<vmem>>, %arg7: memref<4x32x32xbf16, #tpu.memory_space<vmem>>, %arg8: memref<1x32xf32, #tpu.memory_space<vmem>>, %arg9: memref<1x256x32xf32, #tpu.memory_space<vmem>>) attributes {dimension_semantics = [#tpu.dimension_semantics<parallel>, #tpu.dimension_semantics<parallel>], iteration_bounds = array<i64: 2, 1>, scalar_prefetch = 0 : i64, scratch_operands = 0 : i64, tpu.core_type = #tpu.core_type<tc>, window_params = [{transform_indices = @transform_0, window_bounds = array<i64: 1, 256, 32>}, {transform_indices = @transform_1, window_bounds = array<i64: 1, 256, 32>}, {pipeline_mode = #tpu.pipeline_mode<synchronous>, transform_indices = @transform_2, window_bounds = array<i64: 4, 32, 32>}, {pipeline_mode = #tpu.pipeline_mode<synchronous>, transform_indices = @transform_3, window_bounds = array<i64: 4, 32, 32>}, {pipeline_mode = #tpu.pipeline_mode<synchronous>, transform_indices = @transform_4, window_bounds = array<i64: 4, 32, 32>}, {pipeline_mode = #tpu.pipeline_mode<synchronous>, transform_indices = @transform_5, window_bounds = array<i64: 4, 32, 32>}, {pipeline_mode = #tpu.pipeline_mode<synchronous>, transform_indices = @transform_6, window_bounds = array<i64: 1, 32>}, {transform_indices = @transform_7, window_bounds = array<i64: 1, 256, 32>}]} {
    %c0 = arith.constant 0 : index
    %c0_0 = arith.constant 0 : index
    %c0_1 = arith.constant 0 : index
    %0 = vector.load %arg2[%c0, %c0_0, %c0_1] : memref<1x256x32xf32, #tpu.memory_space<vmem>>, vector<1x256x32xf32>
    %1 = vector.shape_cast %0 : vector<1x256x32xf32> to vector<256x32xf32>
    %2 = arith.truncf %1 : vector<256x32xf32> to vector<256x32xbf16>
    %c0_2 = arith.constant 0 : index
    %c0_3 = arith.constant 0 : index
    %c0_4 = arith.constant 0 : index
    %3 = vector.load %arg3[%c0_2, %c0_3, %c0_4] : memref<1x256x32xf32, #tpu.memory_space<vmem>>, vector<1x256x32xf32>
    %4 = vector.shape_cast %3 : vector<1x256x32xf32> to vector<256x32xf32>
    %5 = arith.truncf %4 : vector<256x32xf32> to vector<256x32xbf16>
    %cst = arith.constant 0.000000e+00 : f32
    %6 = vector.broadcast %cst : f32 to vector<256x32xf32>
    %c0_5 = arith.constant 0 : index
    %c0_6 = arith.constant 0 : index
    %c0_7 = arith.constant 0 : index
    %7 = vector.load %arg4[%c0_5, %c0_6, %c0_7] : memref<4x32x32xbf16, #tpu.memory_space<vmem>>, vector<1x32x32xbf16>
    %8 = vector.shape_cast %7 : vector<1x32x32xbf16> to vector<32x32xbf16>
    %cst_8 = arith.constant dense<0.000000e+00> : vector<256x32xf32>
    %9 = tpu.matmul %2, %8, %cst_8 {dimension_numbers = #tpu.dot_dimension_numbers<[1], [0], [0], [1], [0, 0, 1, 1], [], []>} : vector<256x32xbf16>, vector<32x32xbf16>, vector<256x32xf32> -> vector<256x32xf32>
    %c0_9 = arith.constant 0 : index
    %c0_10 = arith.constant 0 : index
    %c0_11 = arith.constant 0 : index
    %10 = vector.load %arg5[%c0_9, %c0_10, %c0_11] : memref<4x32x32xbf16, #tpu.memory_space<vmem>>, vector<1x32x32xbf16>
    %11 = vector.shape_cast %10 : vector<1x32x32xbf16> to vector<32x32xbf16>
    %cst_12 = arith.constant dense<0.000000e+00> : vector<256x32xf32>
    %12 = tpu.matmul %5, %11, %cst_12 {dimension_numbers = #tpu.dot_dimension_numbers<[1], [0], [0], [1], [0, 0, 1, 1], [], []>} : vector<256x32xbf16>, vector<32x32xbf16>, vector<256x32xf32> -> vector<256x32xf32>
    %c0_13 = arith.constant 0 : index
    %c0_14 = arith.constant 0 : index
    %c0_15 = arith.constant 0 : index
    %13 = vector.load %arg6[%c0_13, %c0_14, %c0_15] : memref<4x32x32xbf16, #tpu.memory_space<vmem>>, vector<1x32x32xbf16>
    %14 = vector.shape_cast %13 : vector<1x32x32xbf16> to vector<32x32xbf16>
    %cst_16 = arith.constant dense<0.000000e+00> : vector<256x32xf32>
    %15 = tpu.matmul %5, %14, %cst_16 {dimension_numbers = #tpu.dot_dimension_numbers<[1], [0], [0], [1], [0, 0, 1, 1], [], []>} : vector<256x32xbf16>, vector<32x32xbf16>, vector<256x32xf32> -> vector<256x32xf32>
    %16 = arith.truncf %9 : vector<256x32xf32> to vector<256x32xbf16>
    %17 = arith.truncf %12 : vector<256x32xf32> to vector<256x32xbf16>
    %cst_17 = arith.constant dense<0.000000e+00> : vector<256x256xf32>
    %18 = tpu.matmul %16, %17, %cst_17 {dimension_numbers = #tpu.dot_dimension_numbers<[1], [1], [0], [0], [0, 0, 1, 0], [], []>} : vector<256x32xbf16>, vector<256x32xbf16>, vector<256x256xf32> -> vector<256x256xf32>
    %cst_18 = arith.constant dense<0xFF800000> : vector<256xf32>
    %19 = vector.multi_reduction <maximumf>, %18, %cst_18 [1] : vector<256x256xf32> to vector<256xf32>
    %20 = vector.shape_cast %19 : vector<256xf32> to vector<256x1xf32>
    %21 = vector.broadcast %20 : vector<256x1xf32> to vector<256x256xf32>
    %22 = arith.subf %18, %21 : vector<256x256xf32>
    %23 = math.exp %22 : vector<256x256xf32>
    %cst_19 = arith.constant dense<0.000000e+00> : vector<256xf32>
    %24 = vector.multi_reduction <add>, %23, %cst_19 [1] : vector<256x256xf32> to vector<256xf32>
    %25 = vector.shape_cast %24 : vector<256xf32> to vector<256x1xf32>
    %26 = arith.truncf %23 : vector<256x256xf32> to vector<256x256xbf16>
    %27 = arith.truncf %15 : vector<256x32xf32> to vector<256x32xbf16>
    %cst_20 = arith.constant dense<0.000000e+00> : vector<256x32xf32>
    %28 = tpu.matmul %26, %27, %cst_20 {dimension_numbers = #tpu.dot_dimension_numbers<[1], [0], [0], [1], [0, 0, 1, 1], [], []>} : vector<256x256xbf16>, vector<256x32xbf16>, vector<256x32xf32> -> vector<256x32xf32>
    %29 = tpu.reciprocal %25 {approx = true} : vector<256x1xf32> -> vector<256x1xf32>
    %30 = vector.broadcast %29 : vector<256x1xf32> to vector<256x32xf32>
    %31 = arith.mulf %28, %30 : vector<256x32xf32>
    %32 = arith.truncf %31 : vector<256x32xf32> to vector<256x32xbf16>
    %c0_21 = arith.constant 0 : index
    %c0_22 = arith.constant 0 : index
    %c0_23 = arith.constant 0 : index
    %33 = vector.load %arg7[%c0_21, %c0_22, %c0_23] : memref<4x32x32xbf16, #tpu.memory_space<vmem>>, vector<1x32x32xbf16>
    %34 = vector.shape_cast %33 : vector<1x32x32xbf16> to vector<32x32xbf16>
    %cst_24 = arith.constant dense<0.000000e+00> : vector<256x32xf32>
    %35 = tpu.matmul %32, %34, %cst_24 {dimension_numbers = #tpu.dot_dimension_numbers<[1], [0], [0], [1], [0, 0, 1, 1], [], []>} : vector<256x32xbf16>, vector<32x32xbf16>, vector<256x32xf32> -> vector<256x32xf32>
    %36 = arith.addf %6, %35 : vector<256x32xf32>
    %c1 = arith.constant 1 : index
    %c0_25 = arith.constant 0 : index
    %c0_26 = arith.constant 0 : index
    %37 = vector.load %arg4[%c1, %c0_25, %c0_26] : memref<4x32x32xbf16, #tpu.memory_space<vmem>>, vector<1x32x32xbf16>
    %38 = vector.shape_cast %37 : vector<1x32x32xbf16> to vector<32x32xbf16>
    %cst_27 = arith.constant dense<0.000000e+00> : vector<256x32xf32>
    %39 = tpu.matmul %2, %38, %cst_27 {dimension_numbers = #tpu.dot_dimension_numbers<[1], [0], [0], [1], [0, 0, 1, 1], [], []>} : vector<256x32xbf16>, vector<32x32xbf16>, vector<256x32xf32> -> vector<256x32xf32>
    %c1_28 = arith.constant 1 : index
    %c0_29 = arith.constant 0 : index
    %c0_30 = arith.constant 0 : index
    %40 = vector.load %arg5[%c1_28, %c0_29, %c0_30] : memref<4x32x32xbf16, #tpu.memory_space<vmem>>, vector<1x32x32xbf16>
    %41 = vector.shape_cast %40 : vector<1x32x32xbf16> to vector<32x32xbf16>
    %cst_31 = arith.constant dense<0.000000e+00> : vector<256x32xf32>
    %42 = tpu.matmul %5, %41, %cst_31 {dimension_numbers = #tpu.dot_dimension_numbers<[1], [0], [0], [1], [0, 0, 1, 1], [], []>} : vector<256x32xbf16>, vector<32x32xbf16>, vector<256x32xf32> -> vector<256x32xf32>
    %c1_32 = arith.constant 1 : index
    %c0_33 = arith.constant 0 : index
    %c0_34 = arith.constant 0 : index
    %43 = vector.load %arg6[%c1_32, %c0_33, %c0_34] : memref<4x32x32xbf16, #tpu.memory_space<vmem>>, vector<1x32x32xbf16>
    %44 = vector.shape_cast %43 : vector<1x32x32xbf16> to vector<32x32xbf16>
    %cst_35 = arith.constant dense<0.000000e+00> : vector<256x32xf32>
    %45 = tpu.matmul %5, %44, %cst_35 {dimension_numbers = #tpu.dot_dimension_numbers<[1], [0], [0], [1], [0, 0, 1, 1], [], []>} : vector<256x32xbf16>, vector<32x32xbf16>, vector<256x32xf32> -> vector<256x32xf32>
    %46 = arith.truncf %39 : vector<256x32xf32> to vector<256x32xbf16>
    %47 = arith.truncf %42 : vector<256x32xf32> to vector<256x32xbf16>
    %cst_36 = arith.constant dense<0.000000e+00> : vector<256x256xf32>
    %48 = tpu.matmul %46, %47, %cst_36 {dimension_numbers = #tpu.dot_dimension_numbers<[1], [1], [0], [0], [0, 0, 1, 0], [], []>} : vector<256x32xbf16>, vector<256x32xbf16>, vector<256x256xf32> -> vector<256x256xf32>
    %cst_37 = arith.constant dense<0xFF800000> : vector<256xf32>
    %49 = vector.multi_reduction <maximumf>, %48, %cst_37 [1] : vector<256x256xf32> to vector<256xf32>
    %50 = vector.shape_cast %49 : vector<256xf32> to vector<256x1xf32>
    %51 = vector.broadcast %50 : vector<256x1xf32> to vector<256x256xf32>
    %52 = arith.subf %48, %51 : vector<256x256xf32>
    %53 = math.exp %52 : vector<256x256xf32>
    %cst_38 = arith.constant dense<0.000000e+00> : vector<256xf32>
    %54 = vector.multi_reduction <add>, %53, %cst_38 [1] : vector<256x256xf32> to vector<256xf32>
    %55 = vector.shape_cast %54 : vector<256xf32> to vector<256x1xf32>
    %56 = arith.truncf %53 : vector<256x256xf32> to vector<256x256xbf16>
    %57 = arith.truncf %45 : vector<256x32xf32> to vector<256x32xbf16>
    %cst_39 = arith.constant dense<0.000000e+00> : vector<256x32xf32>
    %58 = tpu.matmul %56, %57, %cst_39 {dimension_numbers = #tpu.dot_dimension_numbers<[1], [0], [0], [1], [0, 0, 1, 1], [], []>} : vector<256x256xbf16>, vector<256x32xbf16>, vector<256x32xf32> -> vector<256x32xf32>
    %59 = tpu.reciprocal %55 {approx = true} : vector<256x1xf32> -> vector<256x1xf32>
    %60 = vector.broadcast %59 : vector<256x1xf32> to vector<256x32xf32>
    %61 = arith.mulf %58, %60 : vector<256x32xf32>
    %62 = arith.truncf %61 : vector<256x32xf32> to vector<256x32xbf16>
    %c1_40 = arith.constant 1 : index
    %c0_41 = arith.constant 0 : index
    %c0_42 = arith.constant 0 : index
    %63 = vector.load %arg7[%c1_40, %c0_41, %c0_42] : memref<4x32x32xbf16, #tpu.memory_space<vmem>>, vector<1x32x32xbf16>
    %64 = vector.shape_cast %63 : vector<1x32x32xbf16> to vector<32x32xbf16>
    %cst_43 = arith.constant dense<0.000000e+00> : vector<256x32xf32>
    %65 = tpu.matmul %62, %64, %cst_43 {dimension_numbers = #tpu.dot_dimension_numbers<[1], [0], [0], [1], [0, 0, 1, 1], [], []>} : vector<256x32xbf16>, vector<32x32xbf16>, vector<256x32xf32> -> vector<256x32xf32>
    %66 = arith.addf %36, %65 : vector<256x32xf32>
    %c2 = arith.constant 2 : index
    %c0_44 = arith.constant 0 : index
    %c0_45 = arith.constant 0 : index
    %67 = vector.load %arg4[%c2, %c0_44, %c0_45] : memref<4x32x32xbf16, #tpu.memory_space<vmem>>, vector<1x32x32xbf16>
    %68 = vector.shape_cast %67 : vector<1x32x32xbf16> to vector<32x32xbf16>
    %cst_46 = arith.constant dense<0.000000e+00> : vector<256x32xf32>
    %69 = tpu.matmul %2, %68, %cst_46 {dimension_numbers = #tpu.dot_dimension_numbers<[1], [0], [0], [1], [0, 0, 1, 1], [], []>} : vector<256x32xbf16>, vector<32x32xbf16>, vector<256x32xf32> -> vector<256x32xf32>
    %c2_47 = arith.constant 2 : index
    %c0_48 = arith.constant 0 : index
    %c0_49 = arith.constant 0 : index
    %70 = vector.load %arg5[%c2_47, %c0_48, %c0_49] : memref<4x32x32xbf16, #tpu.memory_space<vmem>>, vector<1x32x32xbf16>
    %71 = vector.shape_cast %70 : vector<1x32x32xbf16> to vector<32x32xbf16>
    %cst_50 = arith.constant dense<0.000000e+00> : vector<256x32xf32>
    %72 = tpu.matmul %5, %71, %cst_50 {dimension_numbers = #tpu.dot_dimension_numbers<[1], [0], [0], [1], [0, 0, 1, 1], [], []>} : vector<256x32xbf16>, vector<32x32xbf16>, vector<256x32xf32> -> vector<256x32xf32>
    %c2_51 = arith.constant 2 : index
    %c0_52 = arith.constant 0 : index
    %c0_53 = arith.constant 0 : index
    %73 = vector.load %arg6[%c2_51, %c0_52, %c0_53] : memref<4x32x32xbf16, #tpu.memory_space<vmem>>, vector<1x32x32xbf16>
    %74 = vector.shape_cast %73 : vector<1x32x32xbf16> to vector<32x32xbf16>
    %cst_54 = arith.constant dense<0.000000e+00> : vector<256x32xf32>
    %75 = tpu.matmul %5, %74, %cst_54 {dimension_numbers = #tpu.dot_dimension_numbers<[1], [0], [0], [1], [0, 0, 1, 1], [], []>} : vector<256x32xbf16>, vector<32x32xbf16>, vector<256x32xf32> -> vector<256x32xf32>
    %76 = arith.truncf %69 : vector<256x32xf32> to vector<256x32xbf16>
    %77 = arith.truncf %72 : vector<256x32xf32> to vector<256x32xbf16>
    %cst_55 = arith.constant dense<0.000000e+00> : vector<256x256xf32>
    %78 = tpu.matmul %76, %77, %cst_55 {dimension_numbers = #tpu.dot_dimension_numbers<[1], [1], [0], [0], [0, 0, 1, 0], [], []>} : vector<256x32xbf16>, vector<256x32xbf16>, vector<256x256xf32> -> vector<256x256xf32>
    %cst_56 = arith.constant dense<0xFF800000> : vector<256xf32>
    %79 = vector.multi_reduction <maximumf>, %78, %cst_56 [1] : vector<256x256xf32> to vector<256xf32>
    %80 = vector.shape_cast %79 : vector<256xf32> to vector<256x1xf32>
    %81 = vector.broadcast %80 : vector<256x1xf32> to vector<256x256xf32>
    %82 = arith.subf %78, %81 : vector<256x256xf32>
    %83 = math.exp %82 : vector<256x256xf32>
    %cst_57 = arith.constant dense<0.000000e+00> : vector<256xf32>
    %84 = vector.multi_reduction <add>, %83, %cst_57 [1] : vector<256x256xf32> to vector<256xf32>
    %85 = vector.shape_cast %84 : vector<256xf32> to vector<256x1xf32>
    %86 = arith.truncf %83 : vector<256x256xf32> to vector<256x256xbf16>
    %87 = arith.truncf %75 : vector<256x32xf32> to vector<256x32xbf16>
    %cst_58 = arith.constant dense<0.000000e+00> : vector<256x32xf32>
    %88 = tpu.matmul %86, %87, %cst_58 {dimension_numbers = #tpu.dot_dimension_numbers<[1], [0], [0], [1], [0, 0, 1, 1], [], []>} : vector<256x256xbf16>, vector<256x32xbf16>, vector<256x32xf32> -> vector<256x32xf32>
    %89 = tpu.reciprocal %85 {approx = true} : vector<256x1xf32> -> vector<256x1xf32>
    %90 = vector.broadcast %89 : vector<256x1xf32> to vector<256x32xf32>
    %91 = arith.mulf %88, %90 : vector<256x32xf32>
    %92 = arith.truncf %91 : vector<256x32xf32> to vector<256x32xbf16>
    %c2_59 = arith.constant 2 : index
    %c0_60 = arith.constant 0 : index
    %c0_61 = arith.constant 0 : index
    %93 = vector.load %arg7[%c2_59, %c0_60, %c0_61] : memref<4x32x32xbf16, #tpu.memory_space<vmem>>, vector<1x32x32xbf16>
    %94 = vector.shape_cast %93 : vector<1x32x32xbf16> to vector<32x32xbf16>
    %cst_62 = arith.constant dense<0.000000e+00> : vector<256x32xf32>
    %95 = tpu.matmul %92, %94, %cst_62 {dimension_numbers = #tpu.dot_dimension_numbers<[1], [0], [0], [1], [0, 0, 1, 1], [], []>} : vector<256x32xbf16>, vector<32x32xbf16>, vector<256x32xf32> -> vector<256x32xf32>
    %96 = arith.addf %66, %95 : vector<256x32xf32>
    %c3 = arith.constant 3 : index
    %c0_63 = arith.constant 0 : index
    %c0_64 = arith.constant 0 : index
    %97 = vector.load %arg4[%c3, %c0_63, %c0_64] : memref<4x32x32xbf16, #tpu.memory_space<vmem>>, vector<1x32x32xbf16>
    %98 = vector.shape_cast %97 : vector<1x32x32xbf16> to vector<32x32xbf16>
    %cst_65 = arith.constant dense<0.000000e+00> : vector<256x32xf32>
    %99 = tpu.matmul %2, %98, %cst_65 {dimension_numbers = #tpu.dot_dimension_numbers<[1], [0], [0], [1], [0, 0, 1, 1], [], []>} : vector<256x32xbf16>, vector<32x32xbf16>, vector<256x32xf32> -> vector<256x32xf32>
    %c3_66 = arith.constant 3 : index
    %c0_67 = arith.constant 0 : index
    %c0_68 = arith.constant 0 : index
    %100 = vector.load %arg5[%c3_66, %c0_67, %c0_68] : memref<4x32x32xbf16, #tpu.memory_space<vmem>>, vector<1x32x32xbf16>
    %101 = vector.shape_cast %100 : vector<1x32x32xbf16> to vector<32x32xbf16>
    %cst_69 = arith.constant dense<0.000000e+00> : vector<256x32xf32>
    %102 = tpu.matmul %5, %101, %cst_69 {dimension_numbers = #tpu.dot_dimension_numbers<[1], [0], [0], [1], [0, 0, 1, 1], [], []>} : vector<256x32xbf16>, vector<32x32xbf16>, vector<256x32xf32> -> vector<256x32xf32>
    %c3_70 = arith.constant 3 : index
    %c0_71 = arith.constant 0 : index
    %c0_72 = arith.constant 0 : index
    %103 = vector.load %arg6[%c3_70, %c0_71, %c0_72] : memref<4x32x32xbf16, #tpu.memory_space<vmem>>, vector<1x32x32xbf16>
    %104 = vector.shape_cast %103 : vector<1x32x32xbf16> to vector<32x32xbf16>
    %cst_73 = arith.constant dense<0.000000e+00> : vector<256x32xf32>
    %105 = tpu.matmul %5, %104, %cst_73 {dimension_numbers = #tpu.dot_dimension_numbers<[1], [0], [0], [1], [0, 0, 1, 1], [], []>} : vector<256x32xbf16>, vector<32x32xbf16>, vector<256x32xf32> -> vector<256x32xf32>
    %106 = arith.truncf %99 : vector<256x32xf32> to vector<256x32xbf16>
    %107 = arith.truncf %102 : vector<256x32xf32> to vector<256x32xbf16>
    %cst_74 = arith.constant dense<0.000000e+00> : vector<256x256xf32>
    %108 = tpu.matmul %106, %107, %cst_74 {dimension_numbers = #tpu.dot_dimension_numbers<[1], [1], [0], [0], [0, 0, 1, 0], [], []>} : vector<256x32xbf16>, vector<256x32xbf16>, vector<256x256xf32> -> vector<256x256xf32>
    %cst_75 = arith.constant dense<0xFF800000> : vector<256xf32>
    %109 = vector.multi_reduction <maximumf>, %108, %cst_75 [1] : vector<256x256xf32> to vector<256xf32>
    %110 = vector.shape_cast %109 : vector<256xf32> to vector<256x1xf32>
    %111 = vector.broadcast %110 : vector<256x1xf32> to vector<256x256xf32>
    %112 = arith.subf %108, %111 : vector<256x256xf32>
    %113 = math.exp %112 : vector<256x256xf32>
    %cst_76 = arith.constant dense<0.000000e+00> : vector<256xf32>
    %114 = vector.multi_reduction <add>, %113, %cst_76 [1] : vector<256x256xf32> to vector<256xf32>
    %115 = vector.shape_cast %114 : vector<256xf32> to vector<256x1xf32>
    %116 = arith.truncf %113 : vector<256x256xf32> to vector<256x256xbf16>
    %117 = arith.truncf %105 : vector<256x32xf32> to vector<256x32xbf16>
    %cst_77 = arith.constant dense<0.000000e+00> : vector<256x32xf32>
    %118 = tpu.matmul %116, %117, %cst_77 {dimension_numbers = #tpu.dot_dimension_numbers<[1], [0], [0], [1], [0, 0, 1, 1], [], []>} : vector<256x256xbf16>, vector<256x32xbf16>, vector<256x32xf32> -> vector<256x32xf32>
    %119 = tpu.reciprocal %115 {approx = true} : vector<256x1xf32> -> vector<256x1xf32>
    %120 = vector.broadcast %119 : vector<256x1xf32> to vector<256x32xf32>
    %121 = arith.mulf %118, %120 : vector<256x32xf32>
    %122 = arith.truncf %121 : vector<256x32xf32> to vector<256x32xbf16>
    %c3_78 = arith.constant 3 : index
    %c0_79 = arith.constant 0 : index
    %c0_80 = arith.constant 0 : index
    %123 = vector.load %arg7[%c3_78, %c0_79, %c0_80] : memref<4x32x32xbf16, #tpu.memory_space<vmem>>, vector<1x32x32xbf16>
    %124 = vector.shape_cast %123 : vector<1x32x32xbf16> to vector<32x32xbf16>
    %cst_81 = arith.constant dense<0.000000e+00> : vector<256x32xf32>
    %125 = tpu.matmul %122, %124, %cst_81 {dimension_numbers = #tpu.dot_dimension_numbers<[1], [0], [0], [1], [0, 0, 1, 1], [], []>} : vector<256x32xbf16>, vector<32x32xbf16>, vector<256x32xf32> -> vector<256x32xf32>
    %126 = arith.addf %96, %125 : vector<256x32xf32>
    %c0_82 = arith.constant 0 : index
    %c0_83 = arith.constant 0 : index
    %127 = vector.load %arg8[%c0_82, %c0_83] : memref<1x32xf32, #tpu.memory_space<vmem>>, vector<1x32xf32>
    %128 = vector.broadcast %127 : vector<1x32xf32> to vector<256x32xf32>
    %129 = arith.addf %126, %128 : vector<256x32xf32>
    %c0_84 = arith.constant 0 : index
    %c0_85 = arith.constant 0 : index
    %c0_86 = arith.constant 0 : index
    %130 = vector.load %arg9[%c0_84, %c0_85, %c0_86] : memref<1x256x32xf32, #tpu.memory_space<vmem>>, vector<1x256x32xf32>
    %131 = vector.shape_cast %130 : vector<1x256x32xf32> to vector<256x32xf32>
    %132 = vector.shape_cast %129 : vector<256x32xf32> to vector<1x256x32xf32>
    tpu.vector_store %arg9[%c0_84, %c0_85, %c0_86], %132 {strides = array<i32>} : memref<1x256x32xf32, #tpu.memory_space<vmem>>, vector<1x256x32xf32>,
    return
  }
  func.func @transform_0(%arg0: i32, %arg1: i32) -> (i32, i32, i32) {
    %c0_i32 = arith.constant 0 : i32
    %c0_i32_0 = arith.constant 0 : i32
    return %arg0, %arg1, %c0_i32 : i32, i32, i32
  }
  func.func @transform_1(%arg0: i32, %arg1: i32) -> (i32, i32, i32) {
    %c0_i32 = arith.constant 0 : i32
    %c0_i32_0 = arith.constant 0 : i32
    %c0_i32_1 = arith.constant 0 : i32
    return %arg0, %c0_i32, %c0_i32_0 : i32, i32, i32
  }
  func.func @transform_2(%arg0: i32, %arg1: i32) -> (i32, i32, i32) {
    %c0_i32 = arith.constant 0 : i32
    %c0_i32_0 = arith.constant 0 : i32
    %c0_i32_1 = arith.constant 0 : i32
    %c0_i32_2 = arith.constant 0 : i32
    return %c0_i32, %c0_i32_0, %c0_i32_1 : i32, i32, i32
  }
  func.func @transform_3(%arg0: i32, %arg1: i32) -> (i32, i32, i32) {
    %c0_i32 = arith.constant 0 : i32
    %c0_i32_0 = arith.constant 0 : i32
    %c0_i32_1 = arith.constant 0 : i32
    %c0_i32_2 = arith.constant 0 : i32
    return %c0_i32, %c0_i32_0, %c0_i32_1 : i32, i32, i32
  }
  func.func @transform_4(%arg0: i32, %arg1: i32) -> (i32, i32, i32) {
    %c0_i32 = arith.constant 0 : i32
    %c0_i32_0 = arith.constant 0 : i32
    %c0_i32_1 = arith.constant 0 : i32
    %c0_i32_2 = arith.constant 0 : i32
    return %c0_i32, %c0_i32_0, %c0_i32_1 : i32, i32, i32
  }
  func.func @transform_5(%arg0: i32, %arg1: i32) -> (i32, i32, i32) {
    %c0_i32 = arith.constant 0 : i32
    %c0_i32_0 = arith.constant 0 : i32
    %c0_i32_1 = arith.constant 0 : i32
    %c0_i32_2 = arith.constant 0 : i32
    return %c0_i32, %c0_i32_0, %c0_i32_1 : i32, i32, i32
  }
  func.func @transform_6(%arg0: i32, %arg1: i32) -> (i32, i32) {
    %c0_i32 = arith.constant 0 : i32
    %c0_i32_0 = arith.constant 0 : i32
    %c0_i32_1 = arith.constant 0 : i32
    return %c0_i32, %c0_i32_0 : i32, i32
  }
  func.func @transform_7(%arg0: i32, %arg1: i32) -> (i32, i32, i32) {
    %c0_i32 = arith.constant 0 : i32
    %c0_i32_0 = arith.constant 0 : i32
    return %arg0, %arg1, %c0_i32 : i32, i32, i32
  }
}

</mosaic_0001>

<llo_original>
// kernel: attention_forward.1
$region0: #{attention_forward.1}
  #allocation0 [shape = 'u32[]', space=smem, size = 0x4, offset = 0x4, fixed_abs, tag = 'smem constant byte address 0x4 - core index']
  #allocation1 [shape = 'u32[144,128]{1,0:T(1,128)}', space=vmem, size = 0x12000, scoped, tag = 'internal scratch']
  %s0 = inlined_call_operand.vmem [shape: f32[2,256,32], index: 0, kind: input, shape index: {}, may-alias: {0,1}]
  %s1 = inlined_call_operand.vmem [shape: f32[2,256,32], index: 1, kind: input, shape index: {}, may-alias: {0,1}]
  %s2 = inlined_call_operand.vmem [shape: bf16[4,32,32], index: 2, kind: input, shape index: {}]
  %s3 = inlined_call_operand.vmem [shape: bf16[4,32,32], index: 3, kind: input, shape index: {}]
  %s4 = inlined_call_operand.vmem [shape: bf16[4,32,32], index: 4, kind: input, shape index: {}]
  %s5 = inlined_call_operand.vmem [shape: bf16[4,32,32], index: 5, kind: input, shape index: {}]
  %s6 = inlined_call_operand.vmem [shape: f32[1,32], index: 6, kind: input, shape index: {}]
  %s7 = inlined_call_operand.vmem [shape: f32[2,256,32], index: 7, kind: output, shape index: {}]
  %s8 = sld [smem:[#allocation0]]
  $region61: #{attention_forward.1} parent=0
    _
  %s10 = ssub.s32 1, %s8
  %s11 = scalar_select 0, %s10, %s8
  loop: start=0, step=1, limit=4
  $region2: #{attention_forward.1} parent=0 // loop_pre_header
    _
  $region3: #{attention_forward.1} parent=0 // loop_header
    %s13 = sphi 0, %s17
    %p14 = scmp.ge.s32.totalorder %s13, 4
    %s20 = sphi 0, %s32
    %s21 = sphi 0, %s28
    %s22 = sphi 0, %s20
    %s23 = sphi 0, %s21
    %s24 = sphi 0, %s22
    %s25 = sphi 0, %s23
    %s37 = sphi 0, %s39
    %s40 = sphi 0, %s37
    %s41 = sphi 0, %s40
    %s57 = sphi 0, %s41
    %s63 = sphi 0, %s65
    %s66 = sphi 0, %s63
    %s67 = sphi 0, %s66
    %s83 = sphi 0, %s67
    %s87 = sphi 0, %s87
    %s89 = sphi 0, %s87
    %s90 = sphi 0, %s89
    %s104 = sphi 0, %s90
    %s108 = sphi 0, %s108
    %s110 = sphi 0, %s108
    %s111 = sphi 0, %s110
    %s125 = sphi 0, %s111
    %s129 = sphi 0, %s129
    %s131 = sphi 0, %s129
    %s132 = sphi 0, %s131
    %s146 = sphi 0, %s132
    %s150 = sphi 0, %s150
    %s152 = sphi 0, %s150
    %s153 = sphi 0, %s152
    %s167 = sphi 0, %s153
    %s171 = sphi 0, %s171
    %s173 = sphi 0, %s171
    %s174 = sphi 0, %s173
    %s188 = sphi 0, %s174
    %s196 = sphi 0, %s198
    %s199 = sphi 0, %s196
    %s200 = sphi 0, %s199
    %s216 = sphi 0, %s200
  $region4: #{attention_forward.1} parent=0 // loop_header_branch
    %16 = sbr.rel (%p14) target = $region8
  $region5: #{attention_forward.1} parent=0 // loop_body
    %s18 = ssub.s32 %s13, 1
    %s19 = ssub.s32 %s13, 2
    %s26 = sadd.s32 1, %s21
    %p27 = scmp.ge.s32.totalorder %s26, 1
    %s28 = scalar_select %p27, 0, %s26
    %s29 = sadd.s32 1, %s20
    %s30 = scalar_select %p27, %s29, %s20
    %p31 = scmp.ge.s32.totalorder %s30, 2
    %s32 = scalar_select %p31, 0, %s30
    %s33 = ssub.s32 %s20, %s32
    %s34 = ssub.s32 %s21, %s28
    %s35 = sor.u32 %s33, %s34
    %p36 = scmp.eq.s32.totalorder %s35, 0
    %s38 = sadd.s32 %s37, 1
    %s39 = scalar_select %p36, %s37, %s38
    %p42 = pneg %p36
    %p43 = scmp.eq.s32.totalorder %s13, 1
    %p44 = por %p42, %p43
    %p45 = scmp.ne.s32.totalorder %s37, %s40
    %p46 = scmp.eq.s32.totalorder %s13, 0
    %p47 = por %p45, %p46
    %p48 = scmp.ne.s32.totalorder %s37, %s40
    %p49 = scmp.eq.s32.totalorder %s18, 1
    %p50 = por %p48, %p49
    %p51 = scmp.ne.s32.totalorder %s40, %s41
    %p52 = scmp.eq.s32.totalorder %s18, 0
    %p53 = por %p51, %p52
    %p54 = scmp.ne.s32.totalorder %s40, %s41
    %p55 = scmp.eq.s32.totalorder %s19, 1
    %p56 = por %p54, %p55
    %p58 = scmp.ne.s32.totalorder %s41, %s57
    %p59 = scmp.eq.s32.totalorder %s19, 0
    %p60 = por %p58, %p59
    %s61 = ssub.s32 %s20, %s32
    %p62 = scmp.eq.s32.totalorder %s61, 0
    %s64 = sadd.s32 %s63, 1
    %s65 = scalar_select %p62, %s63, %s64
    %p68 = pneg %p62
    %p69 = scmp.eq.s32.totalorder %s13, 1
    %p70 = por %p68, %p69
    %p71 = scmp.ne.s32.totalorder %s63, %s66
    %p72 = scmp.eq.s32.totalorder %s13, 0
    %p73 = por %p71, %p72
    %p74 = scmp.ne.s32.totalorder %s63, %s66
    %p75 = scmp.eq.s32.totalorder %s18, 1
    %p76 = por %p74, %p75
    %p77 = scmp.ne.s32.totalorder %s66, %s67
    %p78 = scmp.eq.s32.totalorder %s18, 0
    %p79 = por %p77, %p78
    %p80 = scmp.ne.s32.totalorder %s66, %s67
    %p81 = scmp.eq.s32.totalorder %s19, 1
    %p82 = por %p80, %p81
    %p84 = scmp.ne.s32.totalorder %s67, %s83
    %p85 = scmp.eq.s32.totalorder %s19, 0
    %p86 = por %p84, %p85
    %s88 = sadd.s32 %s87, 1
    %p91 = scmp.eq.s32.totalorder %s13, 1
    %p92 = scmp.ne.s32.totalorder %s87, %s89
    %p93 = scmp.eq.s32.totalorder %s13, 0
    %p94 = por %p92, %p93
    %p95 = scmp.ne.s32.totalorder %s87, %s89
    %p96 = scmp.eq.s32.totalorder %s18, 1
    %p97 = por %p95, %p96
    %p98 = scmp.ne.s32.totalorder %s89, %s90
    %p99 = scmp.eq.s32.totalorder %s18, 0
    %p100 = por %p98, %p99
    %p101 = scmp.ne.s32.totalorder %s89, %s90
    %p102 = scmp.eq.s32.totalorder %s19, 1
    %p103 = por %p101, %p102
    %p105 = scmp.ne.s32.totalorder %s90, %s104
    %p106 = scmp.eq.s32.totalorder %s19, 0
    %p107 = por %p105, %p106
    %s109 = sadd.s32 %s108, 1
    %p112 = scmp.eq.s32.totalorder %s13, 1
    %p113 = scmp.ne.s32.totalorder %s108, %s110
    %p114 = scmp.eq.s32.totalorder %s13, 0
    %p115 = por %p113, %p114
    %p116 = scmp.ne.s32.totalorder %s108, %s110
    %p117 = scmp.eq.s32.totalorder %s18, 1
    %p118 = por %p116, %p117
    %p119 = scmp.ne.s32.totalorder %s110, %s111
    %p120 = scmp.eq.s32.totalorder %s18, 0
    %p121 = por %p119, %p120
    %p122 = scmp.ne.s32.totalorder %s110, %s111
    %p123 = scmp.eq.s32.totalorder %s19, 1
    %p124 = por %p122, %p123
    %p126 = scmp.ne.s32.totalorder %s111, %s125
    %p127 = scmp.eq.s32.totalorder %s19, 0
    %p128 = por %p126, %p127
    %s130 = sadd.s32 %s129, 1
    %p133 = scmp.eq.s32.totalorder %s13, 1
    %p134 = scmp.ne.s32.totalorder %s129, %s131
    %p135 = scmp.eq.s32.totalorder %s13, 0
    %p136 = por %p134, %p135
    %p137 = scmp.ne.s32.totalorder %s129, %s131
    %p138 = scmp.eq.s32.totalorder %s18, 1
    %p139 = por %p137, %p138
    %p140 = scmp.ne.s32.totalorder %s131, %s132
    %p141 = scmp.eq.s32.totalorder %s18, 0
    %p142 = por %p140, %p141
    %p143 = scmp.ne.s32.totalorder %s131, %s132
    %p144 = scmp.eq.s32.totalorder %s19, 1
    %p145 = por %p143, %p144
    %p147 = scmp.ne.s32.totalorder %s132, %s146
    %p148 = scmp.eq.s32.totalorder %s19, 0
    %p149 = por %p147, %p148
    %s151 = sadd.s32 %s150, 1
    %p154 = scmp.eq.s32.totalorder %s13, 1
    %p155 = scmp.ne.s32.totalorder %s150, %s152
    %p156 = scmp.eq.s32.totalorder %s13, 0
    %p157 = por %p155, %p156
    %p158 = scmp.ne.s32.totalorder %s150, %s152
    %p159 = scmp.eq.s32.totalorder %s18, 1
    %p160 = por %p158, %p159
    %p161 = scmp.ne.s32.totalorder %s152, %s153
    %p162 = scmp.eq.s32.totalorder %s18, 0
    %p163 = por %p161, %p162
    %p164 = scmp.ne.s32.totalorder %s152, %s153
    %p165 = scmp.eq.s32.totalorder %s19, 1
    %p166 = por %p164, %p165
    %p168 = scmp.ne.s32.totalorder %s153, %s167
    %p169 = scmp.eq.s32.totalorder %s19, 0
    %p170 = por %p168, %p169
    %s172 = sadd.s32 %s171, 1
    %p175 = scmp.eq.s32.totalorder %s13, 1
    %p176 = scmp.ne.s32.totalorder %s171, %s173
    %p177 = scmp.eq.s32.totalorder %s13, 0
    %p178 = por %p176, %p177
    %p179 = scmp.ne.s32.totalorder %s171, %s173
    %p180 = scmp.eq.s32.totalorder %s18, 1
    %p181 = por %p179, %p180
    %p182 = scmp.ne.s32.totalorder %s173, %s174
    %p183 = scmp.eq.s32.totalorder %s18, 0
    %p184 = por %p182, %p183
    %p185 = scmp.ne.s32.totalorder %s173, %s174
    %p186 = scmp.eq.s32.totalorder %s19, 1
    %p187 = por %p185, %p186
    %p189 = scmp.ne.s32.totalorder %s174, %s188
    %p190 = scmp.eq.s32.totalorder %s19, 0
    %p191 = por %p189, %p190
    %s192 = ssub.s32 %s20, %s32
    %s193 = ssub.s32 %s21, %s28
    %s194 = sor.u32 %s192, %s193
    %p195 = scmp.eq.s32.totalorder %s194, 0
    %s197 = sadd.s32 %s196, 1
    %s198 = scalar_select %p195, %s196, %s197
    %p201 = pneg %p195
    %p202 = scmp.eq.s32.totalorder %s13, 1
    %p203 = por %p201, %p202
    %p204 = scmp.ne.s32.totalorder %s196, %s199
    %p205 = scmp.eq.s32.totalorder %s13, 0
    %p206 = por %p204, %p205
    %p207 = scmp.ne.s32.totalorder %s196, %s199
    %p208 = scmp.eq.s32.totalorder %s18, 1
    %p209 = por %p207, %p208
    %p210 = scmp.ne.s32.totalorder %s199, %s200
    %p211 = scmp.eq.s32.totalorder %s18, 0
    %p212 = por %p210, %p211
    %p213 = scmp.ne.s32.totalorder %s199, %s200
    %p214 = scmp.eq.s32.totalorder %s19, 1
    %p215 = por %p213, %p214
    %p217 = scmp.ne.s32.totalorder %s200, %s216
    %p218 = scmp.eq.s32.totalorder %s19, 0
    %p219 = por %p217, %p218
    %p220 = scmp.le.s32.totalorder 1, %s13
    %p221 = scmp.lt.s32.totalorder %s13, 3
    %p222 = pnand %p220, %p221
    %p223 = pneg %p222
    // Predicated region
    $region9: #{attention_forward.1} parent=5 // pred_check
      _
    $region10: #{attention_forward.1} parent=5 // pred_check_branch
      %225 = sbr.rel (%p222) target = $region12
    $region11: #{attention_forward.1} parent=5 // pred_region
      %s226 = ssub.s32 %s13, 1
      // Predicated region
      $region13: #{attention_forward.1} parent=11 // pred_check
        %p227 = pneg %p100
      $region14: #{attention_forward.1} parent=11 // pred_check_branch
        %229 = sbr.rel (%p227) target = $region16
      $region15: #{attention_forward.1} parent=11 // pred_region
        _
      $region16: #{attention_forward.1} parent=11 // pred_fallthru
        _
      // Predicated region
      $region17: #{attention_forward.1} parent=11 // pred_check
        %p230 = pneg %p121
      $region18: #{attention_forward.1} parent=11 // pred_check_branch
        %232 = sbr.rel (%p230) target = $region20
      $region19: #{attention_forward.1} parent=11 // pred_region
        _
      $region20: #{attention_forward.1} parent=11 // pred_fallthru
        _
      // Predicated region
      $region21: #{attention_forward.1} parent=11 // pred_check
        %p233 = pneg %p142
      $region22: #{attention_forward.1} parent=11 // pred_check_branch
        %235 = sbr.rel (%p233) target = $region24
      $region23: #{attention_forward.1} parent=11 // pred_region
        _
      $region24: #{attention_forward.1} parent=11 // pred_fallthru
        _
      // Predicated region
      $region25: #{attention_forward.1} parent=11 // pred_check
        %p236 = pneg %p163
      $region26: #{attention_forward.1} parent=11 // pred_check_branch
        %238 = sbr.rel (%p236) target = $region28
      $region27: #{attention_forward.1} parent=11 // pred_region
        _
      $region28: #{attention_forward.1} parent=11 // pred_fallthru
        _
      // Predicated region
      $region29: #{attention_forward.1} parent=11 // pred_check
        %p239 = pneg %p184
      $region30: #{attention_forward.1} parent=11 // pred_check_branch
        %241 = sbr.rel (%p239) target = $region32
      $region31: #{attention_forward.1} parent=11 // pred_region
        _
      $region32: #{attention_forward.1} parent=11 // pred_fallthru
        _
    $region12: #{attention_forward.1} parent=5 // pred_fallthru
      _
    %p242 = scmp.lt.s32.totalorder %s13, 2
    // Predicated region
    $region33: #{attention_forward.1} parent=5 // pred_check
      %p243 = pneg %p242
    $region34: #{attention_forward.1} parent=5 // pred_check_branch
      %245 = sbr.rel (%p243) target = $region36
    $region35: #{attention_forward.1} parent=5 // pred_region
      // Predicated region
      $region37: #{attention_forward.1} parent=35 // pred_check
        %p246 = pneg %p47
      $region38: #{attention_forward.1} parent=35 // pred_check_branch
        %248 = sbr.rel (%p246) target = $region40
      $region39: #{attention_forward.1} parent=35 // pred_region
        %s249 = smul.u32 32, %s21
        %p250 = scmp.lt.s32.totalorder %s20, 1
        %s251 = scalar_select %p250, %s20, 1
        %p252 = scmp.lt.s32.totalorder %s249, 31
        %s253 = scalar_select %p252, %s249, 31
        %s254 = smul.addr %s251, 32
        %s255 = sadd.s32 %s253, %s254
        %s256 = smul.addr %s255, 8
        %s257 = scalar_lea.vmem %s0, %s256
        %s258 = smul.u32 32, %s21
      $region40: #{attention_forward.1} parent=35 // pred_fallthru
        _
      // Predicated region
      $region41: #{attention_forward.1} parent=35 // pred_check
        %p259 = pneg %p73
      $region42: #{attention_forward.1} parent=35 // pred_check_branch
        %261 = sbr.rel (%p259) target = $region44
      $region43: #{attention_forward.1} parent=35 // pred_region
        %p262 = scmp.lt.s32.totalorder %s20, 1
        %s263 = scalar_select %p262, %s20, 1
        %s264 = smul.addr %s263, 32
        %s265 = smul.addr %s264, 8
        %s266 = scalar_lea.vmem %s1, %s265
      $region44: #{attention_forward.1} parent=35 // pred_fallthru
        _
    $region36: #{attention_forward.1} parent=5 // pred_fallthru
      _
    %p267 = scmp.le.s32.totalorder 1, %s13
    %p268 = scmp.lt.s32.totalorder %s13, 3
    %p269 = pnand %p267, %p268
    %p270 = pneg %p269
    // Predicated region
    $region45: #{attention_forward.1} parent=5 // pred_check
      _
    $region46: #{attention_forward.1} parent=5 // pred_check_branch
      %272 = sbr.rel (%p269) target = $region48
    $region47: #{attention_forward.1} parent=5 // pred_region
      %s273 = ssub.s32 %s13, 1
      %s274 = smul.u32 32, %s23
      %p275 = scmp.lt.s32.totalorder %s22, 1
      %s276 = scalar_select %p275, %s22, 1
      %p277 = scmp.lt.s32.totalorder %s274, 31
      %s278 = scalar_select %p277, %s274, 31
      %s279 = smul.addr %s276, 32
      %s280 = sadd.s32 %s278, %s279
      %s281 = smul.addr %s280, 8
      %s282 = scalar_lea.vmem %s0, %s281
      %p283 = pneg %p53
      %p284 = pneg %p50
      %p285 = scmp.lt.s32.totalorder %s22, 1
      %s286 = scalar_select %p285, %s22, 1
      %s287 = smul.addr %s286, 32
      %s288 = smul.addr %s287, 8
      %s289 = scalar_lea.vmem %s1, %s288
      %p290 = pneg %p79
      %p291 = pneg %p76
      %p292 = pneg %p100
      %p293 = pneg %p97
      %p294 = pneg %p121
      %p295 = pneg %p118
      %p296 = pneg %p142
      %p297 = pneg %p139
      %p298 = pneg %p163
      %p299 = pneg %p160
      %p300 = pneg %p184
      %p301 = pneg %p181
      %p302 = pneg %p212
      %p303 = pneg %p209
      %s304 = smul.u32 32, %s23
      %p305 = scmp.lt.s32.totalorder %s22, 1
      %s306 = scalar_select %p305, %s22, 1
      %p307 = scmp.lt.s32.totalorder %s304, 31
      %s308 = scalar_select %p307, %s304, 31
      %s309 = smul.addr %s306, 32
      %s310 = sadd.s32 %s308, %s309
      %s311 = smul.addr %s310, 8
      %s312 = scalar_lea.vmem %s7, %s311
      %s313 = smul.u32 32, %s23
      %p314 = scmp.lt.s32.totalorder %s22, 1
      %s315 = scalar_select %p314, %s22, 1
      %p316 = scmp.lt.s32.totalorder %s313, 31
      %s317 = scalar_select %p316, %s313, 31
      %s318 = smul.addr %s315, 32
      %s319 = sadd.s32 %s317, %s318
      %s320 = smul.addr %s319, 8
      %s321 = scalar_lea.vmem %s0, %s320
      %s322 = smul.u32 32, %s23
      %p323 = scmp.lt.s32.totalorder %s22, 1
      %s324 = scalar_select %p323, %s22, 1
      %s325 = smul.addr %s324, 32
      %s326 = smul.addr %s325, 8
      %s327 = scalar_lea.vmem %s1, %s326
      %s328 = smul.u32 32, %s23
      %p329 = scmp.lt.s32.totalorder %s22, 1
      %s330 = scalar_select %p329, %s22, 1
      %p331 = scmp.lt.s32.totalorder %s328, 31
      %s332 = scalar_select %p331, %s328, 31
      %s333 = smul.addr %s330, 32
      %s334 = sadd.s32 %s332, %s333
      %s335 = smul.addr %s334, 8
      %s336 = scalar_lea.vmem %s7, %s335
      %s337 = smul.u32 32, %s23
      %v339 = vld [vmem:[%s321] sm:$0xff]
      %v340 = vld [vmem:[%s321 + $0x8] sm:$0xff]
      %v341 = vld [vmem:[%s321 + $0x10] sm:$0xff]
      %v342 = vld [vmem:[%s321 + $0x18] sm:$0xff]
      %v343 = vld [vmem:[%s321 + $0x20] sm:$0xff]
      %v344 = vld [vmem:[%s321 + $0x28] sm:$0xff]
      %v345 = vld [vmem:[%s321 + $0x30] sm:$0xff]
      %v346 = vld [vmem:[%s321 + $0x38] sm:$0xff]
      %v347 = vld [vmem:[%s321 + $0x40] sm:$0xff]
      %v348 = vld [vmem:[%s321 + $0x48] sm:$0xff]
      %v349 = vld [vmem:[%s321 + $0x50] sm:$0xff]
      %v350 = vld [vmem:[%s321 + $0x58] sm:$0xff]
      %v351 = vld [vmem:[%s321 + $0x60] sm:$0xff]
      %v352 = vld [vmem:[%s321 + $0x68] sm:$0xff]
      %v353 = vld [vmem:[%s321 + $0x70] sm:$0xff]
      %v354 = vld [vmem:[%s321 + $0x78] sm:$0xff]
      %v355 = vld [vmem:[%s321 + $0x80] sm:$0xff]
      %v356 = vld [vmem:[%s321 + $0x88] sm:$0xff]
      %v357 = vld [vmem:[%s321 + $0x90] sm:$0xff]
      %v358 = vld [vmem:[%s321 + $0x98] sm:$0xff]
      %v359 = vld [vmem:[%s321 + $0xa0] sm:$0xff]
      %v360 = vld [vmem:[%s321 + $0xa8] sm:$0xff]
      %v361 = vld [vmem:[%s321 + $0xb0] sm:$0xff]
      %v362 = vld [vmem:[%s321 + $0xb8] sm:$0xff]
      %v363 = vld [vmem:[%s321 + $0xc0] sm:$0xff]
      %v364 = vld [vmem:[%s321 + $0xc8] sm:$0xff]
      %v365 = vld [vmem:[%s321 + $0xd0] sm:$0xff]
      %v366 = vld [vmem:[%s321 + $0xd8] sm:$0xff]
      %v367 = vld [vmem:[%s321 + $0xe0] sm:$0xff]
      %v368 = vld [vmem:[%s321 + $0xe8] sm:$0xff]
      %v369 = vld [vmem:[%s321 + $0xf0] sm:$0xff]
      %v370 = vld [vmem:[%s321 + $0xf8] sm:$0xff]
      %v371 = vpack.c.bf16 %v340, %v339
      %v372 = vpack.c.bf16 %v342, %v341
      %v373 = vpack.c.bf16 %v344, %v343
      %v374 = vpack.c.bf16 %v346, %v345
      %v375 = vpack.c.bf16 %v348, %v347
      %v376 = vpack.c.bf16 %v350, %v349
      %v377 = vpack.c.bf16 %v352, %v351
      %v378 = vpack.c.bf16 %v354, %v353
      %v379 = vpack.c.bf16 %v356, %v355
      %v380 = vpack.c.bf16 %v358, %v357
      %v381 = vpack.c.bf16 %v360, %v359
      %v382 = vpack.c.bf16 %v362, %v361
      %v383 = vpack.c.bf16 %v364, %v363
      %v384 = vpack.c.bf16 %v366, %v365
      %v385 = vpack.c.bf16 %v368, %v367
      %v386 = vpack.c.bf16 %v370, %v369
      %v387 = vld [vmem:[%s327] sm:$0xff]
      %v388 = vld [vmem:[%s327 + $0x8] sm:$0xff]
      %v389 = vld [vmem:[%s327 + $0x10] sm:$0xff]
      %v390 = vld [vmem:[%s327 + $0x18] sm:$0xff]
      %v391 = vld [vmem:[%s327 + $0x20] sm:$0xff]
      %v392 = vld [vmem:[%s327 + $0x28] sm:$0xff]
      %v393 = vld [vmem:[%s327 + $0x30] sm:$0xff]
      %v394 = vld [vmem:[%s327 + $0x38] sm:$0xff]
      %v395 = vld [vmem:[%s327 + $0x40] sm:$0xff]
      %v396 = vld [vmem:[%s327 + $0x48] sm:$0xff]
      %v397 = vld [vmem:[%s327 + $0x50] sm:$0xff]
      %v398 = vld [vmem:[%s327 + $0x58] sm:$0xff]
      %v399 = vld [vmem:[%s327 + $0x60] sm:$0xff]
      %v400 = vld [vmem:[%s327 + $0x68] sm:$0xff]
      %v401 = vld [vmem:[%s327 + $0x70] sm:$0xff]
      %v402 = vld [vmem:[%s327 + $0x78] sm:$0xff]
      %v403 = vld [vmem:[%s327 + $0x80] sm:$0xff]
      %v404 = vld [vmem:[%s327 + $0x88] sm:$0xff]
      %v405 = vld [vmem:[%s327 + $0x90] sm:$0xff]
      %v406 = vld [vmem:[%s327 + $0x98] sm:$0xff]
      %v407 = vld [vmem:[%s327 + $0xa0] sm:$0xff]
      %v408 = vld [vmem:[%s327 + $0xa8] sm:$0xff]
      %v409 = vld [vmem:[%s327 + $0xb0] sm:$0xff]
      %v410 = vld [vmem:[%s327 + $0xb8] sm:$0xff]
      %v411 = vld [vmem:[%s327 + $0xc0] sm:$0xff]
      %v412 = vld [vmem:[%s327 + $0xc8] sm:$0xff]
      %v413 = vld [vmem:[%s327 + $0xd0] sm:$0xff]
      %v414 = vld [vmem:[%s327 + $0xd8] sm:$0xff]
      %v415 = vld [vmem:[%s327 + $0xe0] sm:$0xff]
      %v416 = vld [vmem:[%s327 + $0xe8] sm:$0xff]
      %v417 = vld [vmem:[%s327 + $0xf0] sm:$0xff]
      %v418 = vld [vmem:[%s327 + $0xf8] sm:$0xff]
      %v419 = vpack.c.bf16 %v388, %v387
      %v420 = vpack.c.bf16 %v390, %v389
      %v421 = vpack.c.bf16 %v392, %v391
      %v422 = vpack.c.bf16 %v394, %v393
      %v423 = vpack.c.bf16 %v396, %v395
      %v424 = vpack.c.bf16 %v398, %v397
      %v425 = vpack.c.bf16 %v400, %v399
      %v426 = vpack.c.bf16 %v402, %v401
      %v427 = vpack.c.bf16 %v404, %v403
      %v428 = vpack.c.bf16 %v406, %v405
      %v429 = vpack.c.bf16 %v408, %v407
      %v430 = vpack.c.bf16 %v410, %v409
      %v431 = vpack.c.bf16 %v412, %v411
      %v432 = vpack.c.bf16 %v414, %v413
      %v433 = vpack.c.bf16 %v416, %v415
      %v434 = vpack.c.bf16 %v418, %v417
      %v435 = vld [vmem:[%s2] sm:$0xf]
      %v436 = vld [vmem:[%s2 + $0x4] sm:$0xf]
      %v437 = vld [vmem:[%s2 + $0x8] sm:$0xf]
      %v438 = vld [vmem:[%s2 + $0xc] sm:$0xf]
      %v443 = vunpack.c.l.b16 %v435
      %v444 = vunpack.c.l.b16 %v436
      %v445 = vunpack.c.l.b16 %v437
      %v446 = vunpack.c.l.b16 %v438
      %v447 = vpack.c.b16 %v444, %v443
      %v448 = vpack.c.b16 %v446, %v445
      %vm451 = vcmask 261120
      %v453 = vsel %vm451, %v371, 0
      %v456 = vsel %vm451, %v372, 0
      %v459 = vsel %vm451, %v373, 0
      %v462 = vsel %vm451, %v374, 0
      %v465 = vsel %vm451, %v375, 0
      %v468 = vsel %vm451, %v376, 0
      %v471 = vsel %vm451, %v377, 0
      %v474 = vsel %vm451, %v378, 0
      %v477 = vsel %vm451, %v379, 0
      %v480 = vsel %vm451, %v380, 0
      %v483 = vsel %vm451, %v381, 0
      %v486 = vsel %vm451, %v382, 0
      %v489 = vsel %vm451, %v383, 0
      %v492 = vsel %vm451, %v384, 0
      %v495 = vsel %vm451, %v385, 0
      %v498 = vsel %vm451, %v386, 0
      %500 = vmatprep.subr.bf16.mxu0 0
      %501 = vmatpush1.bf16.msra.mxu0 %v447
      %502 = vmatprep.subr.bf16.mxu0 0
      %503 = vmatpush1.bf16.msra.mxu0 %v448
      %504 = vmatprep.subr.bf16.mxu0 0
      %505 = vmatpush1.bf16.msra.mxu0 0
      %506 = vmatprep.subr.bf16.mxu0 0
      %507 = vmatpush1.bf16.msra.mxu0 0
      %508 = vmatprep.subr.bf16.mxu0 0
      %509 = vmatpush1.bf16.msra.mxu0 0
      %510 = vmatprep.subr.bf16.mxu0 0
      %511 = vmatpush1.bf16.msra.mxu0 0
      %512 = vmatprep.subr.bf16.mxu0 0
      %513 = vmatpush1.bf16.msra.mxu0 0
      %514 = vmatprep.subr.bf16.mxu0 0
      %515 = vmatpush1.bf16.msra.mxu0 0
      %516 = vmatprep.subr.bf16.mxu0 0
      %517 = vmatpush1.bf16.msra.mxu0 0
      %518 = vmatprep.subr.bf16.mxu0 0
      %519 = vmatpush1.bf16.msra.mxu0 0
      %520 = vmatprep.subr.bf16.mxu0 0
      %521 = vmatpush1.bf16.msra.mxu0 0
      %522 = vmatprep.subr.bf16.mxu0 0
      %523 = vmatpush1.bf16.msra.mxu0 0
      %524 = vmatprep.subr.bf16.mxu0 0
      %525 = vmatpush1.bf16.msra.mxu0 0
      %526 = vmatprep.subr.bf16.mxu0 0
      %527 = vmatpush1.bf16.msra.mxu0 0
      %528 = vmatprep.subr.bf16.mxu0 0
      %529 = vmatpush1.bf16.msra.mxu0 0
      %530 = vmatprep.subr.bf16.mxu0 0
      %531 = vmatpush1.bf16.msra.mxu0 0
      %532 = vmatprep.mubr.bf16.mxu0 0
      %533 = vmatmul.mubr.bf16.gmra.mrb[0].mxu0 %v453
      %v534 = vpop.f32.mrb[0].mxu0
      %v535 = vadd.f32 0.0, %v534
      %v536 = vpop.f32.mrb[0].mxu0
      %v537 = vpop.f32.mrb[0].mxu0
      %v538 = vadd.f32 0.0, %v537
      %v539 = vpop.f32.mrb[0].mxu0
      %540 = vmatprep.mubr.bf16.mxu0 0
      %541 = vmatmul.mubr.bf16.gmra.mrb[0].mxu0 %v456
      %v542 = vpop.f32.mrb[0].mxu0
      %v543 = vadd.f32 0.0, %v542
      %v544 = vpop.f32.mrb[0].mxu0
      %v545 = vpop.f32.mrb[0].mxu0
      %v546 = vadd.f32 0.0, %v545
      %v547 = vpop.f32.mrb[0].mxu0
      %548 = vmatprep.mubr.bf16.mxu0 0
      %549 = vmatmul.mubr.bf16.gmra.mrb[0].mxu0 %v459
      %v550 = vpop.f32.mrb[0].mxu0
      %v551 = vadd.f32 0.0, %v550
      %v552 = vpop.f32.mrb[0].mxu0
      %v553 = vpop.f32.mrb[0].mxu0
      %v554 = vadd.f32 0.0, %v553
      %v555 = vpop.f32.mrb[0].mxu0
      %556 = vmatprep.mubr.bf16.mxu0 0
      %557 = vmatmul.mubr.bf16.gmra.mrb[0].mxu0 %v462
      %v558 = vpop.f32.mrb[0].mxu0
      %v559 = vadd.f32 0.0, %v558
      %v560 = vpop.f32.mrb[0].mxu0
      %v561 = vpop.f32.mrb[0].mxu0
      %v562 = vadd.f32 0.0, %v561
      %v563 = vpop.f32.mrb[0].mxu0
      %564 = vmatprep.mubr.bf16.mxu0 0
      %565 = vmatmul.mubr.bf16.gmra.mrb[0].mxu0 %v465
      %v566 = vpop.f32.mrb[0].mxu0
      %v567 = vadd.f32 0.0, %v566
      %v568 = vpop.f32.mrb[0].mxu0
      %v569 = vpop.f32.mrb[0].mxu0
      %v570 = vadd.f32 0.0, %v569
      %v571 = vpop.f32.mrb[0].mxu0
      %572 = vmatprep.mubr.bf16.mxu0 0
      %573 = vmatmul.mubr.bf16.gmra.mrb[0].mxu0 %v468
      %v574 = vpop.f32.mrb[0].mxu0
      %v575 = vadd.f32 0.0, %v574
      %v576 = vpop.f32.mrb[0].mxu0
      %v577 = vpop.f32.mrb[0].mxu0
      %v578 = vadd.f32 0.0, %v577
      %v579 = vpop.f32.mrb[0].mxu0
      %580 = vmatprep.mubr.bf16.mxu0 0
      %581 = vmatmul.mubr.bf16.gmra.mrb[0].mxu0 %v471
      %v582 = vpop.f32.mrb[0].mxu0
      %v583 = vadd.f32 0.0, %v582
      %v584 = vpop.f32.mrb[0].mxu0
      %v585 = vpop.f32.mrb[0].mxu0
      %v586 = vadd.f32 0.0, %v585
      %v587 = vpop.f32.mrb[0].mxu0
      %588 = vmatprep.mubr.bf16.mxu0 0
      %589 = vmatmul.mubr.bf16.gmra.mrb[0].mxu0 %v474
      %v590 = vpop.f32.mrb[0].mxu0
      %v591 = vadd.f32 0.0, %v590
      %v592 = vpop.f32.mrb[0].mxu0
      %v593 = vpop.f32.mrb[0].mxu0
      %v594 = vadd.f32 0.0, %v593
      %v595 = vpop.f32.mrb[0].mxu0
      %596 = vmatprep.mubr.bf16.mxu0 0
      %597 = vmatmul.mubr.bf16.gmra.mrb[0].mxu0 %v477
      %v598 = vpop.f32.mrb[0].mxu0
      %v599 = vadd.f32 0.0, %v598
      %v600 = vpop.f32.mrb[0].mxu0
      %v601 = vpop.f32.mrb[0].mxu0
      %v602 = vadd.f32 0.0, %v601
      %v603 = vpop.f32.mrb[0].mxu0
      %604 = vmatprep.mubr.bf16.mxu0 0
      %605 = vmatmul.mubr.bf16.gmra.mrb[0].mxu0 %v480
      %v606 = vpop.f32.mrb[0].mxu0
      %v607 = vadd.f32 0.0, %v606
      %v608 = vpop.f32.mrb[0].mxu0
      %v609 = vpop.f32.mrb[0].mxu0
      %v610 = vadd.f32 0.0, %v609
      %v611 = vpop.f32.mrb[0].mxu0
      %612 = vmatprep.mubr.bf16.mxu0 0
      %613 = vmatmul.mubr.bf16.gmra.mrb[0].mxu0 %v483
      %v614 = vpop.f32.mrb[0].mxu0
      %v615 = vadd.f32 0.0, %v614
      %v616 = vpop.f32.mrb[0].mxu0
      %v617 = vpop.f32.mrb[0].mxu0
      %v618 = vadd.f32 0.0, %v617
      %v619 = vpop.f32.mrb[0].mxu0
      %620 = vmatprep.mubr.bf16.mxu0 0
      %621 = vmatmul.mubr.bf16.gmra.mrb[0].mxu0 %v486
      %v622 = vpop.f32.mrb[0].mxu0
      %v623 = vadd.f32 0.0, %v622
      %v624 = vpop.f32.mrb[0].mxu0
      %v625 = vpop.f32.mrb[0].mxu0
      %v626 = vadd.f32 0.0, %v625
      %v627 = vpop.f32.mrb[0].mxu0
      %628 = vmatprep.mubr.bf16.mxu0 0
      %629 = vmatmul.mubr.bf16.gmra.mrb[0].mxu0 %v489
      %v630 = vpop.f32.mrb[0].mxu0
      %v631 = vadd.f32 0.0, %v630
      %v632 = vpop.f32.mrb[0].mxu0
      %v633 = vpop.f32.mrb[0].mxu0
      %v634 = vadd.f32 0.0, %v633
      %v635 = vpop.f32.mrb[0].mxu0
      %636 = vmatprep.mubr.bf16.mxu0 0
      %637 = vmatmul.mubr.bf16.gmra.mrb[0].mxu0 %v492
      %v638 = vpop.f32.mrb[0].mxu0
      %v639 = vadd.f32 0.0, %v638
      %v640 = vpop.f32.mrb[0].mxu0
      %v641 = vpop.f32.mrb[0].mxu0
      %v642 = vadd.f32 0.0, %v641
      %v643 = vpop.f32.mrb[0].mxu0
      %644 = vmatprep.mubr.bf16.mxu0 0
      %645 = vmatmul.mubr.bf16.gmra.mrb[0].mxu0 %v495
      %v646 = vpop.f32.mrb[0].mxu0
      %v647 = vadd.f32 0.0, %v646
      %v648 = vpop.f32.mrb[0].mxu0
      %v649 = vpop.f32.mrb[0].mxu0
      %v650 = vadd.f32 0.0, %v649
      %v651 = vpop.f32.mrb[0].mxu0
      %652 = vmatprep.mubr.bf16.mxu0 0
      %653 = vmatmul.mubr.bf16.gmra.mrb[0].mxu0 %v498
      %v654 = vpop.f32.mrb[0].mxu0
      %v655 = vadd.f32 0.0, %v654
      %v656 = vpop.f32.mrb[0].mxu0
      %v657 = vpop.f32.mrb[0].mxu0
      %v658 = vadd.f32 0.0, %v657
      %v659 = vpop.f32.mrb[0].mxu0
      %660 = vdwg.mxu0
      %v661 = vld [vmem:[%s3] sm:$0xf]
      %v662 = vld [vmem:[%s3 + $0x4] sm:$0xf]
      %v663 = vld [vmem:[%s3 + $0x8] sm:$0xf]
      %v664 = vld [vmem:[%s3 + $0xc] sm:$0xf]
      %v669 = vunpack.c.l.b16 %v661
      %v670 = vunpack.c.l.b16 %v662
      %v671 = vunpack.c.l.b16 %v663
      %v672 = vunpack.c.l.b16 %v664
      %v673 = vpack.c.b16 %v670, %v669
      %v674 = vpack.c.b16 %v672, %v671
      %v678 = vsel %vm451, %v419, 0
      %v681 = vsel %vm451, %v420, 0
      %v684 = vsel %vm451, %v421, 0
      %v687 = vsel %vm451, %v422, 0
      %v690 = vsel %vm451, %v423, 0
      %v693 = vsel %vm451, %v424, 0
      %v696 = vsel %vm451, %v425, 0
      %v699 = vsel %vm451, %v426, 0
      %v702 = vsel %vm451, %v427, 0
      %v705 = vsel %vm451, %v428, 0
      %v708 = vsel %vm451, %v429, 0
      %v711 = vsel %vm451, %v430, 0
      %v714 = vsel %vm451, %v431, 0
      %v717 = vsel %vm451, %v432, 0
      %v720 = vsel %vm451, %v433, 0
      %v723 = vsel %vm451, %v434, 0
      %725 = vmatprep.subr.bf16.mxu0 0
      %726 = vmatpush1.bf16.msra.mxu0 %v673
      %727 = vmatprep.subr.bf16.mxu0 0
      %728 = vmatpush1.bf16.msra.mxu0 %v674
      %729 = vmatprep.subr.bf16.mxu0 0
      %730 = vmatpush1.bf16.msra.mxu0 0
      %731 = vmatprep.subr.bf16.mxu0 0
      %732 = vmatpush1.bf16.msra.mxu0 0
      %733 = vmatprep.subr.bf16.mxu0 0
      %734 = vmatpush1.bf16.msra.mxu0 0
      %735 = vmatprep.subr.bf16.mxu0 0
      %736 = vmatpush1.bf16.msra.mxu0 0
      %737 = vmatprep.subr.bf16.mxu0 0
      %738 = vmatpush1.bf16.msra.mxu0 0
      %739 = vmatprep.subr.bf16.mxu0 0
      %740 = vmatpush1.bf16.msra.mxu0 0
      %741 = vmatprep.subr.bf16.mxu0 0
      %742 = vmatpush1.bf16.msra.mxu0 0
      %743 = vmatprep.subr.bf16.mxu0 0
      %744 = vmatpush1.bf16.msra.mxu0 0
      %745 = vmatprep.subr.bf16.mxu0 0
      %746 = vmatpush1.bf16.msra.mxu0 0
      %747 = vmatprep.subr.bf16.mxu0 0
      %748 = vmatpush1.bf16.msra.mxu0 0
      %749 = vmatprep.subr.bf16.mxu0 0
      %750 = vmatpush1.bf16.msra.mxu0 0
      %751 = vmatprep.subr.bf16.mxu0 0
      %752 = vmatpush1.bf16.msra.mxu0 0
      %753 = vmatprep.subr.bf16.mxu0 0
      %754 = vmatpush1.bf16.msra.mxu0 0
      %755 = vmatprep.subr.bf16.mxu0 0
      %756 = vmatpush1.bf16.msra.mxu0 0
      %757 = vmatprep.mubr.bf16.mxu0 0
      %758 = vmatmul.mubr.bf16.gmra.mrb[0].mxu0 %v678
      %v759 = vpop.f32.mrb[0].mxu0
      %v760 = vadd.f32 0.0, %v759
      %v761 = vpop.f32.mrb[0].mxu0
      %v762 = vpop.f32.mrb[0].mxu0
      %v763 = vadd.f32 0.0, %v762
      %v764 = vpop.f32.mrb[0].mxu0
      %765 = vmatprep.mubr.bf16.mxu0 0
      %766 = vmatmul.mubr.bf16.gmra.mrb[0].mxu0 %v681
      %v767 = vpop.f32.mrb[0].mxu0
      %v768 = vadd.f32 0.0, %v767
      %v769 = vpop.f32.mrb[0].mxu0
      %v770 = vpop.f32.mrb[0].mxu0
      %v771 = vadd.f32 0.0, %v770
      %v772 = vpop.f32.mrb[0].mxu0
      %773 = vmatprep.mubr.bf16.mxu0 0
      %774 = vmatmul.mubr.bf16.gmra.mrb[0].mxu0 %v684
      %v775 = vpop.f32.mrb[0].mxu0
      %v776 = vadd.f32 0.0, %v775
      %v777 = vpop.f32.mrb[0].mxu0
      %v778 = vpop.f32.mrb[0].mxu0
      %v779 = vadd.f32 0.0, %v778
      %v780 = vpop.f32.mrb[0].mxu0
      %781 = vmatprep.mubr.bf16.mxu0 0
      %782 = vmatmul.mubr.bf16.gmra.mrb[0].mxu0 %v687
      %v783 = vpop.f32.mrb[0].mxu0
      %v784 = vadd.f32 0.0, %v783
      %v785 = vpop.f32.mrb[0].mxu0
      %v786 = vpop.f32.mrb[0].mxu0
      %v787 = vadd.f32 0.0, %v786
      %v788 = vpop.f32.mrb[0].mxu0
      %789 = vmatprep.mubr.bf16.mxu0 0
      %790 = vmatmul.mubr.bf16.gmra.mrb[0].mxu0 %v690
      %v791 = vpop.f32.mrb[0].mxu0
      %v792 = vadd.f32 0.0, %v791
      %v793 = vpop.f32.mrb[0].mxu0
      %v794 = vpop.f32.mrb[0].mxu0
      %v795 = vadd.f32 0.0, %v794
      %v796 = vpop.f32.mrb[0].mxu0
      %797 = vmatprep.mubr.bf16.mxu0 0
      %798 = vmatmul.mubr.bf16.gmra.mrb[0].mxu0 %v693
      %v799 = vpop.f32.mrb[0].mxu0
      %v800 = vadd.f32 0.0, %v799
      %v801 = vpop.f32.mrb[0].mxu0
      %v802 = vpop.f32.mrb[0].mxu0
      %v803 = vadd.f32 0.0, %v802
      %v804 = vpop.f32.mrb[0].mxu0
      %805 = vmatprep.mubr.bf16.mxu0 0
      %806 = vmatmul.mubr.bf16.gmra.mrb[0].mxu0 %v696
      %v807 = vpop.f32.mrb[0].mxu0
      %v808 = vadd.f32 0.0, %v807
      %v809 = vpop.f32.mrb[0].mxu0
      %v810 = vpop.f32.mrb[0].mxu0
      %v811 = vadd.f32 0.0, %v810
      %v812 = vpop.f32.mrb[0].mxu0
      %813 = vmatprep.mubr.bf16.mxu0 0
      %814 = vmatmul.mubr.bf16.gmra.mrb[0].mxu0 %v699
      %v815 = vpop.f32.mrb[0].mxu0
      %v816 = vadd.f32 0.0, %v815
      %v817 = vpop.f32.mrb[0].mxu0
      %v818 = vpop.f32.mrb[0].mxu0
      %v819 = vadd.f32 0.0, %v818
      %v820 = vpop.f32.mrb[0].mxu0
      %821 = vmatprep.mubr.bf16.mxu0 0
      %822 = vmatmul.mubr.bf16.gmra.mrb[0].mxu0 %v702
      %v823 = vpop.f32.mrb[0].mxu0
      %v824 = vadd.f32 0.0, %v823
      %v825 = vpop.f32.mrb[0].mxu0
      %v826 = vpop.f32.mrb[0].mxu0
      %v827 = vadd.f32 0.0, %v826
      %v828 = vpop.f32.mrb[0].mxu0
      %829 = vmatprep.mubr.bf16.mxu0 0
      %830 = vmatmul.mubr.bf16.gmra.mrb[0].mxu0 %v705
      %v831 = vpop.f32.mrb[0].mxu0
      %v832 = vadd.f32 0.0, %v831
      %v833 = vpop.f32.mrb[0].mxu0
      %v834 = vpop.f32.mrb[0].mxu0
      %v835 = vadd.f32 0.0, %v834
      %v836 = vpop.f32.mrb[0].mxu0
      %837 = vmatprep.mubr.bf16.mxu0 0
      %838 = vmatmul.mubr.bf16.gmra.mrb[0].mxu0 %v708
      %v839 = vpop.f32.mrb[0].mxu0
      %v840 = vadd.f32 0.0, %v839
      %v841 = vpop.f32.mrb[0].mxu0
      %v842 = vpop.f32.mrb[0].mxu0
      %v843 = vadd.f32 0.0, %v842
      %v844 = vpop.f32.mrb[0].mxu0
      %845 = vmatprep.mubr.bf16.mxu0 0
      %846 = vmatmul.mubr.bf16.gmra.mrb[0].mxu0 %v711
      %v847 = vpop.f32.mrb[0].mxu0
      %v848 = vadd.f32 0.0, %v847
      %v849 = vpop.f32.mrb[0].mxu0
      %v850 = vpop.f32.mrb[0].mxu0
      %v851 = vadd.f32 0.0, %v850
      %v852 = vpop.f32.mrb[0].mxu0
      %853 = vmatprep.mubr.bf16.mxu0 0
      %854 = vmatmul.mubr.bf16.gmra.mrb[0].mxu0 %v714
      %v855 = vpop.f32.mrb[0].mxu0
      %v856 = vadd.f32 0.0, %v855
      %v857 = vpop.f32.mrb[0].mxu0
      %v858 = vpop.f32.mrb[0].mxu0
      %v859 = vadd.f32 0.0, %v858
      %v860 = vpop.f32.mrb[0].mxu0
      %861 = vmatprep.mubr.bf16.mxu0 0
      %862 = vmatmul.mubr.bf16.gmra.mrb[0].mxu0 %v717
      %v863 = vpop.f32.mrb[0].mxu0
      %v864 = vadd.f32 0.0, %v863
      %v865 = vpop.f32.mrb[0].mxu0
      %v866 = vpop.f32.mrb[0].mxu0
      %v867 = vadd.f32 0.0, %v866
      %v868 = vpop.f32.mrb[0].mxu0
      %869 = vmatprep.mubr.bf16.mxu0 0
      %870 = vmatmul.mubr.bf16.gmra.mrb[0].mxu0 %v720
      %v871 = vpop.f32.mrb[0].mxu0
      %v872 = vadd.f32 0.0, %v871
      %v873 = vpop.f32.mrb[0].mxu0
      %v874 = vpop.f32.mrb[0].mxu0
      %v875 = vadd.f32 0.0, %v874
      %v876 = vpop.f32.mrb[0].mxu0
      %877 = vmatprep.mubr.bf16.mxu0 0
      %878 = vmatmul.mubr.bf16.gmra.mrb[0].mxu0 %v723
      %v879 = vpop.f32.mrb[0].mxu0
      %v880 = vadd.f32 0.0, %v879
      %v881 = vpop.f32.mrb[0].mxu0
      %v882 = vpop.f32.mrb[0].mxu0
      %v883 = vadd.f32 0.0, %v882
      %v884 = vpop.f32.mrb[0].mxu0
      %885 = vdwg.mxu0
      %v886 = vld [vmem:[%s4] sm:$0xf]
      %v887 = vld [vmem:[%s4 + $0x4] sm:$0xf]
      %v888 = vld [vmem:[%s4 + $0x8] sm:$0xf]
      %v889 = vld [vmem:[%s4 + $0xc] sm:$0xf]
      %v894 = vunpack.c.l.b16 %v886
      %v895 = vunpack.c.l.b16 %v887
      %v896 = vunpack.c.l.b16 %v888
      %v897 = vunpack.c.l.b16 %v889
      %v898 = vpack.c.b16 %v895, %v894
      %v899 = vpack.c.b16 %v897, %v896
      %902 = vmatprep.subr.bf16.mxu0 0
      %903 = vmatpush1.bf16.msra.mxu0 %v898
      %904 = vmatprep.subr.bf16.mxu0 0
      %905 = vmatpush1.bf16.msra.mxu0 %v899
      %906 = vmatprep.subr.bf16.mxu0 0
      %907 = vmatpush1.bf16.msra.mxu0 0
      %908 = vmatprep.subr.bf16.mxu0 0
      %909 = vmatpush1.bf16.msra.mxu0 0
      %910 = vmatprep.subr.bf16.mxu0 0
      %911 = vmatpush1.bf16.msra.mxu0 0
      %912 = vmatprep.subr.bf16.mxu0 0
      %913 = vmatpush1.bf16.msra.mxu0 0
      %914 = vmatprep.subr.bf16.mxu0 0
      %915 = vmatpush1.bf16.msra.mxu0 0
      %916 = vmatprep.subr.bf16.mxu0 0
      %917 = vmatpush1.bf16.msra.mxu0 0
      %918 = vmatprep.subr.bf16.mxu0 0
      %919 = vmatpush1.bf16.msra.mxu0 0
      %920 = vmatprep.subr.bf16.mxu0 0
      %921 = vmatpush1.bf16.msra.mxu0 0
      %922 = vmatprep.subr.bf16.mxu0 0
      %923 = vmatpush1.bf16.msra.mxu0 0
      %924 = vmatprep.subr.bf16.mxu0 0
      %925 = vmatpush1.bf16.msra.mxu0 0
      %926 = vmatprep.subr.bf16.mxu0 0
      %927 = vmatpush1.bf16.msra.mxu0 0
      %928 = vmatprep.subr.bf16.mxu0 0
      %929 = vmatpush1.bf16.msra.mxu0 0
      %930 = vmatprep.subr.bf16.mxu0 0
      %931 = vmatpush1.bf16.msra.mxu0 0
      %932 = vmatprep.subr.bf16.mxu0 0
      %933 = vmatpush1.bf16.msra.mxu0 0
      %934 = vmatprep.mubr.bf16.mxu0 0
      %935 = vmatmul.mubr.bf16.gmra.mrb[0].mxu0 %v678
      %v936 = vpop.f32.mrb[0].mxu0
      %v937 = vadd.f32 0.0, %v936
      %v938 = vpop.f32.mrb[0].mxu0
      %v939 = vpop.f32.mrb[0].mxu0
      %v940 = vadd.f32 0.0, %v939
      %v941 = vpop.f32.mrb[0].mxu0
      %942 = vmatprep.mubr.bf16.mxu0 0
      %943 = vmatmul.mubr.bf16.gmra.mrb[0].mxu0 %v681
      %v944 = vpop.f32.mrb[0].mxu0
      %v945 = vadd.f32 0.0, %v944
      %v946 = vpop.f32.mrb[0].mxu0
      %v947 = vpop.f32.mrb[0].mxu0
      %v948 = vadd.f32 0.0, %v947
      %v949 = vpop.f32.mrb[0].mxu0
      %950 = vmatprep.mubr.bf16.mxu0 0
      %951 = vmatmul.mubr.bf16.gmra.mrb[0].mxu0 %v684
      %v952 = vpop.f32.mrb[0].mxu0
      %v953 = vadd.f32 0.0, %v952
      %v954 = vpop.f32.mrb[0].mxu0
      %v955 = vpop.f32.mrb[0].mxu0
      %v956 = vadd.f32 0.0, %v955
      %v957 = vpop.f32.mrb[0].mxu0
      %958 = vmatprep.mubr.bf16.mxu0 0
      %959 = vmatmul.mubr.bf16.gmra.mrb[0].mxu0 %v687
      %v960 = vpop.f32.mrb[0].mxu0
      %v961 = vadd.f32 0.0, %v960
      %v962 = vpop.f32.mrb[0].mxu0
      %v963 = vpop.f32.mrb[0].mxu0
      %v964 = vadd.f32 0.0, %v963
      %v965 = vpop.f32.mrb[0].mxu0
      %966 = vmatprep.mubr.bf16.mxu0 0
      %967 = vmatmul.mubr.bf16.gmra.mrb[0].mxu0 %v690
      %v968 = vpop.f32.mrb[0].mxu0
      %v969 = vadd.f32 0.0, %v968
      %v970 = vpop.f32.mrb[0].mxu0
      %v971 = vpop.f32.mrb[0].mxu0
      %v972 = vadd.f32 0.0, %v971
      %v973 = vpop.f32.mrb[0].mxu0
      %974 = vmatprep.mubr.bf16.mxu0 0
      %975 = vmatmul.mubr.bf16.gmra.mrb[0].mxu0 %v693
      %v976 = vpop.f32.mrb[0].mxu0
      %v977 = vadd.f32 0.0, %v976
      %v978 = vpop.f32.mrb[0].mxu0
      %v979 = vpop.f32.mrb[0].mxu0
      %v980 = vadd.f32 0.0, %v979
      %v981 = vpop.f32.mrb[0].mxu0
      %982 = vmatprep.mubr.bf16.mxu0 0
      %983 = vmatmul.mubr.bf16.gmra.mrb[0].mxu0 %v696
      %v984 = vpop.f32.mrb[0].mxu0
      %v985 = vadd.f32 0.0, %v984
      %v986 = vpop.f32.mrb[0].mxu0
      %v987 = vpop.f32.mrb[0].mxu0
      %v988 = vadd.f32 0.0, %v987
      %v989 = vpop.f32.mrb[0].mxu0
      %990 = vmatprep.mubr.bf16.mxu0 0
      %991 = vmatmul.mubr.bf16.gmra.mrb[0].mxu0 %v699
      %v992 = vpop.f32.mrb[0].mxu0
      %v993 = vadd.f32 0.0, %v992
      %v994 = vpop.f32.mrb[0].mxu0
      %v995 = vpop.f32.mrb[0].mxu0
      %v996 = vadd.f32 0.0, %v995
      %v997 = vpop.f32.mrb[0].mxu0
      %998 = vmatprep.mubr.bf16.mxu0 0
      %999 = vmatmul.mubr.bf16.gmra.mrb[0].mxu0 %v702
      %v1000 = vpop.f32.mrb[0].mxu0
      %v1001 = vadd.f32 0.0, %v1000
      %v1002 = vpop.f32.mrb[0].mxu0
      %v1003 = vpop.f32.mrb[0].mxu0
      %v1004 = vadd.f32 0.0, %v1003
      %v1005 = vpop.f32.mrb[0].mxu0
      %1006 = vmatprep.mubr.bf16.mxu0 0
      %1007 = vmatmul.mubr.bf16.gmra.mrb[0].mxu0 %v705
      %v1008 = vpop.f32.mrb[0].mxu0
      %v1009 = vadd.f32 0.0, %v1008
      %v1010 = vpop.f32.mrb[0].mxu0
      %v1011 = vpop.f32.mrb[0].mxu0
      %v1012 = vadd.f32 0.0, %v1011
      %v1013 = vpop.f32.mrb[0].mxu0
      %1014 = vmatprep.mubr.bf16.mxu0 0
      %1015 = vmatmul.mubr.bf16.gmra.mrb[0].mxu0 %v708
      %v1016 = vpop.f32.mrb[0].mxu0
      %v1017 = vadd.f32 0.0, %v1016
      %v1018 = vpop.f32.mrb[0].mxu0
      %v1019 = vpop.f32.mrb[0].mxu0
      %v1020 = vadd.f32 0.0, %v1019
      %v1021 = vpop.f32.mrb[0].mxu0
      %1022 = vmatprep.mubr.bf16.mxu0 0
      %1023 = vmatmul.mubr.bf16.gmra.mrb[0].mxu0 %v711
      %v1024 = vpop.f32.mrb[0].mxu0
      %v1025 = vadd.f32 0.0, %v1024
      %v1026 = vpop.f32.mrb[0].mxu0
      %v1027 = vpop.f32.mrb[0].mxu0
      %v1028 = vadd.f32 0.0, %v1027
      %v1029 = vpop.f32.mrb[0].mxu0
      %1030 = vmatprep.mubr.bf16.mxu0 0
      %1031 = vmatmul.mubr.bf16.gmra.mrb[0].mxu0 %v714
      %v1032 = vpop.f32.mrb[0].mxu0
      %v1033 = vadd.f32 0.0, %v1032
      %v1034 = vpop.f32.mrb[0].mxu0
      %v1035 = vpop.f32.mrb[0].mxu0
      %v1036 = vadd.f32 0.0, %v1035
      %v1037 = vpop.f32.mrb[0].mxu0
      %1038 = vmatprep.mubr.bf16.mxu0 0
      %1039 = vmatmul.mubr.bf16.gmra.mrb[0].mxu0 %v717
      %v1040 = vpop.f32.mrb[0].mxu0
      %v1041 = vadd.f32 0.0, %v1040
      %v1042 = vpop.f32.mrb[0].mxu0
      %v1043 = vpop.f32.mrb[0].mxu0
      %v1044 = vadd.f32 0.0, %v1043
      %v1045 = vpop.f32.mrb[0].mxu0
      %1046 = vmatprep.mubr.bf16.mxu0 0
      %1047 = vmatmul.mubr.bf16.gmra.mrb[0].mxu0 %v720
      %v1048 = vpop.f32.mrb[0].mxu0
      %v1049 = vadd.f32 0.0, %v1048
      %v1050 = vpop.f32.mrb[0].mxu0
      %v1051 = vpop.f32.mrb[0].mxu0
      %v1052 = vadd.f32 0.0, %v1051
      %v1053 = vpop.f32.mrb[0].mxu0
      %1054 = vmatprep.mubr.bf16.mxu0 0
      %1055 = vmatmul.mubr.bf16.gmra.mrb[0].mxu0 %v723
      %v1056 = vpop.f32.mrb[0].mxu0
      %v1057 = vadd.f32 0.0, %v1056
      %v1058 = vpop.f32.mrb[0].mxu0
      %v1059 = vpop.f32.mrb[0].mxu0
      %v1060 = vadd.f32 0.0, %v1059
      %v1061 = vpop.f32.mrb[0].mxu0
      %1062 = vdwg.mxu0
      %v1063 = vpack.c.bf16 %v538, %v535
      %v1064 = vpack.c.bf16 %v546, %v543
      %v1065 = vpack.c.bf16 %v554, %v551
      %v1066 = vpack.c.bf16 %v562, %v559
      %v1067 = vpack.c.bf16 %v570, %v567
      %v1068 = vpack.c.bf16 %v578, %v575
      %v1069 = vpack.c.bf16 %v586, %v583
      %v1070 = vpack.c.bf16 %v594, %v591
      %v1071 = vpack.c.bf16 %v602, %v599
      %v1072 = vpack.c.bf16 %v610, %v607
      %v1073 = vpack.c.bf16 %v618, %v615
      %v1074 = vpack.c.bf16 %v626, %v623
      %v1075 = vpack.c.bf16 %v634, %v631
      %v1076 = vpack.c.bf16 %v642, %v639
      %v1077 = vpack.c.bf16 %v650, %v647
      %v1078 = vpack.c.bf16 %v658, %v655
      %v1079 = vpack.c.bf16 %v763, %v760
      %v1080 = vpack.c.bf16 %v771, %v768
      %v1081 = vpack.c.bf16 %v779, %v776
      %v1082 = vpack.c.bf16 %v787, %v784
      %v1083 = vpack.c.bf16 %v795, %v792
      %v1084 = vpack.c.bf16 %v803, %v800
      %v1085 = vpack.c.bf16 %v811, %v808
      %v1086 = vpack.c.bf16 %v819, %v816
      %v1087 = vpack.c.bf16 %v827, %v824
      %v1088 = vpack.c.bf16 %v835, %v832
      %v1089 = vpack.c.bf16 %v843, %v840
      %v1090 = vpack.c.bf16 %v851, %v848
      %v1091 = vpack.c.bf16 %v859, %v856
      %v1092 = vpack.c.bf16 %v867, %v864
      %v1093 = vpack.c.bf16 %v875, %v872
      %v1094 = vpack.c.bf16 %v883, %v880
      %v1096 = vsel %vm451, %v1063, 0
      %v1099 = vsel %vm451, %v1064, 0
      %v1102 = vsel %vm451, %v1065, 0
      %v1105 = vsel %vm451, %v1066, 0
      %v1108 = vsel %vm451, %v1067, 0
      %v1111 = vsel %vm451, %v1068, 0
      %v1114 = vsel %vm451, %v1069, 0
      %v1117 = vsel %vm451, %v1070, 0
      %v1120 = vsel %vm451, %v1071, 0
      %v1123 = vsel %vm451, %v1072, 0
      %v1126 = vsel %vm451, %v1073, 0
      %v1129 = vsel %vm451, %v1074, 0
      %v1132 = vsel %vm451, %v1075, 0
      %v1135 = vsel %vm451, %v1076, 0
      %v1138 = vsel %vm451, %v1077, 0
      %v1141 = vsel %vm451, %v1078, 0
      %v1144 = vsel %vm451, %v1079, 0
      %v1147 = vsel %vm451, %v1080, 0
      %v1150 = vsel %vm451, %v1081, 0
      %v1153 = vsel %vm451, %v1082, 0
      %v1156 = vsel %vm451, %v1083, 0
      %v1159 = vsel %vm451, %v1084, 0
      %v1162 = vsel %vm451, %v1085, 0
      %v1165 = vsel %vm451, %v1086, 0
      %v1168 = vsel %vm451, %v1087, 0
      %v1171 = vsel %vm451, %v1088, 0
      %v1174 = vsel %vm451, %v1089, 0
      %v1177 = vsel %vm451, %v1090, 0
      %v1180 = vsel %vm451, %v1091, 0
      %v1183 = vsel %vm451, %v1092, 0
      %v1186 = vsel %vm451, %v1093, 0
      %v1189 = vsel %vm451, %v1094, 0
      %1191 = vmatprep.subr.bf16.mxu0 0
      %1192 = vmatpush1.bf16.xpose.msra.mxu0 %v1144
      %1193 = vmatprep.subr.bf16.mxu0 0
      %1194 = vmatpush1.bf16.xpose.msra.mxu0 %v1147
      %1195 = vmatprep.subr.bf16.mxu0 0
      %1196 = vmatpush1.bf16.xpose.msra.mxu0 %v1150
      %1197 = vmatprep.subr.bf16.mxu0 0
      %1198 = vmatpush1.bf16.xpose.msra.mxu0 %v1153
      %1199 = vmatprep.subr.bf16.mxu0 0
      %1200 = vmatpush1.bf16.xpose.msra.mxu0 %v1156
      %1201 = vmatprep.subr.bf16.mxu0 0
      %1202 = vmatpush1.bf16.xpose.msra.mxu0 %v1159
      %1203 = vmatprep.subr.bf16.mxu0 0
      %1204 = vmatpush1.bf16.xpose.msra.mxu0 %v1162
      %1205 = vmatprep.subr.bf16.mxu0 0
      %1206 = vmatpush1.bf16.xpose.msra.mxu0 %v1165
      %1207 = vmatprep.subr.bf16.mxu0 0
      %1208 = vmatpush1.bf16.xpose.msra.mxu0 %v1168
      %1209 = vmatprep.subr.bf16.mxu0 0
      %1210 = vmatpush1.bf16.xpose.msra.mxu0 %v1171
      %1211 = vmatprep.subr.bf16.mxu0 0
      %1212 = vmatpush1.bf16.xpose.msra.mxu0 %v1174
      %1213 = vmatprep.subr.bf16.mxu0 0
      %1214 = vmatpush1.bf16.xpose.msra.mxu0 %v1177
      %1215 = vmatprep.subr.bf16.mxu0 0
      %1216 = vmatpush1.bf16.xpose.msra.mxu0 %v1180
      %1217 = vmatprep.subr.bf16.mxu0 0
      %1218 = vmatpush1.bf16.xpose.msra.mxu0 %v1183
      %1219 = vmatprep.subr.bf16.mxu0 0
      %1220 = vmatpush1.bf16.xpose.msra.mxu0 %v1186
      %1221 = vmatprep.subr.bf16.mxu0 0
      %1222 = vmatpush1.bf16.xpose.msra.mxu0 %v1189
      %1223 = vmatprep.mubr.bf16.mxu0 0
      %1224 = vmatmul.mubr.bf16.gmra.mrb[0].mxu0 %v1096
      %v1225 = vpop.f32.mrb[0].mxu0
      %v1226 = vadd.f32 0.0, %v1225
      %v1227 = vpop.f32.mrb[0].mxu0
      %v1228 = vadd.f32 0.0, %v1227
      %v1229 = vpop.f32.mrb[0].mxu0
      %v1230 = vadd.f32 0.0, %v1229
      %v1231 = vpop.f32.mrb[0].mxu0
      %v1232 = vadd.f32 0.0, %v1231
      %1233 = vmatprep.mubr.bf16.mxu0 0
      %1234 = vmatmul.mubr.bf16.gmra.mrb[0].mxu0 %v1099
      %v1235 = vpop.f32.mrb[0].mxu0
      %v1236 = vadd.f32 0.0, %v1235
      %v1237 = vpop.f32.mrb[0].mxu0
      %v1238 = vadd.f32 0.0, %v1237
      %v1239 = vpop.f32.mrb[0].mxu0
      %v1240 = vadd.f32 0.0, %v1239
      %v1241 = vpop.f32.mrb[0].mxu0
      %v1242 = vadd.f32 0.0, %v1241
      %1243 = vmatprep.mubr.bf16.mxu0 0
      %1244 = vmatmul.mubr.bf16.gmra.mrb[0].mxu0 %v1102
      %v1245 = vpop.f32.mrb[0].mxu0
      %v1246 = vadd.f32 0.0, %v1245
      %v1247 = vpop.f32.mrb[0].mxu0
      %v1248 = vadd.f32 0.0, %v1247
      %v1249 = vpop.f32.mrb[0].mxu0
      %v1250 = vadd.f32 0.0, %v1249
      %v1251 = vpop.f32.mrb[0].mxu0
      %v1252 = vadd.f32 0.0, %v1251
      %1253 = vmatprep.mubr.bf16.mxu0 0
      %1254 = vmatmul.mubr.bf16.gmra.mrb[0].mxu0 %v1105
      %v1255 = vpop.f32.mrb[0].mxu0
      %v1256 = vadd.f32 0.0, %v1255
      %v1257 = vpop.f32.mrb[0].mxu0
      %v1258 = vadd.f32 0.0, %v1257
      %v1259 = vpop.f32.mrb[0].mxu0
      %v1260 = vadd.f32 0.0, %v1259
      %v1261 = vpop.f32.mrb[0].mxu0
      %v1262 = vadd.f32 0.0, %v1261
      %1263 = vmatprep.mubr.bf16.mxu0 0
      %1264 = vmatmul.mubr.bf16.gmra.mrb[0].mxu0 %v1108
      %v1265 = vpop.f32.mrb[0].mxu0
      %v1266 = vadd.f32 0.0, %v1265
      %v1267 = vpop.f32.mrb[0].mxu0
      %v1268 = vadd.f32 0.0, %v1267
      %v1269 = vpop.f32.mrb[0].mxu0
      %v1270 = vadd.f32 0.0, %v1269
      %v1271 = vpop.f32.mrb[0].mxu0
      %v1272 = vadd.f32 0.0, %v1271
      %1273 = vmatprep.mubr.bf16.mxu0 0
      %1274 = vmatmul.mubr.bf16.gmra.mrb[0].mxu0 %v1111
      %v1275 = vpop.f32.mrb[0].mxu0
      %v1276 = vadd.f32 0.0, %v1275
      %v1277 = vpop.f32.mrb[0].mxu0
      %v1278 = vadd.f32 0.0, %v1277
      %v1279 = vpop.f32.mrb[0].mxu0
      %v1280 = vadd.f32 0.0, %v1279
      %v1281 = vpop.f32.mrb[0].mxu0
      %v1282 = vadd.f32 0.0, %v1281
      %1283 = vmatprep.mubr.bf16.mxu0 0
      %1284 = vmatmul.mubr.bf16.gmra.mrb[0].mxu0 %v1114
      %v1285 = vpop.f32.mrb[0].mxu0
      %v1286 = vadd.f32 0.0, %v1285
      %v1287 = vpop.f32.mrb[0].mxu0
      %v1288 = vadd.f32 0.0, %v1287
      %v1289 = vpop.f32.mrb[0].mxu0
      %v1290 = vadd.f32 0.0, %v1289
      %v1291 = vpop.f32.mrb[0].mxu0
      %v1292 = vadd.f32 0.0, %v1291
      %1293 = vmatprep.mubr.bf16.mxu0 0
      %1294 = vmatmul.mubr.bf16.gmra.mrb[0].mxu0 %v1117
      %v1295 = vpop.f32.mrb[0].mxu0
      %v1296 = vadd.f32 0.0, %v1295
      %v1297 = vpop.f32.mrb[0].mxu0
      %v1298 = vadd.f32 0.0, %v1297
      %v1299 = vpop.f32.mrb[0].mxu0
      %v1300 = vadd.f32 0.0, %v1299
      %v1301 = vpop.f32.mrb[0].mxu0
      %v1302 = vadd.f32 0.0, %v1301
      %1303 = vmatprep.mubr.bf16.mxu0 0
      %1304 = vmatmul.mubr.bf16.gmra.mrb[0].mxu0 %v1120
      %v1305 = vpop.f32.mrb[0].mxu0
      %v1306 = vadd.f32 0.0, %v1305
      %v1307 = vpop.f32.mrb[0].mxu0
      %v1308 = vadd.f32 0.0, %v1307
      %v1309 = vpop.f32.mrb[0].mxu0
      %v1310 = vadd.f32 0.0, %v1309
      %v1311 = vpop.f32.mrb[0].mxu0
      %v1312 = vadd.f32 0.0, %v1311
      %1313 = vmatprep.mubr.bf16.mxu0 0
      %1314 = vmatmul.mubr.bf16.gmra.mrb[0].mxu0 %v1123
      %v1315 = vpop.f32.mrb[0].mxu0
      %v1316 = vadd.f32 0.0, %v1315
      %v1317 = vpop.f32.mrb[0].mxu0
      %v1318 = vadd.f32 0.0, %v1317
      %v1319 = vpop.f32.mrb[0].mxu0
      %v1320 = vadd.f32 0.0, %v1319
      %v1321 = vpop.f32.mrb[0].mxu0
      %v1322 = vadd.f32 0.0, %v1321
      %1323 = vmatprep.mubr.bf16.mxu0 0
      %1324 = vmatmul.mubr.bf16.gmra.mrb[0].mxu0 %v1126
      %v1325 = vpop.f32.mrb[0].mxu0
      %v1326 = vadd.f32 0.0, %v1325
      %v1327 = vpop.f32.mrb[0].mxu0
      %v1328 = vadd.f32 0.0, %v1327
      %v1329 = vpop.f32.mrb[0].mxu0
      %v1330 = vadd.f32 0.0, %v1329
      %v1331 = vpop.f32.mrb[0].mxu0
      %v1332 = vadd.f32 0.0, %v1331
      %1333 = vmatprep.mubr.bf16.mxu0 0
      %1334 = vmatmul.mubr.bf16.gmra.mrb[0].mxu0 %v1129
      %v1335 = vpop.f32.mrb[0].mxu0
      %v1336 = vadd.f32 0.0, %v1335
      %v1337 = vpop.f32.mrb[0].mxu0
      %v1338 = vadd.f32 0.0, %v1337
      %v1339 = vpop.f32.mrb[0].mxu0
      %v1340 = vadd.f32 0.0, %v1339
      %v1341 = vpop.f32.mrb[0].mxu0
      %v1342 = vadd.f32 0.0, %v1341
      %1343 = vmatprep.mubr.bf16.mxu0 0
      %1344 = vmatmul.mubr.bf16.gmra.mrb[0].mxu0 %v1132
      %v1345 = vpop.f32.mrb[0].mxu0
      %v1346 = vadd.f32 0.0, %v1345
      %v1347 = vpop.f32.mrb[0].mxu0
      %v1348 = vadd.f32 0.0, %v1347
      %v1349 = vpop.f32.mrb[0].mxu0
      %v1350 = vadd.f32 0.0, %v1349
      %v1351 = vpop.f32.mrb[0].mxu0
      %v1352 = vadd.f32 0.0, %v1351
      %1353 = vmatprep.mubr.bf16.mxu0 0
      %1354 = vmatmul.mubr.bf16.gmra.mrb[0].mxu0 %v1135
      %v1355 = vpop.f32.mrb[0].mxu0
      %v1356 = vadd.f32 0.0, %v1355
      %v1357 = vpop.f32.mrb[0].mxu0
      %v1358 = vadd.f32 0.0, %v1357
      %v1359 = vpop.f32.mrb[0].mxu0
      %v1360 = vadd.f32 0.0, %v1359
      %v1361 = vpop.f32.mrb[0].mxu0
      %v1362 = vadd.f32 0.0, %v1361
      %1363 = vmatprep.mubr.bf16.mxu0 0
      %1364 = vmatmul.mubr.bf16.gmra.mrb[0].mxu0 %v1138
      %v1365 = vpop.f32.mrb[0].mxu0
      %v1366 = vadd.f32 0.0, %v1365
      %v1367 = vpop.f32.mrb[0].mxu0
      %v1368 = vadd.f32 0.0, %v1367
      %v1369 = vpop.f32.mrb[0].mxu0
      %v1370 = vadd.f32 0.0, %v1369
      %v1371 = vpop.f32.mrb[0].mxu0
      %v1372 = vadd.f32 0.0, %v1371
      %1373 = vmatprep.mubr.bf16.mxu0 0
      %1374 = vmatmul.mubr.bf16.gmra.mrb[0].mxu0 %v1141
      %v1375 = vpop.f32.mrb[0].mxu0
      %v1376 = vadd.f32 0.0, %v1375
      %v1377 = vpop.f32.mrb[0].mxu0
      %v1378 = vadd.f32 0.0, %v1377
      %v1379 = vpop.f32.mrb[0].mxu0
      %v1380 = vadd.f32 0.0, %v1379
      %v1381 = vpop.f32.mrb[0].mxu0
      %v1382 = vadd.f32 0.0, %v1381
      %1383 = vdwg.mxu0
      %v1384 = vmax.f32 %v1226, %v1228
      %1385 = vmax.xlane.f32.xlu0 %v1384
      %v1386 = vpop.xlane.xlu0 %1385
      %v1387 = vmax.f32 %v1230, %v1232
      %1388 = vmax.xlane.f32.xlu0 %v1387
      %v1389 = vpop.xlane.xlu0 %1388
      %v1390 = vmax.f32 %v1236, %v1238
      %1391 = vmax.xlane.f32.xlu0 %v1390
      %v1392 = vpop.xlane.xlu0 %1391
      %v1393 = vmax.f32 %v1240, %v1242
      %1394 = vmax.xlane.f32.xlu0 %v1393
      %v1395 = vpop.xlane.xlu0 %1394
      %v1396 = vmax.f32 %v1246, %v1248
      %1397 = vmax.xlane.f32.xlu0 %v1396
      %v1398 = vpop.xlane.xlu0 %1397
      %v1399 = vmax.f32 %v1250, %v1252
      %1400 = vmax.xlane.f32.xlu0 %v1399
      %v1401 = vpop.xlane.xlu0 %1400
      %v1402 = vmax.f32 %v1256, %v1258
      %1403 = vmax.xlane.f32.xlu0 %v1402
      %v1404 = vpop.xlane.xlu0 %1403
      %v1405 = vmax.f32 %v1260, %v1262
      %1406 = vmax.xlane.f32.xlu0 %v1405
      %v1407 = vpop.xlane.xlu0 %1406
      %v1408 = vmax.f32 %v1266, %v1268
      %1409 = vmax.xlane.f32.xlu0 %v1408
      %v1410 = vpop.xlane.xlu0 %1409
      %v1411 = vmax.f32 %v1270, %v1272
      %1412 = vmax.xlane.f32.xlu0 %v1411
      %v1413 = vpop.xlane.xlu0 %1412
      %v1414 = vmax.f32 %v1276, %v1278
      %1415 = vmax.xlane.f32.xlu0 %v1414
      %v1416 = vpop.xlane.xlu0 %1415
      %v1417 = vmax.f32 %v1280, %v1282
      %1418 = vmax.xlane.f32.xlu0 %v1417
      %v1419 = vpop.xlane.xlu0 %1418
      %v1420 = vmax.f32 %v1286, %v1288
      %1421 = vmax.xlane.f32.xlu0 %v1420
      %v1422 = vpop.xlane.xlu0 %1421
      %v1423 = vmax.f32 %v1290, %v1292
      %1424 = vmax.xlane.f32.xlu0 %v1423
      %v1425 = vpop.xlane.xlu0 %1424
      %v1426 = vmax.f32 %v1296, %v1298
      %1427 = vmax.xlane.f32.xlu0 %v1426
      %v1428 = vpop.xlane.xlu0 %1427
      %v1429 = vmax.f32 %v1300, %v1302
      %1430 = vmax.xlane.f32.xlu0 %v1429
      %v1431 = vpop.xlane.xlu0 %1430
      %v1432 = vmax.f32 %v1306, %v1308
      %1433 = vmax.xlane.f32.xlu0 %v1432
      %v1434 = vpop.xlane.xlu0 %1433
      %v1435 = vmax.f32 %v1310, %v1312
      %1436 = vmax.xlane.f32.xlu0 %v1435
      %v1437 = vpop.xlane.xlu0 %1436
      %v1438 = vmax.f32 %v1316, %v1318
      %1439 = vmax.xlane.f32.xlu0 %v1438
      %v1440 = vpop.xlane.xlu0 %1439
      %v1441 = vmax.f32 %v1320, %v1322
      %1442 = vmax.xlane.f32.xlu0 %v1441
      %v1443 = vpop.xlane.xlu0 %1442
      %v1444 = vmax.f32 %v1326, %v1328
      %1445 = vmax.xlane.f32.xlu0 %v1444
      %v1446 = vpop.xlane.xlu0 %1445
      %v1447 = vmax.f32 %v1330, %v1332
      %1448 = vmax.xlane.f32.xlu0 %v1447
      %v1449 = vpop.xlane.xlu0 %1448
      %v1450 = vmax.f32 %v1336, %v1338
      %1451 = vmax.xlane.f32.xlu0 %v1450
      %v1452 = vpop.xlane.xlu0 %1451
      %v1453 = vmax.f32 %v1340, %v1342
      %1454 = vmax.xlane.f32.xlu0 %v1453
      %v1455 = vpop.xlane.xlu0 %1454
      %v1456 = vmax.f32 %v1346, %v1348
      %1457 = vmax.xlane.f32.xlu0 %v1456
      %v1458 = vpop.xlane.xlu0 %1457
      %v1459 = vmax.f32 %v1350, %v1352
      %1460 = vmax.xlane.f32.xlu0 %v1459
      %v1461 = vpop.xlane.xlu0 %1460
      %v1462 = vmax.f32 %v1356, %v1358
      %1463 = vmax.xlane.f32.xlu0 %v1462
      %v1464 = vpop.xlane.xlu0 %1463
      %v1465 = vmax.f32 %v1360, %v1362
      %1466 = vmax.xlane.f32.xlu0 %v1465
      %v1467 = vpop.xlane.xlu0 %1466
      %v1468 = vmax.f32 %v1366, %v1368
      %1469 = vmax.xlane.f32.xlu0 %v1468
      %v1470 = vpop.xlane.xlu0 %1469
      %v1471 = vmax.f32 %v1370, %v1372
      %1472 = vmax.xlane.f32.xlu0 %v1471
      %v1473 = vpop.xlane.xlu0 %1472
      %v1474 = vmax.f32 %v1376, %v1378
      %1475 = vmax.xlane.f32.xlu0 %v1474
      %v1476 = vpop.xlane.xlu0 %1475
      %v1477 = vmax.f32 %v1380, %v1382
      %1478 = vmax.xlane.f32.xlu0 %v1477
      %v1479 = vpop.xlane.xlu0 %1478
      %v1480 = vsub.f32 %v1226, %v1386
      %v1481 = vsub.f32 %v1228, %v1386
      %v1482 = vsub.f32 %v1230, %v1389
      %v1483 = vsub.f32 %v1232, %v1389
      %v1484 = vsub.f32 %v1236, %v1392
      %v1485 = vsub.f32 %v1238, %v1392
      %v1486 = vsub.f32 %v1240, %v1395
      %v1487 = vsub.f32 %v1242, %v1395
      %v1488 = vsub.f32 %v1246, %v1398
      %v1489 = vsub.f32 %v1248, %v1398
      %v1490 = vsub.f32 %v1250, %v1401
      %v1491 = vsub.f32 %v1252, %v1401
      %v1492 = vsub.f32 %v1256, %v1404
      %v1493 = vsub.f32 %v1258, %v1404
      %v1494 = vsub.f32 %v1260, %v1407
      %v1495 = vsub.f32 %v1262, %v1407
      %v1496 = vsub.f32 %v1266, %v1410
      %v1497 = vsub.f32 %v1268, %v1410
      %v1498 = vsub.f32 %v1270, %v1413
      %v1499 = vsub.f32 %v1272, %v1413
      %v1500 = vsub.f32 %v1276, %v1416
      %v1501 = vsub.f32 %v1278, %v1416
      %v1502 = vsub.f32 %v1280, %v1419
      %v1503 = vsub.f32 %v1282, %v1419
      %v1504 = vsub.f32 %v1286, %v1422
      %v1505 = vsub.f32 %v1288, %v1422
      %v1506 = vsub.f32 %v1290, %v1425
      %v1507 = vsub.f32 %v1292, %v1425
      %v1508 = vsub.f32 %v1296, %v1428
      %v1509 = vsub.f32 %v1298, %v1428
      %v1510 = vsub.f32 %v1300, %v1431
      %v1511 = vsub.f32 %v1302, %v1431
      %v1512 = vsub.f32 %v1306, %v1434
      %v1513 = vsub.f32 %v1308, %v1434
      %v1514 = vsub.f32 %v1310, %v1437
      %v1515 = vsub.f32 %v1312, %v1437
      %v1516 = vsub.f32 %v1316, %v1440
      %v1517 = vsub.f32 %v1318, %v1440
      %v1518 = vsub.f32 %v1320, %v1443
      %v1519 = vsub.f32 %v1322, %v1443
      %v1520 = vsub.f32 %v1326, %v1446
      %v1521 = vsub.f32 %v1328, %v1446
      %v1522 = vsub.f32 %v1330, %v1449
      %v1523 = vsub.f32 %v1332, %v1449
      %v1524 = vsub.f32 %v1336, %v1452
      %v1525 = vsub.f32 %v1338, %v1452
      %v1526 = vsub.f32 %v1340, %v1455
      %v1527 = vsub.f32 %v1342, %v1455
      %v1528 = vsub.f32 %v1346, %v1458
      %v1529 = vsub.f32 %v1348, %v1458
      %v1530 = vsub.f32 %v1350, %v1461
      %v1531 = vsub.f32 %v1352, %v1461
      %v1532 = vsub.f32 %v1356, %v1464
      %v1533 = vsub.f32 %v1358, %v1464
      %v1534 = vsub.f32 %v1360, %v1467
      %v1535 = vsub.f32 %v1362, %v1467
      %v1536 = vsub.f32 %v1366, %v1470
      %v1537 = vsub.f32 %v1368, %v1470
      %v1538 = vsub.f32 %v1370, %v1473
      %v1539 = vsub.f32 %v1372, %v1473
      %v1540 = vsub.f32 %v1376, %v1476
      %v1541 = vsub.f32 %v1378, %v1476
      %v1542 = vsub.f32 %v1380, %v1479
      %v1543 = vsub.f32 %v1382, %v1479
      %v1544 = vmul.f32 %v1480, 1.442695
      %v1545 = vpow.pop %v1544
      %v1546 = vmul.f32 %v1481, 1.442695
      %v1547 = vpow.pop %v1546
      %v1548 = vmul.f32 %v1482, 1.442695
      %v1549 = vpow.pop %v1548
      %v1550 = vmul.f32 %v1483, 1.442695
      %v1551 = vpow.pop %v1550
      %v1552 = vmul.f32 %v1484, 1.442695
      %v1553 = vpow.pop %v1552
      %v1554 = vmul.f32 %v1485, 1.442695
      %v1555 = vpow.pop %v1554
      %v1556 = vmul.f32 %v1486, 1.442695
      %v1557 = vpow.pop %v1556
      %v1558 = vmul.f32 %v1487, 1.442695
      %v1559 = vpow.pop %v1558
      %v1560 = vmul.f32 %v1488, 1.442695
      %v1561 = vpow.pop %v1560
      %v1562 = vmul.f32 %v1489, 1.442695
      %v1563 = vpow.pop %v1562
      %v1564 = vmul.f32 %v1490, 1.442695
      %v1565 = vpow.pop %v1564
      %v1566 = vmul.f32 %v1491, 1.442695
      %v1567 = vpow.pop %v1566
      %v1568 = vmul.f32 %v1492, 1.442695
      %v1569 = vpow.pop %v1568
      %v1570 = vmul.f32 %v1493, 1.442695
      %v1571 = vpow.pop %v1570
      %v1572 = vmul.f32 %v1494, 1.442695
      %v1573 = vpow.pop %v1572
      %v1574 = vmul.f32 %v1495, 1.442695
      %v1575 = vpow.pop %v1574
      %v1576 = vmul.f32 %v1496, 1.442695
      %v1577 = vpow.pop %v1576
      %v1578 = vmul.f32 %v1497, 1.442695
      %v1579 = vpow.pop %v1578
      %v1580 = vmul.f32 %v1498, 1.442695
      %v1581 = vpow.pop %v1580
      %v1582 = vmul.f32 %v1499, 1.442695
      %v1583 = vpow.pop %v1582
      %v1584 = vmul.f32 %v1500, 1.442695
      %v1585 = vpow.pop %v1584
      %v1586 = vmul.f32 %v1501, 1.442695
      %v1587 = vpow.pop %v1586
      %v1588 = vmul.f32 %v1502, 1.442695
      %v1589 = vpow.pop %v1588
      %v1590 = vmul.f32 %v1503, 1.442695
      %v1591 = vpow.pop %v1590
      %v1592 = vmul.f32 %v1504, 1.442695
      %v1593 = vpow.pop %v1592
      %v1594 = vmul.f32 %v1505, 1.442695
      %v1595 = vpow.pop %v1594
      %v1596 = vmul.f32 %v1506, 1.442695
      %v1597 = vpow.pop %v1596
      %v1598 = vmul.f32 %v1507, 1.442695
      %v1599 = vpow.pop %v1598
      %v1600 = vmul.f32 %v1508, 1.442695
      %v1601 = vpow.pop %v1600
      %v1602 = vmul.f32 %v1509, 1.442695
      %v1603 = vpow.pop %v1602
      %v1604 = vmul.f32 %v1510, 1.442695
      %v1605 = vpow.pop %v1604
      %v1606 = vmul.f32 %v1511, 1.442695
      %v1607 = vpow.pop %v1606
      %v1608 = vmul.f32 %v1512, 1.442695
      %v1609 = vpow.pop %v1608
      %v1610 = vmul.f32 %v1513, 1.442695
      %v1611 = vpow.pop %v1610
      %v1612 = vmul.f32 %v1514, 1.442695
      %v1613 = vpow.pop %v1612
      %v1614 = vmul.f32 %v1515, 1.442695
      %v1615 = vpow.pop %v1614
      %v1616 = vmul.f32 %v1516, 1.442695
      %v1617 = vpow.pop %v1616
      %v1618 = vmul.f32 %v1517, 1.442695
      %v1619 = vpow.pop %v1618
      %v1620 = vmul.f32 %v1518, 1.442695
      %v1621 = vpow.pop %v1620
      %v1622 = vmul.f32 %v1519, 1.442695
      %v1623 = vpow.pop %v1622
      %v1624 = vmul.f32 %v1520, 1.442695
      %v1625 = vpow.pop %v1624
      %v1626 = vmul.f32 %v1521, 1.442695
      %v1627 = vpow.pop %v1626
      %v1628 = vmul.f32 %v1522, 1.442695
      %v1629 = vpow.pop %v1628
      %v1630 = vmul.f32 %v1523, 1.442695
      %v1631 = vpow.pop %v1630
      %v1632 = vmul.f32 %v1524, 1.442695
      %v1633 = vpow.pop %v1632
      %v1634 = vmul.f32 %v1525, 1.442695
      %v1635 = vpow.pop %v1634
      %v1636 = vmul.f32 %v1526, 1.442695
      %v1637 = vpow.pop %v1636
      %v1638 = vmul.f32 %v1527, 1.442695
      %v1639 = vpow.pop %v1638
      %v1640 = vmul.f32 %v1528, 1.442695
      %v1641 = vpow.pop %v1640
      %v1642 = vmul.f32 %v1529, 1.442695
      %v1643 = vpow.pop %v1642
      %v1644 = vmul.f32 %v1530, 1.442695
      %v1645 = vpow.pop %v1644
      %v1646 = vmul.f32 %v1531, 1.442695
      %v1647 = vpow.pop %v1646
      %v1648 = vmul.f32 %v1532, 1.442695
      %v1649 = vpow.pop %v1648
      %v1650 = vmul.f32 %v1533, 1.442695
      %v1651 = vpow.pop %v1650
      %v1652 = vmul.f32 %v1534, 1.442695
      %v1653 = vpow.pop %v1652
      %v1654 = vmul.f32 %v1535, 1.442695
      %v1655 = vpow.pop %v1654
      %v1656 = vmul.f32 %v1536, 1.442695
      %v1657 = vpow.pop %v1656
      %v1658 = vmul.f32 %v1537, 1.442695
      %v1659 = vpow.pop %v1658
      %v1660 = vmul.f32 %v1538, 1.442695
      %v1661 = vpow.pop %v1660
      %v1662 = vmul.f32 %v1539, 1.442695
      %v1663 = vpow.pop %v1662
      %v1664 = vmul.f32 %v1540, 1.442695
      %v1665 = vpow.pop %v1664
      %v1666 = vmul.f32 %v1541, 1.442695
      %v1667 = vpow.pop %v1666
      %v1668 = vmul.f32 %v1542, 1.442695
      %v1669 = vpow.pop %v1668
      %v1670 = vmul.f32 %v1543, 1.442695
      %v1671 = vpow.pop %v1670
      %v1672 = vadd.f32 %v1545, %v1547
      %1673 = vadd.xlane.f32.xlu0 %v1672
      %v1674 = vpop.xlane.xlu0 %1673
      %v1675 = vadd.f32 %v1549, %v1551
      %1676 = vadd.xlane.f32.xlu0 %v1675
      %v1677 = vpop.xlane.xlu0 %1676
      %v1678 = vadd.f32 %v1553, %v1555
      %1679 = vadd.xlane.f32.xlu0 %v1678
      %v1680 = vpop.xlane.xlu0 %1679
      %v1681 = vadd.f32 %v1557, %v1559
      %1682 = vadd.xlane.f32.xlu0 %v1681
      %v1683 = vpop.xlane.xlu0 %1682
      %v1684 = vadd.f32 %v1561, %v1563
      %1685 = vadd.xlane.f32.xlu0 %v1684
      %v1686 = vpop.xlane.xlu0 %1685
      %v1687 = vadd.f32 %v1565, %v1567
      %1688 = vadd.xlane.f32.xlu0 %v1687
      %v1689 = vpop.xlane.xlu0 %1688
      %v1690 = vadd.f32 %v1569, %v1571
      %1691 = vadd.xlane.f32.xlu0 %v1690
      %v1692 = vpop.xlane.xlu0 %1691
      %v1693 = vadd.f32 %v1573, %v1575
      %1694 = vadd.xlane.f32.xlu0 %v1693
      %v1695 = vpop.xlane.xlu0 %1694
      %v1696 = vadd.f32 %v1577, %v1579
      %1697 = vadd.xlane.f32.xlu0 %v1696
      %v1698 = vpop.xlane.xlu0 %1697
      %v1699 = vadd.f32 %v1581, %v1583
      %1700 = vadd.xlane.f32.xlu0 %v1699
      %v1701 = vpop.xlane.xlu0 %1700
      %v1702 = vadd.f32 %v1585, %v1587
      %1703 = vadd.xlane.f32.xlu0 %v1702
      %v1704 = vpop.xlane.xlu0 %1703
      %v1705 = vadd.f32 %v1589, %v1591
      %1706 = vadd.xlane.f32.xlu0 %v1705
      %v1707 = vpop.xlane.xlu0 %1706
      %v1708 = vadd.f32 %v1593, %v1595
      %1709 = vadd.xlane.f32.xlu0 %v1708
      %v1710 = vpop.xlane.xlu0 %1709
      %v1711 = vadd.f32 %v1597, %v1599
      %1712 = vadd.xlane.f32.xlu0 %v1711
      %v1713 = vpop.xlane.xlu0 %1712
      %v1714 = vadd.f32 %v1601, %v1603
      %1715 = vadd.xlane.f32.xlu0 %v1714
      %v1716 = vpop.xlane.xlu0 %1715
      %v1717 = vadd.f32 %v1605, %v1607
      %1718 = vadd.xlane.f32.xlu0 %v1717
      %v1719 = vpop.xlane.xlu0 %1718
      %v1720 = vadd.f32 %v1609, %v1611
      %1721 = vadd.xlane.f32.xlu0 %v1720
      %v1722 = vpop.xlane.xlu0 %1721
      %v1723 = vadd.f32 %v1613, %v1615
      %1724 = vadd.xlane.f32.xlu0 %v1723
      %v1725 = vpop.xlane.xlu0 %1724
      %v1726 = vadd.f32 %v1617, %v1619
      %1727 = vadd.xlane.f32.xlu0 %v1726
      %v1728 = vpop.xlane.xlu0 %1727
      %v1729 = vadd.f32 %v1621, %v1623
      %1730 = vadd.xlane.f32.xlu0 %v1729
      %v1731 = vpop.xlane.xlu0 %1730
      %v1732 = vadd.f32 %v1625, %v1627
      %1733 = vadd.xlane.f32.xlu0 %v1732
      %v1734 = vpop.xlane.xlu0 %1733
      %v1735 = vadd.f32 %v1629, %v1631
      %1736 = vadd.xlane.f32.xlu0 %v1735
      %v1737 = vpop.xlane.xlu0 %1736
      %v1738 = vadd.f32 %v1633, %v1635
      %1739 = vadd.xlane.f32.xlu0 %v1738
      %v1740 = vpop.xlane.xlu0 %1739
      %v1741 = vadd.f32 %v1637, %v1639
      %1742 = vadd.xlane.f32.xlu0 %v1741
      %v1743 = vpop.xlane.xlu0 %1742
      %v1744 = vadd.f32 %v1641, %v1643
      %1745 = vadd.xlane.f32.xlu0 %v1744
      %v1746 = vpop.xlane.xlu0 %1745
      %v1747 = vadd.f32 %v1645, %v1647
      %1748 = vadd.xlane.f32.xlu0 %v1747
      %v1749 = vpop.xlane.xlu0 %1748
      %v1750 = vadd.f32 %v1649, %v1651
      %1751 = vadd.xlane.f32.xlu0 %v1750
      %v1752 = vpop.xlane.xlu0 %1751
      %v1753 = vadd.f32 %v1653, %v1655
      %1754 = vadd.xlane.f32.xlu0 %v1753
      %v1755 = vpop.xlane.xlu0 %1754
      %v1756 = vadd.f32 %v1657, %v1659
      %1757 = vadd.xlane.f32.xlu0 %v1756
      %v1758 = vpop.xlane.xlu0 %1757
      %v1759 = vadd.f32 %v1661, %v1663
      %1760 = vadd.xlane.f32.xlu0 %v1759
      %v1761 = vpop.xlane.xlu0 %1760
      %v1762 = vadd.f32 %v1665, %v1667
      %1763 = vadd.xlane.f32.xlu0 %v1762
      %v1764 = vpop.xlane.xlu0 %1763
      %v1765 = vadd.f32 %v1669, %v1671
      %1766 = vadd.xlane.f32.xlu0 %v1765
      %v1767 = vpop.xlane.xlu0 %1766
      %v1768 = vpack.c.bf16 %v1549, %v1545
      %v1769 = vpack.c.bf16 %v1551, %v1547
      %v1770 = vpack.c.bf16 %v1557, %v1553
      %v1771 = vpack.c.bf16 %v1559, %v1555
      %v1772 = vpack.c.bf16 %v1565, %v1561
      %v1773 = vpack.c.bf16 %v1567, %v1563
      %v1774 = vpack.c.bf16 %v1573, %v1569
      %v1775 = vpack.c.bf16 %v1575, %v1571
      %v1776 = vpack.c.bf16 %v1581, %v1577
      %v1777 = vpack.c.bf16 %v1583, %v1579
      %v1778 = vpack.c.bf16 %v1589, %v1585
      %v1779 = vpack.c.bf16 %v1591, %v1587
      %v1780 = vpack.c.bf16 %v1597, %v1593
      %v1781 = vpack.c.bf16 %v1599, %v1595
      %v1782 = vpack.c.bf16 %v1605, %v1601
      %v1783 = vpack.c.bf16 %v1607, %v1603
      %v1784 = vpack.c.bf16 %v1613, %v1609
      %v1785 = vpack.c.bf16 %v1615, %v1611
      %v1786 = vpack.c.bf16 %v1621, %v1617
      %v1787 = vpack.c.bf16 %v1623, %v1619
      %v1788 = vpack.c.bf16 %v1629, %v1625
      %v1789 = vpack.c.bf16 %v1631, %v1627
      %v1790 = vpack.c.bf16 %v1637, %v1633
      %v1791 = vpack.c.bf16 %v1639, %v1635
      %v1792 = vpack.c.bf16 %v1645, %v1641
      %v1793 = vpack.c.bf16 %v1647, %v1643
      %v1794 = vpack.c.bf16 %v1653, %v1649
      %v1795 = vpack.c.bf16 %v1655, %v1651
      %v1796 = vpack.c.bf16 %v1661, %v1657
      %v1797 = vpack.c.bf16 %v1663, %v1659
      %v1798 = vpack.c.bf16 %v1669, %v1665
      %v1799 = vpack.c.bf16 %v1671, %v1667
      %v1800 = vpack.c.bf16 %v940, %v937
      %v1801 = vpack.c.bf16 %v948, %v945
      %v1802 = vpack.c.bf16 %v956, %v953
      %v1803 = vpack.c.bf16 %v964, %v961
      %v1804 = vpack.c.bf16 %v972, %v969
      %v1805 = vpack.c.bf16 %v980, %v977
      %v1806 = vpack.c.bf16 %v988, %v985
      %v1807 = vpack.c.bf16 %v996, %v993
      %v1808 = vpack.c.bf16 %v1004, %v1001
      %v1809 = vpack.c.bf16 %v1012, %v1009
      %v1810 = vpack.c.bf16 %v1020, %v1017
      %v1811 = vpack.c.bf16 %v1028, %v1025
      %v1812 = vpack.c.bf16 %v1036, %v1033
      %v1813 = vpack.c.bf16 %v1044, %v1041
      %v1814 = vpack.c.bf16 %v1052, %v1049
      %v1815 = vpack.c.bf16 %v1060, %v1057
      %1816 = vmatprep.subr.bf16.mxu0 0
      %1817 = vmatpush1.bf16.msra.mxu0 %v1800
      %1818 = vmatprep.subr.bf16.mxu0 0
      %1819 = vmatpush1.bf16.msra.mxu0 %v1801
      %1820 = vmatprep.subr.bf16.mxu0 0
      %1821 = vmatpush1.bf16.msra.mxu0 %v1802
      %1822 = vmatprep.subr.bf16.mxu0 0
      %1823 = vmatpush1.bf16.msra.mxu0 %v1803
      %1824 = vmatprep.subr.bf16.mxu0 0
      %1825 = vmatpush1.bf16.msra.mxu0 %v1804
      %1826 = vmatprep.subr.bf16.mxu0 0
      %1827 = vmatpush1.bf16.msra.mxu0 %v1805
      %1828 = vmatprep.subr.bf16.mxu0 0
      %1829 = vmatpush1.bf16.msra.mxu0 %v1806
      %1830 = vmatprep.subr.bf16.mxu0 0
      %1831 = vmatpush1.bf16.msra.mxu0 %v1807
      %1832 = vmatprep.subr.bf16.mxu0 0
      %1833 = vmatpush1.bf16.msra.mxu0 %v1808
      %1834 = vmatprep.subr.bf16.mxu0 0
      %1835 = vmatpush1.bf16.msra.mxu0 %v1809
      %1836 = vmatprep.subr.bf16.mxu0 0
      %1837 = vmatpush1.bf16.msra.mxu0 %v1810
      %1838 = vmatprep.subr.bf16.mxu0 0
      %1839 = vmatpush1.bf16.msra.mxu0 %v1811
      %1840 = vmatprep.subr.bf16.mxu0 0
      %1841 = vmatpush1.bf16.msra.mxu0 %v1812
      %1842 = vmatprep.subr.bf16.mxu0 0
      %1843 = vmatpush1.bf16.msra.mxu0 %v1813
      %1844 = vmatprep.subr.bf16.mxu0 0
      %1845 = vmatpush1.bf16.msra.mxu0 %v1814
      %1846 = vmatprep.subr.bf16.mxu0 0
      %1847 = vmatpush1.bf16.msra.mxu0 %v1815
      %1848 = vmatprep.mubr.bf16.mxu0 %v1769
      %1849 = vmatmul.mubr.bf16.gmra.mrb[0].mxu0 %v1768
      %v1850 = vpop.f32.mrb[0].mxu0
      %v1851 = vadd.f32 0.0, %v1850
      %v1852 = vpop.f32.mrb[0].mxu0
      %v1853 = vpop.f32.mrb[0].mxu0
      %v1854 = vadd.f32 0.0, %v1853
      %v1855 = vpop.f32.mrb[0].mxu0
      %1856 = vmatprep.mubr.bf16.mxu0 %v1771
      %1857 = vmatmul.mubr.bf16.gmra.mrb[0].mxu0 %v1770
      %v1858 = vpop.f32.mrb[0].mxu0
      %v1859 = vadd.f32 0.0, %v1858
      %v1860 = vpop.f32.mrb[0].mxu0
      %v1861 = vpop.f32.mrb[0].mxu0
      %v1862 = vadd.f32 0.0, %v1861
      %v1863 = vpop.f32.mrb[0].mxu0
      %1864 = vmatprep.mubr.bf16.mxu0 %v1773
      %1865 = vmatmul.mubr.bf16.gmra.mrb[0].mxu0 %v1772
      %v1866 = vpop.f32.mrb[0].mxu0
      %v1867 = vadd.f32 0.0, %v1866
      %v1868 = vpop.f32.mrb[0].mxu0
      %v1869 = vpop.f32.mrb[0].mxu0
      %v1870 = vadd.f32 0.0, %v1869
      %v1871 = vpop.f32.mrb[0].mxu0
      %1872 = vmatprep.mubr.bf16.mxu0 %v1775
      %1873 = vmatmul.mubr.bf16.gmra.mrb[0].mxu0 %v1774
      %v1874 = vpop.f32.mrb[0].mxu0
      %v1875 = vadd.f32 0.0, %v1874
      %v1876 = vpop.f32.mrb[0].mxu0
      %v1877 = vpop.f32.mrb[0].mxu0
      %v1878 = vadd.f32 0.0, %v1877
      %v1879 = vpop.f32.mrb[0].mxu0
      %1880 = vmatprep.mubr.bf16.mxu0 %v1777
      %1881 = vmatmul.mubr.bf16.gmra.mrb[0].mxu0 %v1776
      %v1882 = vpop.f32.mrb[0].mxu0
      %v1883 = vadd.f32 0.0, %v1882
      %v1884 = vpop.f32.mrb[0].mxu0
      %v1885 = vpop.f32.mrb[0].mxu0
      %v1886 = vadd.f32 0.0, %v1885
      %v1887 = vpop.f32.mrb[0].mxu0
      %1888 = vmatprep.mubr.bf16.mxu0 %v1779
      %1889 = vmatmul.mubr.bf16.gmra.mrb[0].mxu0 %v1778
      %v1890 = vpop.f32.mrb[0].mxu0
      %v1891 = vadd.f32 0.0, %v1890
      %v1892 = vpop.f32.mrb[0].mxu0
      %v1893 = vpop.f32.mrb[0].mxu0
      %v1894 = vadd.f32 0.0, %v1893
      %v1895 = vpop.f32.mrb[0].mxu0
      %1896 = vmatprep.mubr.bf16.mxu0 %v1781
      %1897 = vmatmul.mubr.bf16.gmra.mrb[0].mxu0 %v1780
      %v1898 = vpop.f32.mrb[0].mxu0
      %v1899 = vadd.f32 0.0, %v1898
      %v1900 = vpop.f32.mrb[0].mxu0
      %v1901 = vpop.f32.mrb[0].mxu0
      %v1902 = vadd.f32 0.0, %v1901
      %v1903 = vpop.f32.mrb[0].mxu0
      %1904 = vmatprep.mubr.bf16.mxu0 %v1783
      %1905 = vmatmul.mubr.bf16.gmra.mrb[0].mxu0 %v1782
      %v1906 = vpop.f32.mrb[0].mxu0
      %v1907 = vadd.f32 0.0, %v1906
      %v1908 = vpop.f32.mrb[0].mxu0
      %v1909 = vpop.f32.mrb[0].mxu0
      %v1910 = vadd.f32 0.0, %v1909
      %v1911 = vpop.f32.mrb[0].mxu0
      %1912 = vmatprep.mubr.bf16.mxu0 %v1785
      %1913 = vmatmul.mubr.bf16.gmra.mrb[0].mxu0 %v1784
      %v1914 = vpop.f32.mrb[0].mxu0
      %v1915 = vadd.f32 0.0, %v1914
      %v1916 = vpop.f32.mrb[0].mxu0
      %v1917 = vpop.f32.mrb[0].mxu0
      %v1918 = vadd.f32 0.0, %v1917
      %v1919 = vpop.f32.mrb[0].mxu0
      %1920 = vmatprep.mubr.bf16.mxu0 %v1787
      %1921 = vmatmul.mubr.bf16.gmra.mrb[0].mxu0 %v1786
      %v1922 = vpop.f32.mrb[0].mxu0
      %v1923 = vadd.f32 0.0, %v1922
      %v1924 = vpop.f32.mrb[0].mxu0
      %v1925 = vpop.f32.mrb[0].mxu0
      %v1926 = vadd.f32 0.0, %v1925
      %v1927 = vpop.f32.mrb[0].mxu0
      %1928 = vmatprep.mubr.bf16.mxu0 %v1789
      %1929 = vmatmul.mubr.bf16.gmra.mrb[0].mxu0 %v1788
      %v1930 = vpop.f32.mrb[0].mxu0
      %v1931 = vadd.f32 0.0, %v1930
      %v1932 = vpop.f32.mrb[0].mxu0
      %v1933 = vpop.f32.mrb[0].mxu0
      %v1934 = vadd.f32 0.0, %v1933
      %v1935 = vpop.f32.mrb[0].mxu0
      %1936 = vmatprep.mubr.bf16.mxu0 %v1791
      %1937 = vmatmul.mubr.bf16.gmra.mrb[0].mxu0 %v1790
      %v1938 = vpop.f32.mrb[0].mxu0
      %v1939 = vadd.f32 0.0, %v1938
      %v1940 = vpop.f32.mrb[0].mxu0
      %v1941 = vpop.f32.mrb[0].mxu0
      %v1942 = vadd.f32 0.0, %v1941
      %v1943 = vpop.f32.mrb[0].mxu0
      %1944 = vmatprep.mubr.bf16.mxu0 %v1793
      %1945 = vmatmul.mubr.bf16.gmra.mrb[0].mxu0 %v1792
      %v1946 = vpop.f32.mrb[0].mxu0
      %v1947 = vadd.f32 0.0, %v1946
      %v1948 = vpop.f32.mrb[0].mxu0
      %v1949 = vpop.f32.mrb[0].mxu0
      %v1950 = vadd.f32 0.0, %v1949
      %v1951 = vpop.f32.mrb[0].mxu0
      %1952 = vmatprep.mubr.bf16.mxu0 %v1795
      %1953 = vmatmul.mubr.bf16.gmra.mrb[0].mxu0 %v1794
      %v1954 = vpop.f32.mrb[0].mxu0
      %v1955 = vadd.f32 0.0, %v1954
      %v1956 = vpop.f32.mrb[0].mxu0
      %v1957 = vpop.f32.mrb[0].mxu0
      %v1958 = vadd.f32 0.0, %v1957
      %v1959 = vpop.f32.mrb[0].mxu0
      %1960 = vmatprep.mubr.bf16.mxu0 %v1797
      %1961 = vmatmul.mubr.bf16.gmra.mrb[0].mxu0 %v1796
      %v1962 = vpop.f32.mrb[0].mxu0
      %v1963 = vadd.f32 0.0, %v1962
      %v1964 = vpop.f32.mrb[0].mxu0
      %v1965 = vpop.f32.mrb[0].mxu0
      %v1966 = vadd.f32 0.0, %v1965
      %v1967 = vpop.f32.mrb[0].mxu0
      %1968 = vmatprep.mubr.bf16.mxu0 %v1799
      %1969 = vmatmul.mubr.bf16.gmra.mrb[0].mxu0 %v1798
      %v1970 = vpop.f32.mrb[0].mxu0
      %v1971 = vadd.f32 0.0, %v1970
      %v1972 = vpop.f32.mrb[0].mxu0
      %v1973 = vpop.f32.mrb[0].mxu0
      %v1974 = vadd.f32 0.0, %v1973
      %v1975 = vpop.f32.mrb[0].mxu0
      %1976 = vdwg.mxu0
      %v1977 = vrcp.pop %v1674
      %v1978 = vrcp.pop %v1677
      %v1979 = vrcp.pop %v1680
      %v1980 = vrcp.pop %v1683
      %v1981 = vrcp.pop %v1686
      %v1982 = vrcp.pop %v1689
      %v1983 = vrcp.pop %v1692
      %v1984 = vrcp.pop %v1695
      %v1985 = vrcp.pop %v1698
      %v1986 = vrcp.pop %v1701
      %v1987 = vrcp.pop %v1704
      %v1988 = vrcp.pop %v1707
      %v1989 = vrcp.pop %v1710
      %v1990 = vrcp.pop %v1713
      %v1991 = vrcp.pop %v1716
      %v1992 = vrcp.pop %v1719
      %v1993 = vrcp.pop %v1722
      %v1994 = vrcp.pop %v1725
      %v1995 = vrcp.pop %v1728
      %v1996 = vrcp.pop %v1731
      %v1997 = vrcp.pop %v1734
      %v1998 = vrcp.pop %v1737
      %v1999 = vrcp.pop %v1740
      %v2000 = vrcp.pop %v1743
      %v2001 = vrcp.pop %v1746
      %v2002 = vrcp.pop %v1749
      %v2003 = vrcp.pop %v1752
      %v2004 = vrcp.pop %v1755
      %v2005 = vrcp.pop %v1758
      %v2006 = vrcp.pop %v1761
      %v2007 = vrcp.pop %v1764
      %v2008 = vrcp.pop %v1767
      %v2009 = vmul.f32 %v1851, %v1977
      %v2010 = vmul.f32 %v1854, %v1978
      %v2011 = vmul.f32 %v1859, %v1979
      %v2012 = vmul.f32 %v1862, %v1980
      %v2013 = vmul.f32 %v1867, %v1981
      %v2014 = vmul.f32 %v1870, %v1982
      %v2015 = vmul.f32 %v1875, %v1983
      %v2016 = vmul.f32 %v1878, %v1984
      %v2017 = vmul.f32 %v1883, %v1985
      %v2018 = vmul.f32 %v1886, %v1986
      %v2019 = vmul.f32 %v1891, %v1987
      %v2020 = vmul.f32 %v1894, %v1988
      %v2021 = vmul.f32 %v1899, %v1989
      %v2022 = vmul.f32 %v1902, %v1990
      %v2023 = vmul.f32 %v1907, %v1991
      %v2024 = vmul.f32 %v1910, %v1992
      %v2025 = vmul.f32 %v1915, %v1993
      %v2026 = vmul.f32 %v1918, %v1994
      %v2027 = vmul.f32 %v1923, %v1995
      %v2028 = vmul.f32 %v1926, %v1996
      %v2029 = vmul.f32 %v1931, %v1997
      %v2030 = vmul.f32 %v1934, %v1998
      %v2031 = vmul.f32 %v1939, %v1999
      %v2032 = vmul.f32 %v1942, %v2000
      %v2033 = vmul.f32 %v1947, %v2001
      %v2034 = vmul.f32 %v1950, %v2002
      %v2035 = vmul.f32 %v1955, %v2003
      %v2036 = vmul.f32 %v1958, %v2004
      %v2037 = vmul.f32 %v1963, %v2005
      %v2038 = vmul.f32 %v1966, %v2006
      %v2039 = vmul.f32 %v1971, %v2007
      %v2040 = vmul.f32 %v1974, %v2008
      %v2041 = vpack.c.bf16 %v2010, %v2009
      %v2042 = vpack.c.bf16 %v2012, %v2011
      %v2043 = vpack.c.bf16 %v2014, %v2013
      %v2044 = vpack.c.bf16 %v2016, %v2015
      %v2045 = vpack.c.bf16 %v2018, %v2017
      %v2046 = vpack.c.bf16 %v2020, %v2019
      %v2047 = vpack.c.bf16 %v2022, %v2021
      %v2048 = vpack.c.bf16 %v2024, %v2023
      %v2049 = vpack.c.bf16 %v2026, %v2025
      %v2050 = vpack.c.bf16 %v2028, %v2027
      %v2051 = vpack.c.bf16 %v2030, %v2029
      %v2052 = vpack.c.bf16 %v2032, %v2031
      %v2053 = vpack.c.bf16 %v2034, %v2033
      %v2054 = vpack.c.bf16 %v2036, %v2035
      %v2055 = vpack.c.bf16 %v2038, %v2037
      %v2056 = vpack.c.bf16 %v2040, %v2039
      %v2057 = vld [vmem:[%s5] sm:$0xf]
      %v2058 = vld [vmem:[%s5 + $0x4] sm:$0xf]
      %v2059 = vld [vmem:[%s5 + $0x8] sm:$0xf]
      %v2060 = vld [vmem:[%s5 + $0xc] sm:$0xf]
      %s2061 = scalar_lea.vmem %s2, 16
      %v2062 = vld [vmem:[%s2061] sm:$0xf]
      %v2063 = vld [vmem:[%s2061 + $0x4] sm:$0xf]
      %v2064 = vld [vmem:[%s2061 + $0x8] sm:$0xf]
      %v2065 = vld [vmem:[%s2061 + $0xc] sm:$0xf]
      %v2070 = vunpack.c.l.b16 %v2062
      %v2071 = vunpack.c.l.b16 %v2063
      %v2072 = vunpack.c.l.b16 %v2064
      %v2073 = vunpack.c.l.b16 %v2065
      %v2074 = vpack.c.b16 %v2071, %v2070
      %v2075 = vpack.c.b16 %v2073, %v2072
      %2078 = vmatprep.subr.bf16.mxu0 0
      %2079 = vmatpush1.bf16.msra.mxu0 %v2074
      %2080 = vmatprep.subr.bf16.mxu0 0
      %2081 = vmatpush1.bf16.msra.mxu0 %v2075
      %2082 = vmatprep.subr.bf16.mxu0 0
      %2083 = vmatpush1.bf16.msra.mxu0 0
      %2084 = vmatprep.subr.bf16.mxu0 0
      %2085 = vmatpush1.bf16.msra.mxu0 0
      %2086 = vmatprep.subr.bf16.mxu0 0
      %2087 = vmatpush1.bf16.msra.mxu0 0
      %2088 = vmatprep.subr.bf16.mxu0 0
      %2089 = vmatpush1.bf16.msra.mxu0 0
      %2090 = vmatprep.subr.bf16.mxu0 0
      %2091 = vmatpush1.bf16.msra.mxu0 0
      %2092 = vmatprep.subr.bf16.mxu0 0
      %2093 = vmatpush1.bf16.msra.mxu0 0
      %2094 = vmatprep.subr.bf16.mxu0 0
      %2095 = vmatpush1.bf16.msra.mxu0 0
      %2096 = vmatprep.subr.bf16.mxu0 0
      %2097 = vmatpush1.bf16.msra.mxu0 0
      %2098 = vmatprep.subr.bf16.mxu0 0
      %2099 = vmatpush1.bf16.msra.mxu0 0
      %2100 = vmatprep.subr.bf16.mxu0 0
      %2101 = vmatpush1.bf16.msra.mxu0 0
      %2102 = vmatprep.subr.bf16.mxu0 0
      %2103 = vmatpush1.bf16.msra.mxu0 0
      %2104 = vmatprep.subr.bf16.mxu0 0
      %2105 = vmatpush1.bf16.msra.mxu0 0
      %2106 = vmatprep.subr.bf16.mxu0 0
      %2107 = vmatpush1.bf16.msra.mxu0 0
      %2108 = vmatprep.subr.bf16.mxu0 0
      %2109 = vmatpush1.bf16.msra.mxu0 0
      %2110 = vmatprep.mubr.bf16.mxu0 0
      %2111 = vmatmul.mubr.bf16.gmra.mrb[0].mxu0 %v453
      %v2112 = vpop.f32.mrb[0].mxu0
      %v2113 = vadd.f32 0.0, %v2112
      %v2114 = vpop.f32.mrb[0].mxu0
      %v2115 = vpop.f32.mrb[0].mxu0
      %v2116 = vadd.f32 0.0, %v2115
      %v2117 = vpop.f32.mrb[0].mxu0
      %2118 = vmatprep.mubr.bf16.mxu0 0
      %2119 = vmatmul.mubr.bf16.gmra.mrb[0].mxu0 %v456
      %v2120 = vpop.f32.mrb[0].mxu0
      %v2121 = vadd.f32 0.0, %v2120
      %v2122 = vpop.f32.mrb[0].mxu0
      %v2123 = vpop.f32.mrb[0].mxu0
      %v2124 = vadd.f32 0.0, %v2123
      %v2125 = vpop.f32.mrb[0].mxu0
      %2126 = vmatprep.mubr.bf16.mxu0 0
      %2127 = vmatmul.mubr.bf16.gmra.mrb[0].mxu0 %v459
      %v2128 = vpop.f32.mrb[0].mxu0
      %v2129 = vadd.f32 0.0, %v2128
      %v2130 = vpop.f32.mrb[0].mxu0
      %v2131 = vpop.f32.mrb[0].mxu0
      %v2132 = vadd.f32 0.0, %v2131
      %v2133 = vpop.f32.mrb[0].mxu0
      %2134 = vmatprep.mubr.bf16.mxu0 0
      %2135 = vmatmul.mubr.bf16.gmra.mrb[0].mxu0 %v462
      %v2136 = vpop.f32.mrb[0].mxu0
      %v2137 = vadd.f32 0.0, %v2136
      %v2138 = vpop.f32.mrb[0].mxu0
      %v2139 = vpop.f32.mrb[0].mxu0
      %v2140 = vadd.f32 0.0, %v2139
      %v2141 = vpop.f32.mrb[0].mxu0
      %2142 = vmatprep.mubr.bf16.mxu0 0
      %2143 = vmatmul.mubr.bf16.gmra.mrb[0].mxu0 %v465
      %v2144 = vpop.f32.mrb[0].mxu0
      %v2145 = vadd.f32 0.0, %v2144
      %v2146 = vpop.f32.mrb[0].mxu0
      %v2147 = vpop.f32.mrb[0].mxu0
      %v2148 = vadd.f32 0.0, %v2147
      %v2149 = vpop.f32.mrb[0].mxu0
      %2150 = vmatprep.mubr.bf16.mxu0 0
      %2151 = vmatmul.mubr.bf16.gmra.mrb[0].mxu0 %v468
      %v2152 = vpop.f32.mrb[0].mxu0
      %v2153 = vadd.f32 0.0, %v2152
      %v2154 = vpop.f32.mrb[0].mxu0
      %v2155 = vpop.f32.mrb[0].mxu0
      %v2156 = vadd.f32 0.0, %v2155
      %v2157 = vpop.f32.mrb[0].mxu0
      %2158 = vmatprep.mubr.bf16.mxu0 0
      %2159 = vmatmul.mubr.bf16.gmra.mrb[0].mxu0 %v471
      %v2160 = vpop.f32.mrb[0].mxu0
      %v2161 = vadd.f32 0.0, %v2160
      %v2162 = vpop.f32.mrb[0].mxu0
      %v2163 = vpop.f32.mrb[0].mxu0
      %v2164 = vadd.f32 0.0, %v2163
      %v2165 = vpop.f32.mrb[0].mxu0
      %2166 = vmatprep.mubr.bf16.mxu0 0
      %2167 = vmatmul.mubr.bf16.gmra.mrb[0].mxu0 %v474
      %v2168 = vpop.f32.mrb[0].mxu0
      %v2169 = vadd.f32 0.0, %v2168
      %v2170 = vpop.f32.mrb[0].mxu0
      %v2171 = vpop.f32.mrb[0].mxu0
      %v2172 = vadd.f32 0.0, %v2171
      %v2173 = vpop.f32.mrb[0].mxu0
      %2174 = vmatprep.mubr.bf16.mxu0 0
      %2175 = vmatmul.mubr.bf16.gmra.mrb[0].mxu0 %v477
      %v2176 = vpop.f32.mrb[0].mxu0
      %v2177 = vadd.f32 0.0, %v2176
      %v2178 = vpop.f32.mrb[0].mxu0
      %v2179 = vpop.f32.mrb[0].mxu0
      %v2180 = vadd.f32 0.0, %v2179
      %v2181 = vpop.f32.mrb[0].mxu0
      %2182 = vmatprep.mubr.bf16.mxu0 0
      %2183 = vmatmul.mubr.bf16.gmra.mrb[0].mxu0 %v480
      %v2184 = vpop.f32.mrb[0].mxu0
      %v2185 = vadd.f32 0.0, %v2184
      %v2186 = vpop.f32.mrb[0].mxu0
      %v2187 = vpop.f32.mrb[0].mxu0
      %v2188 = vadd.f32 0.0, %v2187
      %v2189 = vpop.f32.mrb[0].mxu0
      %2190 = vmatprep.mubr.bf16.mxu0 0
      %2191 = vmatmul.mubr.bf16.gmra.mrb[0].mxu0 %v483
      %v2192 = vpop.f32.mrb[0].mxu0
      %v2193 = vadd.f32 0.0, %v2192
      %v2194 = vpop.f32.mrb[0].mxu0
      %v2195 = vpop.f32.mrb[0].mxu0
      %v2196 = vadd.f32 0.0, %v2195
      %v2197 = vpop.f32.mrb[0].mxu0
      %2198 = vmatprep.mubr.bf16.mxu0 0
      %2199 = vmatmul.mubr.bf16.gmra.mrb[0].mxu0 %v486
      %v2200 = vpop.f32.mrb[0].mxu0
      %v2201 = vadd.f32 0.0, %v2200
      %v2202 = vpop.f32.mrb[0].mxu0
      %v2203 = vpop.f32.mrb[0].mxu0
      %v2204 = vadd.f32 0.0, %v2203
      %v2205 = vpop.f32.mrb[0].mxu0
      %2206 = vmatprep.mubr.bf16.mxu0 0
      %2207 = vmatmul.mubr.bf16.gmra.mrb[0].mxu0 %v489
      %v2208 = vpop.f32.mrb[0].mxu0
      %v2209 = vadd.f32 0.0, %v2208
      %v2210 = vpop.f32.mrb[0].mxu0
      %v2211 = vpop.f32.mrb[0].mxu0
      %v2212 = vadd.f32 0.0, %v2211
      %v2213 = vpop.f32.mrb[0].mxu0
      %2214 = vmatprep.mubr.bf16.mxu0 0
      %2215 = vmatmul.mubr.bf16.gmra.mrb[0].mxu0 %v492
      %v2216 = vpop.f32.mrb[0].mxu0
      %v2217 = vadd.f32 0.0, %v2216
      %v2218 = vpop.f32.mrb[0].mxu0
      %v2219 = vpop.f32.mrb[0].mxu0
      %v2220 = vadd.f32 0.0, %v2219
      %v2221 = vpop.f32.mrb[0].mxu0
      %2222 = vmatprep.mubr.bf16.mxu0 0
      %2223 = vmatmul.mubr.bf16.gmra.mrb[0].mxu0 %v495
      %v2224 = vpop.f32.mrb[0].mxu0
      %v2225 = vadd.f32 0.0, %v2224
      %v2226 = vpop.f32.mrb[0].mxu0
      %v2227 = vpop.f32.mrb[0].mxu0
      %v2228 = vadd.f32 0.0, %v2227
      %v2229 = vpop.f32.mrb[0].mxu0
      %2230 = vmatprep.mubr.bf16.mxu0 0
      %2231 = vmatmul.mubr.bf16.gmra.mrb[0].mxu0 %v498
      %v2232 = vpop.f32.mrb[0].mxu0
      %v2233 = vadd.f32 0.0, %v2232
      %v2234 = vpop.f32.mrb[0].mxu0
      %v2235 = vpop.f32.mrb[0].mxu0
      %v2236 = vadd.f32 0.0, %v2235
      %v2237 = vpop.f32.mrb[0].mxu0
      %2238 = vdwg.mxu0
      %s2239 = scalar_lea.vmem %s3, 16
      %v2240 = vld [vmem:[%s2239] sm:$0xf]
      %v2241 = vld [vmem:[%s2239 + $0x4] sm:$0xf]
      %v2242 = vld [vmem:[%s2239 + $0x8] sm:$0xf]
      %v2243 = vld [vmem:[%s2239 + $0xc] sm:$0xf]
      %v2248 = vunpack.c.l.b16 %v2240
      %v2249 = vunpack.c.l.b16 %v2241
      %v2250 = vunpack.c.l.b16 %v2242
      %v2251 = vunpack.c.l.b16 %v2243
      %v2252 = vpack.c.b16 %v2249, %v2248
      %v2253 = vpack.c.b16 %v2251, %v2250
      %2256 = vmatprep.subr.bf16.mxu0 0
      %2257 = vmatpush1.bf16.msra.mxu0 %v2252
      %2258 = vmatprep.subr.bf16.mxu0 0
      %2259 = vmatpush1.bf16.msra.mxu0 %v2253
      %2260 = vmatprep.subr.bf16.mxu0 0
      %2261 = vmatpush1.bf16.msra.mxu0 0
      %2262 = vmatprep.subr.bf16.mxu0 0
      %2263 = vmatpush1.bf16.msra.mxu0 0
      %2264 = vmatprep.subr.bf16.mxu0 0
      %2265 = vmatpush1.bf16.msra.mxu0 0
      %2266 = vmatprep.subr.bf16.mxu0 0
      %2267 = vmatpush1.bf16.msra.mxu0 0
      %2268 = vmatprep.subr.bf16.mxu0 0
      %2269 = vmatpush1.bf16.msra.mxu0 0
      %2270 = vmatprep.subr.bf16.mxu0 0
      %2271 = vmatpush1.bf16.msra.mxu0 0
      %2272 = vmatprep.subr.bf16.mxu0 0
      %2273 = vmatpush1.bf16.msra.mxu0 0
      %2274 = vmatprep.subr.bf16.mxu0 0
      %2275 = vmatpush1.bf16.msra.mxu0 0
      %2276 = vmatprep.subr.bf16.mxu0 0
      %2277 = vmatpush1.bf16.msra.mxu0 0
      %2278 = vmatprep.subr.bf16.mxu0 0
      %2279 = vmatpush1.bf16.msra.mxu0 0
      %2280 = vmatprep.subr.bf16.mxu0 0
      %2281 = vmatpush1.bf16.msra.mxu0 0
      %2282 = vmatprep.subr.bf16.mxu0 0
      %2283 = vmatpush1.bf16.msra.mxu0 0
      %2284 = vmatprep.subr.bf16.mxu0 0
      %2285 = vmatpush1.bf16.msra.mxu0 0
      %2286 = vmatprep.subr.bf16.mxu0 0
      %2287 = vmatpush1.bf16.msra.mxu0 0
      %2288 = vmatprep.mubr.bf16.mxu0 0
      %2289 = vmatmul.mubr.bf16.gmra.mrb[0].mxu0 %v678
      %v2290 = vpop.f32.mrb[0].mxu0
      %v2291 = vadd.f32 0.0, %v2290
      %v2292 = vpop.f32.mrb[0].mxu0
      %v2293 = vpop.f32.mrb[0].mxu0
      %v2294 = vadd.f32 0.0, %v2293
      %v2295 = vpop.f32.mrb[0].mxu0
      %2296 = vmatprep.mubr.bf16.mxu0 0
      %2297 = vmatmul.mubr.bf16.gmra.mrb[0].mxu0 %v681
      %v2298 = vpop.f32.mrb[0].mxu0
      %v2299 = vadd.f32 0.0, %v2298
      %v2300 = vpop.f32.mrb[0].mxu0
      %v2301 = vpop.f32.mrb[0].mxu0
      %v2302 = vadd.f32 0.0, %v2301
      %v2303 = vpop.f32.mrb[0].mxu0
      %2304 = vmatprep.mubr.bf16.mxu0 0
      %2305 = vmatmul.mubr.bf16.gmra.mrb[0].mxu0 %v684
      %v2306 = vpop.f32.mrb[0].mxu0
      %v2307 = vadd.f32 0.0, %v2306
      %v2308 = vpop.f32.mrb[0].mxu0
      %v2309 = vpop.f32.mrb[0].mxu0
      %v2310 = vadd.f32 0.0, %v2309
      %v2311 = vpop.f32.mrb[0].mxu0
      %2312 = vmatprep.mubr.bf16.mxu0 0
      %2313 = vmatmul.mubr.bf16.gmra.mrb[0].mxu0 %v687
      %v2314 = vpop.f32.mrb[0].mxu0
      %v2315 = vadd.f32 0.0, %v2314
      %v2316 = vpop.f32.mrb[0].mxu0
      %v2317 = vpop.f32.mrb[0].mxu0
      %v2318 = vadd.f32 0.0, %v2317
      %v2319 = vpop.f32.mrb[0].mxu0
      %2320 = vmatprep.mubr.bf16.mxu0 0
      %2321 = vmatmul.mubr.bf16.gmra.mrb[0].mxu0 %v690
      %v2322 = vpop.f32.mrb[0].mxu0
      %v2323 = vadd.f32 0.0, %v2322
      %v2324 = vpop.f32.mrb[0].mxu0
      %v2325 = vpop.f32.mrb[0].mxu0
      %v2326 = vadd.f32 0.0, %v2325
      %v2327 = vpop.f32.mrb[0].mxu0
      %2328 = vmatprep.mubr.bf16.mxu0 0
      %2329 = vmatmul.mubr.bf16.gmra.mrb[0].mxu0 %v693
      %v2330 = vpop.f32.mrb[0].mxu0
      %v2331 = vadd.f32 0.0, %v2330
      %v2332 = vpop.f32.mrb[0].mxu0
      %v2333 = vpop.f32.mrb[0].mxu0
      %v2334 = vadd.f32 0.0, %v2333
      %v2335 = vpop.f32.mrb[0].mxu0
      %2336 = vmatprep.mubr.bf16.mxu0 0
      %2337 = vmatmul.mubr.bf16.gmra.mrb[0].mxu0 %v696
      %v2338 = vpop.f32.mrb[0].mxu0
      %v2339 = vadd.f32 0.0, %v2338
      %v2340 = vpop.f32.mrb[0].mxu0
      %v2341 = vpop.f32.mrb[0].mxu0
      %v2342 = vadd.f32 0.0, %v2341
      %v2343 = vpop.f32.mrb[0].mxu0
      %2344 = vmatprep.mubr.bf16.mxu0 0
      %2345 = vmatmul.mubr.bf16.gmra.mrb[0].mxu0 %v699
      %v2346 = vpop.f32.mrb[0].mxu0
      %v2347 = vadd.f32 0.0, %v2346
      %v2348 = vpop.f32.mrb[0].mxu0
      %v2349 = vpop.f32.mrb[0].mxu0
      %v2350 = vadd.f32 0.0, %v2349
      %v2351 = vpop.f32.mrb[0].mxu0
      %2352 = vmatprep.mubr.bf16.mxu0 0
      %2353 = vmatmul.mubr.bf16.gmra.mrb[0].mxu0 %v702
      %v2354 = vpop.f32.mrb[0].mxu0
      %v2355 = vadd.f32 0.0, %v2354
      %v2356 = vpop.f32.mrb[0].mxu0
      %v2357 = vpop.f32.mrb[0].mxu0
      %v2358 = vadd.f32 0.0, %v2357
      %v2359 = vpop.f32.mrb[0].mxu0
      %2360 = vmatprep.mubr.bf16.mxu0 0
      %2361 = vmatmul.mubr.bf16.gmra.mrb[0].mxu0 %v705
      %v2362 = vpop.f32.mrb[0].mxu0
      %v2363 = vadd.f32 0.0, %v2362
      %v2364 = vpop.f32.mrb[0].mxu0
      %v2365 = vpop.f32.mrb[0].mxu0
      %v2366 = vadd.f32 0.0, %v2365
      %v2367 = vpop.f32.mrb[0].mxu0
      %2368 = vmatprep.mubr.bf16.mxu0 0
      %2369 = vmatmul.mubr.bf16.gmra.mrb[0].mxu0 %v708
      %v2370 = vpop.f32.mrb[0].mxu0
      %v2371 = vadd.f32 0.0, %v2370
      %v2372 = vpop.f32.mrb[0].mxu0
      %v2373 = vpop.f32.mrb[0].mxu0
      %v2374 = vadd.f32 0.0, %v2373
      %v2375 = vpop.f32.mrb[0].mxu0
      %2376 = vmatprep.mubr.bf16.mxu0 0
      %2377 = vmatmul.mubr.bf16.gmra.mrb[0].mxu0 %v711
      %v2378 = vpop.f32.mrb[0].mxu0
      %v2379 = vadd.f32 0.0, %v2378
      %v2380 = vpop.f32.mrb[0].mxu0
      %v2381 = vpop.f32.mrb[0].mxu0
      %v2382 = vadd.f32 0.0, %v2381
      %v2383 = vpop.f32.mrb[0].mxu0
      %2384 = vmatprep.mubr.bf16.mxu0 0
      %2385 = vmatmul.mubr.bf16.gmra.mrb[0].mxu0 %v714
      %v2386 = vpop.f32.mrb[0].mxu0
      %v2387 = vadd.f32 0.0, %v2386
      %v2388 = vpop.f32.mrb[0].mxu0
      %v2389 = vpop.f32.mrb[0].mxu0
      %v2390 = vadd.f32 0.0, %v2389
      %v2391 = vpop.f32.mrb[0].mxu0
      %2392 = vmatprep.mubr.bf16.mxu0 0
      %2393 = vmatmul.mubr.bf16.gmra.mrb[0].mxu0 %v717
      %v2394 = vpop.f32.mrb[0].mxu0
      %v2395 = vadd.f32 0.0, %v2394
      %v2396 = vpop.f32.mrb[0].mxu0
      %v2397 = vpop.f32.mrb[0].mxu0
      %v2398 = vadd.f32 0.0, %v2397
      %v2399 = vpop.f32.mrb[0].mxu0
      %2400 = vmatprep.mubr.bf16.mxu0 0
      %2401 = vmatmul.mubr.bf16.gmra.mrb[0].mxu0 %v720
      %v2402 = vpop.f32.mrb[0].mxu0
      %v2403 = vadd.f32 0.0, %v2402
      %v2404 = vpop.f32.mrb[0].mxu0
      %v2405 = vpop.f32.mrb[0].mxu0
      %v2406 = vadd.f32 0.0, %v2405
      %v2407 = vpop.f32.mrb[0].mxu0
      %2408 = vmatprep.mubr.bf16.mxu0 0
      %2409 = vmatmul.mubr.bf16.gmra.mrb[0].mxu0 %v723
      %v2410 = vpop.f32.mrb[0].mxu0
      %v2411 = vadd.f32 0.0, %v2410
      %v2412 = vpop.f32.mrb[0].mxu0
      %v2413 = vpop.f32.mrb[0].mxu0
      %v2414 = vadd.f32 0.0, %v2413
      %v2415 = vpop.f32.mrb[0].mxu0
      %2416 = vdwg.mxu0
      %s2417 = scalar_lea.vmem %s4, 16
      %v2418 = vld [vmem:[%s2417] sm:$0xf]
      %v2419 = vld [vmem:[%s2417 + $0x4] sm:$0xf]
      %v2420 = vld [vmem:[%s2417 + $0x8] sm:$0xf]
      %v2421 = vld [vmem:[%s2417 + $0xc] sm:$0xf]
      %v2426 = vunpack.c.l.b16 %v2418
      %v2427 = vunpack.c.l.b16 %v2419
      %v2428 = vunpack.c.l.b16 %v2420
      %v2429 = vunpack.c.l.b16 %v2421
      %v2430 = vpack.c.b16 %v2427, %v2426
      %v2431 = vpack.c.b16 %v2429, %v2428
      %2434 = vmatprep.subr.bf16.mxu0 0
      %2435 = vmatpush1.bf16.msra.mxu0 %v2430
      %2436 = vmatprep.subr.bf16.mxu0 0
      %2437 = vmatpush1.bf16.msra.mxu0 %v2431
      %2438 = vmatprep.subr.bf16.mxu0 0
      %2439 = vmatpush1.bf16.msra.mxu0 0
      %2440 = vmatprep.subr.bf16.mxu0 0
      %2441 = vmatpush1.bf16.msra.mxu0 0
      %2442 = vmatprep.subr.bf16.mxu0 0
      %2443 = vmatpush1.bf16.msra.mxu0 0
      %2444 = vmatprep.subr.bf16.mxu0 0
      %2445 = vmatpush1.bf16.msra.mxu0 0
      %2446 = vmatprep.subr.bf16.mxu0 0
      %2447 = vmatpush1.bf16.msra.mxu0 0
      %2448 = vmatprep.subr.bf16.mxu0 0
      %2449 = vmatpush1.bf16.msra.mxu0 0
      %2450 = vmatprep.subr.bf16.mxu0 0
      %2451 = vmatpush1.bf16.msra.mxu0 0
      %2452 = vmatprep.subr.bf16.mxu0 0
      %2453 = vmatpush1.bf16.msra.mxu0 0
      %2454 = vmatprep.subr.bf16.mxu0 0
      %2455 = vmatpush1.bf16.msra.mxu0 0
      %2456 = vmatprep.subr.bf16.mxu0 0
      %2457 = vmatpush1.bf16.msra.mxu0 0
      %2458 = vmatprep.subr.bf16.mxu0 0
      %2459 = vmatpush1.bf16.msra.mxu0 0
      %2460 = vmatprep.subr.bf16.mxu0 0
      %2461 = vmatpush1.bf16.msra.mxu0 0
      %2462 = vmatprep.subr.bf16.mxu0 0
      %2463 = vmatpush1.bf16.msra.mxu0 0
      %2464 = vmatprep.subr.bf16.mxu0 0
      %2465 = vmatpush1.bf16.msra.mxu0 0
      %2466 = vmatprep.mubr.bf16.mxu0 0
      %2467 = vmatmul.mubr.bf16.gmra.mrb[0].mxu0 %v678
      %v2468 = vpop.f32.mrb[0].mxu0
      %v2469 = vadd.f32 0.0, %v2468
      %v2470 = vpop.f32.mrb[0].mxu0
      %v2471 = vpop.f32.mrb[0].mxu0
      %v2472 = vadd.f32 0.0, %v2471
      %v2473 = vpop.f32.mrb[0].mxu0
      %2474 = vmatprep.mubr.bf16.mxu0 0
      %2475 = vmatmul.mubr.bf16.gmra.mrb[0].mxu0 %v681
      %v2476 = vpop.f32.mrb[0].mxu0
      %v2477 = vadd.f32 0.0, %v2476
      %v2478 = vpop.f32.mrb[0].mxu0
      %v2479 = vpop.f32.mrb[0].mxu0
      %v2480 = vadd.f32 0.0, %v2479
      %v2481 = vpop.f32.mrb[0].mxu0
      %2482 = vmatprep.mubr.bf16.mxu0 0
      %2483 = vmatmul.mubr.bf16.gmra.mrb[0].mxu0 %v684
      %v2484 = vpop.f32.mrb[0].mxu0
      %v2485 = vadd.f32 0.0, %v2484
      %v2486 = vpop.f32.mrb[0].mxu0
      %v2487 = vpop.f32.mrb[0].mxu0
      %v2488 = vadd.f32 0.0, %v2487
      %v2489 = vpop.f32.mrb[0].mxu0
      %2490 = vmatprep.mubr.bf16.mxu0 0
      %2491 = vmatmul.mubr.bf16.gmra.mrb[0].mxu0 %v687
      %v2492 = vpop.f32.mrb[0].mxu0
      %v2493 = vadd.f32 0.0, %v2492
      %v2494 = vpop.f32.mrb[0].mxu0
      %v2495 = vpop.f32.mrb[0].mxu0
      %v2496 = vadd.f32 0.0, %v2495
      %v2497 = vpop.f32.mrb[0].mxu0
      %2498 = vmatprep.mubr.bf16.mxu0 0
      %2499 = vmatmul.mubr.bf16.gmra.mrb[0].mxu0 %v690
      %v2500 = vpop.f32.mrb[0].mxu0
      %v2501 = vadd.f32 0.0, %v2500
      %v2502 = vpop.f32.mrb[0].mxu0
      %v2503 = vpop.f32.mrb[0].mxu0
      %v2504 = vadd.f32 0.0, %v2503
      %v2505 = vpop.f32.mrb[0].mxu0
      %2506 = vmatprep.mubr.bf16.mxu0 0
      %2507 = vmatmul.mubr.bf16.gmra.mrb[0].mxu0 %v693
      %v2508 = vpop.f32.mrb[0].mxu0
      %v2509 = vadd.f32 0.0, %v2508
      %v2510 = vpop.f32.mrb[0].mxu0
      %v2511 = vpop.f32.mrb[0].mxu0
      %v2512 = vadd.f32 0.0, %v2511
      %v2513 = vpop.f32.mrb[0].mxu0
      %2514 = vmatprep.mubr.bf16.mxu0 0
      %2515 = vmatmul.mubr.bf16.gmra.mrb[0].mxu0 %v696
      %v2516 = vpop.f32.mrb[0].mxu0
      %v2517 = vadd.f32 0.0, %v2516
      %v2518 = vpop.f32.mrb[0].mxu0
      %v2519 = vpop.f32.mrb[0].mxu0
      %v2520 = vadd.f32 0.0, %v2519
      %v2521 = vpop.f32.mrb[0].mxu0
      %2522 = vmatprep.mubr.bf16.mxu0 0
      %2523 = vmatmul.mubr.bf16.gmra.mrb[0].mxu0 %v699
      %v2524 = vpop.f32.mrb[0].mxu0
      %v2525 = vadd.f32 0.0, %v2524
      %v2526 = vpop.f32.mrb[0].mxu0
      %v2527 = vpop.f32.mrb[0].mxu0
      %v2528 = vadd.f32 0.0, %v2527
      %v2529 = vpop.f32.mrb[0].mxu0
      %2530 = vmatprep.mubr.bf16.mxu0 0
      %2531 = vmatmul.mubr.bf16.gmra.mrb[0].mxu0 %v702
      %v2532 = vpop.f32.mrb[0].mxu0
      %v2533 = vadd.f32 0.0, %v2532
      %v2534 = vpop.f32.mrb[0].mxu0
      %v2535 = vpop.f32.mrb[0].mxu0
      %v2536 = vadd.f32 0.0, %v2535
      %v2537 = vpop.f32.mrb[0].mxu0
      %2538 = vmatprep.mubr.bf16.mxu0 0
      %2539 = vmatmul.mubr.bf16.gmra.mrb[0].mxu0 %v705
      %v2540 = vpop.f32.mrb[0].mxu0
      %v2541 = vadd.f32 0.0, %v2540
      %v2542 = vpop.f32.mrb[0].mxu0
      %v2543 = vpop.f32.mrb[0].mxu0
      %v2544 = vadd.f32 0.0, %v2543
      %v2545 = vpop.f32.mrb[0].mxu0
      %2546 = vmatprep.mubr.bf16.mxu0 0
      %2547 = vmatmul.mubr.bf16.gmra.mrb[0].mxu0 %v708
      %v2548 = vpop.f32.mrb[0].mxu0
      %v2549 = vadd.f32 0.0, %v2548
      %v2550 = vpop.f32.mrb[0].mxu0
      %v2551 = vpop.f32.mrb[0].mxu0
      %v2552 = vadd.f32 0.0, %v2551
      %v2553 = vpop.f32.mrb[0].mxu0
      %2554 = vmatprep.mubr.bf16.mxu0 0
      %2555 = vmatmul.mubr.bf16.gmra.mrb[0].mxu0 %v711
      %v2556 = vpop.f32.mrb[0].mxu0
      %v2557 = vadd.f32 0.0, %v2556
      %v2558 = vpop.f32.mrb[0].mxu0
      %v2559 = vpop.f32.mrb[0].mxu0
      %v2560 = vadd.f32 0.0, %v2559
      %v2561 = vpop.f32.mrb[0].mxu0
      %2562 = vmatprep.mubr.bf16.mxu0 0
      %2563 = vmatmul.mubr.bf16.gmra.mrb[0].mxu0 %v714
      %v2564 = vpop.f32.mrb[0].mxu0
      %v2565 = vadd.f32 0.0, %v2564
      %v2566 = vpop.f32.mrb[0].mxu0
      %v2567 = vpop.f32.mrb[0].mxu0
      %v2568 = vadd.f32 0.0, %v2567
      %v2569 = vpop.f32.mrb[0].mxu0
      %2570 = vmatprep.mubr.bf16.mxu0 0
      %2571 = vmatmul.mubr.bf16.gmra.mrb[0].mxu0 %v717
      %v2572 = vpop.f32.mrb[0].mxu0
      %v2573 = vadd.f32 0.0, %v2572
      %v2574 = vpop.f32.mrb[0].mxu0
      %v2575 = vpop.f32.mrb[0].mxu0
      %v2576 = vadd.f32 0.0, %v2575
      %v2577 = vpop.f32.mrb[0].mxu0
      %2578 = vmatprep.mubr.bf16.mxu0 0
      %2579 = vmatmul.mubr.bf16.gmra.mrb[0].mxu0 %v720
      %v2580 = vpop.f32.mrb[0].mxu0
      %v2581 = vadd.f32 0.0, %v2580
      %v2582 = vpop.f32.mrb[0].mxu0
      %v2583 = vpop.f32.mrb[0].mxu0
      %v2584 = vadd.f32 0.0, %v2583
      %v2585 = vpop.f32.mrb[0].mxu0
      %2586 = vmatprep.mubr.bf16.mxu0 0
      %2587 = vmatmul.mubr.bf16.gmra.mrb[0].mxu0 %v723
      %v2588 = vpop.f32.mrb[0].mxu0
      %v2589 = vadd.f32 0.0, %v2588
      %v2590 = vpop.f32.mrb[0].mxu0
      %v2591 = vpop.f32.mrb[0].mxu0
      %v2592 = vadd.f32 0.0, %v2591
      %v2593 = vpop.f32.mrb[0].mxu0
      %2594 = vdwg.mxu0
      %v2595 = vpack.c.bf16 %v2116, %v2113
      %v2596 = vpack.c.bf16 %v2124, %v2121
      %v2597 = vpack.c.bf16 %v2132, %v2129
      %v2598 = vpack.c.bf16 %v2140, %v2137
      %v2599 = vpack.c.bf16 %v2148, %v2145
      %v2600 = vpack.c.bf16 %v2156, %v2153
      %v2601 = vpack.c.bf16 %v2164, %v2161
      %v2602 = vpack.c.bf16 %v2172, %v2169
      %v2603 = vpack.c.bf16 %v2180, %v2177
      %v2604 = vpack.c.bf16 %v2188, %v2185
      %v2605 = vpack.c.bf16 %v2196, %v2193
      %v2606 = vpack.c.bf16 %v2204, %v2201
      %v2607 = vpack.c.bf16 %v2212, %v2209
      %v2608 = vpack.c.bf16 %v2220, %v2217
      %v2609 = vpack.c.bf16 %v2228, %v2225
      %v2610 = vpack.c.bf16 %v2236, %v2233
      %v2611 = vpack.c.bf16 %v2294, %v2291
      %v2612 = vpack.c.bf16 %v2302, %v2299
      %v2613 = vpack.c.bf16 %v2310, %v2307
      %v2614 = vpack.c.bf16 %v2318, %v2315
      %v2615 = vpack.c.bf16 %v2326, %v2323
      %v2616 = vpack.c.bf16 %v2334, %v2331
      %v2617 = vpack.c.bf16 %v2342, %v2339
      %v2618 = vpack.c.bf16 %v2350, %v2347
      %v2619 = vpack.c.bf16 %v2358, %v2355
      %v2620 = vpack.c.bf16 %v2366, %v2363
      %v2621 = vpack.c.bf16 %v2374, %v2371
      %v2622 = vpack.c.bf16 %v2382, %v2379
      %v2623 = vpack.c.bf16 %v2390, %v2387
      %v2624 = vpack.c.bf16 %v2398, %v2395
      %v2625 = vpack.c.bf16 %v2406, %v2403
      %v2626 = vpack.c.bf16 %v2414, %v2411
      %v2628 = vsel %vm451, %v2595, 0
      %v2631 = vsel %vm451, %v2596, 0
      %v2634 = vsel %vm451, %v2597, 0
      %v2637 = vsel %vm451, %v2598, 0
      %v2640 = vsel %vm451, %v2599, 0
      %v2643 = vsel %vm451, %v2600, 0
      %v2646 = vsel %vm451, %v2601, 0
      %v2649 = vsel %vm451, %v2602, 0
      %v2652 = vsel %vm451, %v2603, 0
      %v2655 = vsel %vm451, %v2604, 0
      %v2658 = vsel %vm451, %v2605, 0
      %v2661 = vsel %vm451, %v2606, 0
      %v2664 = vsel %vm451, %v2607, 0
      %v2667 = vsel %vm451, %v2608, 0
      %v2670 = vsel %vm451, %v2609, 0
      %v2673 = vsel %vm451, %v2610, 0
      %v2676 = vsel %vm451, %v2611, 0
      %v2679 = vsel %vm451, %v2612, 0
      %v2682 = vsel %vm451, %v2613, 0
      %v2685 = vsel %vm451, %v2614, 0
      %v2688 = vsel %vm451, %v2615, 0
      %v2691 = vsel %vm451, %v2616, 0
      %v2694 = vsel %vm451, %v2617, 0
      %v2697 = vsel %vm451, %v2618, 0
      %v2700 = vsel %vm451, %v2619, 0
      %v2703 = vsel %vm451, %v2620, 0
      %v2706 = vsel %vm451, %v2621, 0
      %v2709 = vsel %vm451, %v2622, 0
      %v2712 = vsel %vm451, %v2623, 0
      %v2715 = vsel %vm451, %v2624, 0
      %v2718 = vsel %vm451, %v2625, 0
      %v2721 = vsel %vm451, %v2626, 0
      %2723 = vmatprep.subr.bf16.mxu0 0
      %2724 = vmatpush1.bf16.xpose.msra.mxu0 %v2676
      %2725 = vmatprep.subr.bf16.mxu0 0
      %2726 = vmatpush1.bf16.xpose.msra.mxu0 %v2679
      %2727 = vmatprep.subr.bf16.mxu0 0
      %2728 = vmatpush1.bf16.xpose.msra.mxu0 %v2682
      %2729 = vmatprep.subr.bf16.mxu0 0
      %2730 = vmatpush1.bf16.xpose.msra.mxu0 %v2685
      %2731 = vmatprep.subr.bf16.mxu0 0
      %2732 = vmatpush1.bf16.xpose.msra.mxu0 %v2688
      %2733 = vmatprep.subr.bf16.mxu0 0
      %2734 = vmatpush1.bf16.xpose.msra.mxu0 %v2691
      %2735 = vmatprep.subr.bf16.mxu0 0
      %2736 = vmatpush1.bf16.xpose.msra.mxu0 %v2694
      %2737 = vmatprep.subr.bf16.mxu0 0
      %2738 = vmatpush1.bf16.xpose.msra.mxu0 %v2697
      %2739 = vmatprep.subr.bf16.mxu0 0
      %2740 = vmatpush1.bf16.xpose.msra.mxu0 %v2700
      %2741 = vmatprep.subr.bf16.mxu0 0
      %2742 = vmatpush1.bf16.xpose.msra.mxu0 %v2703
      %2743 = vmatprep.subr.bf16.mxu0 0
      %2744 = vmatpush1.bf16.xpose.msra.mxu0 %v2706
      %2745 = vmatprep.subr.bf16.mxu0 0
      %2746 = vmatpush1.bf16.xpose.msra.mxu0 %v2709
      %2747 = vmatprep.subr.bf16.mxu0 0
      %2748 = vmatpush1.bf16.xpose.msra.mxu0 %v2712
      %2749 = vmatprep.subr.bf16.mxu0 0
      %2750 = vmatpush1.bf16.xpose.msra.mxu0 %v2715
      %2751 = vmatprep.subr.bf16.mxu0 0
      %2752 = vmatpush1.bf16.xpose.msra.mxu0 %v2718
      %2753 = vmatprep.subr.bf16.mxu0 0
      %2754 = vmatpush1.bf16.xpose.msra.mxu0 %v2721
      %2755 = vmatprep.mubr.bf16.mxu0 0
      %2756 = vmatmul.mubr.bf16.gmra.mrb[0].mxu0 %v2628
      %v2757 = vpop.f32.mrb[0].mxu0
      %v2758 = vadd.f32 0.0, %v2757
      %v2759 = vpop.f32.mrb[0].mxu0
      %v2760 = vadd.f32 0.0, %v2759
      %v2761 = vpop.f32.mrb[0].mxu0
      %v2762 = vadd.f32 0.0, %v2761
      %v2763 = vpop.f32.mrb[0].mxu0
      %v2764 = vadd.f32 0.0, %v2763
      %2765 = vmatprep.mubr.bf16.mxu0 0
      %2766 = vmatmul.mubr.bf16.gmra.mrb[0].mxu0 %v2631
      %v2767 = vpop.f32.mrb[0].mxu0
      %v2768 = vadd.f32 0.0, %v2767
      %v2769 = vpop.f32.mrb[0].mxu0
      %v2770 = vadd.f32 0.0, %v2769
      %v2771 = vpop.f32.mrb[0].mxu0
      %v2772 = vadd.f32 0.0, %v2771
      %v2773 = vpop.f32.mrb[0].mxu0
      %v2774 = vadd.f32 0.0, %v2773
      %2775 = vmatprep.mubr.bf16.mxu0 0
      %2776 = vmatmul.mubr.bf16.gmra.mrb[0].mxu0 %v2634
      %v2777 = vpop.f32.mrb[0].mxu0
      %v2778 = vadd.f32 0.0, %v2777
      %v2779 = vpop.f32.mrb[0].mxu0
      %v2780 = vadd.f32 0.0, %v2779
      %v2781 = vpop.f32.mrb[0].mxu0
      %v2782 = vadd.f32 0.0, %v2781
      %v2783 = vpop.f32.mrb[0].mxu0
      %v2784 = vadd.f32 0.0, %v2783
      %2785 = vmatprep.mubr.bf16.mxu0 0
      %2786 = vmatmul.mubr.bf16.gmra.mrb[0].mxu0 %v2637
      %v2787 = vpop.f32.mrb[0].mxu0
      %v2788 = vadd.f32 0.0, %v2787
      %v2789 = vpop.f32.mrb[0].mxu0
      %v2790 = vadd.f32 0.0, %v2789
      %v2791 = vpop.f32.mrb[0].mxu0
      %v2792 = vadd.f32 0.0, %v2791
      %v2793 = vpop.f32.mrb[0].mxu0
      %v2794 = vadd.f32 0.0, %v2793
      %2795 = vmatprep.mubr.bf16.mxu0 0
      %2796 = vmatmul.mubr.bf16.gmra.mrb[0].mxu0 %v2640
      %v2797 = vpop.f32.mrb[0].mxu0
      %v2798 = vadd.f32 0.0, %v2797
      %v2799 = vpop.f32.mrb[0].mxu0
      %v2800 = vadd.f32 0.0, %v2799
      %v2801 = vpop.f32.mrb[0].mxu0
      %v2802 = vadd.f32 0.0, %v2801
      %v2803 = vpop.f32.mrb[0].mxu0
      %v2804 = vadd.f32 0.0, %v2803
      %2805 = vmatprep.mubr.bf16.mxu0 0
      %2806 = vmatmul.mubr.bf16.gmra.mrb[0].mxu0 %v2643
      %v2807 = vpop.f32.mrb[0].mxu0
      %v2808 = vadd.f32 0.0, %v2807
      %v2809 = vpop.f32.mrb[0].mxu0
      %v2810 = vadd.f32 0.0, %v2809
      %v2811 = vpop.f32.mrb[0].mxu0
      %v2812 = vadd.f32 0.0, %v2811
      %v2813 = vpop.f32.mrb[0].mxu0
      %v2814 = vadd.f32 0.0, %v2813
      %2815 = vmatprep.mubr.bf16.mxu0 0
      %2816 = vmatmul.mubr.bf16.gmra.mrb[0].mxu0 %v2646
      %v2817 = vpop.f32.mrb[0].mxu0
      %v2818 = vadd.f32 0.0, %v2817
      %v2819 = vpop.f32.mrb[0].mxu0
      %v2820 = vadd.f32 0.0, %v2819
      %v2821 = vpop.f32.mrb[0].mxu0
      %v2822 = vadd.f32 0.0, %v2821
      %v2823 = vpop.f32.mrb[0].mxu0
      %v2824 = vadd.f32 0.0, %v2823
      %2825 = vmatprep.mubr.bf16.mxu0 0
      %2826 = vmatmul.mubr.bf16.gmra.mrb[0].mxu0 %v2649
      %v2827 = vpop.f32.mrb[0].mxu0
      %v2828 = vadd.f32 0.0, %v2827
      %v2829 = vpop.f32.mrb[0].mxu0
      %v2830 = vadd.f32 0.0, %v2829
      %v2831 = vpop.f32.mrb[0].mxu0
      %v2832 = vadd.f32 0.0, %v2831
      %v2833 = vpop.f32.mrb[0].mxu0
      %v2834 = vadd.f32 0.0, %v2833
      %2835 = vmatprep.mubr.bf16.mxu0 0
      %2836 = vmatmul.mubr.bf16.gmra.mrb[0].mxu0 %v2652
      %v2837 = vpop.f32.mrb[0].mxu0
      %v2838 = vadd.f32 0.0, %v2837
      %v2839 = vpop.f32.mrb[0].mxu0
      %v2840 = vadd.f32 0.0, %v2839
      %v2841 = vpop.f32.mrb[0].mxu0
      %v2842 = vadd.f32 0.0, %v2841
      %v2843 = vpop.f32.mrb[0].mxu0
      %v2844 = vadd.f32 0.0, %v2843
      %2845 = vmatprep.mubr.bf16.mxu0 0
      %2846 = vmatmul.mubr.bf16.gmra.mrb[0].mxu0 %v2655
      %v2847 = vpop.f32.mrb[0].mxu0
      %v2848 = vadd.f32 0.0, %v2847
      %v2849 = vpop.f32.mrb[0].mxu0
      %v2850 = vadd.f32 0.0, %v2849
      %v2851 = vpop.f32.mrb[0].mxu0
      %v2852 = vadd.f32 0.0, %v2851
      %v2853 = vpop.f32.mrb[0].mxu0
      %v2854 = vadd.f32 0.0, %v2853
      %2855 = vmatprep.mubr.bf16.mxu0 0
      %2856 = vmatmul.mubr.bf16.gmra.mrb[0].mxu0 %v2658
      %v2857 = vpop.f32.mrb[0].mxu0
      %v2858 = vadd.f32 0.0, %v2857
      %v2859 = vpop.f32.mrb[0].mxu0
      %v2860 = vadd.f32 0.0, %v2859
      %v2861 = vpop.f32.mrb[0].mxu0
      %v2862 = vadd.f32 0.0, %v2861
      %v2863 = vpop.f32.mrb[0].mxu0
      %v2864 = vadd.f32 0.0, %v2863
      %2865 = vmatprep.mubr.bf16.mxu0 0
      %2866 = vmatmul.mubr.bf16.gmra.mrb[0].mxu0 %v2661
      %v2867 = vpop.f32.mrb[0].mxu0
      %v2868 = vadd.f32 0.0, %v2867
      %v2869 = vpop.f32.mrb[0].mxu0
      %v2870 = vadd.f32 0.0, %v2869
      %v2871 = vpop.f32.mrb[0].mxu0
      %v2872 = vadd.f32 0.0, %v2871
      %v2873 = vpop.f32.mrb[0].mxu0
      %v2874 = vadd.f32 0.0, %v2873
      %2875 = vmatprep.mubr.bf16.mxu0 0
      %2876 = vmatmul.mubr.bf16.gmra.mrb[0].mxu0 %v2664
      %v2877 = vpop.f32.mrb[0].mxu0
      %v2878 = vadd.f32 0.0, %v2877
      %v2879 = vpop.f32.mrb[0].mxu0
      %v2880 = vadd.f32 0.0, %v2879
      %v2881 = vpop.f32.mrb[0].mxu0
      %v2882 = vadd.f32 0.0, %v2881
      %v2883 = vpop.f32.mrb[0].mxu0
      %v2884 = vadd.f32 0.0, %v2883
      %2885 = vmatprep.mubr.bf16.mxu0 0
      %2886 = vmatmul.mubr.bf16.gmra.mrb[0].mxu0 %v2667
      %v2887 = vpop.f32.mrb[0].mxu0
      %v2888 = vadd.f32 0.0, %v2887
      %v2889 = vpop.f32.mrb[0].mxu0
      %v2890 = vadd.f32 0.0, %v2889
      %v2891 = vpop.f32.mrb[0].mxu0
      %v2892 = vadd.f32 0.0, %v2891
      %v2893 = vpop.f32.mrb[0].mxu0
      %v2894 = vadd.f32 0.0, %v2893
      %2895 = vmatprep.mubr.bf16.mxu0 0
      %2896 = vmatmul.mubr.bf16.gmra.mrb[0].mxu0 %v2670
      %v2897 = vpop.f32.mrb[0].mxu0
      %v2898 = vadd.f32 0.0, %v2897
      %v2899 = vpop.f32.mrb[0].mxu0
      %v2900 = vadd.f32 0.0, %v2899
      %v2901 = vpop.f32.mrb[0].mxu0
      %v2902 = vadd.f32 0.0, %v2901
      %v2903 = vpop.f32.mrb[0].mxu0
      %v2904 = vadd.f32 0.0, %v2903
      %2905 = vmatprep.mubr.bf16.mxu0 0
      %2906 = vmatmul.mubr.bf16.gmra.mrb[0].mxu0 %v2673
      %v2907 = vpop.f32.mrb[0].mxu0
      %v2908 = vadd.f32 0.0, %v2907
      %v2909 = vpop.f32.mrb[0].mxu0
      %v2910 = vadd.f32 0.0, %v2909
      %v2911 = vpop.f32.mrb[0].mxu0
      %v2912 = vadd.f32 0.0, %v2911
      %v2913 = vpop.f32.mrb[0].mxu0
      %v2914 = vadd.f32 0.0, %v2913
      %2915 = vdwg.mxu0
      %v2916 = vmax.f32 %v2758, %v2760
      %2917 = vmax.xlane.f32.xlu0 %v2916
      %v2918 = vpop.xlane.xlu0 %2917
      %v2919 = vmax.f32 %v2762, %v2764
      %2920 = vmax.xlane.f32.xlu0 %v2919
      %v2921 = vpop.xlane.xlu0 %2920
      %v2922 = vmax.f32 %v2768, %v2770
      %2923 = vmax.xlane.f32.xlu0 %v2922
      %v2924 = vpop.xlane.xlu0 %2923
      %v2925 = vmax.f32 %v2772, %v2774
      %2926 = vmax.xlane.f32.xlu0 %v2925
      %v2927 = vpop.xlane.xlu0 %2926
      %v2928 = vmax.f32 %v2778, %v2780
      %2929 = vmax.xlane.f32.xlu0 %v2928
      %v2930 = vpop.xlane.xlu0 %2929
      %v2931 = vmax.f32 %v2782, %v2784
      %2932 = vmax.xlane.f32.xlu0 %v2931
      %v2933 = vpop.xlane.xlu0 %2932
      %v2934 = vmax.f32 %v2788, %v2790
      %2935 = vmax.xlane.f32.xlu0 %v2934
      %v2936 = vpop.xlane.xlu0 %2935
      %v2937 = vmax.f32 %v2792, %v2794
      %2938 = vmax.xlane.f32.xlu0 %v2937
      %v2939 = vpop.xlane.xlu0 %2938
      %v2940 = vmax.f32 %v2798, %v2800
      %2941 = vmax.xlane.f32.xlu0 %v2940
      %v2942 = vpop.xlane.xlu0 %2941
      %v2943 = vmax.f32 %v2802, %v2804
      %2944 = vmax.xlane.f32.xlu0 %v2943
      %v2945 = vpop.xlane.xlu0 %2944
      %v2946 = vmax.f32 %v2808, %v2810
      %2947 = vmax.xlane.f32.xlu0 %v2946
      %v2948 = vpop.xlane.xlu0 %2947
      %v2949 = vmax.f32 %v2812, %v2814
      %2950 = vmax.xlane.f32.xlu0 %v2949
      %v2951 = vpop.xlane.xlu0 %2950
      %v2952 = vmax.f32 %v2818, %v2820
      %2953 = vmax.xlane.f32.xlu0 %v2952
      %v2954 = vpop.xlane.xlu0 %2953
      %v2955 = vmax.f32 %v2822, %v2824
      %2956 = vmax.xlane.f32.xlu0 %v2955
      %v2957 = vpop.xlane.xlu0 %2956
      %v2958 = vmax.f32 %v2828, %v2830
      %2959 = vmax.xlane.f32.xlu0 %v2958
      %v2960 = vpop.xlane.xlu0 %2959
      %v2961 = vmax.f32 %v2832, %v2834
      %2962 = vmax.xlane.f32.xlu0 %v2961
      %v2963 = vpop.xlane.xlu0 %2962
      %v2964 = vmax.f32 %v2838, %v2840
      %2965 = vmax.xlane.f32.xlu0 %v2964
      %v2966 = vpop.xlane.xlu0 %2965
      %v2967 = vmax.f32 %v2842, %v2844
      %2968 = vmax.xlane.f32.xlu0 %v2967
      %v2969 = vpop.xlane.xlu0 %2968
      %v2970 = vmax.f32 %v2848, %v2850
      %2971 = vmax.xlane.f32.xlu0 %v2970
      %v2972 = vpop.xlane.xlu0 %2971
      %v2973 = vmax.f32 %v2852, %v2854
      %2974 = vmax.xlane.f32.xlu0 %v2973
      %v2975 = vpop.xlane.xlu0 %2974
      %v2976 = vmax.f32 %v2858, %v2860
      %2977 = vmax.xlane.f32.xlu0 %v2976
      %v2978 = vpop.xlane.xlu0 %2977
      %v2979 = vmax.f32 %v2862, %v2864
      %2980 = vmax.xlane.f32.xlu0 %v2979
      %v2981 = vpop.xlane.xlu0 %2980
      %v2982 = vmax.f32 %v2868, %v2870
      %2983 = vmax.xlane.f32.xlu0 %v2982
      %v2984 = vpop.xlane.xlu0 %2983
      %v2985 = vmax.f32 %v2872, %v2874
      %2986 = vmax.xlane.f32.xlu0 %v2985
      %v2987 = vpop.xlane.xlu0 %2986
      %v2988 = vmax.f32 %v2878, %v2880
      %2989 = vmax.xlane.f32.xlu0 %v2988
      %v2990 = vpop.xlane.xlu0 %2989
      %v2991 = vmax.f32 %v2882, %v2884
      %2992 = vmax.xlane.f32.xlu0 %v2991
      %v2993 = vpop.xlane.xlu0 %2992
      %v2994 = vmax.f32 %v2888, %v2890
      %2995 = vmax.xlane.f32.xlu0 %v2994
      %v2996 = vpop.xlane.xlu0 %2995
      %v2997 = vmax.f32 %v2892, %v2894
      %2998 = vmax.xlane.f32.xlu0 %v2997
      %v2999 = vpop.xlane.xlu0 %2998
      %v3000 = vmax.f32 %v2898, %v2900
      %3001 = vmax.xlane.f32.xlu0 %v3000
      %v3002 = vpop.xlane.xlu0 %3001
      %v3003 = vmax.f32 %v2902, %v2904
      %3004 = vmax.xlane.f32.xlu0 %v3003
      %v3005 = vpop.xlane.xlu0 %3004
      %v3006 = vmax.f32 %v2908, %v2910
      %3007 = vmax.xlane.f32.xlu0 %v3006
      %v3008 = vpop.xlane.xlu0 %3007
      %v3009 = vmax.f32 %v2912, %v2914
      %3010 = vmax.xlane.f32.xlu0 %v3009
      %v3011 = vpop.xlane.xlu0 %3010
      %v3012 = vsub.f32 %v2758, %v2918
      %v3013 = vsub.f32 %v2760, %v2918
      %v3014 = vsub.f32 %v2762, %v2921
      %v3015 = vsub.f32 %v2764, %v2921
      %v3016 = vsub.f32 %v2768, %v2924
      %v3017 = vsub.f32 %v2770, %v2924
      %v3018 = vsub.f32 %v2772, %v2927
      %v3019 = vsub.f32 %v2774, %v2927
      %v3020 = vsub.f32 %v2778, %v2930
      %v3021 = vsub.f32 %v2780, %v2930
      %v3022 = vsub.f32 %v2782, %v2933
      %v3023 = vsub.f32 %v2784, %v2933
      %v3024 = vsub.f32 %v2788, %v2936
      %v3025 = vsub.f32 %v2790, %v2936
      %v3026 = vsub.f32 %v2792, %v2939
      %v3027 = vsub.f32 %v2794, %v2939
      %v3028 = vsub.f32 %v2798, %v2942
      %v3029 = vsub.f32 %v2800, %v2942
      %v3030 = vsub.f32 %v2802, %v2945
      %v3031 = vsub.f32 %v2804, %v2945
      %v3032 = vsub.f32 %v2808, %v2948
      %v3033 = vsub.f32 %v2810, %v2948
      %v3034 = vsub.f32 %v2812, %v2951
      %v3035 = vsub.f32 %v2814, %v2951
      %v3036 = vsub.f32 %v2818, %v2954
      %v3037 = vsub.f32 %v2820, %v2954
      %v3038 = vsub.f32 %v2822, %v2957
      %v3039 = vsub.f32 %v2824, %v2957
      %v3040 = vsub.f32 %v2828, %v2960
      %v3041 = vsub.f32 %v2830, %v2960
      %v3042 = vsub.f32 %v2832, %v2963
      %v3043 = vsub.f32 %v2834, %v2963
      %v3044 = vsub.f32 %v2838, %v2966
      %v3045 = vsub.f32 %v2840, %v2966
      %v3046 = vsub.f32 %v2842, %v2969
      %v3047 = vsub.f32 %v2844, %v2969
      %v3048 = vsub.f32 %v2848, %v2972
      %v3049 = vsub.f32 %v2850, %v2972
      %v3050 = vsub.f32 %v2852, %v2975
      %v3051 = vsub.f32 %v2854, %v2975
      %v3052 = vsub.f32 %v2858, %v2978
      %v3053 = vsub.f32 %v2860, %v2978
      %v3054 = vsub.f32 %v2862, %v2981
      %v3055 = vsub.f32 %v2864, %v2981
      %v3056 = vsub.f32 %v2868, %v2984
      %v3057 = vsub.f32 %v2870, %v2984
      %v3058 = vsub.f32 %v2872, %v2987
      %v3059 = vsub.f32 %v2874, %v2987
      %v3060 = vsub.f32 %v2878, %v2990
      %v3061 = vsub.f32 %v2880, %v2990
      %v3062 = vsub.f32 %v2882, %v2993
      %v3063 = vsub.f32 %v2884, %v2993
      %v3064 = vsub.f32 %v2888, %v2996
      %v3065 = vsub.f32 %v2890, %v2996
      %v3066 = vsub.f32 %v2892, %v2999
      %v3067 = vsub.f32 %v2894, %v2999
      %v3068 = vsub.f32 %v2898, %v3002
      %v3069 = vsub.f32 %v2900, %v3002
      %v3070 = vsub.f32 %v2902, %v3005
      %v3071 = vsub.f32 %v2904, %v3005
      %v3072 = vsub.f32 %v2908, %v3008
      %v3073 = vsub.f32 %v2910, %v3008
      %v3074 = vsub.f32 %v2912, %v3011
      %v3075 = vsub.f32 %v2914, %v3011
      %v3076 = vmul.f32 %v3012, 1.442695
      %v3077 = vpow.pop %v3076
      %v3078 = vmul.f32 %v3013, 1.442695
      %v3079 = vpow.pop %v3078
      %v3080 = vmul.f32 %v3014, 1.442695
      %v3081 = vpow.pop %v3080
      %v3082 = vmul.f32 %v3015, 1.442695
      %v3083 = vpow.pop %v3082
      %v3084 = vmul.f32 %v3016, 1.442695
      %v3085 = vpow.pop %v3084
      %v3086 = vmul.f32 %v3017, 1.442695
      %v3087 = vpow.pop %v3086
      %v3088 = vmul.f32 %v3018, 1.442695
      %v3089 = vpow.pop %v3088
      %v3090 = vmul.f32 %v3019, 1.442695
      %v3091 = vpow.pop %v3090
      %v3092 = vmul.f32 %v3020, 1.442695
      %v3093 = vpow.pop %v3092
      %v3094 = vmul.f32 %v3021, 1.442695
      %v3095 = vpow.pop %v3094
      %v3096 = vmul.f32 %v3022, 1.442695
      %v3097 = vpow.pop %v3096
      %v3098 = vmul.f32 %v3023, 1.442695
      %v3099 = vpow.pop %v3098
      %v3100 = vmul.f32 %v3024, 1.442695
      %v3101 = vpow.pop %v3100
      %v3102 = vmul.f32 %v3025, 1.442695
      %v3103 = vpow.pop %v3102
      %v3104 = vmul.f32 %v3026, 1.442695
      %v3105 = vpow.pop %v3104
      %v3106 = vmul.f32 %v3027, 1.442695
      %v3107 = vpow.pop %v3106
      %v3108 = vmul.f32 %v3028, 1.442695
      %v3109 = vpow.pop %v3108
      %v3110 = vmul.f32 %v3029, 1.442695
      %v3111 = vpow.pop %v3110
      %v3112 = vmul.f32 %v3030, 1.442695
      %v3113 = vpow.pop %v3112
      %v3114 = vmul.f32 %v3031, 1.442695
      %v3115 = vpow.pop %v3114
      %v3116 = vmul.f32 %v3032, 1.442695
      %v3117 = vpow.pop %v3116
      %v3118 = vmul.f32 %v3033, 1.442695
      %v3119 = vpow.pop %v3118
      %v3120 = vmul.f32 %v3034, 1.442695
      %v3121 = vpow.pop %v3120
      %v3122 = vmul.f32 %v3035, 1.442695
      %v3123 = vpow.pop %v3122
      %v3124 = vmul.f32 %v3036, 1.442695
      %v3125 = vpow.pop %v3124
      %v3126 = vmul.f32 %v3037, 1.442695
      %v3127 = vpow.pop %v3126
      %v3128 = vmul.f32 %v3038, 1.442695
      %v3129 = vpow.pop %v3128
      %v3130 = vmul.f32 %v3039, 1.442695
      %v3131 = vpow.pop %v3130
      %v3132 = vmul.f32 %v3040, 1.442695
      %v3133 = vpow.pop %v3132
      %v3134 = vmul.f32 %v3041, 1.442695
      %v3135 = vpow.pop %v3134
      %v3136 = vmul.f32 %v3042, 1.442695
      %v3137 = vpow.pop %v3136
      %v3138 = vmul.f32 %v3043, 1.442695
      %v3139 = vpow.pop %v3138
      %v3140 = vmul.f32 %v3044, 1.442695
      %v3141 = vpow.pop %v3140
      %v3142 = vmul.f32 %v3045, 1.442695
      %v3143 = vpow.pop %v3142
      %v3144 = vmul.f32 %v3046, 1.442695
      %v3145 = vpow.pop %v3144
      %v3146 = vmul.f32 %v3047, 1.442695
      %v3147 = vpow.pop %v3146
      %v3148 = vmul.f32 %v3048, 1.442695
      %v3149 = vpow.pop %v3148
      %v3150 = vmul.f32 %v3049, 1.442695
      %v3151 = vpow.pop %v3150
      %v3152 = vmul.f32 %v3050, 1.442695
      %v3153 = vpow.pop %v3152
      %v3154 = vmul.f32 %v3051, 1.442695
      %v3155 = vpow.pop %v3154
      %v3156 = vmul.f32 %v3052, 1.442695
      %v3157 = vpow.pop %v3156
      %v3158 = vmul.f32 %v3053, 1.442695
      %v3159 = vpow.pop %v3158
      %v3160 = vmul.f32 %v3054, 1.442695
      %v3161 = vpow.pop %v3160
      %v3162 = vmul.f32 %v3055, 1.442695
      %v3163 = vpow.pop %v3162
      %v3164 = vmul.f32 %v3056, 1.442695
      %v3165 = vpow.pop %v3164
      %v3166 = vmul.f32 %v3057, 1.442695
      %v3167 = vpow.pop %v3166
      %v3168 = vmul.f32 %v3058, 1.442695
      %v3169 = vpow.pop %v3168
      %v3170 = vmul.f32 %v3059, 1.442695
      %v3171 = vpow.pop %v3170
      %v3172 = vmul.f32 %v3060, 1.442695
      %v3173 = vpow.pop %v3172
      %v3174 = vmul.f32 %v3061, 1.442695
      %v3175 = vpow.pop %v3174
      %v3176 = vmul.f32 %v3062, 1.442695
      %v3177 = vpow.pop %v3176
      %v3178 = vmul.f32 %v3063, 1.442695
      %v3179 = vpow.pop %v3178
      %v3180 = vmul.f32 %v3064, 1.442695
      %v3181 = vpow.pop %v3180
      %v3182 = vmul.f32 %v3065, 1.442695
      %v3183 = vpow.pop %v3182
      %v3184 = vmul.f32 %v3066, 1.442695
      %v3185 = vpow.pop %v3184
      %v3186 = vmul.f32 %v3067, 1.442695
      %v3187 = vpow.pop %v3186
      %v3188 = vmul.f32 %v3068, 1.442695
      %v3189 = vpow.pop %v3188
      %v3190 = vmul.f32 %v3069, 1.442695
      %v3191 = vpow.pop %v3190
      %v3192 = vmul.f32 %v3070, 1.442695
      %v3193 = vpow.pop %v3192
      %v3194 = vmul.f32 %v3071, 1.442695
      %v3195 = vpow.pop %v3194
      %v3196 = vmul.f32 %v3072, 1.442695
      %v3197 = vpow.pop %v3196
      %v3198 = vmul.f32 %v3073, 1.442695
      %v3199 = vpow.pop %v3198
      %v3200 = vmul.f32 %v3074, 1.442695
      %v3201 = vpow.pop %v3200
      %v3202 = vmul.f32 %v3075, 1.442695
      %v3203 = vpow.pop %v3202
      %v3204 = vadd.f32 %v3077, %v3079
      %3205 = vadd.xlane.f32.xlu0 %v3204
      %v3206 = vpop.xlane.xlu0 %3205
      %v3207 = vadd.f32 %v3081, %v3083
      %3208 = vadd.xlane.f32.xlu0 %v3207
      %v3209 = vpop.xlane.xlu0 %3208
      %v3210 = vadd.f32 %v3085, %v3087
      %3211 = vadd.xlane.f32.xlu0 %v3210
      %v3212 = vpop.xlane.xlu0 %3211
      %v3213 = vadd.f32 %v3089, %v3091
      %3214 = vadd.xlane.f32.xlu0 %v3213
      %v3215 = vpop.xlane.xlu0 %3214
      %v3216 = vadd.f32 %v3093, %v3095
      %3217 = vadd.xlane.f32.xlu0 %v3216
      %v3218 = vpop.xlane.xlu0 %3217
      %v3219 = vadd.f32 %v3097, %v3099
      %3220 = vadd.xlane.f32.xlu0 %v3219
      %v3221 = vpop.xlane.xlu0 %3220
      %v3222 = vadd.f32 %v3101, %v3103
      %3223 = vadd.xlane.f32.xlu0 %v3222
      %v3224 = vpop.xlane.xlu0 %3223
      %v3225 = vadd.f32 %v3105, %v3107
      %3226 = vadd.xlane.f32.xlu0 %v3225
      %v3227 = vpop.xlane.xlu0 %3226
      %v3228 = vadd.f32 %v3109, %v3111
      %3229 = vadd.xlane.f32.xlu0 %v3228
      %v3230 = vpop.xlane.xlu0 %3229
      %v3231 = vadd.f32 %v3113, %v3115
      %3232 = vadd.xlane.f32.xlu0 %v3231
      %v3233 = vpop.xlane.xlu0 %3232
      %v3234 = vadd.f32 %v3117, %v3119
      %3235 = vadd.xlane.f32.xlu0 %v3234
      %v3236 = vpop.xlane.xlu0 %3235
      %v3237 = vadd.f32 %v3121, %v3123
      %3238 = vadd.xlane.f32.xlu0 %v3237
      %v3239 = vpop.xlane.xlu0 %3238
      %v3240 = vadd.f32 %v3125, %v3127
      %3241 = vadd.xlane.f32.xlu0 %v3240
      %v3242 = vpop.xlane.xlu0 %3241
      %v3243 = vadd.f32 %v3129, %v3131
      %3244 = vadd.xlane.f32.xlu0 %v3243
      %v3245 = vpop.xlane.xlu0 %3244
      %v3246 = vadd.f32 %v3133, %v3135
      %3247 = vadd.xlane.f32.xlu0 %v3246
      %v3248 = vpop.xlane.xlu0 %3247
      %v3249 = vadd.f32 %v3137, %v3139
      %3250 = vadd.xlane.f32.xlu0 %v3249
      %v3251 = vpop.xlane.xlu0 %3250
      %v3252 = vadd.f32 %v3141, %v3143
      %3253 = vadd.xlane.f32.xlu0 %v3252
      %v3254 = vpop.xlane.xlu0 %3253
      %v3255 = vadd.f32 %v3145, %v3147
      %3256 = vadd.xlane.f32.xlu0 %v3255
      %v3257 = vpop.xlane.xlu0 %3256
      %v3258 = vadd.f32 %v3149, %v3151
      %3259 = vadd.xlane.f32.xlu0 %v3258
      %v3260 = vpop.xlane.xlu0 %3259
      %v3261 = vadd.f32 %v3153, %v3155
      %3262 = vadd.xlane.f32.xlu0 %v3261
      %v3263 = vpop.xlane.xlu0 %3262
      %v3264 = vadd.f32 %v3157, %v3159
      %3265 = vadd.xlane.f32.xlu0 %v3264
      %v3266 = vpop.xlane.xlu0 %3265
      %v3267 = vadd.f32 %v3161, %v3163
      %3268 = vadd.xlane.f32.xlu0 %v3267
      %v3269 = vpop.xlane.xlu0 %3268
      %v3270 = vadd.f32 %v3165, %v3167
      %3271 = vadd.xlane.f32.xlu0 %v3270
      %v3272 = vpop.xlane.xlu0 %3271
      %v3273 = vadd.f32 %v3169, %v3171
      %3274 = vadd.xlane.f32.xlu0 %v3273
      %v3275 = vpop.xlane.xlu0 %3274
      %v3276 = vadd.f32 %v3173, %v3175
      %3277 = vadd.xlane.f32.xlu0 %v3276
      %v3278 = vpop.xlane.xlu0 %3277
      %v3279 = vadd.f32 %v3177, %v3179
      %3280 = vadd.xlane.f32.xlu0 %v3279
      %v3281 = vpop.xlane.xlu0 %3280
      %v3282 = vadd.f32 %v3181, %v3183
      %3283 = vadd.xlane.f32.xlu0 %v3282
      %v3284 = vpop.xlane.xlu0 %3283
      %v3285 = vadd.f32 %v3185, %v3187
      %3286 = vadd.xlane.f32.xlu0 %v3285
      %v3287 = vpop.xlane.xlu0 %3286
      %v3288 = vadd.f32 %v3189, %v3191
      %3289 = vadd.xlane.f32.xlu0 %v3288
      %v3290 = vpop.xlane.xlu0 %3289
      %v3291 = vadd.f32 %v3193, %v3195
      %3292 = vadd.xlane.f32.xlu0 %v3291
      %v3293 = vpop.xlane.xlu0 %3292
      %v3294 = vadd.f32 %v3197, %v3199
      %3295 = vadd.xlane.f32.xlu0 %v3294
      %v3296 = vpop.xlane.xlu0 %3295
      %v3297 = vadd.f32 %v3201, %v3203
      %3298 = vadd.xlane.f32.xlu0 %v3297
      %v3299 = vpop.xlane.xlu0 %3298
      %v3300 = vpack.c.bf16 %v3081, %v3077
      %v3301 = vpack.c.bf16 %v3083, %v3079
      %v3302 = vpack.c.bf16 %v3089, %v3085
      %v3303 = vpack.c.bf16 %v3091, %v3087
      %v3304 = vpack.c.bf16 %v3097, %v3093
      %v3305 = vpack.c.bf16 %v3099, %v3095
      %v3306 = vpack.c.bf16 %v3105, %v3101
      %v3307 = vpack.c.bf16 %v3107, %v3103
      %v3308 = vpack.c.bf16 %v3113, %v3109
      %v3309 = vpack.c.bf16 %v3115, %v3111
      %v3310 = vpack.c.bf16 %v3121, %v3117
      %v3311 = vpack.c.bf16 %v3123, %v3119
      %v3312 = vpack.c.bf16 %v3129, %v3125
      %v3313 = vpack.c.bf16 %v3131, %v3127
      %v3314 = vpack.c.bf16 %v3137, %v3133
      %v3315 = vpack.c.bf16 %v3139, %v3135
      %v3316 = vpack.c.bf16 %v3145, %v3141
      %v3317 = vpack.c.bf16 %v3147, %v3143
      %v3318 = vpack.c.bf16 %v3153, %v3149
      %v3319 = vpack.c.bf16 %v3155, %v3151
      %v3320 = vpack.c.bf16 %v3161, %v3157
      %v3321 = vpack.c.bf16 %v3163, %v3159
      %v3322 = vpack.c.bf16 %v3169, %v3165
      %v3323 = vpack.c.bf16 %v3171, %v3167
      %v3324 = vpack.c.bf16 %v3177, %v3173
      %v3325 = vpack.c.bf16 %v3179, %v3175
      %v3326 = vpack.c.bf16 %v3185, %v3181
      %v3327 = vpack.c.bf16 %v3187, %v3183
      %v3328 = vpack.c.bf16 %v3193, %v3189
      %v3329 = vpack.c.bf16 %v3195, %v3191
      %v3330 = vpack.c.bf16 %v3201, %v3197
      %v3331 = vpack.c.bf16 %v3203, %v3199
      %v3332 = vpack.c.bf16 %v2472, %v2469
      %v3333 = vpack.c.bf16 %v2480, %v2477
      %v3334 = vpack.c.bf16 %v2488, %v2485
      %v3335 = vpack.c.bf16 %v2496, %v2493
      %v3336 = vpack.c.bf16 %v2504, %v2501
      %v3337 = vpack.c.bf16 %v2512, %v2509
      %v3338 = vpack.c.bf16 %v2520, %v2517
      %v3339 = vpack.c.bf16 %v2528, %v2525
      %v3340 = vpack.c.bf16 %v2536, %v2533
      %v3341 = vpack.c.bf16 %v2544, %v2541
      %v3342 = vpack.c.bf16 %v2552, %v2549
      %v3343 = vpack.c.bf16 %v2560, %v2557
      %v3344 = vpack.c.bf16 %v2568, %v2565
      %v3345 = vpack.c.bf16 %v2576, %v2573
      %v3346 = vpack.c.bf16 %v2584, %v2581
      %v3347 = vpack.c.bf16 %v2592, %v2589
      %3348 = vmatprep.subr.bf16.mxu0 0
      %3349 = vmatpush1.bf16.msra.mxu0 %v3332
      %3350 = vmatprep.subr.bf16.mxu0 0
      %3351 = vmatpush1.bf16.msra.mxu0 %v3333
      %3352 = vmatprep.subr.bf16.mxu0 0
      %3353 = vmatpush1.bf16.msra.mxu0 %v3334
      %3354 = vmatprep.subr.bf16.mxu0 0
      %3355 = vmatpush1.bf16.msra.mxu0 %v3335
      %3356 = vmatprep.subr.bf16.mxu0 0
      %3357 = vmatpush1.bf16.msra.mxu0 %v3336
      %3358 = vmatprep.subr.bf16.mxu0 0
      %3359 = vmatpush1.bf16.msra.mxu0 %v3337
      %3360 = vmatprep.subr.bf16.mxu0 0
      %3361 = vmatpush1.bf16.msra.mxu0 %v3338
      %3362 = vmatprep.subr.bf16.mxu0 0
      %3363 = vmatpush1.bf16.msra.mxu0 %v3339
      %3364 = vmatprep.subr.bf16.mxu0 0
      %3365 = vmatpush1.bf16.msra.mxu0 %v3340
      %3366 = vmatprep.subr.bf16.mxu0 0
      %3367 = vmatpush1.bf16.msra.mxu0 %v3341
      %3368 = vmatprep.subr.bf16.mxu0 0
      %3369 = vmatpush1.bf16.msra.mxu0 %v3342
      %3370 = vmatprep.subr.bf16.mxu0 0
      %3371 = vmatpush1.bf16.msra.mxu0 %v3343
      %3372 = vmatprep.subr.bf16.mxu0 0
      %3373 = vmatpush1.bf16.msra.mxu0 %v3344
      %3374 = vmatprep.subr.bf16.mxu0 0
      %3375 = vmatpush1.bf16.msra.mxu0 %v3345
      %3376 = vmatprep.subr.bf16.mxu0 0
      %3377 = vmatpush1.bf16.msra.mxu0 %v3346
      %3378 = vmatprep.subr.bf16.mxu0 0
      %3379 = vmatpush1.bf16.msra.mxu0 %v3347
      %3380 = vmatprep.mubr.bf16.mxu0 %v3301
      %3381 = vmatmul.mubr.bf16.gmra.mrb[0].mxu0 %v3300
      %v3382 = vpop.f32.mrb[0].mxu0
      %v3383 = vadd.f32 0.0, %v3382
      %v3384 = vpop.f32.mrb[0].mxu0
      %v3385 = vpop.f32.mrb[0].mxu0
      %v3386 = vadd.f32 0.0, %v3385
      %v3387 = vpop.f32.mrb[0].mxu0
      %3388 = vmatprep.mubr.bf16.mxu0 %v3303
      %3389 = vmatmul.mubr.bf16.gmra.mrb[0].mxu0 %v3302
      %v3390 = vpop.f32.mrb[0].mxu0
      %v3391 = vadd.f32 0.0, %v3390
      %v3392 = vpop.f32.mrb[0].mxu0
      %v3393 = vpop.f32.mrb[0].mxu0
      %v3394 = vadd.f32 0.0, %v3393
      %v3395 = vpop.f32.mrb[0].mxu0
      %3396 = vmatprep.mubr.bf16.mxu0 %v3305
      %3397 = vmatmul.mubr.bf16.gmra.mrb[0].mxu0 %v3304
      %v3398 = vpop.f32.mrb[0].mxu0
      %v3399 = vadd.f32 0.0, %v3398
      %v3400 = vpop.f32.mrb[0].mxu0
      %v3401 = vpop.f32.mrb[0].mxu0
      %v3402 = vadd.f32 0.0, %v3401
      %v3403 = vpop.f32.mrb[0].mxu0
      %3404 = vmatprep.mubr.bf16.mxu0 %v3307
      %3405 = vmatmul.mubr.bf16.gmra.mrb[0].mxu0 %v3306
      %v3406 = vpop.f32.mrb[0].mxu0
      %v3407 = vadd.f32 0.0, %v3406
      %v3408 = vpop.f32.mrb[0].mxu0
      %v3409 = vpop.f32.mrb[0].mxu0
      %v3410 = vadd.f32 0.0, %v3409
      %v3411 = vpop.f32.mrb[0].mxu0
      %3412 = vmatprep.mubr.bf16.mxu0 %v3309
      %3413 = vmatmul.mubr.bf16.gmra.mrb[0].mxu0 %v3308
      %v3414 = vpop.f32.mrb[0].mxu0
      %v3415 = vadd.f32 0.0, %v3414
      %v3416 = vpop.f32.mrb[0].mxu0
      %v3417 = vpop.f32.mrb[0].mxu0
      %v3418 = vadd.f32 0.0, %v3417
      %v3419 = vpop.f32.mrb[0].mxu0
      %3420 = vmatprep.mubr.bf16.mxu0 %v3311
      %3421 = vmatmul.mubr.bf16.gmra.mrb[0].mxu0 %v3310
      %v3422 = vpop.f32.mrb[0].mxu0
      %v3423 = vadd.f32 0.0, %v3422
      %v3424 = vpop.f32.mrb[0].mxu0
      %v3425 = vpop.f32.mrb[0].mxu0
      %v3426 = vadd.f32 0.0, %v3425
      %v3427 = vpop.f32.mrb[0].mxu0
      %3428 = vmatprep.mubr.bf16.mxu0 %v3313
      %3429 = vmatmul.mubr.bf16.gmra.mrb[0].mxu0 %v3312
      %v3430 = vpop.f32.mrb[0].mxu0
      %v3431 = vadd.f32 0.0, %v3430
      %v3432 = vpop.f32.mrb[0].mxu0
      %v3433 = vpop.f32.mrb[0].mxu0
      %v3434 = vadd.f32 0.0, %v3433
      %v3435 = vpop.f32.mrb[0].mxu0
      %3436 = vmatprep.mubr.bf16.mxu0 %v3315
      %3437 = vmatmul.mubr.bf16.gmra.mrb[0].mxu0 %v3314
      %v3438 = vpop.f32.mrb[0].mxu0
      %v3439 = vadd.f32 0.0, %v3438
      %v3440 = vpop.f32.mrb[0].mxu0
      %v3441 = vpop.f32.mrb[0].mxu0
      %v3442 = vadd.f32 0.0, %v3441
      %v3443 = vpop.f32.mrb[0].mxu0
      %3444 = vmatprep.mubr.bf16.mxu0 %v3317
      %3445 = vmatmul.mubr.bf16.gmra.mrb[0].mxu0 %v3316
      %v3446 = vpop.f32.mrb[0].mxu0
      %v3447 = vadd.f32 0.0, %v3446
      %v3448 = vpop.f32.mrb[0].mxu0
      %v3449 = vpop.f32.mrb[0].mxu0
      %v3450 = vadd.f32 0.0, %v3449
      %v3451 = vpop.f32.mrb[0].mxu0
      %3452 = vmatprep.mubr.bf16.mxu0 %v3319
      %3453 = vmatmul.mubr.bf16.gmra.mrb[0].mxu0 %v3318
      %v3454 = vpop.f32.mrb[0].mxu0
      %v3455 = vadd.f32 0.0, %v3454
      %v3456 = vpop.f32.mrb[0].mxu0
      %v3457 = vpop.f32.mrb[0].mxu0
      %v3458 = vadd.f32 0.0, %v3457
      %v3459 = vpop.f32.mrb[0].mxu0
      %3460 = vmatprep.mubr.bf16.mxu0 %v3321
      %3461 = vmatmul.mubr.bf16.gmra.mrb[0].mxu0 %v3320
      %v3462 = vpop.f32.mrb[0].mxu0
      %v3463 = vadd.f32 0.0, %v3462
      %v3464 = vpop.f32.mrb[0].mxu0
      %v3465 = vpop.f32.mrb[0].mxu0
      %v3466 = vadd.f32 0.0, %v3465
      %v3467 = vpop.f32.mrb[0].mxu0
      %3468 = vmatprep.mubr.bf16.mxu0 %v3323
      %3469 = vmatmul.mubr.bf16.gmra.mrb[0].mxu0 %v3322
      %v3470 = vpop.f32.mrb[0].mxu0
      %v3471 = vadd.f32 0.0, %v3470
      %v3472 = vpop.f32.mrb[0].mxu0
      %v3473 = vpop.f32.mrb[0].mxu0
      %v3474 = vadd.f32 0.0, %v3473
      %v3475 = vpop.f32.mrb[0].mxu0
      %3476 = vmatprep.mubr.bf16.mxu0 %v3325
      %3477 = vmatmul.mubr.bf16.gmra.mrb[0].mxu0 %v3324
      %v3478 = vpop.f32.mrb[0].mxu0
      %v3479 = vadd.f32 0.0, %v3478
      %v3480 = vpop.f32.mrb[0].mxu0
      %v3481 = vpop.f32.mrb[0].mxu0
      %v3482 = vadd.f32 0.0, %v3481
      %v3483 = vpop.f32.mrb[0].mxu0
      %3484 = vmatprep.mubr.bf16.mxu0 %v3327
      %3485 = vmatmul.mubr.bf16.gmra.mrb[0].mxu0 %v3326
      %v3486 = vpop.f32.mrb[0].mxu0
      %v3487 = vadd.f32 0.0, %v3486
      %v3488 = vpop.f32.mrb[0].mxu0
      %v3489 = vpop.f32.mrb[0].mxu0
      %v3490 = vadd.f32 0.0, %v3489
      %v3491 = vpop.f32.mrb[0].mxu0
      %3492 = vmatprep.mubr.bf16.mxu0 %v3329
      %3493 = vmatmul.mubr.bf16.gmra.mrb[0].mxu0 %v3328
      %v3494 = vpop.f32.mrb[0].mxu0
      %v3495 = vadd.f32 0.0, %v3494
      %v3496 = vpop.f32.mrb[0].mxu0
      %v3497 = vpop.f32.mrb[0].mxu0
      %v3498 = vadd.f32 0.0, %v3497
      %v3499 = vpop.f32.mrb[0].mxu0
      %3500 = vmatprep.mubr.bf16.mxu0 %v3331
      %3501 = vmatmul.mubr.bf16.gmra.mrb[0].mxu0 %v3330
      %v3502 = vpop.f32.mrb[0].mxu0
      %v3503 = vadd.f32 0.0, %v3502
      %v3504 = vpop.f32.mrb[0].mxu0
      %v3505 = vpop.f32.mrb[0].mxu0
      %v3506 = vadd.f32 0.0, %v3505
      %v3507 = vpop.f32.mrb[0].mxu0
      %3508 = vdwg.mxu0
      %v3509 = vrcp.pop %v3206
      %v3510 = vrcp.pop %v3209
      %v3511 = vrcp.pop %v3212
      %v3512 = vrcp.pop %v3215
      %v3513 = vrcp.pop %v3218
      %v3514 = vrcp.pop %v3221
      %v3515 = vrcp.pop %v3224
      %v3516 = vrcp.pop %v3227
      %v3517 = vrcp.pop %v3230
      %v3518 = vrcp.pop %v3233
      %v3519 = vrcp.pop %v3236
      %v3520 = vrcp.pop %v3239
      %v3521 = vrcp.pop %v3242
      %v3522 = vrcp.pop %v3245
      %v3523 = vrcp.pop %v3248
      %v3524 = vrcp.pop %v3251
      %v3525 = vrcp.pop %v3254
      %v3526 = vrcp.pop %v3257
      %v3527 = vrcp.pop %v3260
      %v3528 = vrcp.pop %v3263
      %v3529 = vrcp.pop %v3266
      %v3530 = vrcp.pop %v3269
      %v3531 = vrcp.pop %v3272
      %v3532 = vrcp.pop %v3275
      %v3533 = vrcp.pop %v3278
      %v3534 = vrcp.pop %v3281
      %v3535 = vrcp.pop %v3284
      %v3536 = vrcp.pop %v3287
      %v3537 = vrcp.pop %v3290
      %v3538 = vrcp.pop %v3293
      %v3539 = vrcp.pop %v3296
      %v3540 = vrcp.pop %v3299
      %v3541 = vmul.f32 %v3383, %v3509
      %v3542 = vmul.f32 %v3386, %v3510
      %v3543 = vmul.f32 %v3391, %v3511
      %v3544 = vmul.f32 %v3394, %v3512
      %v3545 = vmul.f32 %v3399, %v3513
      %v3546 = vmul.f32 %v3402, %v3514
      %v3547 = vmul.f32 %v3407, %v3515
      %v3548 = vmul.f32 %v3410, %v3516
      %v3549 = vmul.f32 %v3415, %v3517
      %v3550 = vmul.f32 %v3418, %v3518
      %v3551 = vmul.f32 %v3423, %v3519
      %v3552 = vmul.f32 %v3426, %v3520
      %v3553 = vmul.f32 %v3431, %v3521
      %v3554 = vmul.f32 %v3434, %v3522
      %v3555 = vmul.f32 %v3439, %v3523
      %v3556 = vmul.f32 %v3442, %v3524
      %v3557 = vmul.f32 %v3447, %v3525
      %v3558 = vmul.f32 %v3450, %v3526
      %v3559 = vmul.f32 %v3455, %v3527
      %v3560 = vmul.f32 %v3458, %v3528
      %v3561 = vmul.f32 %v3463, %v3529
      %v3562 = vmul.f32 %v3466, %v3530
      %v3563 = vmul.f32 %v3471, %v3531
      %v3564 = vmul.f32 %v3474, %v3532
      %v3565 = vmul.f32 %v3479, %v3533
      %v3566 = vmul.f32 %v3482, %v3534
      %v3567 = vmul.f32 %v3487, %v3535
      %v3568 = vmul.f32 %v3490, %v3536
      %v3569 = vmul.f32 %v3495, %v3537
      %v3570 = vmul.f32 %v3498, %v3538
      %v3571 = vmul.f32 %v3503, %v3539
      %v3572 = vmul.f32 %v3506, %v3540
      %v3573 = vpack.c.bf16 %v3542, %v3541
      %v3574 = vpack.c.bf16 %v3544, %v3543
      %v3575 = vpack.c.bf16 %v3546, %v3545
      %v3576 = vpack.c.bf16 %v3548, %v3547
      %v3577 = vpack.c.bf16 %v3550, %v3549
      %v3578 = vpack.c.bf16 %v3552, %v3551
      %v3579 = vpack.c.bf16 %v3554, %v3553
      %v3580 = vpack.c.bf16 %v3556, %v3555
      %v3581 = vpack.c.bf16 %v3558, %v3557
      %v3582 = vpack.c.bf16 %v3560, %v3559
      %v3583 = vpack.c.bf16 %v3562, %v3561
      %v3584 = vpack.c.bf16 %v3564, %v3563
      %v3585 = vpack.c.bf16 %v3566, %v3565
      %v3586 = vpack.c.bf16 %v3568, %v3567
      %v3587 = vpack.c.bf16 %v3570, %v3569
      %v3588 = vpack.c.bf16 %v3572, %v3571
      %s3589 = scalar_lea.vmem %s5, 16
      %v3590 = vld [vmem:[%s3589] sm:$0xf]
      %v3591 = vld [vmem:[%s3589 + $0x4] sm:$0xf]
      %v3592 = vld [vmem:[%s3589 + $0x8] sm:$0xf]
      %v3593 = vld [vmem:[%s3589 + $0xc] sm:$0xf]
      %v3598 = vunpack.c.l.b16 %v3590
      %v3599 = vunpack.c.l.b16 %v3591
      %v3600 = vunpack.c.l.b16 %v3592
      %v3601 = vunpack.c.l.b16 %v3593
      %v3602 = vpack.c.b16 %v3599, %v3598
      %v3603 = vpack.c.b16 %v3601, %v3600
      %v3607 = vsel %vm451, %v3573, 0
      %v3610 = vsel %vm451, %v3574, 0
      %v3613 = vsel %vm451, %v3575, 0
      %v3616 = vsel %vm451, %v3576, 0
      %v3619 = vsel %vm451, %v3577, 0
      %v3622 = vsel %vm451, %v3578, 0
      %v3625 = vsel %vm451, %v3579, 0
      %v3628 = vsel %vm451, %v3580, 0
      %v3631 = vsel %vm451, %v3581, 0
      %v3634 = vsel %vm451, %v3582, 0
      %v3637 = vsel %vm451, %v3583, 0
      %v3640 = vsel %vm451, %v3584, 0
      %v3643 = vsel %vm451, %v3585, 0
      %v3646 = vsel %vm451, %v3586, 0
      %v3649 = vsel %vm451, %v3587, 0
      %v3652 = vsel %vm451, %v3588, 0
      %3654 = vmatprep.subr.bf16.mxu0 0
      %3655 = vmatpush1.bf16.msra.mxu0 %v3602
      %3656 = vmatprep.subr.bf16.mxu0 0
      %3657 = vmatpush1.bf16.msra.mxu0 %v3603
      %3658 = vmatprep.subr.bf16.mxu0 0
      %3659 = vmatpush1.bf16.msra.mxu0 0
      %3660 = vmatprep.subr.bf16.mxu0 0
      %3661 = vmatpush1.bf16.msra.mxu0 0
      %3662 = vmatprep.subr.bf16.mxu0 0
      %3663 = vmatpush1.bf16.msra.mxu0 0
      %3664 = vmatprep.subr.bf16.mxu0 0
      %3665 = vmatpush1.bf16.msra.mxu0 0
      %3666 = vmatprep.subr.bf16.mxu0 0
      %3667 = vmatpush1.bf16.msra.mxu0 0
      %3668 = vmatprep.subr.bf16.mxu0 0
      %3669 = vmatpush1.bf16.msra.mxu0 0
      %3670 = vmatprep.subr.bf16.mxu0 0
      %3671 = vmatpush1.bf16.msra.mxu0 0
      %3672 = vmatprep.subr.bf16.mxu0 0
      %3673 = vmatpush1.bf16.msra.mxu0 0
      %3674 = vmatprep.subr.bf16.mxu0 0
      %3675 = vmatpush1.bf16.msra.mxu0 0
      %3676 = vmatprep.subr.bf16.mxu0 0
      %3677 = vmatpush1.bf16.msra.mxu0 0
      %3678 = vmatprep.subr.bf16.mxu0 0
      %3679 = vmatpush1.bf16.msra.mxu0 0
      %3680 = vmatprep.subr.bf16.mxu0 0
      %3681 = vmatpush1.bf16.msra.mxu0 0
      %3682 = vmatprep.subr.bf16.mxu0 0
      %3683 = vmatpush1.bf16.msra.mxu0 0
      %3684 = vmatprep.subr.bf16.mxu0 0
      %3685 = vmatpush1.bf16.msra.mxu0 0
      %3686 = vmatprep.mubr.bf16.mxu0 0
      %3687 = vmatmul.mubr.bf16.gmra.mrb[0].mxu0 %v3607
      %v3688 = vpop.f32.mrb[0].mxu0
      %v3689 = vadd.f32 0.0, %v3688
      %v3690 = vpop.f32.mrb[0].mxu0
      %v3691 = vpop.f32.mrb[0].mxu0
      %v3692 = vadd.f32 0.0, %v3691
      %v3693 = vpop.f32.mrb[0].mxu0
      %3694 = vmatprep.mubr.bf16.mxu0 0
      %3695 = vmatmul.mubr.bf16.gmra.mrb[0].mxu0 %v3610
      %v3696 = vpop.f32.mrb[0].mxu0
      %v3697 = vadd.f32 0.0, %v3696
      %v3698 = vpop.f32.mrb[0].mxu0
      %v3699 = vpop.f32.mrb[0].mxu0
      %v3700 = vadd.f32 0.0, %v3699
      %v3701 = vpop.f32.mrb[0].mxu0
      %3702 = vmatprep.mubr.bf16.mxu0 0
      %3703 = vmatmul.mubr.bf16.gmra.mrb[0].mxu0 %v3613
      %v3704 = vpop.f32.mrb[0].mxu0
      %v3705 = vadd.f32 0.0, %v3704
      %v3706 = vpop.f32.mrb[0].mxu0
      %v3707 = vpop.f32.mrb[0].mxu0
      %v3708 = vadd.f32 0.0, %v3707
      %v3709 = vpop.f32.mrb[0].mxu0
      %3710 = vmatprep.mubr.bf16.mxu0 0
      %3711 = vmatmul.mubr.bf16.gmra.mrb[0].mxu0 %v3616
      %v3712 = vpop.f32.mrb[0].mxu0
      %v3713 = vadd.f32 0.0, %v3712
      %v3714 = vpop.f32.mrb[0].mxu0
      %v3715 = vpop.f32.mrb[0].mxu0
      %v3716 = vadd.f32 0.0, %v3715
      %v3717 = vpop.f32.mrb[0].mxu0
      %3718 = vmatprep.mubr.bf16.mxu0 0
      %3719 = vmatmul.mubr.bf16.gmra.mrb[0].mxu0 %v3619
      %v3720 = vpop.f32.mrb[0].mxu0
      %v3721 = vadd.f32 0.0, %v3720
      %v3722 = vpop.f32.mrb[0].mxu0
      %v3723 = vpop.f32.mrb[0].mxu0
      %v3724 = vadd.f32 0.0, %v3723
      %v3725 = vpop.f32.mrb[0].mxu0
      %3726 = vmatprep.mubr.bf16.mxu0 0
      %3727 = vmatmul.mubr.bf16.gmra.mrb[0].mxu0 %v3622
      %v3728 = vpop.f32.mrb[0].mxu0
      %v3729 = vadd.f32 0.0, %v3728
      %v3730 = vpop.f32.mrb[0].mxu0
      %v3731 = vpop.f32.mrb[0].mxu0
      %v3732 = vadd.f32 0.0, %v3731
      %v3733 = vpop.f32.mrb[0].mxu0
      %3734 = vmatprep.mubr.bf16.mxu0 0
      %3735 = vmatmul.mubr.bf16.gmra.mrb[0].mxu0 %v3625
      %v3736 = vpop.f32.mrb[0].mxu0
      %v3737 = vadd.f32 0.0, %v3736
      %v3738 = vpop.f32.mrb[0].mxu0
      %v3739 = vpop.f32.mrb[0].mxu0
      %v3740 = vadd.f32 0.0, %v3739
      %v3741 = vpop.f32.mrb[0].mxu0
      %3742 = vmatprep.mubr.bf16.mxu0 0
      %3743 = vmatmul.mubr.bf16.gmra.mrb[0].mxu0 %v3628
      %v3744 = vpop.f32.mrb[0].mxu0
      %v3745 = vadd.f32 0.0, %v3744
      %v3746 = vpop.f32.mrb[0].mxu0
      %v3747 = vpop.f32.mrb[0].mxu0
      %v3748 = vadd.f32 0.0, %v3747
      %v3749 = vpop.f32.mrb[0].mxu0
      %3750 = vmatprep.mubr.bf16.mxu0 0
      %3751 = vmatmul.mubr.bf16.gmra.mrb[0].mxu0 %v3631
      %v3752 = vpop.f32.mrb[0].mxu0
      %v3753 = vadd.f32 0.0, %v3752
      %v3754 = vpop.f32.mrb[0].mxu0
      %v3755 = vpop.f32.mrb[0].mxu0
      %v3756 = vadd.f32 0.0, %v3755
      %v3757 = vpop.f32.mrb[0].mxu0
      %3758 = vmatprep.mubr.bf16.mxu0 0
      %3759 = vmatmul.mubr.bf16.gmra.mrb[0].mxu0 %v3634
      %v3760 = vpop.f32.mrb[0].mxu0
      %v3761 = vadd.f32 0.0, %v3760
      %v3762 = vpop.f32.mrb[0].mxu0
      %v3763 = vpop.f32.mrb[0].mxu0
      %v3764 = vadd.f32 0.0, %v3763
      %v3765 = vpop.f32.mrb[0].mxu0
      %3766 = vmatprep.mubr.bf16.mxu0 0
      %3767 = vmatmul.mubr.bf16.gmra.mrb[0].mxu0 %v3637
      %v3768 = vpop.f32.mrb[0].mxu0
      %v3769 = vadd.f32 0.0, %v3768
      %v3770 = vpop.f32.mrb[0].mxu0
      %v3771 = vpop.f32.mrb[0].mxu0
      %v3772 = vadd.f32 0.0, %v3771
      %v3773 = vpop.f32.mrb[0].mxu0
      %3774 = vmatprep.mubr.bf16.mxu0 0
      %3775 = vmatmul.mubr.bf16.gmra.mrb[0].mxu0 %v3640
      %v3776 = vpop.f32.mrb[0].mxu0
      %v3777 = vadd.f32 0.0, %v3776
      %v3778 = vpop.f32.mrb[0].mxu0
      %v3779 = vpop.f32.mrb[0].mxu0
      %v3780 = vadd.f32 0.0, %v3779
      %v3781 = vpop.f32.mrb[0].mxu0
      %3782 = vmatprep.mubr.bf16.mxu0 0
      %3783 = vmatmul.mubr.bf16.gmra.mrb[0].mxu0 %v3643
      %v3784 = vpop.f32.mrb[0].mxu0
      %v3785 = vadd.f32 0.0, %v3784
      %v3786 = vpop.f32.mrb[0].mxu0
      %v3787 = vpop.f32.mrb[0].mxu0
      %v3788 = vadd.f32 0.0, %v3787
      %v3789 = vpop.f32.mrb[0].mxu0
      %3790 = vmatprep.mubr.bf16.mxu0 0
      %3791 = vmatmul.mubr.bf16.gmra.mrb[0].mxu0 %v3646
      %v3792 = vpop.f32.mrb[0].mxu0
      %v3793 = vadd.f32 0.0, %v3792
      %v3794 = vpop.f32.mrb[0].mxu0
      %v3795 = vpop.f32.mrb[0].mxu0
      %v3796 = vadd.f32 0.0, %v3795
      %v3797 = vpop.f32.mrb[0].mxu0
      %3798 = vmatprep.mubr.bf16.mxu0 0
      %3799 = vmatmul.mubr.bf16.gmra.mrb[0].mxu0 %v3649
      %v3800 = vpop.f32.mrb[0].mxu0
      %v3801 = vadd.f32 0.0, %v3800
      %v3802 = vpop.f32.mrb[0].mxu0
      %v3803 = vpop.f32.mrb[0].mxu0
      %v3804 = vadd.f32 0.0, %v3803
      %v3805 = vpop.f32.mrb[0].mxu0
      %3806 = vmatprep.mubr.bf16.mxu0 0
      %3807 = vmatmul.mubr.bf16.gmra.mrb[0].mxu0 %v3652
      %v3808 = vpop.f32.mrb[0].mxu0
      %v3809 = vadd.f32 0.0, %v3808
      %v3810 = vpop.f32.mrb[0].mxu0
      %v3811 = vpop.f32.mrb[0].mxu0
      %v3812 = vadd.f32 0.0, %v3811
      %v3813 = vpop.f32.mrb[0].mxu0
      %3814 = vdwg.mxu0
      %v3819 = vunpack.c.l.b16 %v2057
      %v3820 = vunpack.c.l.b16 %v2058
      %v3821 = vunpack.c.l.b16 %v2059
      %v3822 = vunpack.c.l.b16 %v2060
      %v3823 = vpack.c.b16 %v3820, %v3819
      %v3824 = vpack.c.b16 %v3822, %v3821
      %v3828 = vsel %vm451, %v2041, 0
      %v3831 = vsel %vm451, %v2042, 0
      %v3834 = vsel %vm451, %v2043, 0
      %v3837 = vsel %vm451, %v2044, 0
      %v3840 = vsel %vm451, %v2045, 0
      %v3843 = vsel %vm451, %v2046, 0
      %v3846 = vsel %vm451, %v2047, 0
      %v3849 = vsel %vm451, %v2048, 0
      %v3852 = vsel %vm451, %v2049, 0
      %v3855 = vsel %vm451, %v2050, 0
      %v3858 = vsel %vm451, %v2051, 0
      %v3861 = vsel %vm451, %v2052, 0
      %v3864 = vsel %vm451, %v2053, 0
      %v3867 = vsel %vm451, %v2054, 0
      %v3870 = vsel %vm451, %v2055, 0
      %v3873 = vsel %vm451, %v2056, 0
      %3875 = vmatprep.subr.bf16.mxu0 0
      %3876 = vmatpush1.bf16.msra.mxu0 %v3823
      %3877 = vmatprep.subr.bf16.mxu0 0
      %3878 = vmatpush1.bf16.msra.mxu0 %v3824
      %3879 = vmatprep.subr.bf16.mxu0 0
      %3880 = vmatpush1.bf16.msra.mxu0 0
      %3881 = vmatprep.subr.bf16.mxu0 0
      %3882 = vmatpush1.bf16.msra.mxu0 0
      %3883 = vmatprep.subr.bf16.mxu0 0
      %3884 = vmatpush1.bf16.msra.mxu0 0
      %3885 = vmatprep.subr.bf16.mxu0 0
      %3886 = vmatpush1.bf16.msra.mxu0 0
      %3887 = vmatprep.subr.bf16.mxu0 0
      %3888 = vmatpush1.bf16.msra.mxu0 0
      %3889 = vmatprep.subr.bf16.mxu0 0
      %3890 = vmatpush1.bf16.msra.mxu0 0
      %3891 = vmatprep.subr.bf16.mxu0 0
      %3892 = vmatpush1.bf16.msra.mxu0 0
      %3893 = vmatprep.subr.bf16.mxu0 0
      %3894 = vmatpush1.bf16.msra.mxu0 0
      %3895 = vmatprep.subr.bf16.mxu0 0
      %3896 = vmatpush1.bf16.msra.mxu0 0
      %3897 = vmatprep.subr.bf16.mxu0 0
      %3898 = vmatpush1.bf16.msra.mxu0 0
      %3899 = vmatprep.subr.bf16.mxu0 0
      %3900 = vmatpush1.bf16.msra.mxu0 0
      %3901 = vmatprep.subr.bf16.mxu0 0
      %3902 = vmatpush1.bf16.msra.mxu0 0
      %3903 = vmatprep.subr.bf16.mxu0 0
      %3904 = vmatpush1.bf16.msra.mxu0 0
      %3905 = vmatprep.subr.bf16.mxu0 0
      %3906 = vmatpush1.bf16.msra.mxu0 0
      %3907 = vmatprep.mubr.bf16.mxu0 0
      %3908 = vmatmul.mubr.bf16.gmra.mrb[0].mxu0 %v3828
      %v3909 = vpop.f32.mrb[0].mxu0
      %v3910 = vadd.f32 %v3689, %v3909
      %v3911 = vpop.f32.mrb[0].mxu0
      %v3912 = vpop.f32.mrb[0].mxu0
      %v3913 = vadd.f32 %v3692, %v3912
      %v3914 = vpop.f32.mrb[0].mxu0
      %3915 = vmatprep.mubr.bf16.mxu0 0
      %3916 = vmatmul.mubr.bf16.gmra.mrb[0].mxu0 %v3831
      %v3917 = vpop.f32.mrb[0].mxu0
      %v3918 = vadd.f32 %v3697, %v3917
      %v3919 = vpop.f32.mrb[0].mxu0
      %v3920 = vpop.f32.mrb[0].mxu0
      %v3921 = vadd.f32 %v3700, %v3920
      %v3922 = vpop.f32.mrb[0].mxu0
      %3923 = vmatprep.mubr.bf16.mxu0 0
      %3924 = vmatmul.mubr.bf16.gmra.mrb[0].mxu0 %v3834
      %v3925 = vpop.f32.mrb[0].mxu0
      %v3926 = vadd.f32 %v3705, %v3925
      %v3927 = vpop.f32.mrb[0].mxu0
      %v3928 = vpop.f32.mrb[0].mxu0
      %v3929 = vadd.f32 %v3708, %v3928
      %v3930 = vpop.f32.mrb[0].mxu0
      %3931 = vmatprep.mubr.bf16.mxu0 0
      %3932 = vmatmul.mubr.bf16.gmra.mrb[0].mxu0 %v3837
      %v3933 = vpop.f32.mrb[0].mxu0
      %v3934 = vadd.f32 %v3713, %v3933
      %v3935 = vpop.f32.mrb[0].mxu0
      %v3936 = vpop.f32.mrb[0].mxu0
      %v3937 = vadd.f32 %v3716, %v3936
      %v3938 = vpop.f32.mrb[0].mxu0
      %3939 = vmatprep.mubr.bf16.mxu0 0
      %3940 = vmatmul.mubr.bf16.gmra.mrb[0].mxu0 %v3840
      %v3941 = vpop.f32.mrb[0].mxu0
      %v3942 = vadd.f32 %v3721, %v3941
      %v3943 = vpop.f32.mrb[0].mxu0
      %v3944 = vpop.f32.mrb[0].mxu0
      %v3945 = vadd.f32 %v3724, %v3944
      %v3946 = vpop.f32.mrb[0].mxu0
      %3947 = vmatprep.mubr.bf16.mxu0 0
      %3948 = vmatmul.mubr.bf16.gmra.mrb[0].mxu0 %v3843
      %v3949 = vpop.f32.mrb[0].mxu0
      %v3950 = vadd.f32 %v3729, %v3949
      %v3951 = vpop.f32.mrb[0].mxu0
      %v3952 = vpop.f32.mrb[0].mxu0
      %v3953 = vadd.f32 %v3732, %v3952
      %v3954 = vpop.f32.mrb[0].mxu0
      %3955 = vmatprep.mubr.bf16.mxu0 0
      %3956 = vmatmul.mubr.bf16.gmra.mrb[0].mxu0 %v3846
      %v3957 = vpop.f32.mrb[0].mxu0
      %v3958 = vadd.f32 %v3737, %v3957
      %v3959 = vpop.f32.mrb[0].mxu0
      %v3960 = vpop.f32.mrb[0].mxu0
      %v3961 = vadd.f32 %v3740, %v3960
      %v3962 = vpop.f32.mrb[0].mxu0
      %3963 = vmatprep.mubr.bf16.mxu0 0
      %3964 = vmatmul.mubr.bf16.gmra.mrb[0].mxu0 %v3849
      %v3965 = vpop.f32.mrb[0].mxu0
      %v3966 = vadd.f32 %v3745, %v3965
      %v3967 = vpop.f32.mrb[0].mxu0
      %v3968 = vpop.f32.mrb[0].mxu0
      %v3969 = vadd.f32 %v3748, %v3968
      %v3970 = vpop.f32.mrb[0].mxu0
      %3971 = vmatprep.mubr.bf16.mxu0 0
      %3972 = vmatmul.mubr.bf16.gmra.mrb[0].mxu0 %v3852
      %v3973 = vpop.f32.mrb[0].mxu0
      %v3974 = vadd.f32 %v3753, %v3973
      %v3975 = vpop.f32.mrb[0].mxu0
      %v3976 = vpop.f32.mrb[0].mxu0
      %v3977 = vadd.f32 %v3756, %v3976
      %v3978 = vpop.f32.mrb[0].mxu0
      %3979 = vmatprep.mubr.bf16.mxu0 0
      %3980 = vmatmul.mubr.bf16.gmra.mrb[0].mxu0 %v3855
      %v3981 = vpop.f32.mrb[0].mxu0
      %v3982 = vadd.f32 %v3761, %v3981
      %v3983 = vpop.f32.mrb[0].mxu0
      %v3984 = vpop.f32.mrb[0].mxu0
      %v3985 = vadd.f32 %v3764, %v3984
      %v3986 = vpop.f32.mrb[0].mxu0
      %3987 = vmatprep.mubr.bf16.mxu0 0
      %3988 = vmatmul.mubr.bf16.gmra.mrb[0].mxu0 %v3858
      %v3989 = vpop.f32.mrb[0].mxu0
      %v3990 = vadd.f32 %v3769, %v3989
      %v3991 = vpop.f32.mrb[0].mxu0
      %v3992 = vpop.f32.mrb[0].mxu0
      %v3993 = vadd.f32 %v3772, %v3992
      %v3994 = vpop.f32.mrb[0].mxu0
      %3995 = vmatprep.mubr.bf16.mxu0 0
      %3996 = vmatmul.mubr.bf16.gmra.mrb[0].mxu0 %v3861
      %v3997 = vpop.f32.mrb[0].mxu0
      %v3998 = vadd.f32 %v3777, %v3997
      %v3999 = vpop.f32.mrb[0].mxu0
      %v4000 = vpop.f32.mrb[0].mxu0
      %v4001 = vadd.f32 %v3780, %v4000
      %v4002 = vpop.f32.mrb[0].mxu0
      %4003 = vmatprep.mubr.bf16.mxu0 0
      %4004 = vmatmul.mubr.bf16.gmra.mrb[0].mxu0 %v3864
      %v4005 = vpop.f32.mrb[0].mxu0
      %v4006 = vadd.f32 %v3785, %v4005
      %v4007 = vpop.f32.mrb[0].mxu0
      %v4008 = vpop.f32.mrb[0].mxu0
      %v4009 = vadd.f32 %v3788, %v4008
      %v4010 = vpop.f32.mrb[0].mxu0
      %4011 = vmatprep.mubr.bf16.mxu0 0
      %4012 = vmatmul.mubr.bf16.gmra.mrb[0].mxu0 %v3867
      %v4013 = vpop.f32.mrb[0].mxu0
      %v4014 = vadd.f32 %v3793, %v4013
      %v4015 = vpop.f32.mrb[0].mxu0
      %v4016 = vpop.f32.mrb[0].mxu0
      %v4017 = vadd.f32 %v3796, %v4016
      %v4018 = vpop.f32.mrb[0].mxu0
      %4019 = vmatprep.mubr.bf16.mxu0 0
      %4020 = vmatmul.mubr.bf16.gmra.mrb[0].mxu0 %v3870
      %v4021 = vpop.f32.mrb[0].mxu0
      %v4022 = vadd.f32 %v3801, %v4021
      %v4023 = vpop.f32.mrb[0].mxu0
      %v4024 = vpop.f32.mrb[0].mxu0
      %v4025 = vadd.f32 %v3804, %v4024
      %v4026 = vpop.f32.mrb[0].mxu0
      %4027 = vmatprep.mubr.bf16.mxu0 0
      %4028 = vmatmul.mubr.bf16.gmra.mrb[0].mxu0 %v3873
      %v4029 = vpop.f32.mrb[0].mxu0
      %v4030 = vadd.f32 %v3809, %v4029
      %v4031 = vpop.f32.mrb[0].mxu0
      %v4032 = vpop.f32.mrb[0].mxu0
      %v4033 = vadd.f32 %v3812, %v4032
      %v4034 = vpop.f32.mrb[0].mxu0
      %4035 = vdwg.mxu0
      %s4036 = scalar_lea.vmem %s2, 32
      %v4037 = vld [vmem:[%s4036] sm:$0xf]
      %v4038 = vld [vmem:[%s4036 + $0x4] sm:$0xf]
      %v4039 = vld [vmem:[%s4036 + $0x8] sm:$0xf]
      %v4040 = vld [vmem:[%s4036 + $0xc] sm:$0xf]
      %v4045 = vunpack.c.l.b16 %v4037
      %v4046 = vunpack.c.l.b16 %v4038
      %v4047 = vunpack.c.l.b16 %v4039
      %v4048 = vunpack.c.l.b16 %v4040
      %v4049 = vpack.c.b16 %v4046, %v4045
      %v4050 = vpack.c.b16 %v4048, %v4047
      %4053 = vmatprep.subr.bf16.mxu0 0
      %4054 = vmatpush1.bf16.msra.mxu0 %v4049
      %4055 = vmatprep.subr.bf16.mxu0 0
      %4056 = vmatpush1.bf16.msra.mxu0 %v4050
      %4057 = vmatprep.subr.bf16.mxu0 0
      %4058 = vmatpush1.bf16.msra.mxu0 0
      %4059 = vmatprep.subr.bf16.mxu0 0
      %4060 = vmatpush1.bf16.msra.mxu0 0
      %4061 = vmatprep.subr.bf16.mxu0 0
      %4062 = vmatpush1.bf16.msra.mxu0 0
      %4063 = vmatprep.subr.bf16.mxu0 0
      %4064 = vmatpush1.bf16.msra.mxu0 0
      %4065 = vmatprep.subr.bf16.mxu0 0
      %4066 = vmatpush1.bf16.msra.mxu0 0
      %4067 = vmatprep.subr.bf16.mxu0 0
      %4068 = vmatpush1.bf16.msra.mxu0 0
      %4069 = vmatprep.subr.bf16.mxu0 0
      %4070 = vmatpush1.bf16.msra.mxu0 0
      %4071 = vmatprep.subr.bf16.mxu0 0
      %4072 = vmatpush1.bf16.msra.mxu0 0
      %4073 = vmatprep.subr.bf16.mxu0 0
      %4074 = vmatpush1.bf16.msra.mxu0 0
      %4075 = vmatprep.subr.bf16.mxu0 0
      %4076 = vmatpush1.bf16.msra.mxu0 0
      %4077 = vmatprep.subr.bf16.mxu0 0
      %4078 = vmatpush1.bf16.msra.mxu0 0
      %4079 = vmatprep.subr.bf16.mxu0 0
      %4080 = vmatpush1.bf16.msra.mxu0 0
      %4081 = vmatprep.subr.bf16.mxu0 0
      %4082 = vmatpush1.bf16.msra.mxu0 0
      %4083 = vmatprep.subr.bf16.mxu0 0
      %4084 = vmatpush1.bf16.msra.mxu0 0
      %4085 = vmatprep.mubr.bf16.mxu0 0
      %4086 = vmatmul.mubr.bf16.gmra.mrb[0].mxu0 %v453
      %v4087 = vpop.f32.mrb[0].mxu0
      %v4088 = vadd.f32 0.0, %v4087
      %v4089 = vpop.f32.mrb[0].mxu0
      %v4090 = vpop.f32.mrb[0].mxu0
      %v4091 = vadd.f32 0.0, %v4090
      %v4092 = vpop.f32.mrb[0].mxu0
      %4093 = vmatprep.mubr.bf16.mxu0 0
      %4094 = vmatmul.mubr.bf16.gmra.mrb[0].mxu0 %v456
      %v4095 = vpop.f32.mrb[0].mxu0
      %v4096 = vadd.f32 0.0, %v4095
      %v4097 = vpop.f32.mrb[0].mxu0
      %v4098 = vpop.f32.mrb[0].mxu0
      %v4099 = vadd.f32 0.0, %v4098
      %v4100 = vpop.f32.mrb[0].mxu0
      %4101 = vmatprep.mubr.bf16.mxu0 0
      %4102 = vmatmul.mubr.bf16.gmra.mrb[0].mxu0 %v459
      %v4103 = vpop.f32.mrb[0].mxu0
      %v4104 = vadd.f32 0.0, %v4103
      %v4105 = vpop.f32.mrb[0].mxu0
      %v4106 = vpop.f32.mrb[0].mxu0
      %v4107 = vadd.f32 0.0, %v4106
      %v4108 = vpop.f32.mrb[0].mxu0
      %4109 = vmatprep.mubr.bf16.mxu0 0
      %4110 = vmatmul.mubr.bf16.gmra.mrb[0].mxu0 %v462
      %v4111 = vpop.f32.mrb[0].mxu0
      %v4112 = vadd.f32 0.0, %v4111
      %v4113 = vpop.f32.mrb[0].mxu0
      %v4114 = vpop.f32.mrb[0].mxu0
      %v4115 = vadd.f32 0.0, %v4114
      %v4116 = vpop.f32.mrb[0].mxu0
      %4117 = vmatprep.mubr.bf16.mxu0 0
      %4118 = vmatmul.mubr.bf16.gmra.mrb[0].mxu0 %v465
      %v4119 = vpop.f32.mrb[0].mxu0
      %v4120 = vadd.f32 0.0, %v4119
      %v4121 = vpop.f32.mrb[0].mxu0
      %v4122 = vpop.f32.mrb[0].mxu0
      %v4123 = vadd.f32 0.0, %v4122
      %v4124 = vpop.f32.mrb[0].mxu0
      %4125 = vmatprep.mubr.bf16.mxu0 0
      %4126 = vmatmul.mubr.bf16.gmra.mrb[0].mxu0 %v468
      %v4127 = vpop.f32.mrb[0].mxu0
      %v4128 = vadd.f32 0.0, %v4127
      %v4129 = vpop.f32.mrb[0].mxu0
      %v4130 = vpop.f32.mrb[0].mxu0
      %v4131 = vadd.f32 0.0, %v4130
      %v4132 = vpop.f32.mrb[0].mxu0
      %4133 = vmatprep.mubr.bf16.mxu0 0
      %4134 = vmatmul.mubr.bf16.gmra.mrb[0].mxu0 %v471
      %v4135 = vpop.f32.mrb[0].mxu0
      %v4136 = vadd.f32 0.0, %v4135
      %v4137 = vpop.f32.mrb[0].mxu0
      %v4138 = vpop.f32.mrb[0].mxu0
      %v4139 = vadd.f32 0.0, %v4138
      %v4140 = vpop.f32.mrb[0].mxu0
      %4141 = vmatprep.mubr.bf16.mxu0 0
      %4142 = vmatmul.mubr.bf16.gmra.mrb[0].mxu0 %v474
      %v4143 = vpop.f32.mrb[0].mxu0
      %v4144 = vadd.f32 0.0, %v4143
      %v4145 = vpop.f32.mrb[0].mxu0
      %v4146 = vpop.f32.mrb[0].mxu0
      %v4147 = vadd.f32 0.0, %v4146
      %v4148 = vpop.f32.mrb[0].mxu0
      %4149 = vmatprep.mubr.bf16.mxu0 0
      %4150 = vmatmul.mubr.bf16.gmra.mrb[0].mxu0 %v477
      %v4151 = vpop.f32.mrb[0].mxu0
      %v4152 = vadd.f32 0.0, %v4151
      %v4153 = vpop.f32.mrb[0].mxu0
      %v4154 = vpop.f32.mrb[0].mxu0
      %v4155 = vadd.f32 0.0, %v4154
      %v4156 = vpop.f32.mrb[0].mxu0
      %4157 = vmatprep.mubr.bf16.mxu0 0
      %4158 = vmatmul.mubr.bf16.gmra.mrb[0].mxu0 %v480
      %v4159 = vpop.f32.mrb[0].mxu0
      %v4160 = vadd.f32 0.0, %v4159
      %v4161 = vpop.f32.mrb[0].mxu0
      %v4162 = vpop.f32.mrb[0].mxu0
      %v4163 = vadd.f32 0.0, %v4162
      %v4164 = vpop.f32.mrb[0].mxu0
      %4165 = vmatprep.mubr.bf16.mxu0 0
      %4166 = vmatmul.mubr.bf16.gmra.mrb[0].mxu0 %v483
      %v4167 = vpop.f32.mrb[0].mxu0
      %v4168 = vadd.f32 0.0, %v4167
      %v4169 = vpop.f32.mrb[0].mxu0
      %v4170 = vpop.f32.mrb[0].mxu0
      %v4171 = vadd.f32 0.0, %v4170
      %v4172 = vpop.f32.mrb[0].mxu0
      %4173 = vmatprep.mubr.bf16.mxu0 0
      %4174 = vmatmul.mubr.bf16.gmra.mrb[0].mxu0 %v486
      %v4175 = vpop.f32.mrb[0].mxu0
      %v4176 = vadd.f32 0.0, %v4175
      %v4177 = vpop.f32.mrb[0].mxu0
      %v4178 = vpop.f32.mrb[0].mxu0
      %v4179 = vadd.f32 0.0, %v4178
      %v4180 = vpop.f32.mrb[0].mxu0
      %4181 = vmatprep.mubr.bf16.mxu0 0
      %4182 = vmatmul.mubr.bf16.gmra.mrb[0].mxu0 %v489
      %v4183 = vpop.f32.mrb[0].mxu0
      %v4184 = vadd.f32 0.0, %v4183
      %v4185 = vpop.f32.mrb[0].mxu0
      %v4186 = vpop.f32.mrb[0].mxu0
      %v4187 = vadd.f32 0.0, %v4186
      %v4188 = vpop.f32.mrb[0].mxu0
      %4189 = vmatprep.mubr.bf16.mxu0 0
      %4190 = vmatmul.mubr.bf16.gmra.mrb[0].mxu0 %v492
      %v4191 = vpop.f32.mrb[0].mxu0
      %v4192 = vadd.f32 0.0, %v4191
      %v4193 = vpop.f32.mrb[0].mxu0
      %v4194 = vpop.f32.mrb[0].mxu0
      %v4195 = vadd.f32 0.0, %v4194
      %v4196 = vpop.f32.mrb[0].mxu0
      %4197 = vmatprep.mubr.bf16.mxu0 0
      %4198 = vmatmul.mubr.bf16.gmra.mrb[0].mxu0 %v495
      %v4199 = vpop.f32.mrb[0].mxu0
      %v4200 = vadd.f32 0.0, %v4199
      %v4201 = vpop.f32.mrb[0].mxu0
      %v4202 = vpop.f32.mrb[0].mxu0
      %v4203 = vadd.f32 0.0, %v4202
      %v4204 = vpop.f32.mrb[0].mxu0
      %4205 = vmatprep.mubr.bf16.mxu0 0
      %4206 = vmatmul.mubr.bf16.gmra.mrb[0].mxu0 %v498
      %v4207 = vpop.f32.mrb[0].mxu0
      %v4208 = vadd.f32 0.0, %v4207
      %v4209 = vpop.f32.mrb[0].mxu0
      %v4210 = vpop.f32.mrb[0].mxu0
      %v4211 = vadd.f32 0.0, %v4210
      %v4212 = vpop.f32.mrb[0].mxu0
      %4213 = vdwg.mxu0
      %s4214 = scalar_lea.vmem %s3, 32
      %v4215 = vld [vmem:[%s4214] sm:$0xf]
      %v4216 = vld [vmem:[%s4214 + $0x4] sm:$0xf]
      %v4217 = vld [vmem:[%s4214 + $0x8] sm:$0xf]
      %v4218 = vld [vmem:[%s4214 + $0xc] sm:$0xf]
      %v4223 = vunpack.c.l.b16 %v4215
      %v4224 = vunpack.c.l.b16 %v4216
      %v4225 = vunpack.c.l.b16 %v4217
      %v4226 = vunpack.c.l.b16 %v4218
      %v4227 = vpack.c.b16 %v4224, %v4223
      %v4228 = vpack.c.b16 %v4226, %v4225
      %4231 = vmatprep.subr.bf16.mxu0 0
      %4232 = vmatpush1.bf16.msra.mxu0 %v4227
      %4233 = vmatprep.subr.bf16.mxu0 0
      %4234 = vmatpush1.bf16.msra.mxu0 %v4228
      %4235 = vmatprep.subr.bf16.mxu0 0
      %4236 = vmatpush1.bf16.msra.mxu0 0
      %4237 = vmatprep.subr.bf16.mxu0 0
      %4238 = vmatpush1.bf16.msra.mxu0 0
      %4239 = vmatprep.subr.bf16.mxu0 0
      %4240 = vmatpush1.bf16.msra.mxu0 0
      %4241 = vmatprep.subr.bf16.mxu0 0
      %4242 = vmatpush1.bf16.msra.mxu0 0
      %4243 = vmatprep.subr.bf16.mxu0 0
      %4244 = vmatpush1.bf16.msra.mxu0 0
      %4245 = vmatprep.subr.bf16.mxu0 0
      %4246 = vmatpush1.bf16.msra.mxu0 0
      %4247 = vmatprep.subr.bf16.mxu0 0
      %4248 = vmatpush1.bf16.msra.mxu0 0
      %4249 = vmatprep.subr.bf16.mxu0 0
      %4250 = vmatpush1.bf16.msra.mxu0 0
      %4251 = vmatprep.subr.bf16.mxu0 0
      %4252 = vmatpush1.bf16.msra.mxu0 0
      %4253 = vmatprep.subr.bf16.mxu0 0
      %4254 = vmatpush1.bf16.msra.mxu0 0
      %4255 = vmatprep.subr.bf16.mxu0 0
      %4256 = vmatpush1.bf16.msra.mxu0 0
      %4257 = vmatprep.subr.bf16.mxu0 0
      %4258 = vmatpush1.bf16.msra.mxu0 0
      %4259 = vmatprep.subr.bf16.mxu0 0
      %4260 = vmatpush1.bf16.msra.mxu0 0
      %4261 = vmatprep.subr.bf16.mxu0 0
      %4262 = vmatpush1.bf16.msra.mxu0 0
      %4263 = vmatprep.mubr.bf16.mxu0 0
      %4264 = vmatmul.mubr.bf16.gmra.mrb[0].mxu0 %v678
      %v4265 = vpop.f32.mrb[0].mxu0
      %v4266 = vadd.f32 0.0, %v4265
      %v4267 = vpop.f32.mrb[0].mxu0
      %v4268 = vpop.f32.mrb[0].mxu0
      %v4269 = vadd.f32 0.0, %v4268
      %v4270 = vpop.f32.mrb[0].mxu0
      %4271 = vmatprep.mubr.bf16.mxu0 0
      %4272 = vmatmul.mubr.bf16.gmra.mrb[0].mxu0 %v681
      %v4273 = vpop.f32.mrb[0].mxu0
      %v4274 = vadd.f32 0.0, %v4273
      %v4275 = vpop.f32.mrb[0].mxu0
      %v4276 = vpop.f32.mrb[0].mxu0
      %v4277 = vadd.f32 0.0, %v4276
      %v4278 = vpop.f32.mrb[0].mxu0
      %4279 = vmatprep.mubr.bf16.mxu0 0
      %4280 = vmatmul.mubr.bf16.gmra.mrb[0].mxu0 %v684
      %v4281 = vpop.f32.mrb[0].mxu0
      %v4282 = vadd.f32 0.0, %v4281
      %v4283 = vpop.f32.mrb[0].mxu0
      %v4284 = vpop.f32.mrb[0].mxu0
      %v4285 = vadd.f32 0.0, %v4284
      %v4286 = vpop.f32.mrb[0].mxu0
      %4287 = vmatprep.mubr.bf16.mxu0 0
      %4288 = vmatmul.mubr.bf16.gmra.mrb[0].mxu0 %v687
      %v4289 = vpop.f32.mrb[0].mxu0
      %v4290 = vadd.f32 0.0, %v4289
      %v4291 = vpop.f32.mrb[0].mxu0
      %v4292 = vpop.f32.mrb[0].mxu0
      %v4293 = vadd.f32 0.0, %v4292
      %v4294 = vpop.f32.mrb[0].mxu0
      %4295 = vmatprep.mubr.bf16.mxu0 0
      %4296 = vmatmul.mubr.bf16.gmra.mrb[0].mxu0 %v690
      %v4297 = vpop.f32.mrb[0].mxu0
      %v4298 = vadd.f32 0.0, %v4297
      %v4299 = vpop.f32.mrb[0].mxu0
      %v4300 = vpop.f32.mrb[0].mxu0
      %v4301 = vadd.f32 0.0, %v4300
      %v4302 = vpop.f32.mrb[0].mxu0
      %4303 = vmatprep.mubr.bf16.mxu0 0
      %4304 = vmatmul.mubr.bf16.gmra.mrb[0].mxu0 %v693
      %v4305 = vpop.f32.mrb[0].mxu0
      %v4306 = vadd.f32 0.0, %v4305
      %v4307 = vpop.f32.mrb[0].mxu0
      %v4308 = vpop.f32.mrb[0].mxu0
      %v4309 = vadd.f32 0.0, %v4308
      %v4310 = vpop.f32.mrb[0].mxu0
      %4311 = vmatprep.mubr.bf16.mxu0 0
      %4312 = vmatmul.mubr.bf16.gmra.mrb[0].mxu0 %v696
      %v4313 = vpop.f32.mrb[0].mxu0
      %v4314 = vadd.f32 0.0, %v4313
      %v4315 = vpop.f32.mrb[0].mxu0
      %v4316 = vpop.f32.mrb[0].mxu0
      %v4317 = vadd.f32 0.0, %v4316
      %v4318 = vpop.f32.mrb[0].mxu0
      %4319 = vmatprep.mubr.bf16.mxu0 0
      %4320 = vmatmul.mubr.bf16.gmra.mrb[0].mxu0 %v699
      %v4321 = vpop.f32.mrb[0].mxu0
      %v4322 = vadd.f32 0.0, %v4321
      %v4323 = vpop.f32.mrb[0].mxu0
      %v4324 = vpop.f32.mrb[0].mxu0
      %v4325 = vadd.f32 0.0, %v4324
      %v4326 = vpop.f32.mrb[0].mxu0
      %4327 = vmatprep.mubr.bf16.mxu0 0
      %4328 = vmatmul.mubr.bf16.gmra.mrb[0].mxu0 %v702
      %v4329 = vpop.f32.mrb[0].mxu0
      %v4330 = vadd.f32 0.0, %v4329
      %v4331 = vpop.f32.mrb[0].mxu0
      %v4332 = vpop.f32.mrb[0].mxu0
      %v4333 = vadd.f32 0.0, %v4332
      %v4334 = vpop.f32.mrb[0].mxu0
      %4335 = vmatprep.mubr.bf16.mxu0 0
      %4336 = vmatmul.mubr.bf16.gmra.mrb[0].mxu0 %v705
      %v4337 = vpop.f32.mrb[0].mxu0
      %v4338 = vadd.f32 0.0, %v4337
      %v4339 = vpop.f32.mrb[0].mxu0
      %v4340 = vpop.f32.mrb[0].mxu0
      %v4341 = vadd.f32 0.0, %v4340
      %v4342 = vpop.f32.mrb[0].mxu0
      %4343 = vmatprep.mubr.bf16.mxu0 0
      %4344 = vmatmul.mubr.bf16.gmra.mrb[0].mxu0 %v708
      %v4345 = vpop.f32.mrb[0].mxu0
      %v4346 = vadd.f32 0.0, %v4345
      %v4347 = vpop.f32.mrb[0].mxu0
      %v4348 = vpop.f32.mrb[0].mxu0
      %v4349 = vadd.f32 0.0, %v4348
      %v4350 = vpop.f32.mrb[0].mxu0
      %4351 = vmatprep.mubr.bf16.mxu0 0
      %4352 = vmatmul.mubr.bf16.gmra.mrb[0].mxu0 %v711
      %v4353 = vpop.f32.mrb[0].mxu0
      %v4354 = vadd.f32 0.0, %v4353
      %v4355 = vpop.f32.mrb[0].mxu0
      %v4356 = vpop.f32.mrb[0].mxu0
      %v4357 = vadd.f32 0.0, %v4356
      %v4358 = vpop.f32.mrb[0].mxu0
      %4359 = vmatprep.mubr.bf16.mxu0 0
      %4360 = vmatmul.mubr.bf16.gmra.mrb[0].mxu0 %v714
      %v4361 = vpop.f32.mrb[0].mxu0
      %v4362 = vadd.f32 0.0, %v4361
      %v4363 = vpop.f32.mrb[0].mxu0
      %v4364 = vpop.f32.mrb[0].mxu0
      %v4365 = vadd.f32 0.0, %v4364
      %v4366 = vpop.f32.mrb[0].mxu0
      %4367 = vmatprep.mubr.bf16.mxu0 0
      %4368 = vmatmul.mubr.bf16.gmra.mrb[0].mxu0 %v717
      %v4369 = vpop.f32.mrb[0].mxu0
      %v4370 = vadd.f32 0.0, %v4369
      %v4371 = vpop.f32.mrb[0].mxu0
      %v4372 = vpop.f32.mrb[0].mxu0
      %v4373 = vadd.f32 0.0, %v4372
      %v4374 = vpop.f32.mrb[0].mxu0
      %4375 = vmatprep.mubr.bf16.mxu0 0
      %4376 = vmatmul.mubr.bf16.gmra.mrb[0].mxu0 %v720
      %v4377 = vpop.f32.mrb[0].mxu0
      %v4378 = vadd.f32 0.0, %v4377
      %v4379 = vpop.f32.mrb[0].mxu0
      %v4380 = vpop.f32.mrb[0].mxu0
      %v4381 = vadd.f32 0.0, %v4380
      %v4382 = vpop.f32.mrb[0].mxu0
      %4383 = vmatprep.mubr.bf16.mxu0 0
      %4384 = vmatmul.mubr.bf16.gmra.mrb[0].mxu0 %v723
      %v4385 = vpop.f32.mrb[0].mxu0
      %v4386 = vadd.f32 0.0, %v4385
      %v4387 = vpop.f32.mrb[0].mxu0
      %v4388 = vpop.f32.mrb[0].mxu0
      %v4389 = vadd.f32 0.0, %v4388
      %v4390 = vpop.f32.mrb[0].mxu0
      %4391 = vdwg.mxu0
      %s4392 = scalar_lea.vmem %s4, 32
      %v4393 = vld [vmem:[%s4392] sm:$0xf]
      %v4394 = vld [vmem:[%s4392 + $0x4] sm:$0xf]
      %v4395 = vld [vmem:[%s4392 + $0x8] sm:$0xf]
      %v4396 = vld [vmem:[%s4392 + $0xc] sm:$0xf]
      %v4401 = vunpack.c.l.b16 %v4393
      %v4402 = vunpack.c.l.b16 %v4394
      %v4403 = vunpack.c.l.b16 %v4395
      %v4404 = vunpack.c.l.b16 %v4396
      %v4405 = vpack.c.b16 %v4402, %v4401
      %v4406 = vpack.c.b16 %v4404, %v4403
      %4409 = vmatprep.subr.bf16.mxu0 0
      %4410 = vmatpush1.bf16.msra.mxu0 %v4405
      %4411 = vmatprep.subr.bf16.mxu0 0
      %4412 = vmatpush1.bf16.msra.mxu0 %v4406
      %4413 = vmatprep.subr.bf16.mxu0 0
      %4414 = vmatpush1.bf16.msra.mxu0 0
      %4415 = vmatprep.subr.bf16.mxu0 0
      %4416 = vmatpush1.bf16.msra.mxu0 0
      %4417 = vmatprep.subr.bf16.mxu0 0
      %4418 = vmatpush1.bf16.msra.mxu0 0
      %4419 = vmatprep.subr.bf16.mxu0 0
      %4420 = vmatpush1.bf16.msra.mxu0 0
      %4421 = vmatprep.subr.bf16.mxu0 0
      %4422 = vmatpush1.bf16.msra.mxu0 0
      %4423 = vmatprep.subr.bf16.mxu0 0
      %4424 = vmatpush1.bf16.msra.mxu0 0
      %4425 = vmatprep.subr.bf16.mxu0 0
      %4426 = vmatpush1.bf16.msra.mxu0 0
      %4427 = vmatprep.subr.bf16.mxu0 0
      %4428 = vmatpush1.bf16.msra.mxu0 0
      %4429 = vmatprep.subr.bf16.mxu0 0
      %4430 = vmatpush1.bf16.msra.mxu0 0
      %4431 = vmatprep.subr.bf16.mxu0 0
      %4432 = vmatpush1.bf16.msra.mxu0 0
      %4433 = vmatprep.subr.bf16.mxu0 0
      %4434 = vmatpush1.bf16.msra.mxu0 0
      %4435 = vmatprep.subr.bf16.mxu0 0
      %4436 = vmatpush1.bf16.msra.mxu0 0
      %4437 = vmatprep.subr.bf16.mxu0 0
      %4438 = vmatpush1.bf16.msra.mxu0 0
      %4439 = vmatprep.subr.bf16.mxu0 0
      %4440 = vmatpush1.bf16.msra.mxu0 0
      %4441 = vmatprep.mubr.bf16.mxu0 0
      %4442 = vmatmul.mubr.bf16.gmra.mrb[0].mxu0 %v678
      %v4443 = vpop.f32.mrb[0].mxu0
      %v4444 = vadd.f32 0.0, %v4443
      %v4445 = vpop.f32.mrb[0].mxu0
      %v4446 = vpop.f32.mrb[0].mxu0
      %v4447 = vadd.f32 0.0, %v4446
      %v4448 = vpop.f32.mrb[0].mxu0
      %4449 = vmatprep.mubr.bf16.mxu0 0
      %4450 = vmatmul.mubr.bf16.gmra.mrb[0].mxu0 %v681
      %v4451 = vpop.f32.mrb[0].mxu0
      %v4452 = vadd.f32 0.0, %v4451
      %v4453 = vpop.f32.mrb[0].mxu0
      %v4454 = vpop.f32.mrb[0].mxu0
      %v4455 = vadd.f32 0.0, %v4454
      %v4456 = vpop.f32.mrb[0].mxu0
      %4457 = vmatprep.mubr.bf16.mxu0 0
      %4458 = vmatmul.mubr.bf16.gmra.mrb[0].mxu0 %v684
      %v4459 = vpop.f32.mrb[0].mxu0
      %v4460 = vadd.f32 0.0, %v4459
      %v4461 = vpop.f32.mrb[0].mxu0
      %v4462 = vpop.f32.mrb[0].mxu0
      %v4463 = vadd.f32 0.0, %v4462
      %v4464 = vpop.f32.mrb[0].mxu0
      %4465 = vmatprep.mubr.bf16.mxu0 0
      %4466 = vmatmul.mubr.bf16.gmra.mrb[0].mxu0 %v687
      %v4467 = vpop.f32.mrb[0].mxu0
      %v4468 = vadd.f32 0.0, %v4467
      %v4469 = vpop.f32.mrb[0].mxu0
      %v4470 = vpop.f32.mrb[0].mxu0
      %v4471 = vadd.f32 0.0, %v4470
      %v4472 = vpop.f32.mrb[0].mxu0
      %4473 = vmatprep.mubr.bf16.mxu0 0
      %4474 = vmatmul.mubr.bf16.gmra.mrb[0].mxu0 %v690
      %v4475 = vpop.f32.mrb[0].mxu0
      %v4476 = vadd.f32 0.0, %v4475
      %v4477 = vpop.f32.mrb[0].mxu0
      %v4478 = vpop.f32.mrb[0].mxu0
      %v4479 = vadd.f32 0.0, %v4478
      %v4480 = vpop.f32.mrb[0].mxu0
      %4481 = vmatprep.mubr.bf16.mxu0 0
      %4482 = vmatmul.mubr.bf16.gmra.mrb[0].mxu0 %v693
      %v4483 = vpop.f32.mrb[0].mxu0
      %v4484 = vadd.f32 0.0, %v4483
      %v4485 = vpop.f32.mrb[0].mxu0
      %v4486 = vpop.f32.mrb[0].mxu0
      %v4487 = vadd.f32 0.0, %v4486
      %v4488 = vpop.f32.mrb[0].mxu0
      %4489 = vmatprep.mubr.bf16.mxu0 0
      %4490 = vmatmul.mubr.bf16.gmra.mrb[0].mxu0 %v696
      %v4491 = vpop.f32.mrb[0].mxu0
      %v4492 = vadd.f32 0.0, %v4491
      %v4493 = vpop.f32.mrb[0].mxu0
      %v4494 = vpop.f32.mrb[0].mxu0
      %v4495 = vadd.f32 0.0, %v4494
      %v4496 = vpop.f32.mrb[0].mxu0
      %4497 = vmatprep.mubr.bf16.mxu0 0
      %4498 = vmatmul.mubr.bf16.gmra.mrb[0].mxu0 %v699
      %v4499 = vpop.f32.mrb[0].mxu0
      %v4500 = vadd.f32 0.0, %v4499
      %v4501 = vpop.f32.mrb[0].mxu0
      %v4502 = vpop.f32.mrb[0].mxu0
      %v4503 = vadd.f32 0.0, %v4502
      %v4504 = vpop.f32.mrb[0].mxu0
      %4505 = vmatprep.mubr.bf16.mxu0 0
      %4506 = vmatmul.mubr.bf16.gmra.mrb[0].mxu0 %v702
      %v4507 = vpop.f32.mrb[0].mxu0
      %v4508 = vadd.f32 0.0, %v4507
      %v4509 = vpop.f32.mrb[0].mxu0
      %v4510 = vpop.f32.mrb[0].mxu0
      %v4511 = vadd.f32 0.0, %v4510
      %v4512 = vpop.f32.mrb[0].mxu0
      %4513 = vmatprep.mubr.bf16.mxu0 0
      %4514 = vmatmul.mubr.bf16.gmra.mrb[0].mxu0 %v705
      %v4515 = vpop.f32.mrb[0].mxu0
      %v4516 = vadd.f32 0.0, %v4515
      %v4517 = vpop.f32.mrb[0].mxu0
      %v4518 = vpop.f32.mrb[0].mxu0
      %v4519 = vadd.f32 0.0, %v4518
      %v4520 = vpop.f32.mrb[0].mxu0
      %4521 = vmatprep.mubr.bf16.mxu0 0
      %4522 = vmatmul.mubr.bf16.gmra.mrb[0].mxu0 %v708
      %v4523 = vpop.f32.mrb[0].mxu0
      %v4524 = vadd.f32 0.0, %v4523
      %v4525 = vpop.f32.mrb[0].mxu0
      %v4526 = vpop.f32.mrb[0].mxu0
      %v4527 = vadd.f32 0.0, %v4526
      %v4528 = vpop.f32.mrb[0].mxu0
      %4529 = vmatprep.mubr.bf16.mxu0 0
      %4530 = vmatmul.mubr.bf16.gmra.mrb[0].mxu0 %v711
      %v4531 = vpop.f32.mrb[0].mxu0
      %v4532 = vadd.f32 0.0, %v4531
      %v4533 = vpop.f32.mrb[0].mxu0
      %v4534 = vpop.f32.mrb[0].mxu0
      %v4535 = vadd.f32 0.0, %v4534
      %v4536 = vpop.f32.mrb[0].mxu0
      %4537 = vmatprep.mubr.bf16.mxu0 0
      %4538 = vmatmul.mubr.bf16.gmra.mrb[0].mxu0 %v714
      %v4539 = vpop.f32.mrb[0].mxu0
      %v4540 = vadd.f32 0.0, %v4539
      %v4541 = vpop.f32.mrb[0].mxu0
      %v4542 = vpop.f32.mrb[0].mxu0
      %v4543 = vadd.f32 0.0, %v4542
      %v4544 = vpop.f32.mrb[0].mxu0
      %4545 = vmatprep.mubr.bf16.mxu0 0
      %4546 = vmatmul.mubr.bf16.gmra.mrb[0].mxu0 %v717
      %v4547 = vpop.f32.mrb[0].mxu0
      %v4548 = vadd.f32 0.0, %v4547
      %v4549 = vpop.f32.mrb[0].mxu0
      %v4550 = vpop.f32.mrb[0].mxu0
      %v4551 = vadd.f32 0.0, %v4550
      %v4552 = vpop.f32.mrb[0].mxu0
      %4553 = vmatprep.mubr.bf16.mxu0 0
      %4554 = vmatmul.mubr.bf16.gmra.mrb[0].mxu0 %v720
      %v4555 = vpop.f32.mrb[0].mxu0
      %v4556 = vadd.f32 0.0, %v4555
      %v4557 = vpop.f32.mrb[0].mxu0
      %v4558 = vpop.f32.mrb[0].mxu0
      %v4559 = vadd.f32 0.0, %v4558
      %v4560 = vpop.f32.mrb[0].mxu0
      %4561 = vmatprep.mubr.bf16.mxu0 0
      %4562 = vmatmul.mubr.bf16.gmra.mrb[0].mxu0 %v723
      %v4563 = vpop.f32.mrb[0].mxu0
      %v4564 = vadd.f32 0.0, %v4563
      %v4565 = vpop.f32.mrb[0].mxu0
      %v4566 = vpop.f32.mrb[0].mxu0
      %v4567 = vadd.f32 0.0, %v4566
      %v4568 = vpop.f32.mrb[0].mxu0
      %4569 = vdwg.mxu0
      %v4570 = vpack.c.bf16 %v4091, %v4088
      %v4571 = vpack.c.bf16 %v4099, %v4096
      %v4572 = vpack.c.bf16 %v4107, %v4104
      %v4573 = vpack.c.bf16 %v4115, %v4112
      %v4574 = vpack.c.bf16 %v4123, %v4120
      %v4575 = vpack.c.bf16 %v4131, %v4128
      %v4576 = vpack.c.bf16 %v4139, %v4136
      %v4577 = vpack.c.bf16 %v4147, %v4144
      %v4578 = vpack.c.bf16 %v4155, %v4152
      %v4579 = vpack.c.bf16 %v4163, %v4160
      %v4580 = vpack.c.bf16 %v4171, %v4168
      %v4581 = vpack.c.bf16 %v4179, %v4176
      %v4582 = vpack.c.bf16 %v4187, %v4184
      %v4583 = vpack.c.bf16 %v4195, %v4192
      %v4584 = vpack.c.bf16 %v4203, %v4200
      %v4585 = vpack.c.bf16 %v4211, %v4208
      %v4586 = vpack.c.bf16 %v4269, %v4266
      %v4587 = vpack.c.bf16 %v4277, %v4274
      %v4588 = vpack.c.bf16 %v4285, %v4282
      %v4589 = vpack.c.bf16 %v4293, %v4290
      %v4590 = vpack.c.bf16 %v4301, %v4298
      %v4591 = vpack.c.bf16 %v4309, %v4306
      %v4592 = vpack.c.bf16 %v4317, %v4314
      %v4593 = vpack.c.bf16 %v4325, %v4322
      %v4594 = vpack.c.bf16 %v4333, %v4330
      %v4595 = vpack.c.bf16 %v4341, %v4338
      %v4596 = vpack.c.bf16 %v4349, %v4346
      %v4597 = vpack.c.bf16 %v4357, %v4354
      %v4598 = vpack.c.bf16 %v4365, %v4362
      %v4599 = vpack.c.bf16 %v4373, %v4370
      %v4600 = vpack.c.bf16 %v4381, %v4378
      %v4601 = vpack.c.bf16 %v4389, %v4386
      %v4603 = vsel %vm451, %v4570, 0
      %v4606 = vsel %vm451, %v4571, 0
      %v4609 = vsel %vm451, %v4572, 0
      %v4612 = vsel %vm451, %v4573, 0
      %v4615 = vsel %vm451, %v4574, 0
      %v4618 = vsel %vm451, %v4575, 0
      %v4621 = vsel %vm451, %v4576, 0
      %v4624 = vsel %vm451, %v4577, 0
      %v4627 = vsel %vm451, %v4578, 0
      %v4630 = vsel %vm451, %v4579, 0
      %v4633 = vsel %vm451, %v4580, 0
      %v4636 = vsel %vm451, %v4581, 0
      %v4639 = vsel %vm451, %v4582, 0
      %v4642 = vsel %vm451, %v4583, 0
      %v4645 = vsel %vm451, %v4584, 0
      %v4648 = vsel %vm451, %v4585, 0
      %v4651 = vsel %vm451, %v4586, 0
      %v4654 = vsel %vm451, %v4587, 0
      %v4657 = vsel %vm451, %v4588, 0
      %v4660 = vsel %vm451, %v4589, 0
      %v4663 = vsel %vm451, %v4590, 0
      %v4666 = vsel %vm451, %v4591, 0
      %v4669 = vsel %vm451, %v4592, 0
      %v4672 = vsel %vm451, %v4593, 0
      %v4675 = vsel %vm451, %v4594, 0
      %v4678 = vsel %vm451, %v4595, 0
      %v4681 = vsel %vm451, %v4596, 0
      %v4684 = vsel %vm451, %v4597, 0
      %v4687 = vsel %vm451, %v4598, 0
      %v4690 = vsel %vm451, %v4599, 0
      %v4693 = vsel %vm451, %v4600, 0
      %v4696 = vsel %vm451, %v4601, 0
      %4698 = vmatprep.subr.bf16.mxu0 0
      %4699 = vmatpush1.bf16.xpose.msra.mxu0 %v4651
      %4700 = vmatprep.subr.bf16.mxu0 0
      %4701 = vmatpush1.bf16.xpose.msra.mxu0 %v4654
      %4702 = vmatprep.subr.bf16.mxu0 0
      %4703 = vmatpush1.bf16.xpose.msra.mxu0 %v4657
      %4704 = vmatprep.subr.bf16.mxu0 0
      %4705 = vmatpush1.bf16.xpose.msra.mxu0 %v4660
      %4706 = vmatprep.subr.bf16.mxu0 0
      %4707 = vmatpush1.bf16.xpose.msra.mxu0 %v4663
      %4708 = vmatprep.subr.bf16.mxu0 0
      %4709 = vmatpush1.bf16.xpose.msra.mxu0 %v4666
      %4710 = vmatprep.subr.bf16.mxu0 0
      %4711 = vmatpush1.bf16.xpose.msra.mxu0 %v4669
      %4712 = vmatprep.subr.bf16.mxu0 0
      %4713 = vmatpush1.bf16.xpose.msra.mxu0 %v4672
      %4714 = vmatprep.subr.bf16.mxu0 0
      %4715 = vmatpush1.bf16.xpose.msra.mxu0 %v4675
      %4716 = vmatprep.subr.bf16.mxu0 0
      %4717 = vmatpush1.bf16.xpose.msra.mxu0 %v4678
      %4718 = vmatprep.subr.bf16.mxu0 0
      %4719 = vmatpush1.bf16.xpose.msra.mxu0 %v4681
      %4720 = vmatprep.subr.bf16.mxu0 0
      %4721 = vmatpush1.bf16.xpose.msra.mxu0 %v4684
      %4722 = vmatprep.subr.bf16.mxu0 0
      %4723 = vmatpush1.bf16.xpose.msra.mxu0 %v4687
      %4724 = vmatprep.subr.bf16.mxu0 0
      %4725 = vmatpush1.bf16.xpose.msra.mxu0 %v4690
      %4726 = vmatprep.subr.bf16.mxu0 0
      %4727 = vmatpush1.bf16.xpose.msra.mxu0 %v4693
      %4728 = vmatprep.subr.bf16.mxu0 0
      %4729 = vmatpush1.bf16.xpose.msra.mxu0 %v4696
      %4730 = vmatprep.mubr.bf16.mxu0 0
      %4731 = vmatmul.mubr.bf16.gmra.mrb[0].mxu0 %v4603
      %v4732 = vpop.f32.mrb[0].mxu0
      %v4733 = vadd.f32 0.0, %v4732
      %v4734 = vpop.f32.mrb[0].mxu0
      %v4735 = vadd.f32 0.0, %v4734
      %v4736 = vpop.f32.mrb[0].mxu0
      %v4737 = vadd.f32 0.0, %v4736
      %v4738 = vpop.f32.mrb[0].mxu0
      %v4739 = vadd.f32 0.0, %v4738
      %4740 = vmatprep.mubr.bf16.mxu0 0
      %4741 = vmatmul.mubr.bf16.gmra.mrb[0].mxu0 %v4606
      %v4742 = vpop.f32.mrb[0].mxu0
      %v4743 = vadd.f32 0.0, %v4742
      %v4744 = vpop.f32.mrb[0].mxu0
      %v4745 = vadd.f32 0.0, %v4744
      %v4746 = vpop.f32.mrb[0].mxu0
      %v4747 = vadd.f32 0.0, %v4746
      %v4748 = vpop.f32.mrb[0].mxu0
      %v4749 = vadd.f32 0.0, %v4748
      %4750 = vmatprep.mubr.bf16.mxu0 0
      %4751 = vmatmul.mubr.bf16.gmra.mrb[0].mxu0 %v4609
      %v4752 = vpop.f32.mrb[0].mxu0
      %v4753 = vadd.f32 0.0, %v4752
      %v4754 = vpop.f32.mrb[0].mxu0
      %v4755 = vadd.f32 0.0, %v4754
      %v4756 = vpop.f32.mrb[0].mxu0
      %v4757 = vadd.f32 0.0, %v4756
      %v4758 = vpop.f32.mrb[0].mxu0
      %v4759 = vadd.f32 0.0, %v4758
      %4760 = vmatprep.mubr.bf16.mxu0 0
      %4761 = vmatmul.mubr.bf16.gmra.mrb[0].mxu0 %v4612
      %v4762 = vpop.f32.mrb[0].mxu0
      %v4763 = vadd.f32 0.0, %v4762
      %v4764 = vpop.f32.mrb[0].mxu0
      %v4765 = vadd.f32 0.0, %v4764
      %v4766 = vpop.f32.mrb[0].mxu0
      %v4767 = vadd.f32 0.0, %v4766
      %v4768 = vpop.f32.mrb[0].mxu0
      %v4769 = vadd.f32 0.0, %v4768
      %4770 = vmatprep.mubr.bf16.mxu0 0
      %4771 = vmatmul.mubr.bf16.gmra.mrb[0].mxu0 %v4615
      %v4772 = vpop.f32.mrb[0].mxu0
      %v4773 = vadd.f32 0.0, %v4772
      %v4774 = vpop.f32.mrb[0].mxu0
      %v4775 = vadd.f32 0.0, %v4774
      %v4776 = vpop.f32.mrb[0].mxu0
      %v4777 = vadd.f32 0.0, %v4776
      %v4778 = vpop.f32.mrb[0].mxu0
      %v4779 = vadd.f32 0.0, %v4778
      %4780 = vmatprep.mubr.bf16.mxu0 0
      %4781 = vmatmul.mubr.bf16.gmra.mrb[0].mxu0 %v4618
      %v4782 = vpop.f32.mrb[0].mxu0
      %v4783 = vadd.f32 0.0, %v4782
      %v4784 = vpop.f32.mrb[0].mxu0
      %v4785 = vadd.f32 0.0, %v4784
      %v4786 = vpop.f32.mrb[0].mxu0
      %v4787 = vadd.f32 0.0, %v4786
      %v4788 = vpop.f32.mrb[0].mxu0
      %v4789 = vadd.f32 0.0, %v4788
      %4790 = vmatprep.mubr.bf16.mxu0 0
      %4791 = vmatmul.mubr.bf16.gmra.mrb[0].mxu0 %v4621
      %v4792 = vpop.f32.mrb[0].mxu0
      %v4793 = vadd.f32 0.0, %v4792
      %v4794 = vpop.f32.mrb[0].mxu0
      %v4795 = vadd.f32 0.0, %v4794
      %v4796 = vpop.f32.mrb[0].mxu0
      %v4797 = vadd.f32 0.0, %v4796
      %v4798 = vpop.f32.mrb[0].mxu0
      %v4799 = vadd.f32 0.0, %v4798
      %4800 = vmatprep.mubr.bf16.mxu0 0
      %4801 = vmatmul.mubr.bf16.gmra.mrb[0].mxu0 %v4624
      %v4802 = vpop.f32.mrb[0].mxu0
      %v4803 = vadd.f32 0.0, %v4802
      %v4804 = vpop.f32.mrb[0].mxu0
      %v4805 = vadd.f32 0.0, %v4804
      %v4806 = vpop.f32.mrb[0].mxu0
      %v4807 = vadd.f32 0.0, %v4806
      %v4808 = vpop.f32.mrb[0].mxu0
      %v4809 = vadd.f32 0.0, %v4808
      %4810 = vmatprep.mubr.bf16.mxu0 0
      %4811 = vmatmul.mubr.bf16.gmra.mrb[0].mxu0 %v4627
      %v4812 = vpop.f32.mrb[0].mxu0
      %v4813 = vadd.f32 0.0, %v4812
      %v4814 = vpop.f32.mrb[0].mxu0
      %v4815 = vadd.f32 0.0, %v4814
      %v4816 = vpop.f32.mrb[0].mxu0
      %v4817 = vadd.f32 0.0, %v4816
      %v4818 = vpop.f32.mrb[0].mxu0
      %v4819 = vadd.f32 0.0, %v4818
      %4820 = vmatprep.mubr.bf16.mxu0 0
      %4821 = vmatmul.mubr.bf16.gmra.mrb[0].mxu0 %v4630
      %v4822 = vpop.f32.mrb[0].mxu0
      %v4823 = vadd.f32 0.0, %v4822
      %v4824 = vpop.f32.mrb[0].mxu0
      %v4825 = vadd.f32 0.0, %v4824
      %v4826 = vpop.f32.mrb[0].mxu0
      %v4827 = vadd.f32 0.0, %v4826
      %v4828 = vpop.f32.mrb[0].mxu0
      %v4829 = vadd.f32 0.0, %v4828
      %4830 = vmatprep.mubr.bf16.mxu0 0
      %4831 = vmatmul.mubr.bf16.gmra.mrb[0].mxu0 %v4633
      %v4832 = vpop.f32.mrb[0].mxu0
      %v4833 = vadd.f32 0.0, %v4832
      %v4834 = vpop.f32.mrb[0].mxu0
      %v4835 = vadd.f32 0.0, %v4834
      %v4836 = vpop.f32.mrb[0].mxu0
      %v4837 = vadd.f32 0.0, %v4836
      %v4838 = vpop.f32.mrb[0].mxu0
      %v4839 = vadd.f32 0.0, %v4838
      %4840 = vmatprep.mubr.bf16.mxu0 0
      %4841 = vmatmul.mubr.bf16.gmra.mrb[0].mxu0 %v4636
      %v4842 = vpop.f32.mrb[0].mxu0
      %v4843 = vadd.f32 0.0, %v4842
      %v4844 = vpop.f32.mrb[0].mxu0
      %v4845 = vadd.f32 0.0, %v4844
      %v4846 = vpop.f32.mrb[0].mxu0
      %v4847 = vadd.f32 0.0, %v4846
      %v4848 = vpop.f32.mrb[0].mxu0
      %v4849 = vadd.f32 0.0, %v4848
      %4850 = vmatprep.mubr.bf16.mxu0 0
      %4851 = vmatmul.mubr.bf16.gmra.mrb[0].mxu0 %v4639
      %v4852 = vpop.f32.mrb[0].mxu0
      %v4853 = vadd.f32 0.0, %v4852
      %v4854 = vpop.f32.mrb[0].mxu0
      %v4855 = vadd.f32 0.0, %v4854
      %v4856 = vpop.f32.mrb[0].mxu0
      %v4857 = vadd.f32 0.0, %v4856
      %v4858 = vpop.f32.mrb[0].mxu0
      %v4859 = vadd.f32 0.0, %v4858
      %4860 = vmatprep.mubr.bf16.mxu0 0
      %4861 = vmatmul.mubr.bf16.gmra.mrb[0].mxu0 %v4642
      %v4862 = vpop.f32.mrb[0].mxu0
      %v4863 = vadd.f32 0.0, %v4862
      %v4864 = vpop.f32.mrb[0].mxu0
      %v4865 = vadd.f32 0.0, %v4864
      %v4866 = vpop.f32.mrb[0].mxu0
      %v4867 = vadd.f32 0.0, %v4866
      %v4868 = vpop.f32.mrb[0].mxu0
      %v4869 = vadd.f32 0.0, %v4868
      %4870 = vmatprep.mubr.bf16.mxu0 0
      %4871 = vmatmul.mubr.bf16.gmra.mrb[0].mxu0 %v4645
      %v4872 = vpop.f32.mrb[0].mxu0
      %v4873 = vadd.f32 0.0, %v4872
      %v4874 = vpop.f32.mrb[0].mxu0
      %v4875 = vadd.f32 0.0, %v4874
      %v4876 = vpop.f32.mrb[0].mxu0
      %v4877 = vadd.f32 0.0, %v4876
      %v4878 = vpop.f32.mrb[0].mxu0
      %v4879 = vadd.f32 0.0, %v4878
      %4880 = vmatprep.mubr.bf16.mxu0 0
      %4881 = vmatmul.mubr.bf16.gmra.mrb[0].mxu0 %v4648
      %v4882 = vpop.f32.mrb[0].mxu0
      %v4883 = vadd.f32 0.0, %v4882
      %v4884 = vpop.f32.mrb[0].mxu0
      %v4885 = vadd.f32 0.0, %v4884
      %v4886 = vpop.f32.mrb[0].mxu0
      %v4887 = vadd.f32 0.0, %v4886
      %v4888 = vpop.f32.mrb[0].mxu0
      %v4889 = vadd.f32 0.0, %v4888
      %4890 = vdwg.mxu0
      %v4891 = vmax.f32 %v4733, %v4735
      %4892 = vmax.xlane.f32.xlu0 %v4891
      %v4893 = vpop.xlane.xlu0 %4892
      %v4894 = vmax.f32 %v4737, %v4739
      %4895 = vmax.xlane.f32.xlu0 %v4894
      %v4896 = vpop.xlane.xlu0 %4895
      %v4897 = vmax.f32 %v4743, %v4745
      %4898 = vmax.xlane.f32.xlu0 %v4897
      %v4899 = vpop.xlane.xlu0 %4898
      %v4900 = vmax.f32 %v4747, %v4749
      %4901 = vmax.xlane.f32.xlu0 %v4900
      %v4902 = vpop.xlane.xlu0 %4901
      %v4903 = vmax.f32 %v4753, %v4755
      %4904 = vmax.xlane.f32.xlu0 %v4903
      %v4905 = vpop.xlane.xlu0 %4904
      %v4906 = vmax.f32 %v4757, %v4759
      %4907 = vmax.xlane.f32.xlu0 %v4906
      %v4908 = vpop.xlane.xlu0 %4907
      %v4909 = vmax.f32 %v4763, %v4765
      %4910 = vmax.xlane.f32.xlu0 %v4909
      %v4911 = vpop.xlane.xlu0 %4910
      %v4912 = vmax.f32 %v4767, %v4769
      %4913 = vmax.xlane.f32.xlu0 %v4912
      %v4914 = vpop.xlane.xlu0 %4913
      %v4915 = vmax.f32 %v4773, %v4775
      %4916 = vmax.xlane.f32.xlu0 %v4915
      %v4917 = vpop.xlane.xlu0 %4916
      %v4918 = vmax.f32 %v4777, %v4779
      %4919 = vmax.xlane.f32.xlu0 %v4918
      %v4920 = vpop.xlane.xlu0 %4919
      %v4921 = vmax.f32 %v4783, %v4785
      %4922 = vmax.xlane.f32.xlu0 %v4921
      %v4923 = vpop.xlane.xlu0 %4922
      %v4924 = vmax.f32 %v4787, %v4789
      %4925 = vmax.xlane.f32.xlu0 %v4924
      %v4926 = vpop.xlane.xlu0 %4925
      %v4927 = vmax.f32 %v4793, %v4795
      %4928 = vmax.xlane.f32.xlu0 %v4927
      %v4929 = vpop.xlane.xlu0 %4928
      %v4930 = vmax.f32 %v4797, %v4799
      %4931 = vmax.xlane.f32.xlu0 %v4930
      %v4932 = vpop.xlane.xlu0 %4931
      %v4933 = vmax.f32 %v4803, %v4805
      %4934 = vmax.xlane.f32.xlu0 %v4933
      %v4935 = vpop.xlane.xlu0 %4934
      %v4936 = vmax.f32 %v4807, %v4809
      %4937 = vmax.xlane.f32.xlu0 %v4936
      %v4938 = vpop.xlane.xlu0 %4937
      %v4939 = vmax.f32 %v4813, %v4815
      %4940 = vmax.xlane.f32.xlu0 %v4939
      %v4941 = vpop.xlane.xlu0 %4940
      %v4942 = vmax.f32 %v4817, %v4819
      %4943 = vmax.xlane.f32.xlu0 %v4942
      %v4944 = vpop.xlane.xlu0 %4943
      %v4945 = vmax.f32 %v4823, %v4825
      %4946 = vmax.xlane.f32.xlu0 %v4945
      %v4947 = vpop.xlane.xlu0 %4946
      %v4948 = vmax.f32 %v4827, %v4829
      %4949 = vmax.xlane.f32.xlu0 %v4948
      %v4950 = vpop.xlane.xlu0 %4949
      %v4951 = vmax.f32 %v4833, %v4835
      %4952 = vmax.xlane.f32.xlu0 %v4951
      %v4953 = vpop.xlane.xlu0 %4952
      %v4954 = vmax.f32 %v4837, %v4839
      %4955 = vmax.xlane.f32.xlu0 %v4954
      %v4956 = vpop.xlane.xlu0 %4955
      %v4957 = vmax.f32 %v4843, %v4845
      %4958 = vmax.xlane.f32.xlu0 %v4957
      %v4959 = vpop.xlane.xlu0 %4958
      %v4960 = vmax.f32 %v4847, %v4849
      %4961 = vmax.xlane.f32.xlu0 %v4960
      %v4962 = vpop.xlane.xlu0 %4961
      %v4963 = vmax.f32 %v4853, %v4855
      %4964 = vmax.xlane.f32.xlu0 %v4963
      %v4965 = vpop.xlane.xlu0 %4964
      %v4966 = vmax.f32 %v4857, %v4859
      %4967 = vmax.xlane.f32.xlu0 %v4966
      %v4968 = vpop.xlane.xlu0 %4967
      %v4969 = vmax.f32 %v4863, %v4865
      %4970 = vmax.xlane.f32.xlu0 %v4969
      %v4971 = vpop.xlane.xlu0 %4970
      %v4972 = vmax.f32 %v4867, %v4869
      %4973 = vmax.xlane.f32.xlu0 %v4972
      %v4974 = vpop.xlane.xlu0 %4973
      %v4975 = vmax.f32 %v4873, %v4875
      %4976 = vmax.xlane.f32.xlu0 %v4975
      %v4977 = vpop.xlane.xlu0 %4976
      %v4978 = vmax.f32 %v4877, %v4879
      %4979 = vmax.xlane.f32.xlu0 %v4978
      %v4980 = vpop.xlane.xlu0 %4979
      %v4981 = vmax.f32 %v4883, %v4885
      %4982 = vmax.xlane.f32.xlu0 %v4981
      %v4983 = vpop.xlane.xlu0 %4982
      %v4984 = vmax.f32 %v4887, %v4889
      %4985 = vmax.xlane.f32.xlu0 %v4984
      %v4986 = vpop.xlane.xlu0 %4985
      %v4987 = vsub.f32 %v4733, %v4893
      %v4988 = vsub.f32 %v4735, %v4893
      %v4989 = vsub.f32 %v4737, %v4896
      %v4990 = vsub.f32 %v4739, %v4896
      %v4991 = vsub.f32 %v4743, %v4899
      %v4992 = vsub.f32 %v4745, %v4899
      %v4993 = vsub.f32 %v4747, %v4902
      %v4994 = vsub.f32 %v4749, %v4902
      %v4995 = vsub.f32 %v4753, %v4905
      %v4996 = vsub.f32 %v4755, %v4905
      %v4997 = vsub.f32 %v4757, %v4908
      %v4998 = vsub.f32 %v4759, %v4908
      %v4999 = vsub.f32 %v4763, %v4911
      %v5000 = vsub.f32 %v4765, %v4911
      %v5001 = vsub.f32 %v4767, %v4914
      %v5002 = vsub.f32 %v4769, %v4914
      %v5003 = vsub.f32 %v4773, %v4917
      %v5004 = vsub.f32 %v4775, %v4917
      %v5005 = vsub.f32 %v4777, %v4920
      %v5006 = vsub.f32 %v4779, %v4920
      %v5007 = vsub.f32 %v4783, %v4923
      %v5008 = vsub.f32 %v4785, %v4923
      %v5009 = vsub.f32 %v4787, %v4926
      %v5010 = vsub.f32 %v4789, %v4926
      %v5011 = vsub.f32 %v4793, %v4929
      %v5012 = vsub.f32 %v4795, %v4929
      %v5013 = vsub.f32 %v4797, %v4932
      %v5014 = vsub.f32 %v4799, %v4932
      %v5015 = vsub.f32 %v4803, %v4935
      %v5016 = vsub.f32 %v4805, %v4935
      %v5017 = vsub.f32 %v4807, %v4938
      %v5018 = vsub.f32 %v4809, %v4938
      %v5019 = vsub.f32 %v4813, %v4941
      %v5020 = vsub.f32 %v4815, %v4941
      %v5021 = vsub.f32 %v4817, %v4944
      %v5022 = vsub.f32 %v4819, %v4944
      %v5023 = vsub.f32 %v4823, %v4947
      %v5024 = vsub.f32 %v4825, %v4947
      %v5025 = vsub.f32 %v4827, %v4950
      %v5026 = vsub.f32 %v4829, %v4950
      %v5027 = vsub.f32 %v4833, %v4953
      %v5028 = vsub.f32 %v4835, %v4953
      %v5029 = vsub.f32 %v4837, %v4956
      %v5030 = vsub.f32 %v4839, %v4956
      %v5031 = vsub.f32 %v4843, %v4959
      %v5032 = vsub.f32 %v4845, %v4959
      %v5033 = vsub.f32 %v4847, %v4962
      %v5034 = vsub.f32 %v4849, %v4962
      %v5035 = vsub.f32 %v4853, %v4965
      %v5036 = vsub.f32 %v4855, %v4965
      %v5037 = vsub.f32 %v4857, %v4968
      %v5038 = vsub.f32 %v4859, %v4968
      %v5039 = vsub.f32 %v4863, %v4971
      %v5040 = vsub.f32 %v4865, %v4971
      %v5041 = vsub.f32 %v4867, %v4974
      %v5042 = vsub.f32 %v4869, %v4974
      %v5043 = vsub.f32 %v4873, %v4977
      %v5044 = vsub.f32 %v4875, %v4977
      %v5045 = vsub.f32 %v4877, %v4980
      %v5046 = vsub.f32 %v4879, %v4980
      %v5047 = vsub.f32 %v4883, %v4983
      %v5048 = vsub.f32 %v4885, %v4983
      %v5049 = vsub.f32 %v4887, %v4986
      %v5050 = vsub.f32 %v4889, %v4986
      %v5051 = vmul.f32 %v4987, 1.442695
      %v5052 = vpow.pop %v5051
      %v5053 = vmul.f32 %v4988, 1.442695
      %v5054 = vpow.pop %v5053
      %v5055 = vmul.f32 %v4989, 1.442695
      %v5056 = vpow.pop %v5055
      %v5057 = vmul.f32 %v4990, 1.442695
      %v5058 = vpow.pop %v5057
      %v5059 = vmul.f32 %v4991, 1.442695
      %v5060 = vpow.pop %v5059
      %v5061 = vmul.f32 %v4992, 1.442695
      %v5062 = vpow.pop %v5061
      %v5063 = vmul.f32 %v4993, 1.442695
      %v5064 = vpow.pop %v5063
      %v5065 = vmul.f32 %v4994, 1.442695
      %v5066 = vpow.pop %v5065
      %v5067 = vmul.f32 %v4995, 1.442695
      %v5068 = vpow.pop %v5067
      %v5069 = vmul.f32 %v4996, 1.442695
      %v5070 = vpow.pop %v5069
      %v5071 = vmul.f32 %v4997, 1.442695
      %v5072 = vpow.pop %v5071
      %v5073 = vmul.f32 %v4998, 1.442695
      %v5074 = vpow.pop %v5073
      %v5075 = vmul.f32 %v4999, 1.442695
      %v5076 = vpow.pop %v5075
      %v5077 = vmul.f32 %v5000, 1.442695
      %v5078 = vpow.pop %v5077
      %v5079 = vmul.f32 %v5001, 1.442695
      %v5080 = vpow.pop %v5079
      %v5081 = vmul.f32 %v5002, 1.442695
      %v5082 = vpow.pop %v5081
      %v5083 = vmul.f32 %v5003, 1.442695
      %v5084 = vpow.pop %v5083
      %v5085 = vmul.f32 %v5004, 1.442695
      %v5086 = vpow.pop %v5085
      %v5087 = vmul.f32 %v5005, 1.442695
      %v5088 = vpow.pop %v5087
      %v5089 = vmul.f32 %v5006, 1.442695
      %v5090 = vpow.pop %v5089
      %v5091 = vmul.f32 %v5007, 1.442695
      %v5092 = vpow.pop %v5091
      %v5093 = vmul.f32 %v5008, 1.442695
      %v5094 = vpow.pop %v5093
      %v5095 = vmul.f32 %v5009, 1.442695
      %v5096 = vpow.pop %v5095
      %v5097 = vmul.f32 %v5010, 1.442695
      %v5098 = vpow.pop %v5097
      %v5099 = vmul.f32 %v5011, 1.442695
      %v5100 = vpow.pop %v5099
      %v5101 = vmul.f32 %v5012, 1.442695
      %v5102 = vpow.pop %v5101
      %v5103 = vmul.f32 %v5013, 1.442695
      %v5104 = vpow.pop %v5103
      %v5105 = vmul.f32 %v5014, 1.442695
      %v5106 = vpow.pop %v5105
      %v5107 = vmul.f32 %v5015, 1.442695
      %v5108 = vpow.pop %v5107
      %v5109 = vmul.f32 %v5016, 1.442695
      %v5110 = vpow.pop %v5109
      %v5111 = vmul.f32 %v5017, 1.442695
      %v5112 = vpow.pop %v5111
      %v5113 = vmul.f32 %v5018, 1.442695
      %v5114 = vpow.pop %v5113
      %v5115 = vmul.f32 %v5019, 1.442695
      %v5116 = vpow.pop %v5115
      %v5117 = vmul.f32 %v5020, 1.442695
      %v5118 = vpow.pop %v5117
      %v5119 = vmul.f32 %v5021, 1.442695
      %v5120 = vpow.pop %v5119
      %v5121 = vmul.f32 %v5022, 1.442695
      %v5122 = vpow.pop %v5121
      %v5123 = vmul.f32 %v5023, 1.442695
      %v5124 = vpow.pop %v5123
      %v5125 = vmul.f32 %v5024, 1.442695
      %v5126 = vpow.pop %v5125
      %v5127 = vmul.f32 %v5025, 1.442695
      %v5128 = vpow.pop %v5127
      %v5129 = vmul.f32 %v5026, 1.442695
      %v5130 = vpow.pop %v5129
      %v5131 = vmul.f32 %v5027, 1.442695
      %v5132 = vpow.pop %v5131
      %v5133 = vmul.f32 %v5028, 1.442695
      %v5134 = vpow.pop %v5133
      %v5135 = vmul.f32 %v5029, 1.442695
      %v5136 = vpow.pop %v5135
      %v5137 = vmul.f32 %v5030, 1.442695
      %v5138 = vpow.pop %v5137
      %v5139 = vmul.f32 %v5031, 1.442695
      %v5140 = vpow.pop %v5139
      %v5141 = vmul.f32 %v5032, 1.442695
      %v5142 = vpow.pop %v5141
      %v5143 = vmul.f32 %v5033, 1.442695
      %v5144 = vpow.pop %v5143
      %v5145 = vmul.f32 %v5034, 1.442695
      %v5146 = vpow.pop %v5145
      %v5147 = vmul.f32 %v5035, 1.442695
      %v5148 = vpow.pop %v5147
      %v5149 = vmul.f32 %v5036, 1.442695
      %v5150 = vpow.pop %v5149
      %v5151 = vmul.f32 %v5037, 1.442695
      %v5152 = vpow.pop %v5151
      %v5153 = vmul.f32 %v5038, 1.442695
      %v5154 = vpow.pop %v5153
      %v5155 = vmul.f32 %v5039, 1.442695
      %v5156 = vpow.pop %v5155
      %v5157 = vmul.f32 %v5040, 1.442695
      %v5158 = vpow.pop %v5157
      %v5159 = vmul.f32 %v5041, 1.442695
      %v5160 = vpow.pop %v5159
      %v5161 = vmul.f32 %v5042, 1.442695
      %v5162 = vpow.pop %v5161
      %v5163 = vmul.f32 %v5043, 1.442695
      %v5164 = vpow.pop %v5163
      %v5165 = vmul.f32 %v5044, 1.442695
      %v5166 = vpow.pop %v5165
      %v5167 = vmul.f32 %v5045, 1.442695
      %v5168 = vpow.pop %v5167
      %v5169 = vmul.f32 %v5046, 1.442695
      %v5170 = vpow.pop %v5169
      %v5171 = vmul.f32 %v5047, 1.442695
      %v5172 = vpow.pop %v5171
      %v5173 = vmul.f32 %v5048, 1.442695
      %v5174 = vpow.pop %v5173
      %v5175 = vmul.f32 %v5049, 1.442695
      %v5176 = vpow.pop %v5175
      %v5177 = vmul.f32 %v5050, 1.442695
      %v5178 = vpow.pop %v5177
      %v5179 = vadd.f32 %v5052, %v5054
      %5180 = vadd.xlane.f32.xlu0 %v5179
      %v5181 = vpop.xlane.xlu0 %5180
      %v5182 = vadd.f32 %v5056, %v5058
      %5183 = vadd.xlane.f32.xlu0 %v5182
      %v5184 = vpop.xlane.xlu0 %5183
      %v5185 = vadd.f32 %v5060, %v5062
      %5186 = vadd.xlane.f32.xlu0 %v5185
      %v5187 = vpop.xlane.xlu0 %5186
      %v5188 = vadd.f32 %v5064, %v5066
      %5189 = vadd.xlane.f32.xlu0 %v5188
      %v5190 = vpop.xlane.xlu0 %5189
      %v5191 = vadd.f32 %v5068, %v5070
      %5192 = vadd.xlane.f32.xlu0 %v5191
      %v5193 = vpop.xlane.xlu0 %5192
      %v5194 = vadd.f32 %v5072, %v5074
      %5195 = vadd.xlane.f32.xlu0 %v5194
      %v5196 = vpop.xlane.xlu0 %5195
      %v5197 = vadd.f32 %v5076, %v5078
      %5198 = vadd.xlane.f32.xlu0 %v5197
      %v5199 = vpop.xlane.xlu0 %5198
      %v5200 = vadd.f32 %v5080, %v5082
      %5201 = vadd.xlane.f32.xlu0 %v5200
      %v5202 = vpop.xlane.xlu0 %5201
      %v5203 = vadd.f32 %v5084, %v5086
      %5204 = vadd.xlane.f32.xlu0 %v5203
      %v5205 = vpop.xlane.xlu0 %5204
      %v5206 = vadd.f32 %v5088, %v5090
      %5207 = vadd.xlane.f32.xlu0 %v5206
      %v5208 = vpop.xlane.xlu0 %5207
      %v5209 = vadd.f32 %v5092, %v5094
      %5210 = vadd.xlane.f32.xlu0 %v5209
      %v5211 = vpop.xlane.xlu0 %5210
      %v5212 = vadd.f32 %v5096, %v5098
      %5213 = vadd.xlane.f32.xlu0 %v5212
      %v5214 = vpop.xlane.xlu0 %5213
      %v5215 = vadd.f32 %v5100, %v5102
      %5216 = vadd.xlane.f32.xlu0 %v5215
      %v5217 = vpop.xlane.xlu0 %5216
      %v5218 = vadd.f32 %v5104, %v5106
      %5219 = vadd.xlane.f32.xlu0 %v5218
      %v5220 = vpop.xlane.xlu0 %5219
      %v5221 = vadd.f32 %v5108, %v5110
      %5222 = vadd.xlane.f32.xlu0 %v5221
      %v5223 = vpop.xlane.xlu0 %5222
      %v5224 = vadd.f32 %v5112, %v5114
      %5225 = vadd.xlane.f32.xlu0 %v5224
      %v5226 = vpop.xlane.xlu0 %5225
      %v5227 = vadd.f32 %v5116, %v5118
      %5228 = vadd.xlane.f32.xlu0 %v5227
      %v5229 = vpop.xlane.xlu0 %5228
      %v5230 = vadd.f32 %v5120, %v5122
      %5231 = vadd.xlane.f32.xlu0 %v5230
      %v5232 = vpop.xlane.xlu0 %5231
      %v5233 = vadd.f32 %v5124, %v5126
      %5234 = vadd.xlane.f32.xlu0 %v5233
      %v5235 = vpop.xlane.xlu0 %5234
      %v5236 = vadd.f32 %v5128, %v5130
      %5237 = vadd.xlane.f32.xlu0 %v5236
      %v5238 = vpop.xlane.xlu0 %5237
      %v5239 = vadd.f32 %v5132, %v5134
      %5240 = vadd.xlane.f32.xlu0 %v5239
      %v5241 = vpop.xlane.xlu0 %5240
      %v5242 = vadd.f32 %v5136, %v5138
      %5243 = vadd.xlane.f32.xlu0 %v5242
      %v5244 = vpop.xlane.xlu0 %5243
      %v5245 = vadd.f32 %v5140, %v5142
      %5246 = vadd.xlane.f32.xlu0 %v5245
      %v5247 = vpop.xlane.xlu0 %5246
      %v5248 = vadd.f32 %v5144, %v5146
      %5249 = vadd.xlane.f32.xlu0 %v5248
      %v5250 = vpop.xlane.xlu0 %5249
      %v5251 = vadd.f32 %v5148, %v5150
      %5252 = vadd.xlane.f32.xlu0 %v5251
      %v5253 = vpop.xlane.xlu0 %5252
      %v5254 = vadd.f32 %v5152, %v5154
      %5255 = vadd.xlane.f32.xlu0 %v5254
      %v5256 = vpop.xlane.xlu0 %5255
      %v5257 = vadd.f32 %v5156, %v5158
      %5258 = vadd.xlane.f32.xlu0 %v5257
      %v5259 = vpop.xlane.xlu0 %5258
      %v5260 = vadd.f32 %v5160, %v5162
      %5261 = vadd.xlane.f32.xlu0 %v5260
      %v5262 = vpop.xlane.xlu0 %5261
      %v5263 = vadd.f32 %v5164, %v5166
      %5264 = vadd.xlane.f32.xlu0 %v5263
      %v5265 = vpop.xlane.xlu0 %5264
      %v5266 = vadd.f32 %v5168, %v5170
      %5267 = vadd.xlane.f32.xlu0 %v5266
      %v5268 = vpop.xlane.xlu0 %5267
      %v5269 = vadd.f32 %v5172, %v5174
      %5270 = vadd.xlane.f32.xlu0 %v5269
      %v5271 = vpop.xlane.xlu0 %5270
      %v5272 = vadd.f32 %v5176, %v5178
      %5273 = vadd.xlane.f32.xlu0 %v5272
      %v5274 = vpop.xlane.xlu0 %5273
      %v5275 = vpack.c.bf16 %v5056, %v5052
      %v5276 = vpack.c.bf16 %v5058, %v5054
      %v5277 = vpack.c.bf16 %v5064, %v5060
      %v5278 = vpack.c.bf16 %v5066, %v5062
      %v5279 = vpack.c.bf16 %v5072, %v5068
      %v5280 = vpack.c.bf16 %v5074, %v5070
      %v5281 = vpack.c.bf16 %v5080, %v5076
      %v5282 = vpack.c.bf16 %v5082, %v5078
      %v5283 = vpack.c.bf16 %v5088, %v5084
      %v5284 = vpack.c.bf16 %v5090, %v5086
      %v5285 = vpack.c.bf16 %v5096, %v5092
      %v5286 = vpack.c.bf16 %v5098, %v5094
      %v5287 = vpack.c.bf16 %v5104, %v5100
      %v5288 = vpack.c.bf16 %v5106, %v5102
      %v5289 = vpack.c.bf16 %v5112, %v5108
      %v5290 = vpack.c.bf16 %v5114, %v5110
      %v5291 = vpack.c.bf16 %v5120, %v5116
      %v5292 = vpack.c.bf16 %v5122, %v5118
      %v5293 = vpack.c.bf16 %v5128, %v5124
      %v5294 = vpack.c.bf16 %v5130, %v5126
      %v5295 = vpack.c.bf16 %v5136, %v5132
      %v5296 = vpack.c.bf16 %v5138, %v5134
      %v5297 = vpack.c.bf16 %v5144, %v5140
      %v5298 = vpack.c.bf16 %v5146, %v5142
      %v5299 = vpack.c.bf16 %v5152, %v5148
      %v5300 = vpack.c.bf16 %v5154, %v5150
      %v5301 = vpack.c.bf16 %v5160, %v5156
      %v5302 = vpack.c.bf16 %v5162, %v5158
      %v5303 = vpack.c.bf16 %v5168, %v5164
      %v5304 = vpack.c.bf16 %v5170, %v5166
      %v5305 = vpack.c.bf16 %v5176, %v5172
      %v5306 = vpack.c.bf16 %v5178, %v5174
      %v5307 = vpack.c.bf16 %v4447, %v4444
      %v5308 = vpack.c.bf16 %v4455, %v4452
      %v5309 = vpack.c.bf16 %v4463, %v4460
      %v5310 = vpack.c.bf16 %v4471, %v4468
      %v5311 = vpack.c.bf16 %v4479, %v4476
      %v5312 = vpack.c.bf16 %v4487, %v4484
      %v5313 = vpack.c.bf16 %v4495, %v4492
      %v5314 = vpack.c.bf16 %v4503, %v4500
      %v5315 = vpack.c.bf16 %v4511, %v4508
      %v5316 = vpack.c.bf16 %v4519, %v4516
      %v5317 = vpack.c.bf16 %v4527, %v4524
      %v5318 = vpack.c.bf16 %v4535, %v4532
      %v5319 = vpack.c.bf16 %v4543, %v4540
      %v5320 = vpack.c.bf16 %v4551, %v4548
      %v5321 = vpack.c.bf16 %v4559, %v4556
      %v5322 = vpack.c.bf16 %v4567, %v4564
      %5323 = vmatprep.subr.bf16.mxu0 0
      %5324 = vmatpush1.bf16.msra.mxu0 %v5307
      %5325 = vmatprep.subr.bf16.mxu0 0
      %5326 = vmatpush1.bf16.msra.mxu0 %v5308
      %5327 = vmatprep.subr.bf16.mxu0 0
      %5328 = vmatpush1.bf16.msra.mxu0 %v5309
      %5329 = vmatprep.subr.bf16.mxu0 0
      %5330 = vmatpush1.bf16.msra.mxu0 %v5310
      %5331 = vmatprep.subr.bf16.mxu0 0
      %5332 = vmatpush1.bf16.msra.mxu0 %v5311
      %5333 = vmatprep.subr.bf16.mxu0 0
      %5334 = vmatpush1.bf16.msra.mxu0 %v5312
      %5335 = vmatprep.subr.bf16.mxu0 0
      %5336 = vmatpush1.bf16.msra.mxu0 %v5313
      %5337 = vmatprep.subr.bf16.mxu0 0
      %5338 = vmatpush1.bf16.msra.mxu0 %v5314
      %5339 = vmatprep.subr.bf16.mxu0 0
      %5340 = vmatpush1.bf16.msra.mxu0 %v5315
      %5341 = vmatprep.subr.bf16.mxu0 0
      %5342 = vmatpush1.bf16.msra.mxu0 %v5316
      %5343 = vmatprep.subr.bf16.mxu0 0
      %5344 = vmatpush1.bf16.msra.mxu0 %v5317
      %5345 = vmatprep.subr.bf16.mxu0 0
      %5346 = vmatpush1.bf16.msra.mxu0 %v5318
      %5347 = vmatprep.subr.bf16.mxu0 0
      %5348 = vmatpush1.bf16.msra.mxu0 %v5319
      %5349 = vmatprep.subr.bf16.mxu0 0
      %5350 = vmatpush1.bf16.msra.mxu0 %v5320
      %5351 = vmatprep.subr.bf16.mxu0 0
      %5352 = vmatpush1.bf16.msra.mxu0 %v5321
      %5353 = vmatprep.subr.bf16.mxu0 0
      %5354 = vmatpush1.bf16.msra.mxu0 %v5322
      %5355 = vmatprep.mubr.bf16.mxu0 %v5276
      %5356 = vmatmul.mubr.bf16.gmra.mrb[0].mxu0 %v5275
      %v5357 = vpop.f32.mrb[0].mxu0
      %v5358 = vadd.f32 0.0, %v5357
      %v5359 = vpop.f32.mrb[0].mxu0
      %v5360 = vpop.f32.mrb[0].mxu0
      %v5361 = vadd.f32 0.0, %v5360
      %v5362 = vpop.f32.mrb[0].mxu0
      %5363 = vmatprep.mubr.bf16.mxu0 %v5278
      %5364 = vmatmul.mubr.bf16.gmra.mrb[0].mxu0 %v5277
      %v5365 = vpop.f32.mrb[0].mxu0
      %v5366 = vadd.f32 0.0, %v5365
      %v5367 = vpop.f32.mrb[0].mxu0
      %v5368 = vpop.f32.mrb[0].mxu0
      %v5369 = vadd.f32 0.0, %v5368
      %v5370 = vpop.f32.mrb[0].mxu0
      %5371 = vmatprep.mubr.bf16.mxu0 %v5280
      %5372 = vmatmul.mubr.bf16.gmra.mrb[0].mxu0 %v5279
      %v5373 = vpop.f32.mrb[0].mxu0
      %v5374 = vadd.f32 0.0, %v5373
      %v5375 = vpop.f32.mrb[0].mxu0
      %v5376 = vpop.f32.mrb[0].mxu0
      %v5377 = vadd.f32 0.0, %v5376
      %v5378 = vpop.f32.mrb[0].mxu0
      %5379 = vmatprep.mubr.bf16.mxu0 %v5282
      %5380 = vmatmul.mubr.bf16.gmra.mrb[0].mxu0 %v5281
      %v5381 = vpop.f32.mrb[0].mxu0
      %v5382 = vadd.f32 0.0, %v5381
      %v5383 = vpop.f32.mrb[0].mxu0
      %v5384 = vpop.f32.mrb[0].mxu0
      %v5385 = vadd.f32 0.0, %v5384
      %v5386 = vpop.f32.mrb[0].mxu0
      %5387 = vmatprep.mubr.bf16.mxu0 %v5284
      %5388 = vmatmul.mubr.bf16.gmra.mrb[0].mxu0 %v5283
      %v5389 = vpop.f32.mrb[0].mxu0
      %v5390 = vadd.f32 0.0, %v5389
      %v5391 = vpop.f32.mrb[0].mxu0
      %v5392 = vpop.f32.mrb[0].mxu0
      %v5393 = vadd.f32 0.0, %v5392
      %v5394 = vpop.f32.mrb[0].mxu0
      %5395 = vmatprep.mubr.bf16.mxu0 %v5286
      %5396 = vmatmul.mubr.bf16.gmra.mrb[0].mxu0 %v5285
      %v5397 = vpop.f32.mrb[0].mxu0
      %v5398 = vadd.f32 0.0, %v5397
      %v5399 = vpop.f32.mrb[0].mxu0
      %v5400 = vpop.f32.mrb[0].mxu0
      %v5401 = vadd.f32 0.0, %v5400
      %v5402 = vpop.f32.mrb[0].mxu0
      %5403 = vmatprep.mubr.bf16.mxu0 %v5288
      %5404 = vmatmul.mubr.bf16.gmra.mrb[0].mxu0 %v5287
      %v5405 = vpop.f32.mrb[0].mxu0
      %v5406 = vadd.f32 0.0, %v5405
      %v5407 = vpop.f32.mrb[0].mxu0
      %v5408 = vpop.f32.mrb[0].mxu0
      %v5409 = vadd.f32 0.0, %v5408
      %v5410 = vpop.f32.mrb[0].mxu0
      %5411 = vmatprep.mubr.bf16.mxu0 %v5290
      %5412 = vmatmul.mubr.bf16.gmra.mrb[0].mxu0 %v5289
      %v5413 = vpop.f32.mrb[0].mxu0
      %v5414 = vadd.f32 0.0, %v5413
      %v5415 = vpop.f32.mrb[0].mxu0
      %v5416 = vpop.f32.mrb[0].mxu0
      %v5417 = vadd.f32 0.0, %v5416
      %v5418 = vpop.f32.mrb[0].mxu0
      %5419 = vmatprep.mubr.bf16.mxu0 %v5292
      %5420 = vmatmul.mubr.bf16.gmra.mrb[0].mxu0 %v5291
      %v5421 = vpop.f32.mrb[0].mxu0
      %v5422 = vadd.f32 0.0, %v5421
      %v5423 = vpop.f32.mrb[0].mxu0
      %v5424 = vpop.f32.mrb[0].mxu0
      %v5425 = vadd.f32 0.0, %v5424
      %v5426 = vpop.f32.mrb[0].mxu0
      %5427 = vmatprep.mubr.bf16.mxu0 %v5294
      %5428 = vmatmul.mubr.bf16.gmra.mrb[0].mxu0 %v5293
      %v5429 = vpop.f32.mrb[0].mxu0
      %v5430 = vadd.f32 0.0, %v5429
      %v5431 = vpop.f32.mrb[0].mxu0
      %v5432 = vpop.f32.mrb[0].mxu0
      %v5433 = vadd.f32 0.0, %v5432
      %v5434 = vpop.f32.mrb[0].mxu0
      %5435 = vmatprep.mubr.bf16.mxu0 %v5296
      %5436 = vmatmul.mubr.bf16.gmra.mrb[0].mxu0 %v5295
      %v5437 = vpop.f32.mrb[0].mxu0
      %v5438 = vadd.f32 0.0, %v5437
      %v5439 = vpop.f32.mrb[0].mxu0
      %v5440 = vpop.f32.mrb[0].mxu0
      %v5441 = vadd.f32 0.0, %v5440
      %v5442 = vpop.f32.mrb[0].mxu0
      %5443 = vmatprep.mubr.bf16.mxu0 %v5298
      %5444 = vmatmul.mubr.bf16.gmra.mrb[0].mxu0 %v5297
      %v5445 = vpop.f32.mrb[0].mxu0
      %v5446 = vadd.f32 0.0, %v5445
      %v5447 = vpop.f32.mrb[0].mxu0
      %v5448 = vpop.f32.mrb[0].mxu0
      %v5449 = vadd.f32 0.0, %v5448
      %v5450 = vpop.f32.mrb[0].mxu0
      %5451 = vmatprep.mubr.bf16.mxu0 %v5300
      %5452 = vmatmul.mubr.bf16.gmra.mrb[0].mxu0 %v5299
      %v5453 = vpop.f32.mrb[0].mxu0
      %v5454 = vadd.f32 0.0, %v5453
      %v5455 = vpop.f32.mrb[0].mxu0
      %v5456 = vpop.f32.mrb[0].mxu0
      %v5457 = vadd.f32 0.0, %v5456
      %v5458 = vpop.f32.mrb[0].mxu0
      %5459 = vmatprep.mubr.bf16.mxu0 %v5302
      %5460 = vmatmul.mubr.bf16.gmra.mrb[0].mxu0 %v5301
      %v5461 = vpop.f32.mrb[0].mxu0
      %v5462 = vadd.f32 0.0, %v5461
      %v5463 = vpop.f32.mrb[0].mxu0
      %v5464 = vpop.f32.mrb[0].mxu0
      %v5465 = vadd.f32 0.0, %v5464
      %v5466 = vpop.f32.mrb[0].mxu0
      %5467 = vmatprep.mubr.bf16.mxu0 %v5304
      %5468 = vmatmul.mubr.bf16.gmra.mrb[0].mxu0 %v5303
      %v5469 = vpop.f32.mrb[0].mxu0
      %v5470 = vadd.f32 0.0, %v5469
      %v5471 = vpop.f32.mrb[0].mxu0
      %v5472 = vpop.f32.mrb[0].mxu0
      %v5473 = vadd.f32 0.0, %v5472
      %v5474 = vpop.f32.mrb[0].mxu0
      %5475 = vmatprep.mubr.bf16.mxu0 %v5306
      %5476 = vmatmul.mubr.bf16.gmra.mrb[0].mxu0 %v5305
      %v5477 = vpop.f32.mrb[0].mxu0
      %v5478 = vadd.f32 0.0, %v5477
      %v5479 = vpop.f32.mrb[0].mxu0
      %v5480 = vpop.f32.mrb[0].mxu0
      %v5481 = vadd.f32 0.0, %v5480
      %v5482 = vpop.f32.mrb[0].mxu0
      %5483 = vdwg.mxu0
      %v5484 = vrcp.pop %v5181
      %v5485 = vrcp.pop %v5184
      %v5486 = vrcp.pop %v5187
      %v5487 = vrcp.pop %v5190
      %v5488 = vrcp.pop %v5193
      %v5489 = vrcp.pop %v5196
      %v5490 = vrcp.pop %v5199
      %v5491 = vrcp.pop %v5202
      %v5492 = vrcp.pop %v5205
      %v5493 = vrcp.pop %v5208
      %v5494 = vrcp.pop %v5211
      %v5495 = vrcp.pop %v5214
      %v5496 = vrcp.pop %v5217
      %v5497 = vrcp.pop %v5220
      %v5498 = vrcp.pop %v5223
      %v5499 = vrcp.pop %v5226
      %v5500 = vrcp.pop %v5229
      %v5501 = vrcp.pop %v5232
      %v5502 = vrcp.pop %v5235
      %v5503 = vrcp.pop %v5238
      %v5504 = vrcp.pop %v5241
      %v5505 = vrcp.pop %v5244
      %v5506 = vrcp.pop %v5247
      %v5507 = vrcp.pop %v5250
      %v5508 = vrcp.pop %v5253
      %v5509 = vrcp.pop %v5256
      %v5510 = vrcp.pop %v5259
      %v5511 = vrcp.pop %v5262
      %v5512 = vrcp.pop %v5265
      %v5513 = vrcp.pop %v5268
      %v5514 = vrcp.pop %v5271
      %v5515 = vrcp.pop %v5274
      %v5516 = vmul.f32 %v5358, %v5484
      %v5517 = vmul.f32 %v5361, %v5485
      %v5518 = vmul.f32 %v5366, %v5486
      %v5519 = vmul.f32 %v5369, %v5487
      %v5520 = vmul.f32 %v5374, %v5488
      %v5521 = vmul.f32 %v5377, %v5489
      %v5522 = vmul.f32 %v5382, %v5490
      %v5523 = vmul.f32 %v5385, %v5491
      %v5524 = vmul.f32 %v5390, %v5492
      %v5525 = vmul.f32 %v5393, %v5493
      %v5526 = vmul.f32 %v5398, %v5494
      %v5527 = vmul.f32 %v5401, %v5495
      %v5528 = vmul.f32 %v5406, %v5496
      %v5529 = vmul.f32 %v5409, %v5497
      %v5530 = vmul.f32 %v5414, %v5498
      %v5531 = vmul.f32 %v5417, %v5499
      %v5532 = vmul.f32 %v5422, %v5500
      %v5533 = vmul.f32 %v5425, %v5501
      %v5534 = vmul.f32 %v5430, %v5502
      %v5535 = vmul.f32 %v5433, %v5503
      %v5536 = vmul.f32 %v5438, %v5504
      %v5537 = vmul.f32 %v5441, %v5505
      %v5538 = vmul.f32 %v5446, %v5506
      %v5539 = vmul.f32 %v5449, %v5507
      %v5540 = vmul.f32 %v5454, %v5508
      %v5541 = vmul.f32 %v5457, %v5509
      %v5542 = vmul.f32 %v5462, %v5510
      %v5543 = vmul.f32 %v5465, %v5511
      %v5544 = vmul.f32 %v5470, %v5512
      %v5545 = vmul.f32 %v5473, %v5513
      %v5546 = vmul.f32 %v5478, %v5514
      %v5547 = vmul.f32 %v5481, %v5515
      %v5548 = vpack.c.bf16 %v5517, %v5516
      %v5549 = vpack.c.bf16 %v5519, %v5518
      %v5550 = vpack.c.bf16 %v5521, %v5520
      %v5551 = vpack.c.bf16 %v5523, %v5522
      %v5552 = vpack.c.bf16 %v5525, %v5524
      %v5553 = vpack.c.bf16 %v5527, %v5526
      %v5554 = vpack.c.bf16 %v5529, %v5528
      %v5555 = vpack.c.bf16 %v5531, %v5530
      %v5556 = vpack.c.bf16 %v5533, %v5532
      %v5557 = vpack.c.bf16 %v5535, %v5534
      %v5558 = vpack.c.bf16 %v5537, %v5536
      %v5559 = vpack.c.bf16 %v5539, %v5538
      %v5560 = vpack.c.bf16 %v5541, %v5540
      %v5561 = vpack.c.bf16 %v5543, %v5542
      %v5562 = vpack.c.bf16 %v5545, %v5544
      %v5563 = vpack.c.bf16 %v5547, %v5546
      %s5564 = scalar_lea.vmem %s5, 32
      %v5565 = vld [vmem:[%s5564] sm:$0xf]
      %v5566 = vld [vmem:[%s5564 + $0x4] sm:$0xf]
      %v5567 = vld [vmem:[%s5564 + $0x8] sm:$0xf]
      %v5568 = vld [vmem:[%s5564 + $0xc] sm:$0xf]
      %v5573 = vunpack.c.l.b16 %v5565
      %v5574 = vunpack.c.l.b16 %v5566
      %v5575 = vunpack.c.l.b16 %v5567
      %v5576 = vunpack.c.l.b16 %v5568
      %v5577 = vpack.c.b16 %v5574, %v5573
      %v5578 = vpack.c.b16 %v5576, %v5575
      %v5582 = vsel %vm451, %v5548, 0
      %v5585 = vsel %vm451, %v5549, 0
      %v5588 = vsel %vm451, %v5550, 0
      %v5591 = vsel %vm451, %v5551, 0
      %v5594 = vsel %vm451, %v5552, 0
      %v5597 = vsel %vm451, %v5553, 0
      %v5600 = vsel %vm451, %v5554, 0
      %v5603 = vsel %vm451, %v5555, 0
      %v5606 = vsel %vm451, %v5556, 0
      %v5609 = vsel %vm451, %v5557, 0
      %v5612 = vsel %vm451, %v5558, 0
      %v5615 = vsel %vm451, %v5559, 0
      %v5618 = vsel %vm451, %v5560, 0
      %v5621 = vsel %vm451, %v5561, 0
      %v5624 = vsel %vm451, %v5562, 0
      %v5627 = vsel %vm451, %v5563, 0
      %5629 = vmatprep.subr.bf16.mxu0 0
      %5630 = vmatpush1.bf16.msra.mxu0 %v5577
      %5631 = vmatprep.subr.bf16.mxu0 0
      %5632 = vmatpush1.bf16.msra.mxu0 %v5578
      %5633 = vmatprep.subr.bf16.mxu0 0
      %5634 = vmatpush1.bf16.msra.mxu0 0
      %5635 = vmatprep.subr.bf16.mxu0 0
      %5636 = vmatpush1.bf16.msra.mxu0 0
      %5637 = vmatprep.subr.bf16.mxu0 0
      %5638 = vmatpush1.bf16.msra.mxu0 0
      %5639 = vmatprep.subr.bf16.mxu0 0
      %5640 = vmatpush1.bf16.msra.mxu0 0
      %5641 = vmatprep.subr.bf16.mxu0 0
      %5642 = vmatpush1.bf16.msra.mxu0 0
      %5643 = vmatprep.subr.bf16.mxu0 0
      %5644 = vmatpush1.bf16.msra.mxu0 0
      %5645 = vmatprep.subr.bf16.mxu0 0
      %5646 = vmatpush1.bf16.msra.mxu0 0
      %5647 = vmatprep.subr.bf16.mxu0 0
      %5648 = vmatpush1.bf16.msra.mxu0 0
      %5649 = vmatprep.subr.bf16.mxu0 0
      %5650 = vmatpush1.bf16.msra.mxu0 0
      %5651 = vmatprep.subr.bf16.mxu0 0
      %5652 = vmatpush1.bf16.msra.mxu0 0
      %5653 = vmatprep.subr.bf16.mxu0 0
      %5654 = vmatpush1.bf16.msra.mxu0 0
      %5655 = vmatprep.subr.bf16.mxu0 0
      %5656 = vmatpush1.bf16.msra.mxu0 0
      %5657 = vmatprep.subr.bf16.mxu0 0
      %5658 = vmatpush1.bf16.msra.mxu0 0
      %5659 = vmatprep.subr.bf16.mxu0 0
      %5660 = vmatpush1.bf16.msra.mxu0 0
      %5661 = vmatprep.mubr.bf16.mxu0 0
      %5662 = vmatmul.mubr.bf16.gmra.mrb[0].mxu0 %v5582
      %v5663 = vpop.f32.mrb[0].mxu0
      %v5664 = vadd.f32 0.0, %v5663
      %v5665 = vpop.f32.mrb[0].mxu0
      %v5666 = vpop.f32.mrb[0].mxu0
      %v5667 = vadd.f32 0.0, %v5666
      %v5668 = vpop.f32.mrb[0].mxu0
      %5669 = vmatprep.mubr.bf16.mxu0 0
      %5670 = vmatmul.mubr.bf16.gmra.mrb[0].mxu0 %v5585
      %v5671 = vpop.f32.mrb[0].mxu0
      %v5672 = vadd.f32 0.0, %v5671
      %v5673 = vpop.f32.mrb[0].mxu0
      %v5674 = vpop.f32.mrb[0].mxu0
      %v5675 = vadd.f32 0.0, %v5674
      %v5676 = vpop.f32.mrb[0].mxu0
      %5677 = vmatprep.mubr.bf16.mxu0 0
      %5678 = vmatmul.mubr.bf16.gmra.mrb[0].mxu0 %v5588
      %v5679 = vpop.f32.mrb[0].mxu0
      %v5680 = vadd.f32 0.0, %v5679
      %v5681 = vpop.f32.mrb[0].mxu0
      %v5682 = vpop.f32.mrb[0].mxu0
      %v5683 = vadd.f32 0.0, %v5682
      %v5684 = vpop.f32.mrb[0].mxu0
      %5685 = vmatprep.mubr.bf16.mxu0 0
      %5686 = vmatmul.mubr.bf16.gmra.mrb[0].mxu0 %v5591
      %v5687 = vpop.f32.mrb[0].mxu0
      %v5688 = vadd.f32 0.0, %v5687
      %v5689 = vpop.f32.mrb[0].mxu0
      %v5690 = vpop.f32.mrb[0].mxu0
      %v5691 = vadd.f32 0.0, %v5690
      %v5692 = vpop.f32.mrb[0].mxu0
      %5693 = vmatprep.mubr.bf16.mxu0 0
      %5694 = vmatmul.mubr.bf16.gmra.mrb[0].mxu0 %v5594
      %v5695 = vpop.f32.mrb[0].mxu0
      %v5696 = vadd.f32 0.0, %v5695
      %v5697 = vpop.f32.mrb[0].mxu0
      %v5698 = vpop.f32.mrb[0].mxu0
      %v5699 = vadd.f32 0.0, %v5698
      %v5700 = vpop.f32.mrb[0].mxu0
      %5701 = vmatprep.mubr.bf16.mxu0 0
      %5702 = vmatmul.mubr.bf16.gmra.mrb[0].mxu0 %v5597
      %v5703 = vpop.f32.mrb[0].mxu0
      %v5704 = vadd.f32 0.0, %v5703
      %v5705 = vpop.f32.mrb[0].mxu0
      %v5706 = vpop.f32.mrb[0].mxu0
      %v5707 = vadd.f32 0.0, %v5706
      %v5708 = vpop.f32.mrb[0].mxu0
      %5709 = vmatprep.mubr.bf16.mxu0 0
      %5710 = vmatmul.mubr.bf16.gmra.mrb[0].mxu0 %v5600
      %v5711 = vpop.f32.mrb[0].mxu0
      %v5712 = vadd.f32 0.0, %v5711
      %v5713 = vpop.f32.mrb[0].mxu0
      %v5714 = vpop.f32.mrb[0].mxu0
      %v5715 = vadd.f32 0.0, %v5714
      %v5716 = vpop.f32.mrb[0].mxu0
      %5717 = vmatprep.mubr.bf16.mxu0 0
      %5718 = vmatmul.mubr.bf16.gmra.mrb[0].mxu0 %v5603
      %v5719 = vpop.f32.mrb[0].mxu0
      %v5720 = vadd.f32 0.0, %v5719
      %v5721 = vpop.f32.mrb[0].mxu0
      %v5722 = vpop.f32.mrb[0].mxu0
      %v5723 = vadd.f32 0.0, %v5722
      %v5724 = vpop.f32.mrb[0].mxu0
      %5725 = vmatprep.mubr.bf16.mxu0 0
      %5726 = vmatmul.mubr.bf16.gmra.mrb[0].mxu0 %v5606
      %v5727 = vpop.f32.mrb[0].mxu0
      %v5728 = vadd.f32 0.0, %v5727
      %v5729 = vpop.f32.mrb[0].mxu0
      %v5730 = vpop.f32.mrb[0].mxu0
      %v5731 = vadd.f32 0.0, %v5730
      %v5732 = vpop.f32.mrb[0].mxu0
      %5733 = vmatprep.mubr.bf16.mxu0 0
      %5734 = vmatmul.mubr.bf16.gmra.mrb[0].mxu0 %v5609
      %v5735 = vpop.f32.mrb[0].mxu0
      %v5736 = vadd.f32 0.0, %v5735
      %v5737 = vpop.f32.mrb[0].mxu0
      %v5738 = vpop.f32.mrb[0].mxu0
      %v5739 = vadd.f32 0.0, %v5738
      %v5740 = vpop.f32.mrb[0].mxu0
      %5741 = vmatprep.mubr.bf16.mxu0 0
      %5742 = vmatmul.mubr.bf16.gmra.mrb[0].mxu0 %v5612
      %v5743 = vpop.f32.mrb[0].mxu0
      %v5744 = vadd.f32 0.0, %v5743
      %v5745 = vpop.f32.mrb[0].mxu0
      %v5746 = vpop.f32.mrb[0].mxu0
      %v5747 = vadd.f32 0.0, %v5746
      %v5748 = vpop.f32.mrb[0].mxu0
      %5749 = vmatprep.mubr.bf16.mxu0 0
      %5750 = vmatmul.mubr.bf16.gmra.mrb[0].mxu0 %v5615
      %v5751 = vpop.f32.mrb[0].mxu0
      %v5752 = vadd.f32 0.0, %v5751
      %v5753 = vpop.f32.mrb[0].mxu0
      %v5754 = vpop.f32.mrb[0].mxu0
      %v5755 = vadd.f32 0.0, %v5754
      %v5756 = vpop.f32.mrb[0].mxu0
      %5757 = vmatprep.mubr.bf16.mxu0 0
      %5758 = vmatmul.mubr.bf16.gmra.mrb[0].mxu0 %v5618
      %v5759 = vpop.f32.mrb[0].mxu0
      %v5760 = vadd.f32 0.0, %v5759
      %v5761 = vpop.f32.mrb[0].mxu0
      %v5762 = vpop.f32.mrb[0].mxu0
      %v5763 = vadd.f32 0.0, %v5762
      %v5764 = vpop.f32.mrb[0].mxu0
      %5765 = vmatprep.mubr.bf16.mxu0 0
      %5766 = vmatmul.mubr.bf16.gmra.mrb[0].mxu0 %v5621
      %v5767 = vpop.f32.mrb[0].mxu0
      %v5768 = vadd.f32 0.0, %v5767
      %v5769 = vpop.f32.mrb[0].mxu0
      %v5770 = vpop.f32.mrb[0].mxu0
      %v5771 = vadd.f32 0.0, %v5770
      %v5772 = vpop.f32.mrb[0].mxu0
      %5773 = vmatprep.mubr.bf16.mxu0 0
      %5774 = vmatmul.mubr.bf16.gmra.mrb[0].mxu0 %v5624
      %v5775 = vpop.f32.mrb[0].mxu0
      %v5776 = vadd.f32 0.0, %v5775
      %v5777 = vpop.f32.mrb[0].mxu0
      %v5778 = vpop.f32.mrb[0].mxu0
      %v5779 = vadd.f32 0.0, %v5778
      %v5780 = vpop.f32.mrb[0].mxu0
      %5781 = vmatprep.mubr.bf16.mxu0 0
      %5782 = vmatmul.mubr.bf16.gmra.mrb[0].mxu0 %v5627
      %v5783 = vpop.f32.mrb[0].mxu0
      %v5784 = vadd.f32 0.0, %v5783
      %v5785 = vpop.f32.mrb[0].mxu0
      %v5786 = vpop.f32.mrb[0].mxu0
      %v5787 = vadd.f32 0.0, %v5786
      %v5788 = vpop.f32.mrb[0].mxu0
      %5789 = vdwg.mxu0
      %v5790 = vadd.f32 %v3910, %v5664
      %v5791 = vadd.f32 %v3913, %v5667
      %v5792 = vadd.f32 %v3918, %v5672
      %v5793 = vadd.f32 %v3921, %v5675
      %v5794 = vadd.f32 %v3926, %v5680
      %v5795 = vadd.f32 %v3929, %v5683
      %v5796 = vadd.f32 %v3934, %v5688
      %v5797 = vadd.f32 %v3937, %v5691
      %v5798 = vadd.f32 %v3942, %v5696
      %v5799 = vadd.f32 %v3945, %v5699
      %v5800 = vadd.f32 %v3950, %v5704
      %v5801 = vadd.f32 %v3953, %v5707
      %v5802 = vadd.f32 %v3958, %v5712
      %v5803 = vadd.f32 %v3961, %v5715
      %v5804 = vadd.f32 %v3966, %v5720
      %v5805 = vadd.f32 %v3969, %v5723
      %v5806 = vadd.f32 %v3974, %v5728
      %v5807 = vadd.f32 %v3977, %v5731
      %v5808 = vadd.f32 %v3982, %v5736
      %v5809 = vadd.f32 %v3985, %v5739
      %v5810 = vadd.f32 %v3990, %v5744
      %v5811 = vadd.f32 %v3993, %v5747
      %v5812 = vadd.f32 %v3998, %v5752
      %v5813 = vadd.f32 %v4001, %v5755
      %v5814 = vadd.f32 %v4006, %v5760
      %v5815 = vadd.f32 %v4009, %v5763
      %v5816 = vadd.f32 %v4014, %v5768
      %v5817 = vadd.f32 %v4017, %v5771
      %v5818 = vadd.f32 %v4022, %v5776
      %v5819 = vadd.f32 %v4025, %v5779
      %v5820 = vadd.f32 %v4030, %v5784
      %v5821 = vadd.f32 %v4033, %v5787
      %s5822 = scalar_lea.vmem %s2, 48
      %v5823 = vld [vmem:[%s5822] sm:$0xf]
      %v5824 = vld [vmem:[%s5822 + $0x4] sm:$0xf]
      %v5825 = vld [vmem:[%s5822 + $0x8] sm:$0xf]
      %v5826 = vld [vmem:[%s5822 + $0xc] sm:$0xf]
      %v5831 = vunpack.c.l.b16 %v5823
      %v5832 = vunpack.c.l.b16 %v5824
      %v5833 = vunpack.c.l.b16 %v5825
      %v5834 = vunpack.c.l.b16 %v5826
      %v5835 = vpack.c.b16 %v5832, %v5831
      %v5836 = vpack.c.b16 %v5834, %v5833
      %5839 = vmatprep.subr.bf16.mxu0 0
      %5840 = vmatpush1.bf16.msra.mxu0 %v5835
      %5841 = vmatprep.subr.bf16.mxu0 0
      %5842 = vmatpush1.bf16.msra.mxu0 %v5836
      %5843 = vmatprep.subr.bf16.mxu0 0
      %5844 = vmatpush1.bf16.msra.mxu0 0
      %5845 = vmatprep.subr.bf16.mxu0 0
      %5846 = vmatpush1.bf16.msra.mxu0 0
      %5847 = vmatprep.subr.bf16.mxu0 0
      %5848 = vmatpush1.bf16.msra.mxu0 0
      %5849 = vmatprep.subr.bf16.mxu0 0
      %5850 = vmatpush1.bf16.msra.mxu0 0
      %5851 = vmatprep.subr.bf16.mxu0 0
      %5852 = vmatpush1.bf16.msra.mxu0 0
      %5853 = vmatprep.subr.bf16.mxu0 0
      %5854 = vmatpush1.bf16.msra.mxu0 0
      %5855 = vmatprep.subr.bf16.mxu0 0
      %5856 = vmatpush1.bf16.msra.mxu0 0
      %5857 = vmatprep.subr.bf16.mxu0 0
      %5858 = vmatpush1.bf16.msra.mxu0 0
      %5859 = vmatprep.subr.bf16.mxu0 0
      %5860 = vmatpush1.bf16.msra.mxu0 0
      %5861 = vmatprep.subr.bf16.mxu0 0
      %5862 = vmatpush1.bf16.msra.mxu0 0
      %5863 = vmatprep.subr.bf16.mxu0 0
      %5864 = vmatpush1.bf16.msra.mxu0 0
      %5865 = vmatprep.subr.bf16.mxu0 0
      %5866 = vmatpush1.bf16.msra.mxu0 0
      %5867 = vmatprep.subr.bf16.mxu0 0
      %5868 = vmatpush1.bf16.msra.mxu0 0
      %5869 = vmatprep.subr.bf16.mxu0 0
      %5870 = vmatpush1.bf16.msra.mxu0 0
      %5871 = vmatprep.mubr.bf16.mxu0 0
      %5872 = vmatmul.mubr.bf16.gmra.mrb[0].mxu0 %v453
      %v5873 = vpop.f32.mrb[0].mxu0
      %v5874 = vadd.f32 0.0, %v5873
      %v5875 = vpop.f32.mrb[0].mxu0
      %v5876 = vpop.f32.mrb[0].mxu0
      %v5877 = vadd.f32 0.0, %v5876
      %v5878 = vpop.f32.mrb[0].mxu0
      %5879 = vmatprep.mubr.bf16.mxu0 0
      %5880 = vmatmul.mubr.bf16.gmra.mrb[0].mxu0 %v456
      %v5881 = vpop.f32.mrb[0].mxu0
      %v5882 = vadd.f32 0.0, %v5881
      %v5883 = vpop.f32.mrb[0].mxu0
      %v5884 = vpop.f32.mrb[0].mxu0
      %v5885 = vadd.f32 0.0, %v5884
      %v5886 = vpop.f32.mrb[0].mxu0
      %5887 = vmatprep.mubr.bf16.mxu0 0
      %5888 = vmatmul.mubr.bf16.gmra.mrb[0].mxu0 %v459
      %v5889 = vpop.f32.mrb[0].mxu0
      %v5890 = vadd.f32 0.0, %v5889
      %v5891 = vpop.f32.mrb[0].mxu0
      %v5892 = vpop.f32.mrb[0].mxu0
      %v5893 = vadd.f32 0.0, %v5892
      %v5894 = vpop.f32.mrb[0].mxu0
      %5895 = vmatprep.mubr.bf16.mxu0 0
      %5896 = vmatmul.mubr.bf16.gmra.mrb[0].mxu0 %v462
      %v5897 = vpop.f32.mrb[0].mxu0
      %v5898 = vadd.f32 0.0, %v5897
      %v5899 = vpop.f32.mrb[0].mxu0
      %v5900 = vpop.f32.mrb[0].mxu0
      %v5901 = vadd.f32 0.0, %v5900
      %v5902 = vpop.f32.mrb[0].mxu0
      %5903 = vmatprep.mubr.bf16.mxu0 0
      %5904 = vmatmul.mubr.bf16.gmra.mrb[0].mxu0 %v465
      %v5905 = vpop.f32.mrb[0].mxu0
      %v5906 = vadd.f32 0.0, %v5905
      %v5907 = vpop.f32.mrb[0].mxu0
      %v5908 = vpop.f32.mrb[0].mxu0
      %v5909 = vadd.f32 0.0, %v5908
      %v5910 = vpop.f32.mrb[0].mxu0
      %5911 = vmatprep.mubr.bf16.mxu0 0
      %5912 = vmatmul.mubr.bf16.gmra.mrb[0].mxu0 %v468
      %v5913 = vpop.f32.mrb[0].mxu0
      %v5914 = vadd.f32 0.0, %v5913
      %v5915 = vpop.f32.mrb[0].mxu0
      %v5916 = vpop.f32.mrb[0].mxu0
      %v5917 = vadd.f32 0.0, %v5916
      %v5918 = vpop.f32.mrb[0].mxu0
      %5919 = vmatprep.mubr.bf16.mxu0 0
      %5920 = vmatmul.mubr.bf16.gmra.mrb[0].mxu0 %v471
      %v5921 = vpop.f32.mrb[0].mxu0
      %v5922 = vadd.f32 0.0, %v5921
      %v5923 = vpop.f32.mrb[0].mxu0
      %v5924 = vpop.f32.mrb[0].mxu0
      %v5925 = vadd.f32 0.0, %v5924
      %v5926 = vpop.f32.mrb[0].mxu0
      %5927 = vmatprep.mubr.bf16.mxu0 0
      %5928 = vmatmul.mubr.bf16.gmra.mrb[0].mxu0 %v474
      %v5929 = vpop.f32.mrb[0].mxu0
      %v5930 = vadd.f32 0.0, %v5929
      %v5931 = vpop.f32.mrb[0].mxu0
      %v5932 = vpop.f32.mrb[0].mxu0
      %v5933 = vadd.f32 0.0, %v5932
      %v5934 = vpop.f32.mrb[0].mxu0
      %5935 = vmatprep.mubr.bf16.mxu0 0
      %5936 = vmatmul.mubr.bf16.gmra.mrb[0].mxu0 %v477
      %v5937 = vpop.f32.mrb[0].mxu0
      %v5938 = vadd.f32 0.0, %v5937
      %v5939 = vpop.f32.mrb[0].mxu0
      %v5940 = vpop.f32.mrb[0].mxu0
      %v5941 = vadd.f32 0.0, %v5940
      %v5942 = vpop.f32.mrb[0].mxu0
      %5943 = vmatprep.mubr.bf16.mxu0 0
      %5944 = vmatmul.mubr.bf16.gmra.mrb[0].mxu0 %v480
      %v5945 = vpop.f32.mrb[0].mxu0
      %v5946 = vadd.f32 0.0, %v5945
      %v5947 = vpop.f32.mrb[0].mxu0
      %v5948 = vpop.f32.mrb[0].mxu0
      %v5949 = vadd.f32 0.0, %v5948
      %v5950 = vpop.f32.mrb[0].mxu0
      %5951 = vmatprep.mubr.bf16.mxu0 0
      %5952 = vmatmul.mubr.bf16.gmra.mrb[0].mxu0 %v483
      %v5953 = vpop.f32.mrb[0].mxu0
      %v5954 = vadd.f32 0.0, %v5953
      %v5955 = vpop.f32.mrb[0].mxu0
      %v5956 = vpop.f32.mrb[0].mxu0
      %v5957 = vadd.f32 0.0, %v5956
      %v5958 = vpop.f32.mrb[0].mxu0
      %5959 = vmatprep.mubr.bf16.mxu0 0
      %5960 = vmatmul.mubr.bf16.gmra.mrb[0].mxu0 %v486
      %v5961 = vpop.f32.mrb[0].mxu0
      %v5962 = vadd.f32 0.0, %v5961
      %v5963 = vpop.f32.mrb[0].mxu0
      %v5964 = vpop.f32.mrb[0].mxu0
      %v5965 = vadd.f32 0.0, %v5964
      %v5966 = vpop.f32.mrb[0].mxu0
      %5967 = vmatprep.mubr.bf16.mxu0 0
      %5968 = vmatmul.mubr.bf16.gmra.mrb[0].mxu0 %v489
      %v5969 = vpop.f32.mrb[0].mxu0
      %v5970 = vadd.f32 0.0, %v5969
      %v5971 = vpop.f32.mrb[0].mxu0
      %v5972 = vpop.f32.mrb[0].mxu0
      %v5973 = vadd.f32 0.0, %v5972
      %v5974 = vpop.f32.mrb[0].mxu0
      %5975 = vmatprep.mubr.bf16.mxu0 0
      %5976 = vmatmul.mubr.bf16.gmra.mrb[0].mxu0 %v492
      %v5977 = vpop.f32.mrb[0].mxu0
      %v5978 = vadd.f32 0.0, %v5977
      %v5979 = vpop.f32.mrb[0].mxu0
      %v5980 = vpop.f32.mrb[0].mxu0
      %v5981 = vadd.f32 0.0, %v5980
      %v5982 = vpop.f32.mrb[0].mxu0
      %5983 = vmatprep.mubr.bf16.mxu0 0
      %5984 = vmatmul.mubr.bf16.gmra.mrb[0].mxu0 %v495
      %v5985 = vpop.f32.mrb[0].mxu0
      %v5986 = vadd.f32 0.0, %v5985
      %v5987 = vpop.f32.mrb[0].mxu0
      %v5988 = vpop.f32.mrb[0].mxu0
      %v5989 = vadd.f32 0.0, %v5988
      %v5990 = vpop.f32.mrb[0].mxu0
      %5991 = vmatprep.mubr.bf16.mxu0 0
      %5992 = vmatmul.mubr.bf16.gmra.mrb[0].mxu0 %v498
      %v5993 = vpop.f32.mrb[0].mxu0
      %v5994 = vadd.f32 0.0, %v5993
      %v5995 = vpop.f32.mrb[0].mxu0
      %v5996 = vpop.f32.mrb[0].mxu0
      %v5997 = vadd.f32 0.0, %v5996
      %v5998 = vpop.f32.mrb[0].mxu0
      %5999 = vdwg.mxu0
      %s6000 = scalar_lea.vmem %s3, 48
      %v6001 = vld [vmem:[%s6000] sm:$0xf]
      %v6002 = vld [vmem:[%s6000 + $0x4] sm:$0xf]
      %v6003 = vld [vmem:[%s6000 + $0x8] sm:$0xf]
      %v6004 = vld [vmem:[%s6000 + $0xc] sm:$0xf]
      %v6009 = vunpack.c.l.b16 %v6001
      %v6010 = vunpack.c.l.b16 %v6002
      %v6011 = vunpack.c.l.b16 %v6003
      %v6012 = vunpack.c.l.b16 %v6004
      %v6013 = vpack.c.b16 %v6010, %v6009
      %v6014 = vpack.c.b16 %v6012, %v6011
      %6017 = vmatprep.subr.bf16.mxu0 0
      %6018 = vmatpush1.bf16.msra.mxu0 %v6013
      %6019 = vmatprep.subr.bf16.mxu0 0
      %6020 = vmatpush1.bf16.msra.mxu0 %v6014
      %6021 = vmatprep.subr.bf16.mxu0 0
      %6022 = vmatpush1.bf16.msra.mxu0 0
      %6023 = vmatprep.subr.bf16.mxu0 0
      %6024 = vmatpush1.bf16.msra.mxu0 0
      %6025 = vmatprep.subr.bf16.mxu0 0
      %6026 = vmatpush1.bf16.msra.mxu0 0
      %6027 = vmatprep.subr.bf16.mxu0 0
      %6028 = vmatpush1.bf16.msra.mxu0 0
      %6029 = vmatprep.subr.bf16.mxu0 0
      %6030 = vmatpush1.bf16.msra.mxu0 0
      %6031 = vmatprep.subr.bf16.mxu0 0
      %6032 = vmatpush1.bf16.msra.mxu0 0
      %6033 = vmatprep.subr.bf16.mxu0 0
      %6034 = vmatpush1.bf16.msra.mxu0 0
      %6035 = vmatprep.subr.bf16.mxu0 0
      %6036 = vmatpush1.bf16.msra.mxu0 0
      %6037 = vmatprep.subr.bf16.mxu0 0
      %6038 = vmatpush1.bf16.msra.mxu0 0
      %6039 = vmatprep.subr.bf16.mxu0 0
      %6040 = vmatpush1.bf16.msra.mxu0 0
      %6041 = vmatprep.subr.bf16.mxu0 0
      %6042 = vmatpush1.bf16.msra.mxu0 0
      %6043 = vmatprep.subr.bf16.mxu0 0
      %6044 = vmatpush1.bf16.msra.mxu0 0
      %6045 = vmatprep.subr.bf16.mxu0 0
      %6046 = vmatpush1.bf16.msra.mxu0 0
      %6047 = vmatprep.subr.bf16.mxu0 0
      %6048 = vmatpush1.bf16.msra.mxu0 0
      %6049 = vmatprep.mubr.bf16.mxu0 0
      %6050 = vmatmul.mubr.bf16.gmra.mrb[0].mxu0 %v678
      %v6051 = vpop.f32.mrb[0].mxu0
      %v6052 = vadd.f32 0.0, %v6051
      %v6053 = vpop.f32.mrb[0].mxu0
      %v6054 = vpop.f32.mrb[0].mxu0
      %v6055 = vadd.f32 0.0, %v6054
      %v6056 = vpop.f32.mrb[0].mxu0
      %6057 = vmatprep.mubr.bf16.mxu0 0
      %6058 = vmatmul.mubr.bf16.gmra.mrb[0].mxu0 %v681
      %v6059 = vpop.f32.mrb[0].mxu0
      %v6060 = vadd.f32 0.0, %v6059
      %v6061 = vpop.f32.mrb[0].mxu0
      %v6062 = vpop.f32.mrb[0].mxu0
      %v6063 = vadd.f32 0.0, %v6062
      %v6064 = vpop.f32.mrb[0].mxu0
      %6065 = vmatprep.mubr.bf16.mxu0 0
      %6066 = vmatmul.mubr.bf16.gmra.mrb[0].mxu0 %v684
      %v6067 = vpop.f32.mrb[0].mxu0
      %v6068 = vadd.f32 0.0, %v6067
      %v6069 = vpop.f32.mrb[0].mxu0
      %v6070 = vpop.f32.mrb[0].mxu0
      %v6071 = vadd.f32 0.0, %v6070
      %v6072 = vpop.f32.mrb[0].mxu0
      %6073 = vmatprep.mubr.bf16.mxu0 0
      %6074 = vmatmul.mubr.bf16.gmra.mrb[0].mxu0 %v687
      %v6075 = vpop.f32.mrb[0].mxu0
      %v6076 = vadd.f32 0.0, %v6075
      %v6077 = vpop.f32.mrb[0].mxu0
      %v6078 = vpop.f32.mrb[0].mxu0
      %v6079 = vadd.f32 0.0, %v6078
      %v6080 = vpop.f32.mrb[0].mxu0
      %6081 = vmatprep.mubr.bf16.mxu0 0
      %6082 = vmatmul.mubr.bf16.gmra.mrb[0].mxu0 %v690
      %v6083 = vpop.f32.mrb[0].mxu0
      %v6084 = vadd.f32 0.0, %v6083
      %v6085 = vpop.f32.mrb[0].mxu0
      %v6086 = vpop.f32.mrb[0].mxu0
      %v6087 = vadd.f32 0.0, %v6086
      %v6088 = vpop.f32.mrb[0].mxu0
      %6089 = vmatprep.mubr.bf16.mxu0 0
      %6090 = vmatmul.mubr.bf16.gmra.mrb[0].mxu0 %v693
      %v6091 = vpop.f32.mrb[0].mxu0
      %v6092 = vadd.f32 0.0, %v6091
      %v6093 = vpop.f32.mrb[0].mxu0
      %v6094 = vpop.f32.mrb[0].mxu0
      %v6095 = vadd.f32 0.0, %v6094
      %v6096 = vpop.f32.mrb[0].mxu0
      %6097 = vmatprep.mubr.bf16.mxu0 0
      %6098 = vmatmul.mubr.bf16.gmra.mrb[0].mxu0 %v696
      %v6099 = vpop.f32.mrb[0].mxu0
      %v6100 = vadd.f32 0.0, %v6099
      %v6101 = vpop.f32.mrb[0].mxu0
      %v6102 = vpop.f32.mrb[0].mxu0
      %v6103 = vadd.f32 0.0, %v6102
      %v6104 = vpop.f32.mrb[0].mxu0
      %6105 = vmatprep.mubr.bf16.mxu0 0
      %6106 = vmatmul.mubr.bf16.gmra.mrb[0].mxu0 %v699
      %v6107 = vpop.f32.mrb[0].mxu0
      %v6108 = vadd.f32 0.0, %v6107
      %v6109 = vpop.f32.mrb[0].mxu0
      %v6110 = vpop.f32.mrb[0].mxu0
      %v6111 = vadd.f32 0.0, %v6110
      %v6112 = vpop.f32.mrb[0].mxu0
      %6113 = vmatprep.mubr.bf16.mxu0 0
      %6114 = vmatmul.mubr.bf16.gmra.mrb[0].mxu0 %v702
      %v6115 = vpop.f32.mrb[0].mxu0
      %v6116 = vadd.f32 0.0, %v6115
      %v6117 = vpop.f32.mrb[0].mxu0
      %v6118 = vpop.f32.mrb[0].mxu0
      %v6119 = vadd.f32 0.0, %v6118
      %v6120 = vpop.f32.mrb[0].mxu0
      %6121 = vmatprep.mubr.bf16.mxu0 0
      %6122 = vmatmul.mubr.bf16.gmra.mrb[0].mxu0 %v705
      %v6123 = vpop.f32.mrb[0].mxu0
      %v6124 = vadd.f32 0.0, %v6123
      %v6125 = vpop.f32.mrb[0].mxu0
      %v6126 = vpop.f32.mrb[0].mxu0
      %v6127 = vadd.f32 0.0, %v6126
      %v6128 = vpop.f32.mrb[0].mxu0
      %6129 = vmatprep.mubr.bf16.mxu0 0
      %6130 = vmatmul.mubr.bf16.gmra.mrb[0].mxu0 %v708
      %v6131 = vpop.f32.mrb[0].mxu0
      %v6132 = vadd.f32 0.0, %v6131
      %v6133 = vpop.f32.mrb[0].mxu0
      %v6134 = vpop.f32.mrb[0].mxu0
      %v6135 = vadd.f32 0.0, %v6134
      %v6136 = vpop.f32.mrb[0].mxu0
      %6137 = vmatprep.mubr.bf16.mxu0 0
      %6138 = vmatmul.mubr.bf16.gmra.mrb[0].mxu0 %v711
      %v6139 = vpop.f32.mrb[0].mxu0
      %v6140 = vadd.f32 0.0, %v6139
      %v6141 = vpop.f32.mrb[0].mxu0
      %v6142 = vpop.f32.mrb[0].mxu0
      %v6143 = vadd.f32 0.0, %v6142
      %v6144 = vpop.f32.mrb[0].mxu0
      %6145 = vmatprep.mubr.bf16.mxu0 0
      %6146 = vmatmul.mubr.bf16.gmra.mrb[0].mxu0 %v714
      %v6147 = vpop.f32.mrb[0].mxu0
      %v6148 = vadd.f32 0.0, %v6147
      %v6149 = vpop.f32.mrb[0].mxu0
      %v6150 = vpop.f32.mrb[0].mxu0
      %v6151 = vadd.f32 0.0, %v6150
      %v6152 = vpop.f32.mrb[0].mxu0
      %6153 = vmatprep.mubr.bf16.mxu0 0
      %6154 = vmatmul.mubr.bf16.gmra.mrb[0].mxu0 %v717
      %v6155 = vpop.f32.mrb[0].mxu0
      %v6156 = vadd.f32 0.0, %v6155
      %v6157 = vpop.f32.mrb[0].mxu0
      %v6158 = vpop.f32.mrb[0].mxu0
      %v6159 = vadd.f32 0.0, %v6158
      %v6160 = vpop.f32.mrb[0].mxu0
      %6161 = vmatprep.mubr.bf16.mxu0 0
      %6162 = vmatmul.mubr.bf16.gmra.mrb[0].mxu0 %v720
      %v6163 = vpop.f32.mrb[0].mxu0
      %v6164 = vadd.f32 0.0, %v6163
      %v6165 = vpop.f32.mrb[0].mxu0
      %v6166 = vpop.f32.mrb[0].mxu0
      %v6167 = vadd.f32 0.0, %v6166
      %v6168 = vpop.f32.mrb[0].mxu0
      %6169 = vmatprep.mubr.bf16.mxu0 0
      %6170 = vmatmul.mubr.bf16.gmra.mrb[0].mxu0 %v723
      %v6171 = vpop.f32.mrb[0].mxu0
      %v6172 = vadd.f32 0.0, %v6171
      %v6173 = vpop.f32.mrb[0].mxu0
      %v6174 = vpop.f32.mrb[0].mxu0
      %v6175 = vadd.f32 0.0, %v6174
      %v6176 = vpop.f32.mrb[0].mxu0
      %6177 = vdwg.mxu0
      %s6178 = scalar_lea.vmem %s4, 48
      %v6179 = vld [vmem:[%s6178] sm:$0xf]
      %v6180 = vld [vmem:[%s6178 + $0x4] sm:$0xf]
      %v6181 = vld [vmem:[%s6178 + $0x8] sm:$0xf]
      %v6182 = vld [vmem:[%s6178 + $0xc] sm:$0xf]
      %v6187 = vunpack.c.l.b16 %v6179
      %v6188 = vunpack.c.l.b16 %v6180
      %v6189 = vunpack.c.l.b16 %v6181
      %v6190 = vunpack.c.l.b16 %v6182
      %v6191 = vpack.c.b16 %v6188, %v6187
      %v6192 = vpack.c.b16 %v6190, %v6189
      %6195 = vmatprep.subr.bf16.mxu0 0
      %6196 = vmatpush1.bf16.msra.mxu0 %v6191
      %6197 = vmatprep.subr.bf16.mxu0 0
      %6198 = vmatpush1.bf16.msra.mxu0 %v6192
      %6199 = vmatprep.subr.bf16.mxu0 0
      %6200 = vmatpush1.bf16.msra.mxu0 0
      %6201 = vmatprep.subr.bf16.mxu0 0
      %6202 = vmatpush1.bf16.msra.mxu0 0
      %6203 = vmatprep.subr.bf16.mxu0 0
      %6204 = vmatpush1.bf16.msra.mxu0 0
      %6205 = vmatprep.subr.bf16.mxu0 0
      %6206 = vmatpush1.bf16.msra.mxu0 0
      %6207 = vmatprep.subr.bf16.mxu0 0
      %6208 = vmatpush1.bf16.msra.mxu0 0
      %6209 = vmatprep.subr.bf16.mxu0 0
      %6210 = vmatpush1.bf16.msra.mxu0 0
      %6211 = vmatprep.subr.bf16.mxu0 0
      %6212 = vmatpush1.bf16.msra.mxu0 0
      %6213 = vmatprep.subr.bf16.mxu0 0
      %6214 = vmatpush1.bf16.msra.mxu0 0
      %6215 = vmatprep.subr.bf16.mxu0 0
      %6216 = vmatpush1.bf16.msra.mxu0 0
      %6217 = vmatprep.subr.bf16.mxu0 0
      %6218 = vmatpush1.bf16.msra.mxu0 0
      %6219 = vmatprep.subr.bf16.mxu0 0
      %6220 = vmatpush1.bf16.msra.mxu0 0
      %6221 = vmatprep.subr.bf16.mxu0 0
      %6222 = vmatpush1.bf16.msra.mxu0 0
      %6223 = vmatprep.subr.bf16.mxu0 0
      %6224 = vmatpush1.bf16.msra.mxu0 0
      %6225 = vmatprep.subr.bf16.mxu0 0
      %6226 = vmatpush1.bf16.msra.mxu0 0
      %6227 = vmatprep.mubr.bf16.mxu0 0
      %6228 = vmatmul.mubr.bf16.gmra.mrb[0].mxu0 %v678
      %v6229 = vpop.f32.mrb[0].mxu0
      %v6230 = vadd.f32 0.0, %v6229
      %v6231 = vpop.f32.mrb[0].mxu0
      %v6232 = vpop.f32.mrb[0].mxu0
      %v6233 = vadd.f32 0.0, %v6232
      %v6234 = vpop.f32.mrb[0].mxu0
      %6235 = vmatprep.mubr.bf16.mxu0 0
      %6236 = vmatmul.mubr.bf16.gmra.mrb[0].mxu0 %v681
      %v6237 = vpop.f32.mrb[0].mxu0
      %v6238 = vadd.f32 0.0, %v6237
      %v6239 = vpop.f32.mrb[0].mxu0
      %v6240 = vpop.f32.mrb[0].mxu0
      %v6241 = vadd.f32 0.0, %v6240
      %v6242 = vpop.f32.mrb[0].mxu0
      %6243 = vmatprep.mubr.bf16.mxu0 0
      %6244 = vmatmul.mubr.bf16.gmra.mrb[0].mxu0 %v684
      %v6245 = vpop.f32.mrb[0].mxu0
      %v6246 = vadd.f32 0.0, %v6245
      %v6247 = vpop.f32.mrb[0].mxu0
      %v6248 = vpop.f32.mrb[0].mxu0
      %v6249 = vadd.f32 0.0, %v6248
      %v6250 = vpop.f32.mrb[0].mxu0
      %6251 = vmatprep.mubr.bf16.mxu0 0
      %6252 = vmatmul.mubr.bf16.gmra.mrb[0].mxu0 %v687
      %v6253 = vpop.f32.mrb[0].mxu0
      %v6254 = vadd.f32 0.0, %v6253
      %v6255 = vpop.f32.mrb[0].mxu0
      %v6256 = vpop.f32.mrb[0].mxu0
      %v6257 = vadd.f32 0.0, %v6256
      %v6258 = vpop.f32.mrb[0].mxu0
      %6259 = vmatprep.mubr.bf16.mxu0 0
      %6260 = vmatmul.mubr.bf16.gmra.mrb[0].mxu0 %v690
      %v6261 = vpop.f32.mrb[0].mxu0
      %v6262 = vadd.f32 0.0, %v6261
      %v6263 = vpop.f32.mrb[0].mxu0
      %v6264 = vpop.f32.mrb[0].mxu0
      %v6265 = vadd.f32 0.0, %v6264
      %v6266 = vpop.f32.mrb[0].mxu0
      %6267 = vmatprep.mubr.bf16.mxu0 0
      %6268 = vmatmul.mubr.bf16.gmra.mrb[0].mxu0 %v693
      %v6269 = vpop.f32.mrb[0].mxu0
      %v6270 = vadd.f32 0.0, %v6269
      %v6271 = vpop.f32.mrb[0].mxu0
      %v6272 = vpop.f32.mrb[0].mxu0
      %v6273 = vadd.f32 0.0, %v6272
      %v6274 = vpop.f32.mrb[0].mxu0
      %6275 = vmatprep.mubr.bf16.mxu0 0
      %6276 = vmatmul.mubr.bf16.gmra.mrb[0].mxu0 %v696
      %v6277 = vpop.f32.mrb[0].mxu0
      %v6278 = vadd.f32 0.0, %v6277
      %v6279 = vpop.f32.mrb[0].mxu0
      %v6280 = vpop.f32.mrb[0].mxu0
      %v6281 = vadd.f32 0.0, %v6280
      %v6282 = vpop.f32.mrb[0].mxu0
      %6283 = vmatprep.mubr.bf16.mxu0 0
      %6284 = vmatmul.mubr.bf16.gmra.mrb[0].mxu0 %v699
      %v6285 = vpop.f32.mrb[0].mxu0
      %v6286 = vadd.f32 0.0, %v6285
      %v6287 = vpop.f32.mrb[0].mxu0
      %v6288 = vpop.f32.mrb[0].mxu0
      %v6289 = vadd.f32 0.0, %v6288
      %v6290 = vpop.f32.mrb[0].mxu0
      %6291 = vmatprep.mubr.bf16.mxu0 0
      %6292 = vmatmul.mubr.bf16.gmra.mrb[0].mxu0 %v702
      %v6293 = vpop.f32.mrb[0].mxu0
      %v6294 = vadd.f32 0.0, %v6293
      %v6295 = vpop.f32.mrb[0].mxu0
      %v6296 = vpop.f32.mrb[0].mxu0
      %v6297 = vadd.f32 0.0, %v6296
      %v6298 = vpop.f32.mrb[0].mxu0
      %6299 = vmatprep.mubr.bf16.mxu0 0
      %6300 = vmatmul.mubr.bf16.gmra.mrb[0].mxu0 %v705
      %v6301 = vpop.f32.mrb[0].mxu0
      %v6302 = vadd.f32 0.0, %v6301
      %v6303 = vpop.f32.mrb[0].mxu0
      %v6304 = vpop.f32.mrb[0].mxu0
      %v6305 = vadd.f32 0.0, %v6304
      %v6306 = vpop.f32.mrb[0].mxu0
      %6307 = vmatprep.mubr.bf16.mxu0 0
      %6308 = vmatmul.mubr.bf16.gmra.mrb[0].mxu0 %v708
      %v6309 = vpop.f32.mrb[0].mxu0
      %v6310 = vadd.f32 0.0, %v6309
      %v6311 = vpop.f32.mrb[0].mxu0
      %v6312 = vpop.f32.mrb[0].mxu0
      %v6313 = vadd.f32 0.0, %v6312
      %v6314 = vpop.f32.mrb[0].mxu0
      %6315 = vmatprep.mubr.bf16.mxu0 0
      %6316 = vmatmul.mubr.bf16.gmra.mrb[0].mxu0 %v711
      %v6317 = vpop.f32.mrb[0].mxu0
      %v6318 = vadd.f32 0.0, %v6317
      %v6319 = vpop.f32.mrb[0].mxu0
      %v6320 = vpop.f32.mrb[0].mxu0
      %v6321 = vadd.f32 0.0, %v6320
      %v6322 = vpop.f32.mrb[0].mxu0
      %6323 = vmatprep.mubr.bf16.mxu0 0
      %6324 = vmatmul.mubr.bf16.gmra.mrb[0].mxu0 %v714
      %v6325 = vpop.f32.mrb[0].mxu0
      %v6326 = vadd.f32 0.0, %v6325
      %v6327 = vpop.f32.mrb[0].mxu0
      %v6328 = vpop.f32.mrb[0].mxu0
      %v6329 = vadd.f32 0.0, %v6328
      %v6330 = vpop.f32.mrb[0].mxu0
      %6331 = vmatprep.mubr.bf16.mxu0 0
      %6332 = vmatmul.mubr.bf16.gmra.mrb[0].mxu0 %v717
      %v6333 = vpop.f32.mrb[0].mxu0
      %v6334 = vadd.f32 0.0, %v6333
      %v6335 = vpop.f32.mrb[0].mxu0
      %v6336 = vpop.f32.mrb[0].mxu0
      %v6337 = vadd.f32 0.0, %v6336
      %v6338 = vpop.f32.mrb[0].mxu0
      %6339 = vmatprep.mubr.bf16.mxu0 0
      %6340 = vmatmul.mubr.bf16.gmra.mrb[0].mxu0 %v720
      %v6341 = vpop.f32.mrb[0].mxu0
      %v6342 = vadd.f32 0.0, %v6341
      %v6343 = vpop.f32.mrb[0].mxu0
      %v6344 = vpop.f32.mrb[0].mxu0
      %v6345 = vadd.f32 0.0, %v6344
      %v6346 = vpop.f32.mrb[0].mxu0
      %6347 = vmatprep.mubr.bf16.mxu0 0
      %6348 = vmatmul.mubr.bf16.gmra.mrb[0].mxu0 %v723
      %v6349 = vpop.f32.mrb[0].mxu0
      %v6350 = vadd.f32 0.0, %v6349
      %v6351 = vpop.f32.mrb[0].mxu0
      %v6352 = vpop.f32.mrb[0].mxu0
      %v6353 = vadd.f32 0.0, %v6352
      %v6354 = vpop.f32.mrb[0].mxu0
      %6355 = vdwg.mxu0
      %v6356 = vpack.c.bf16 %v5877, %v5874
      %v6357 = vpack.c.bf16 %v5885, %v5882
      %v6358 = vpack.c.bf16 %v5893, %v5890
      %v6359 = vpack.c.bf16 %v5901, %v5898
      %v6360 = vpack.c.bf16 %v5909, %v5906
      %v6361 = vpack.c.bf16 %v5917, %v5914
      %v6362 = vpack.c.bf16 %v5925, %v5922
      %v6363 = vpack.c.bf16 %v5933, %v5930
      %v6364 = vpack.c.bf16 %v5941, %v5938
      %v6365 = vpack.c.bf16 %v5949, %v5946
      %v6366 = vpack.c.bf16 %v5957, %v5954
      %v6367 = vpack.c.bf16 %v5965, %v5962
      %v6368 = vpack.c.bf16 %v5973, %v5970
      %v6369 = vpack.c.bf16 %v5981, %v5978
      %v6370 = vpack.c.bf16 %v5989, %v5986
      %v6371 = vpack.c.bf16 %v5997, %v5994
      %v6372 = vpack.c.bf16 %v6055, %v6052
      %v6373 = vpack.c.bf16 %v6063, %v6060
      %v6374 = vpack.c.bf16 %v6071, %v6068
      %v6375 = vpack.c.bf16 %v6079, %v6076
      %v6376 = vpack.c.bf16 %v6087, %v6084
      %v6377 = vpack.c.bf16 %v6095, %v6092
      %v6378 = vpack.c.bf16 %v6103, %v6100
      %v6379 = vpack.c.bf16 %v6111, %v6108
      %v6380 = vpack.c.bf16 %v6119, %v6116
      %v6381 = vpack.c.bf16 %v6127, %v6124
      %v6382 = vpack.c.bf16 %v6135, %v6132
      %v6383 = vpack.c.bf16 %v6143, %v6140
      %v6384 = vpack.c.bf16 %v6151, %v6148
      %v6385 = vpack.c.bf16 %v6159, %v6156
      %v6386 = vpack.c.bf16 %v6167, %v6164
      %v6387 = vpack.c.bf16 %v6175, %v6172
      %v6389 = vsel %vm451, %v6356, 0
      %v6392 = vsel %vm451, %v6357, 0
      %v6395 = vsel %vm451, %v6358, 0
      %v6398 = vsel %vm451, %v6359, 0
      %v6401 = vsel %vm451, %v6360, 0
      %v6404 = vsel %vm451, %v6361, 0
      %v6407 = vsel %vm451, %v6362, 0
      %v6410 = vsel %vm451, %v6363, 0
      %v6413 = vsel %vm451, %v6364, 0
      %v6416 = vsel %vm451, %v6365, 0
      %v6419 = vsel %vm451, %v6366, 0
      %v6422 = vsel %vm451, %v6367, 0
      %v6425 = vsel %vm451, %v6368, 0
      %v6428 = vsel %vm451, %v6369, 0
      %v6431 = vsel %vm451, %v6370, 0
      %v6434 = vsel %vm451, %v6371, 0
      %v6437 = vsel %vm451, %v6372, 0
      %v6440 = vsel %vm451, %v6373, 0
      %v6443 = vsel %vm451, %v6374, 0
      %v6446 = vsel %vm451, %v6375, 0
      %v6449 = vsel %vm451, %v6376, 0
      %v6452 = vsel %vm451, %v6377, 0
      %v6455 = vsel %vm451, %v6378, 0
      %v6458 = vsel %vm451, %v6379, 0
      %v6461 = vsel %vm451, %v6380, 0
      %v6464 = vsel %vm451, %v6381, 0
      %v6467 = vsel %vm451, %v6382, 0
      %v6470 = vsel %vm451, %v6383, 0
      %v6473 = vsel %vm451, %v6384, 0
      %v6476 = vsel %vm451, %v6385, 0
      %v6479 = vsel %vm451, %v6386, 0
      %v6482 = vsel %vm451, %v6387, 0
      %6484 = vmatprep.subr.bf16.mxu0 0
      %6485 = vmatpush1.bf16.xpose.msra.mxu0 %v6437
      %6486 = vmatprep.subr.bf16.mxu0 0
      %6487 = vmatpush1.bf16.xpose.msra.mxu0 %v6440
      %6488 = vmatprep.subr.bf16.mxu0 0
      %6489 = vmatpush1.bf16.xpose.msra.mxu0 %v6443
      %6490 = vmatprep.subr.bf16.mxu0 0
      %6491 = vmatpush1.bf16.xpose.msra.mxu0 %v6446
      %6492 = vmatprep.subr.bf16.mxu0 0
      %6493 = vmatpush1.bf16.xpose.msra.mxu0 %v6449
      %6494 = vmatprep.subr.bf16.mxu0 0
      %6495 = vmatpush1.bf16.xpose.msra.mxu0 %v6452
      %6496 = vmatprep.subr.bf16.mxu0 0
      %6497 = vmatpush1.bf16.xpose.msra.mxu0 %v6455
      %6498 = vmatprep.subr.bf16.mxu0 0
      %6499 = vmatpush1.bf16.xpose.msra.mxu0 %v6458
      %6500 = vmatprep.subr.bf16.mxu0 0
      %6501 = vmatpush1.bf16.xpose.msra.mxu0 %v6461
      %6502 = vmatprep.subr.bf16.mxu0 0
      %6503 = vmatpush1.bf16.xpose.msra.mxu0 %v6464
      %6504 = vmatprep.subr.bf16.mxu0 0
      %6505 = vmatpush1.bf16.xpose.msra.mxu0 %v6467
      %6506 = vmatprep.subr.bf16.mxu0 0
      %6507 = vmatpush1.bf16.xpose.msra.mxu0 %v6470
      %6508 = vmatprep.subr.bf16.mxu0 0
      %6509 = vmatpush1.bf16.xpose.msra.mxu0 %v6473
      %6510 = vmatprep.subr.bf16.mxu0 0
      %6511 = vmatpush1.bf16.xpose.msra.mxu0 %v6476
      %6512 = vmatprep.subr.bf16.mxu0 0
      %6513 = vmatpush1.bf16.xpose.msra.mxu0 %v6479
      %6514 = vmatprep.subr.bf16.mxu0 0
      %6515 = vmatpush1.bf16.xpose.msra.mxu0 %v6482
      %6516 = vmatprep.mubr.bf16.mxu0 0
      %6517 = vmatmul.mubr.bf16.gmra.mrb[0].mxu0 %v6389
      %v6518 = vpop.f32.mrb[0].mxu0
      %v6519 = vadd.f32 0.0, %v6518
      %v6520 = vpop.f32.mrb[0].mxu0
      %v6521 = vadd.f32 0.0, %v6520
      %v6522 = vpop.f32.mrb[0].mxu0
      %v6523 = vadd.f32 0.0, %v6522
      %v6524 = vpop.f32.mrb[0].mxu0
      %v6525 = vadd.f32 0.0, %v6524
      %6526 = vmatprep.mubr.bf16.mxu0 0
      %6527 = vmatmul.mubr.bf16.gmra.mrb[0].mxu0 %v6392
      %v6528 = vpop.f32.mrb[0].mxu0
      %v6529 = vadd.f32 0.0, %v6528
      %v6530 = vpop.f32.mrb[0].mxu0
      %v6531 = vadd.f32 0.0, %v6530
      %v6532 = vpop.f32.mrb[0].mxu0
      %v6533 = vadd.f32 0.0, %v6532
      %v6534 = vpop.f32.mrb[0].mxu0
      %v6535 = vadd.f32 0.0, %v6534
      %6536 = vmatprep.mubr.bf16.mxu0 0
      %6537 = vmatmul.mubr.bf16.gmra.mrb[0].mxu0 %v6395
      %v6538 = vpop.f32.mrb[0].mxu0
      %v6539 = vadd.f32 0.0, %v6538
      %v6540 = vpop.f32.mrb[0].mxu0
      %v6541 = vadd.f32 0.0, %v6540
      %v6542 = vpop.f32.mrb[0].mxu0
      %v6543 = vadd.f32 0.0, %v6542
      %v6544 = vpop.f32.mrb[0].mxu0
      %v6545 = vadd.f32 0.0, %v6544
      %6546 = vmatprep.mubr.bf16.mxu0 0
      %6547 = vmatmul.mubr.bf16.gmra.mrb[0].mxu0 %v6398
      %v6548 = vpop.f32.mrb[0].mxu0
      %v6549 = vadd.f32 0.0, %v6548
      %v6550 = vpop.f32.mrb[0].mxu0
      %v6551 = vadd.f32 0.0, %v6550
      %v6552 = vpop.f32.mrb[0].mxu0
      %v6553 = vadd.f32 0.0, %v6552
      %v6554 = vpop.f32.mrb[0].mxu0
      %v6555 = vadd.f32 0.0, %v6554
      %6556 = vmatprep.mubr.bf16.mxu0 0
      %6557 = vmatmul.mubr.bf16.gmra.mrb[0].mxu0 %v6401
      %v6558 = vpop.f32.mrb[0].mxu0
      %v6559 = vadd.f32 0.0, %v6558
      %v6560 = vpop.f32.mrb[0].mxu0
      %v6561 = vadd.f32 0.0, %v6560
      %v6562 = vpop.f32.mrb[0].mxu0
      %v6563 = vadd.f32 0.0, %v6562
      %v6564 = vpop.f32.mrb[0].mxu0
      %v6565 = vadd.f32 0.0, %v6564
      %6566 = vmatprep.mubr.bf16.mxu0 0
      %6567 = vmatmul.mubr.bf16.gmra.mrb[0].mxu0 %v6404
      %v6568 = vpop.f32.mrb[0].mxu0
      %v6569 = vadd.f32 0.0, %v6568
      %v6570 = vpop.f32.mrb[0].mxu0
      %v6571 = vadd.f32 0.0, %v6570
      %v6572 = vpop.f32.mrb[0].mxu0
      %v6573 = vadd.f32 0.0, %v6572
      %v6574 = vpop.f32.mrb[0].mxu0
      %v6575 = vadd.f32 0.0, %v6574
      %6576 = vmatprep.mubr.bf16.mxu0 0
      %6577 = vmatmul.mubr.bf16.gmra.mrb[0].mxu0 %v6407
      %v6578 = vpop.f32.mrb[0].mxu0
      %v6579 = vadd.f32 0.0, %v6578
      %v6580 = vpop.f32.mrb[0].mxu0
      %v6581 = vadd.f32 0.0, %v6580
      %v6582 = vpop.f32.mrb[0].mxu0
      %v6583 = vadd.f32 0.0, %v6582
      %v6584 = vpop.f32.mrb[0].mxu0
      %v6585 = vadd.f32 0.0, %v6584
      %6586 = vmatprep.mubr.bf16.mxu0 0
      %6587 = vmatmul.mubr.bf16.gmra.mrb[0].mxu0 %v6410
      %v6588 = vpop.f32.mrb[0].mxu0
      %v6589 = vadd.f32 0.0, %v6588
      %v6590 = vpop.f32.mrb[0].mxu0
      %v6591 = vadd.f32 0.0, %v6590
      %v6592 = vpop.f32.mrb[0].mxu0
      %v6593 = vadd.f32 0.0, %v6592
      %v6594 = vpop.f32.mrb[0].mxu0
      %v6595 = vadd.f32 0.0, %v6594
      %6596 = vmatprep.mubr.bf16.mxu0 0
      %6597 = vmatmul.mubr.bf16.gmra.mrb[0].mxu0 %v6413
      %v6598 = vpop.f32.mrb[0].mxu0
      %v6599 = vadd.f32 0.0, %v6598
      %v6600 = vpop.f32.mrb[0].mxu0
      %v6601 = vadd.f32 0.0, %v6600
      %v6602 = vpop.f32.mrb[0].mxu0
      %v6603 = vadd.f32 0.0, %v6602
      %v6604 = vpop.f32.mrb[0].mxu0
      %v6605 = vadd.f32 0.0, %v6604
      %6606 = vmatprep.mubr.bf16.mxu0 0
      %6607 = vmatmul.mubr.bf16.gmra.mrb[0].mxu0 %v6416
      %v6608 = vpop.f32.mrb[0].mxu0
      %v6609 = vadd.f32 0.0, %v6608
      %v6610 = vpop.f32.mrb[0].mxu0
      %v6611 = vadd.f32 0.0, %v6610
      %v6612 = vpop.f32.mrb[0].mxu0
      %v6613 = vadd.f32 0.0, %v6612
      %v6614 = vpop.f32.mrb[0].mxu0
      %v6615 = vadd.f32 0.0, %v6614
      %6616 = vmatprep.mubr.bf16.mxu0 0
      %6617 = vmatmul.mubr.bf16.gmra.mrb[0].mxu0 %v6419
      %v6618 = vpop.f32.mrb[0].mxu0
      %v6619 = vadd.f32 0.0, %v6618
      %v6620 = vpop.f32.mrb[0].mxu0
      %v6621 = vadd.f32 0.0, %v6620
      %v6622 = vpop.f32.mrb[0].mxu0
      %v6623 = vadd.f32 0.0, %v6622
      %v6624 = vpop.f32.mrb[0].mxu0
      %v6625 = vadd.f32 0.0, %v6624
      %6626 = vmatprep.mubr.bf16.mxu0 0
      %6627 = vmatmul.mubr.bf16.gmra.mrb[0].mxu0 %v6422
      %v6628 = vpop.f32.mrb[0].mxu0
      %v6629 = vadd.f32 0.0, %v6628
      %v6630 = vpop.f32.mrb[0].mxu0
      %v6631 = vadd.f32 0.0, %v6630
      %v6632 = vpop.f32.mrb[0].mxu0
      %v6633 = vadd.f32 0.0, %v6632
      %v6634 = vpop.f32.mrb[0].mxu0
      %v6635 = vadd.f32 0.0, %v6634
      %6636 = vmatprep.mubr.bf16.mxu0 0
      %6637 = vmatmul.mubr.bf16.gmra.mrb[0].mxu0 %v6425
      %v6638 = vpop.f32.mrb[0].mxu0
      %v6639 = vadd.f32 0.0, %v6638
      %v6640 = vpop.f32.mrb[0].mxu0
      %v6641 = vadd.f32 0.0, %v6640
      %v6642 = vpop.f32.mrb[0].mxu0
      %v6643 = vadd.f32 0.0, %v6642
      %v6644 = vpop.f32.mrb[0].mxu0
      %v6645 = vadd.f32 0.0, %v6644
      %6646 = vmatprep.mubr.bf16.mxu0 0
      %6647 = vmatmul.mubr.bf16.gmra.mrb[0].mxu0 %v6428
      %v6648 = vpop.f32.mrb[0].mxu0
      %v6649 = vadd.f32 0.0, %v6648
      %v6650 = vpop.f32.mrb[0].mxu0
      %v6651 = vadd.f32 0.0, %v6650
      %v6652 = vpop.f32.mrb[0].mxu0
      %v6653 = vadd.f32 0.0, %v6652
      %v6654 = vpop.f32.mrb[0].mxu0
      %v6655 = vadd.f32 0.0, %v6654
      %6656 = vmatprep.mubr.bf16.mxu0 0
      %6657 = vmatmul.mubr.bf16.gmra.mrb[0].mxu0 %v6431
      %v6658 = vpop.f32.mrb[0].mxu0
      %v6659 = vadd.f32 0.0, %v6658
      %v6660 = vpop.f32.mrb[0].mxu0
      %v6661 = vadd.f32 0.0, %v6660
      %v6662 = vpop.f32.mrb[0].mxu0
      %v6663 = vadd.f32 0.0, %v6662
      %v6664 = vpop.f32.mrb[0].mxu0
      %v6665 = vadd.f32 0.0, %v6664
      %6666 = vmatprep.mubr.bf16.mxu0 0
      %6667 = vmatmul.mubr.bf16.gmra.mrb[0].mxu0 %v6434
      %v6668 = vpop.f32.mrb[0].mxu0
      %v6669 = vadd.f32 0.0, %v6668
      %v6670 = vpop.f32.mrb[0].mxu0
      %v6671 = vadd.f32 0.0, %v6670
      %v6672 = vpop.f32.mrb[0].mxu0
      %v6673 = vadd.f32 0.0, %v6672
      %v6674 = vpop.f32.mrb[0].mxu0
      %v6675 = vadd.f32 0.0, %v6674
      %6676 = vdwg.mxu0
      %v6677 = vmax.f32 %v6519, %v6521
      %6678 = vmax.xlane.f32.xlu0 %v6677
      %v6679 = vpop.xlane.xlu0 %6678
      %v6680 = vmax.f32 %v6523, %v6525
      %6681 = vmax.xlane.f32.xlu0 %v6680
      %v6682 = vpop.xlane.xlu0 %6681
      %v6683 = vmax.f32 %v6529, %v6531
      %6684 = vmax.xlane.f32.xlu0 %v6683
      %v6685 = vpop.xlane.xlu0 %6684
      %v6686 = vmax.f32 %v6533, %v6535
      %6687 = vmax.xlane.f32.xlu0 %v6686
      %v6688 = vpop.xlane.xlu0 %6687
      %v6689 = vmax.f32 %v6539, %v6541
      %6690 = vmax.xlane.f32.xlu0 %v6689
      %v6691 = vpop.xlane.xlu0 %6690
      %v6692 = vmax.f32 %v6543, %v6545
      %6693 = vmax.xlane.f32.xlu0 %v6692
      %v6694 = vpop.xlane.xlu0 %6693
      %v6695 = vmax.f32 %v6549, %v6551
      %6696 = vmax.xlane.f32.xlu0 %v6695
      %v6697 = vpop.xlane.xlu0 %6696
      %v6698 = vmax.f32 %v6553, %v6555
      %6699 = vmax.xlane.f32.xlu0 %v6698
      %v6700 = vpop.xlane.xlu0 %6699
      %v6701 = vmax.f32 %v6559, %v6561
      %6702 = vmax.xlane.f32.xlu0 %v6701
      %v6703 = vpop.xlane.xlu0 %6702
      %v6704 = vmax.f32 %v6563, %v6565
      %6705 = vmax.xlane.f32.xlu0 %v6704
      %v6706 = vpop.xlane.xlu0 %6705
      %v6707 = vmax.f32 %v6569, %v6571
      %6708 = vmax.xlane.f32.xlu0 %v6707
      %v6709 = vpop.xlane.xlu0 %6708
      %v6710 = vmax.f32 %v6573, %v6575
      %6711 = vmax.xlane.f32.xlu0 %v6710
      %v6712 = vpop.xlane.xlu0 %6711
      %v6713 = vmax.f32 %v6579, %v6581
      %6714 = vmax.xlane.f32.xlu0 %v6713
      %v6715 = vpop.xlane.xlu0 %6714
      %v6716 = vmax.f32 %v6583, %v6585
      %6717 = vmax.xlane.f32.xlu0 %v6716
      %v6718 = vpop.xlane.xlu0 %6717
      %v6719 = vmax.f32 %v6589, %v6591
      %6720 = vmax.xlane.f32.xlu0 %v6719
      %v6721 = vpop.xlane.xlu0 %6720
      %v6722 = vmax.f32 %v6593, %v6595
      %6723 = vmax.xlane.f32.xlu0 %v6722
      %v6724 = vpop.xlane.xlu0 %6723
      %v6725 = vmax.f32 %v6599, %v6601
      %6726 = vmax.xlane.f32.xlu0 %v6725
      %v6727 = vpop.xlane.xlu0 %6726
      %v6728 = vmax.f32 %v6603, %v6605
      %6729 = vmax.xlane.f32.xlu0 %v6728
      %v6730 = vpop.xlane.xlu0 %6729
      %v6731 = vmax.f32 %v6609, %v6611
      %6732 = vmax.xlane.f32.xlu0 %v6731
      %v6733 = vpop.xlane.xlu0 %6732
      %v6734 = vmax.f32 %v6613, %v6615
      %6735 = vmax.xlane.f32.xlu0 %v6734
      %v6736 = vpop.xlane.xlu0 %6735
      %v6737 = vmax.f32 %v6619, %v6621
      %6738 = vmax.xlane.f32.xlu0 %v6737
      %v6739 = vpop.xlane.xlu0 %6738
      %v6740 = vmax.f32 %v6623, %v6625
      %6741 = vmax.xlane.f32.xlu0 %v6740
      %v6742 = vpop.xlane.xlu0 %6741
      %v6743 = vmax.f32 %v6629, %v6631
      %6744 = vmax.xlane.f32.xlu0 %v6743
      %v6745 = vpop.xlane.xlu0 %6744
      %v6746 = vmax.f32 %v6633, %v6635
      %6747 = vmax.xlane.f32.xlu0 %v6746
      %v6748 = vpop.xlane.xlu0 %6747
      %v6749 = vmax.f32 %v6639, %v6641
      %6750 = vmax.xlane.f32.xlu0 %v6749
      %v6751 = vpop.xlane.xlu0 %6750
      %v6752 = vmax.f32 %v6643, %v6645
      %6753 = vmax.xlane.f32.xlu0 %v6752
      %v6754 = vpop.xlane.xlu0 %6753
      %v6755 = vmax.f32 %v6649, %v6651
      %6756 = vmax.xlane.f32.xlu0 %v6755
      %v6757 = vpop.xlane.xlu0 %6756
      %v6758 = vmax.f32 %v6653, %v6655
      %6759 = vmax.xlane.f32.xlu0 %v6758
      %v6760 = vpop.xlane.xlu0 %6759
      %v6761 = vmax.f32 %v6659, %v6661
      %6762 = vmax.xlane.f32.xlu0 %v6761
      %v6763 = vpop.xlane.xlu0 %6762
      %v6764 = vmax.f32 %v6663, %v6665
      %6765 = vmax.xlane.f32.xlu0 %v6764
      %v6766 = vpop.xlane.xlu0 %6765
      %v6767 = vmax.f32 %v6669, %v6671
      %6768 = vmax.xlane.f32.xlu0 %v6767
      %v6769 = vpop.xlane.xlu0 %6768
      %v6770 = vmax.f32 %v6673, %v6675
      %6771 = vmax.xlane.f32.xlu0 %v6770
      %v6772 = vpop.xlane.xlu0 %6771
      %v6773 = vsub.f32 %v6519, %v6679
      %v6774 = vsub.f32 %v6521, %v6679
      %v6775 = vsub.f32 %v6523, %v6682
      %v6776 = vsub.f32 %v6525, %v6682
      %v6777 = vsub.f32 %v6529, %v6685
      %v6778 = vsub.f32 %v6531, %v6685
      %v6779 = vsub.f32 %v6533, %v6688
      %v6780 = vsub.f32 %v6535, %v6688
      %v6781 = vsub.f32 %v6539, %v6691
      %v6782 = vsub.f32 %v6541, %v6691
      %v6783 = vsub.f32 %v6543, %v6694
      %v6784 = vsub.f32 %v6545, %v6694
      %v6785 = vsub.f32 %v6549, %v6697
      %v6786 = vsub.f32 %v6551, %v6697
      %v6787 = vsub.f32 %v6553, %v6700
      %v6788 = vsub.f32 %v6555, %v6700
      %v6789 = vsub.f32 %v6559, %v6703
      %v6790 = vsub.f32 %v6561, %v6703
      %v6791 = vsub.f32 %v6563, %v6706
      %v6792 = vsub.f32 %v6565, %v6706
      %v6793 = vsub.f32 %v6569, %v6709
      %v6794 = vsub.f32 %v6571, %v6709
      %v6795 = vsub.f32 %v6573, %v6712
      %v6796 = vsub.f32 %v6575, %v6712
      %v6797 = vsub.f32 %v6579, %v6715
      %v6798 = vsub.f32 %v6581, %v6715
      %v6799 = vsub.f32 %v6583, %v6718
      %v6800 = vsub.f32 %v6585, %v6718
      %v6801 = vsub.f32 %v6589, %v6721
      %v6802 = vsub.f32 %v6591, %v6721
      %v6803 = vsub.f32 %v6593, %v6724
      %v6804 = vsub.f32 %v6595, %v6724
      %v6805 = vsub.f32 %v6599, %v6727
      %v6806 = vsub.f32 %v6601, %v6727
      %v6807 = vsub.f32 %v6603, %v6730
      %v6808 = vsub.f32 %v6605, %v6730
      %v6809 = vsub.f32 %v6609, %v6733
      %v6810 = vsub.f32 %v6611, %v6733
      %v6811 = vsub.f32 %v6613, %v6736
      %v6812 = vsub.f32 %v6615, %v6736
      %v6813 = vsub.f32 %v6619, %v6739
      %v6814 = vsub.f32 %v6621, %v6739
      %v6815 = vsub.f32 %v6623, %v6742
      %v6816 = vsub.f32 %v6625, %v6742
      %v6817 = vsub.f32 %v6629, %v6745
      %v6818 = vsub.f32 %v6631, %v6745
      %v6819 = vsub.f32 %v6633, %v6748
      %v6820 = vsub.f32 %v6635, %v6748
      %v6821 = vsub.f32 %v6639, %v6751
      %v6822 = vsub.f32 %v6641, %v6751
      %v6823 = vsub.f32 %v6643, %v6754
      %v6824 = vsub.f32 %v6645, %v6754
      %v6825 = vsub.f32 %v6649, %v6757
      %v6826 = vsub.f32 %v6651, %v6757
      %v6827 = vsub.f32 %v6653, %v6760
      %v6828 = vsub.f32 %v6655, %v6760
      %v6829 = vsub.f32 %v6659, %v6763
      %v6830 = vsub.f32 %v6661, %v6763
      %v6831 = vsub.f32 %v6663, %v6766
      %v6832 = vsub.f32 %v6665, %v6766
      %v6833 = vsub.f32 %v6669, %v6769
      %v6834 = vsub.f32 %v6671, %v6769
      %v6835 = vsub.f32 %v6673, %v6772
      %v6836 = vsub.f32 %v6675, %v6772
      %v6837 = vmul.f32 %v6773, 1.442695
      %v6838 = vpow.pop %v6837
      %v6839 = vmul.f32 %v6774, 1.442695
      %v6840 = vpow.pop %v6839
      %v6841 = vmul.f32 %v6775, 1.442695
      %v6842 = vpow.pop %v6841
      %v6843 = vmul.f32 %v6776, 1.442695
      %v6844 = vpow.pop %v6843
      %v6845 = vmul.f32 %v6777, 1.442695
      %v6846 = vpow.pop %v6845
      %v6847 = vmul.f32 %v6778, 1.442695
      %v6848 = vpow.pop %v6847
      %v6849 = vmul.f32 %v6779, 1.442695
      %v6850 = vpow.pop %v6849
      %v6851 = vmul.f32 %v6780, 1.442695
      %v6852 = vpow.pop %v6851
      %v6853 = vmul.f32 %v6781, 1.442695
      %v6854 = vpow.pop %v6853
      %v6855 = vmul.f32 %v6782, 1.442695
      %v6856 = vpow.pop %v6855
      %v6857 = vmul.f32 %v6783, 1.442695
      %v6858 = vpow.pop %v6857
      %v6859 = vmul.f32 %v6784, 1.442695
      %v6860 = vpow.pop %v6859
      %v6861 = vmul.f32 %v6785, 1.442695
      %v6862 = vpow.pop %v6861
      %v6863 = vmul.f32 %v6786, 1.442695
      %v6864 = vpow.pop %v6863
      %v6865 = vmul.f32 %v6787, 1.442695
      %v6866 = vpow.pop %v6865
      %v6867 = vmul.f32 %v6788, 1.442695
      %v6868 = vpow.pop %v6867
      %v6869 = vmul.f32 %v6789, 1.442695
      %v6870 = vpow.pop %v6869
      %v6871 = vmul.f32 %v6790, 1.442695
      %v6872 = vpow.pop %v6871
      %v6873 = vmul.f32 %v6791, 1.442695
      %v6874 = vpow.pop %v6873
      %v6875 = vmul.f32 %v6792, 1.442695
      %v6876 = vpow.pop %v6875
      %v6877 = vmul.f32 %v6793, 1.442695
      %v6878 = vpow.pop %v6877
      %v6879 = vmul.f32 %v6794, 1.442695
      %v6880 = vpow.pop %v6879
      %v6881 = vmul.f32 %v6795, 1.442695
      %v6882 = vpow.pop %v6881
      %v6883 = vmul.f32 %v6796, 1.442695
      %v6884 = vpow.pop %v6883
      %v6885 = vmul.f32 %v6797, 1.442695
      %v6886 = vpow.pop %v6885
      %v6887 = vmul.f32 %v6798, 1.442695
      %v6888 = vpow.pop %v6887
      %v6889 = vmul.f32 %v6799, 1.442695
      %v6890 = vpow.pop %v6889
      %v6891 = vmul.f32 %v6800, 1.442695
      %v6892 = vpow.pop %v6891
      %v6893 = vmul.f32 %v6801, 1.442695
      %v6894 = vpow.pop %v6893
      %v6895 = vmul.f32 %v6802, 1.442695
      %v6896 = vpow.pop %v6895
      %v6897 = vmul.f32 %v6803, 1.442695
      %v6898 = vpow.pop %v6897
      %v6899 = vmul.f32 %v6804, 1.442695
      %v6900 = vpow.pop %v6899
      %v6901 = vmul.f32 %v6805, 1.442695
      %v6902 = vpow.pop %v6901
      %v6903 = vmul.f32 %v6806, 1.442695
      %v6904 = vpow.pop %v6903
      %v6905 = vmul.f32 %v6807, 1.442695
      %v6906 = vpow.pop %v6905
      %v6907 = vmul.f32 %v6808, 1.442695
      %v6908 = vpow.pop %v6907
      %v6909 = vmul.f32 %v6809, 1.442695
      %v6910 = vpow.pop %v6909
      %v6911 = vmul.f32 %v6810, 1.442695
      %v6912 = vpow.pop %v6911
      %v6913 = vmul.f32 %v6811, 1.442695
      %v6914 = vpow.pop %v6913
      %v6915 = vmul.f32 %v6812, 1.442695
      %v6916 = vpow.pop %v6915
      %v6917 = vmul.f32 %v6813, 1.442695
      %v6918 = vpow.pop %v6917
      %v6919 = vmul.f32 %v6814, 1.442695
      %v6920 = vpow.pop %v6919
      %v6921 = vmul.f32 %v6815, 1.442695
      %v6922 = vpow.pop %v6921
      %v6923 = vmul.f32 %v6816, 1.442695
      %v6924 = vpow.pop %v6923
      %v6925 = vmul.f32 %v6817, 1.442695
      %v6926 = vpow.pop %v6925
      %v6927 = vmul.f32 %v6818, 1.442695
      %v6928 = vpow.pop %v6927
      %v6929 = vmul.f32 %v6819, 1.442695
      %v6930 = vpow.pop %v6929
      %v6931 = vmul.f32 %v6820, 1.442695
      %v6932 = vpow.pop %v6931
      %v6933 = vmul.f32 %v6821, 1.442695
      %v6934 = vpow.pop %v6933
      %v6935 = vmul.f32 %v6822, 1.442695
      %v6936 = vpow.pop %v6935
      %v6937 = vmul.f32 %v6823, 1.442695
      %v6938 = vpow.pop %v6937
      %v6939 = vmul.f32 %v6824, 1.442695
      %v6940 = vpow.pop %v6939
      %v6941 = vmul.f32 %v6825, 1.442695
      %v6942 = vpow.pop %v6941
      %v6943 = vmul.f32 %v6826, 1.442695
      %v6944 = vpow.pop %v6943
      %v6945 = vmul.f32 %v6827, 1.442695
      %v6946 = vpow.pop %v6945
      %v6947 = vmul.f32 %v6828, 1.442695
      %v6948 = vpow.pop %v6947
      %v6949 = vmul.f32 %v6829, 1.442695
      %v6950 = vpow.pop %v6949
      %v6951 = vmul.f32 %v6830, 1.442695
      %v6952 = vpow.pop %v6951
      %v6953 = vmul.f32 %v6831, 1.442695
      %v6954 = vpow.pop %v6953
      %v6955 = vmul.f32 %v6832, 1.442695
      %v6956 = vpow.pop %v6955
      %v6957 = vmul.f32 %v6833, 1.442695
      %v6958 = vpow.pop %v6957
      %v6959 = vmul.f32 %v6834, 1.442695
      %v6960 = vpow.pop %v6959
      %v6961 = vmul.f32 %v6835, 1.442695
      %v6962 = vpow.pop %v6961
      %v6963 = vmul.f32 %v6836, 1.442695
      %v6964 = vpow.pop %v6963
      %v6965 = vadd.f32 %v6838, %v6840
      %6966 = vadd.xlane.f32.xlu0 %v6965
      %v6967 = vpop.xlane.xlu0 %6966
      %v6968 = vadd.f32 %v6842, %v6844
      %6969 = vadd.xlane.f32.xlu0 %v6968
      %v6970 = vpop.xlane.xlu0 %6969
      %v6971 = vadd.f32 %v6846, %v6848
      %6972 = vadd.xlane.f32.xlu0 %v6971
      %v6973 = vpop.xlane.xlu0 %6972
      %v6974 = vadd.f32 %v6850, %v6852
      %6975 = vadd.xlane.f32.xlu0 %v6974
      %v6976 = vpop.xlane.xlu0 %6975
      %v6977 = vadd.f32 %v6854, %v6856
      %6978 = vadd.xlane.f32.xlu0 %v6977
      %v6979 = vpop.xlane.xlu0 %6978
      %v6980 = vadd.f32 %v6858, %v6860
      %6981 = vadd.xlane.f32.xlu0 %v6980
      %v6982 = vpop.xlane.xlu0 %6981
      %v6983 = vadd.f32 %v6862, %v6864
      %6984 = vadd.xlane.f32.xlu0 %v6983
      %v6985 = vpop.xlane.xlu0 %6984
      %v6986 = vadd.f32 %v6866, %v6868
      %6987 = vadd.xlane.f32.xlu0 %v6986
      %v6988 = vpop.xlane.xlu0 %6987
      %v6989 = vadd.f32 %v6870, %v6872
      %6990 = vadd.xlane.f32.xlu0 %v6989
      %v6991 = vpop.xlane.xlu0 %6990
      %v6992 = vadd.f32 %v6874, %v6876
      %6993 = vadd.xlane.f32.xlu0 %v6992
      %v6994 = vpop.xlane.xlu0 %6993
      %v6995 = vadd.f32 %v6878, %v6880
      %6996 = vadd.xlane.f32.xlu0 %v6995
      %v6997 = vpop.xlane.xlu0 %6996
      %v6998 = vadd.f32 %v6882, %v6884
      %6999 = vadd.xlane.f32.xlu0 %v6998
      %v7000 = vpop.xlane.xlu0 %6999
      %v7001 = vadd.f32 %v6886, %v6888
      %7002 = vadd.xlane.f32.xlu0 %v7001
      %v7003 = vpop.xlane.xlu0 %7002
      %v7004 = vadd.f32 %v6890, %v6892
      %7005 = vadd.xlane.f32.xlu0 %v7004
      %v7006 = vpop.xlane.xlu0 %7005
      %v7007 = vadd.f32 %v6894, %v6896
      %7008 = vadd.xlane.f32.xlu0 %v7007
      %v7009 = vpop.xlane.xlu0 %7008
      %v7010 = vadd.f32 %v6898, %v6900
      %7011 = vadd.xlane.f32.xlu0 %v7010
      %v7012 = vpop.xlane.xlu0 %7011
      %v7013 = vadd.f32 %v6902, %v6904
      %7014 = vadd.xlane.f32.xlu0 %v7013
      %v7015 = vpop.xlane.xlu0 %7014
      %v7016 = vadd.f32 %v6906, %v6908
      %7017 = vadd.xlane.f32.xlu0 %v7016
      %v7018 = vpop.xlane.xlu0 %7017
      %v7019 = vadd.f32 %v6910, %v6912
      %7020 = vadd.xlane.f32.xlu0 %v7019
      %v7021 = vpop.xlane.xlu0 %7020
      %v7022 = vadd.f32 %v6914, %v6916
      %7023 = vadd.xlane.f32.xlu0 %v7022
      %v7024 = vpop.xlane.xlu0 %7023
      %v7025 = vadd.f32 %v6918, %v6920
      %7026 = vadd.xlane.f32.xlu0 %v7025
      %v7027 = vpop.xlane.xlu0 %7026
      %v7028 = vadd.f32 %v6922, %v6924
      %7029 = vadd.xlane.f32.xlu0 %v7028
      %v7030 = vpop.xlane.xlu0 %7029
      %v7031 = vadd.f32 %v6926, %v6928
      %7032 = vadd.xlane.f32.xlu0 %v7031
      %v7033 = vpop.xlane.xlu0 %7032
      %v7034 = vadd.f32 %v6930, %v6932
      %7035 = vadd.xlane.f32.xlu0 %v7034
      %v7036 = vpop.xlane.xlu0 %7035
      %v7037 = vadd.f32 %v6934, %v6936
      %7038 = vadd.xlane.f32.xlu0 %v7037
      %v7039 = vpop.xlane.xlu0 %7038
      %v7040 = vadd.f32 %v6938, %v6940
      %7041 = vadd.xlane.f32.xlu0 %v7040
      %v7042 = vpop.xlane.xlu0 %7041
      %v7043 = vadd.f32 %v6942, %v6944
      %7044 = vadd.xlane.f32.xlu0 %v7043
      %v7045 = vpop.xlane.xlu0 %7044
      %v7046 = vadd.f32 %v6946, %v6948
      %7047 = vadd.xlane.f32.xlu0 %v7046
      %v7048 = vpop.xlane.xlu0 %7047
      %v7049 = vadd.f32 %v6950, %v6952
      %7050 = vadd.xlane.f32.xlu0 %v7049
      %v7051 = vpop.xlane.xlu0 %7050
      %v7052 = vadd.f32 %v6954, %v6956
      %7053 = vadd.xlane.f32.xlu0 %v7052
      %v7054 = vpop.xlane.xlu0 %7053
      %v7055 = vadd.f32 %v6958, %v6960
      %7056 = vadd.xlane.f32.xlu0 %v7055
      %v7057 = vpop.xlane.xlu0 %7056
      %v7058 = vadd.f32 %v6962, %v6964
      %7059 = vadd.xlane.f32.xlu0 %v7058
      %v7060 = vpop.xlane.xlu0 %7059
      %v7061 = vpack.c.bf16 %v6842, %v6838
      %v7062 = vpack.c.bf16 %v6844, %v6840
      %v7063 = vpack.c.bf16 %v6850, %v6846
      %v7064 = vpack.c.bf16 %v6852, %v6848
      %v7065 = vpack.c.bf16 %v6858, %v6854
      %v7066 = vpack.c.bf16 %v6860, %v6856
      %v7067 = vpack.c.bf16 %v6866, %v6862
      %v7068 = vpack.c.bf16 %v6868, %v6864
      %v7069 = vpack.c.bf16 %v6874, %v6870
      %v7070 = vpack.c.bf16 %v6876, %v6872
      %v7071 = vpack.c.bf16 %v6882, %v6878
      %v7072 = vpack.c.bf16 %v6884, %v6880
      %v7073 = vpack.c.bf16 %v6890, %v6886
      %v7074 = vpack.c.bf16 %v6892, %v6888
      %v7075 = vpack.c.bf16 %v6898, %v6894
      %v7076 = vpack.c.bf16 %v6900, %v6896
      %v7077 = vpack.c.bf16 %v6906, %v6902
      %v7078 = vpack.c.bf16 %v6908, %v6904
      %v7079 = vpack.c.bf16 %v6914, %v6910
      %v7080 = vpack.c.bf16 %v6916, %v6912
      %v7081 = vpack.c.bf16 %v6922, %v6918
      %v7082 = vpack.c.bf16 %v6924, %v6920
      %v7083 = vpack.c.bf16 %v6930, %v6926
      %v7084 = vpack.c.bf16 %v6932, %v6928
      %v7085 = vpack.c.bf16 %v6938, %v6934
      %v7086 = vpack.c.bf16 %v6940, %v6936
      %v7087 = vpack.c.bf16 %v6946, %v6942
      %v7088 = vpack.c.bf16 %v6948, %v6944
      %v7089 = vpack.c.bf16 %v6954, %v6950
      %v7090 = vpack.c.bf16 %v6956, %v6952
      %v7091 = vpack.c.bf16 %v6962, %v6958
      %v7092 = vpack.c.bf16 %v6964, %v6960
      %v7093 = vpack.c.bf16 %v6233, %v6230
      %v7094 = vpack.c.bf16 %v6241, %v6238
      %v7095 = vpack.c.bf16 %v6249, %v6246
      %v7096 = vpack.c.bf16 %v6257, %v6254
      %v7097 = vpack.c.bf16 %v6265, %v6262
      %v7098 = vpack.c.bf16 %v6273, %v6270
      %v7099 = vpack.c.bf16 %v6281, %v6278
      %v7100 = vpack.c.bf16 %v6289, %v6286
      %v7101 = vpack.c.bf16 %v6297, %v6294
      %v7102 = vpack.c.bf16 %v6305, %v6302
      %v7103 = vpack.c.bf16 %v6313, %v6310
      %v7104 = vpack.c.bf16 %v6321, %v6318
      %v7105 = vpack.c.bf16 %v6329, %v6326
      %v7106 = vpack.c.bf16 %v6337, %v6334
      %v7107 = vpack.c.bf16 %v6345, %v6342
      %v7108 = vpack.c.bf16 %v6353, %v6350
      %7109 = vmatprep.subr.bf16.mxu0 0
      %7110 = vmatpush1.bf16.msra.mxu0 %v7093
      %7111 = vmatprep.subr.bf16.mxu0 0
      %7112 = vmatpush1.bf16.msra.mxu0 %v7094
      %7113 = vmatprep.subr.bf16.mxu0 0
      %7114 = vmatpush1.bf16.msra.mxu0 %v7095
      %7115 = vmatprep.subr.bf16.mxu0 0
      %7116 = vmatpush1.bf16.msra.mxu0 %v7096
      %7117 = vmatprep.subr.bf16.mxu0 0
      %7118 = vmatpush1.bf16.msra.mxu0 %v7097
      %7119 = vmatprep.subr.bf16.mxu0 0
      %7120 = vmatpush1.bf16.msra.mxu0 %v7098
      %7121 = vmatprep.subr.bf16.mxu0 0
      %7122 = vmatpush1.bf16.msra.mxu0 %v7099
      %7123 = vmatprep.subr.bf16.mxu0 0
      %7124 = vmatpush1.bf16.msra.mxu0 %v7100
      %7125 = vmatprep.subr.bf16.mxu0 0
      %7126 = vmatpush1.bf16.msra.mxu0 %v7101
      %7127 = vmatprep.subr.bf16.mxu0 0
      %7128 = vmatpush1.bf16.msra.mxu0 %v7102
      %7129 = vmatprep.subr.bf16.mxu0 0
      %7130 = vmatpush1.bf16.msra.mxu0 %v7103
      %7131 = vmatprep.subr.bf16.mxu0 0
      %7132 = vmatpush1.bf16.msra.mxu0 %v7104
      %7133 = vmatprep.subr.bf16.mxu0 0
      %7134 = vmatpush1.bf16.msra.mxu0 %v7105
      %7135 = vmatprep.subr.bf16.mxu0 0
      %7136 = vmatpush1.bf16.msra.mxu0 %v7106
      %7137 = vmatprep.subr.bf16.mxu0 0
      %7138 = vmatpush1.bf16.msra.mxu0 %v7107
      %7139 = vmatprep.subr.bf16.mxu0 0
      %7140 = vmatpush1.bf16.msra.mxu0 %v7108
      %7141 = vmatprep.mubr.bf16.mxu0 %v7062
      %7142 = vmatmul.mubr.bf16.gmra.mrb[0].mxu0 %v7061
      %v7143 = vpop.f32.mrb[0].mxu0
      %v7144 = vadd.f32 0.0, %v7143
      %v7145 = vpop.f32.mrb[0].mxu0
      %v7146 = vpop.f32.mrb[0].mxu0
      %v7147 = vadd.f32 0.0, %v7146
      %v7148 = vpop.f32.mrb[0].mxu0
      %7149 = vmatprep.mubr.bf16.mxu0 %v7064
      %7150 = vmatmul.mubr.bf16.gmra.mrb[0].mxu0 %v7063
      %v7151 = vpop.f32.mrb[0].mxu0
      %v7152 = vadd.f32 0.0, %v7151
      %v7153 = vpop.f32.mrb[0].mxu0
      %v7154 = vpop.f32.mrb[0].mxu0
      %v7155 = vadd.f32 0.0, %v7154
      %v7156 = vpop.f32.mrb[0].mxu0
      %7157 = vmatprep.mubr.bf16.mxu0 %v7066
      %7158 = vmatmul.mubr.bf16.gmra.mrb[0].mxu0 %v7065
      %v7159 = vpop.f32.mrb[0].mxu0
      %v7160 = vadd.f32 0.0, %v7159
      %v7161 = vpop.f32.mrb[0].mxu0
      %v7162 = vpop.f32.mrb[0].mxu0
      %v7163 = vadd.f32 0.0, %v7162
      %v7164 = vpop.f32.mrb[0].mxu0
      %7165 = vmatprep.mubr.bf16.mxu0 %v7068
      %7166 = vmatmul.mubr.bf16.gmra.mrb[0].mxu0 %v7067
      %v7167 = vpop.f32.mrb[0].mxu0
      %v7168 = vadd.f32 0.0, %v7167
      %v7169 = vpop.f32.mrb[0].mxu0
      %v7170 = vpop.f32.mrb[0].mxu0
      %v7171 = vadd.f32 0.0, %v7170
      %v7172 = vpop.f32.mrb[0].mxu0
      %7173 = vmatprep.mubr.bf16.mxu0 %v7070
      %7174 = vmatmul.mubr.bf16.gmra.mrb[0].mxu0 %v7069
      %v7175 = vpop.f32.mrb[0].mxu0
      %v7176 = vadd.f32 0.0, %v7175
      %v7177 = vpop.f32.mrb[0].mxu0
      %v7178 = vpop.f32.mrb[0].mxu0
      %v7179 = vadd.f32 0.0, %v7178
      %v7180 = vpop.f32.mrb[0].mxu0
      %7181 = vmatprep.mubr.bf16.mxu0 %v7072
      %7182 = vmatmul.mubr.bf16.gmra.mrb[0].mxu0 %v7071
      %v7183 = vpop.f32.mrb[0].mxu0
      %v7184 = vadd.f32 0.0, %v7183
      %v7185 = vpop.f32.mrb[0].mxu0
      %v7186 = vpop.f32.mrb[0].mxu0
      %v7187 = vadd.f32 0.0, %v7186
      %v7188 = vpop.f32.mrb[0].mxu0
      %7189 = vmatprep.mubr.bf16.mxu0 %v7074
      %7190 = vmatmul.mubr.bf16.gmra.mrb[0].mxu0 %v7073
      %v7191 = vpop.f32.mrb[0].mxu0
      %v7192 = vadd.f32 0.0, %v7191
      %v7193 = vpop.f32.mrb[0].mxu0
      %v7194 = vpop.f32.mrb[0].mxu0
      %v7195 = vadd.f32 0.0, %v7194
      %v7196 = vpop.f32.mrb[0].mxu0
      %7197 = vmatprep.mubr.bf16.mxu0 %v7076
      %7198 = vmatmul.mubr.bf16.gmra.mrb[0].mxu0 %v7075
      %v7199 = vpop.f32.mrb[0].mxu0
      %v7200 = vadd.f32 0.0, %v7199
      %v7201 = vpop.f32.mrb[0].mxu0
      %v7202 = vpop.f32.mrb[0].mxu0
      %v7203 = vadd.f32 0.0, %v7202
      %v7204 = vpop.f32.mrb[0].mxu0
      %7205 = vmatprep.mubr.bf16.mxu0 %v7078
      %7206 = vmatmul.mubr.bf16.gmra.mrb[0].mxu0 %v7077
      %v7207 = vpop.f32.mrb[0].mxu0
      %v7208 = vadd.f32 0.0, %v7207
      %v7209 = vpop.f32.mrb[0].mxu0
      %v7210 = vpop.f32.mrb[0].mxu0
      %v7211 = vadd.f32 0.0, %v7210
      %v7212 = vpop.f32.mrb[0].mxu0
      %7213 = vmatprep.mubr.bf16.mxu0 %v7080
      %7214 = vmatmul.mubr.bf16.gmra.mrb[0].mxu0 %v7079
      %v7215 = vpop.f32.mrb[0].mxu0
      %v7216 = vadd.f32 0.0, %v7215
      %v7217 = vpop.f32.mrb[0].mxu0
      %v7218 = vpop.f32.mrb[0].mxu0
      %v7219 = vadd.f32 0.0, %v7218
      %v7220 = vpop.f32.mrb[0].mxu0
      %7221 = vmatprep.mubr.bf16.mxu0 %v7082
      %7222 = vmatmul.mubr.bf16.gmra.mrb[0].mxu0 %v7081
      %v7223 = vpop.f32.mrb[0].mxu0
      %v7224 = vadd.f32 0.0, %v7223
      %v7225 = vpop.f32.mrb[0].mxu0
      %v7226 = vpop.f32.mrb[0].mxu0
      %v7227 = vadd.f32 0.0, %v7226
      %v7228 = vpop.f32.mrb[0].mxu0
      %7229 = vmatprep.mubr.bf16.mxu0 %v7084
      %7230 = vmatmul.mubr.bf16.gmra.mrb[0].mxu0 %v7083
      %v7231 = vpop.f32.mrb[0].mxu0
      %v7232 = vadd.f32 0.0, %v7231
      %v7233 = vpop.f32.mrb[0].mxu0
      %v7234 = vpop.f32.mrb[0].mxu0
      %v7235 = vadd.f32 0.0, %v7234
      %v7236 = vpop.f32.mrb[0].mxu0
      %7237 = vmatprep.mubr.bf16.mxu0 %v7086
      %7238 = vmatmul.mubr.bf16.gmra.mrb[0].mxu0 %v7085
      %v7239 = vpop.f32.mrb[0].mxu0
      %v7240 = vadd.f32 0.0, %v7239
      %v7241 = vpop.f32.mrb[0].mxu0
      %v7242 = vpop.f32.mrb[0].mxu0
      %v7243 = vadd.f32 0.0, %v7242
      %v7244 = vpop.f32.mrb[0].mxu0
      %7245 = vmatprep.mubr.bf16.mxu0 %v7088
      %7246 = vmatmul.mubr.bf16.gmra.mrb[0].mxu0 %v7087
      %v7247 = vpop.f32.mrb[0].mxu0
      %v7248 = vadd.f32 0.0, %v7247
      %v7249 = vpop.f32.mrb[0].mxu0
      %v7250 = vpop.f32.mrb[0].mxu0
      %v7251 = vadd.f32 0.0, %v7250
      %v7252 = vpop.f32.mrb[0].mxu0
      %7253 = vmatprep.mubr.bf16.mxu0 %v7090
      %7254 = vmatmul.mubr.bf16.gmra.mrb[0].mxu0 %v7089
      %v7255 = vpop.f32.mrb[0].mxu0
      %v7256 = vadd.f32 0.0, %v7255
      %v7257 = vpop.f32.mrb[0].mxu0
      %v7258 = vpop.f32.mrb[0].mxu0
      %v7259 = vadd.f32 0.0, %v7258
      %v7260 = vpop.f32.mrb[0].mxu0
      %7261 = vmatprep.mubr.bf16.mxu0 %v7092
      %7262 = vmatmul.mubr.bf16.gmra.mrb[0].mxu0 %v7091
      %v7263 = vpop.f32.mrb[0].mxu0
      %v7264 = vadd.f32 0.0, %v7263
      %v7265 = vpop.f32.mrb[0].mxu0
      %v7266 = vpop.f32.mrb[0].mxu0
      %v7267 = vadd.f32 0.0, %v7266
      %v7268 = vpop.f32.mrb[0].mxu0
      %7269 = vdwg.mxu0
      %v7270 = vrcp.pop %v6967
      %v7271 = vrcp.pop %v6970
      %v7272 = vrcp.pop %v6973
      %v7273 = vrcp.pop %v6976
      %v7274 = vrcp.pop %v6979
      %v7275 = vrcp.pop %v6982
      %v7276 = vrcp.pop %v6985
      %v7277 = vrcp.pop %v6988
      %v7278 = vrcp.pop %v6991
      %v7279 = vrcp.pop %v6994
      %v7280 = vrcp.pop %v6997
      %v7281 = vrcp.pop %v7000
      %v7282 = vrcp.pop %v7003
      %v7283 = vrcp.pop %v7006
      %v7284 = vrcp.pop %v7009
      %v7285 = vrcp.pop %v7012
      %v7286 = vrcp.pop %v7015
      %v7287 = vrcp.pop %v7018
      %v7288 = vrcp.pop %v7021
      %v7289 = vrcp.pop %v7024
      %v7290 = vrcp.pop %v7027
      %v7291 = vrcp.pop %v7030
      %v7292 = vrcp.pop %v7033
      %v7293 = vrcp.pop %v7036
      %v7294 = vrcp.pop %v7039
      %v7295 = vrcp.pop %v7042
      %v7296 = vrcp.pop %v7045
      %v7297 = vrcp.pop %v7048
      %v7298 = vrcp.pop %v7051
      %v7299 = vrcp.pop %v7054
      %v7300 = vrcp.pop %v7057
      %v7301 = vrcp.pop %v7060
      %v7302 = vmul.f32 %v7144, %v7270
      %v7303 = vmul.f32 %v7147, %v7271
      %v7304 = vmul.f32 %v7152, %v7272
      %v7305 = vmul.f32 %v7155, %v7273
      %v7306 = vmul.f32 %v7160, %v7274
      %v7307 = vmul.f32 %v7163, %v7275
      %v7308 = vmul.f32 %v7168, %v7276
      %v7309 = vmul.f32 %v7171, %v7277
      %v7310 = vmul.f32 %v7176, %v7278
      %v7311 = vmul.f32 %v7179, %v7279
      %v7312 = vmul.f32 %v7184, %v7280
      %v7313 = vmul.f32 %v7187, %v7281
      %v7314 = vmul.f32 %v7192, %v7282
      %v7315 = vmul.f32 %v7195, %v7283
      %v7316 = vmul.f32 %v7200, %v7284
      %v7317 = vmul.f32 %v7203, %v7285
      %v7318 = vmul.f32 %v7208, %v7286
      %v7319 = vmul.f32 %v7211, %v7287
      %v7320 = vmul.f32 %v7216, %v7288
      %v7321 = vmul.f32 %v7219, %v7289
      %v7322 = vmul.f32 %v7224, %v7290
      %v7323 = vmul.f32 %v7227, %v7291
      %v7324 = vmul.f32 %v7232, %v7292
      %v7325 = vmul.f32 %v7235, %v7293
      %v7326 = vmul.f32 %v7240, %v7294
      %v7327 = vmul.f32 %v7243, %v7295
      %v7328 = vmul.f32 %v7248, %v7296
      %v7329 = vmul.f32 %v7251, %v7297
      %v7330 = vmul.f32 %v7256, %v7298
      %v7331 = vmul.f32 %v7259, %v7299
      %v7332 = vmul.f32 %v7264, %v7300
      %v7333 = vmul.f32 %v7267, %v7301
      %v7334 = vpack.c.bf16 %v7303, %v7302
      %v7335 = vpack.c.bf16 %v7305, %v7304
      %v7336 = vpack.c.bf16 %v7307, %v7306
      %v7337 = vpack.c.bf16 %v7309, %v7308
      %v7338 = vpack.c.bf16 %v7311, %v7310
      %v7339 = vpack.c.bf16 %v7313, %v7312
      %v7340 = vpack.c.bf16 %v7315, %v7314
      %v7341 = vpack.c.bf16 %v7317, %v7316
      %v7342 = vpack.c.bf16 %v7319, %v7318
      %v7343 = vpack.c.bf16 %v7321, %v7320
      %v7344 = vpack.c.bf16 %v7323, %v7322
      %v7345 = vpack.c.bf16 %v7325, %v7324
      %v7346 = vpack.c.bf16 %v7327, %v7326
      %v7347 = vpack.c.bf16 %v7329, %v7328
      %v7348 = vpack.c.bf16 %v7331, %v7330
      %v7349 = vpack.c.bf16 %v7333, %v7332
      %s7350 = scalar_lea.vmem %s5, 48
      %v7351 = vld [vmem:[%s7350] sm:$0xf]
      %v7352 = vld [vmem:[%s7350 + $0x4] sm:$0xf]
      %v7353 = vld [vmem:[%s7350 + $0x8] sm:$0xf]
      %v7354 = vld [vmem:[%s7350 + $0xc] sm:$0xf]
      %v7359 = vunpack.c.l.b16 %v7351
      %v7360 = vunpack.c.l.b16 %v7352
      %v7361 = vunpack.c.l.b16 %v7353
      %v7362 = vunpack.c.l.b16 %v7354
      %v7363 = vpack.c.b16 %v7360, %v7359
      %v7364 = vpack.c.b16 %v7362, %v7361
      %v7368 = vsel %vm451, %v7334, 0
      %v7371 = vsel %vm451, %v7335, 0
      %v7374 = vsel %vm451, %v7336, 0
      %v7377 = vsel %vm451, %v7337, 0
      %v7380 = vsel %vm451, %v7338, 0
      %v7383 = vsel %vm451, %v7339, 0
      %v7386 = vsel %vm451, %v7340, 0
      %v7389 = vsel %vm451, %v7341, 0
      %v7392 = vsel %vm451, %v7342, 0
      %v7395 = vsel %vm451, %v7343, 0
      %v7398 = vsel %vm451, %v7344, 0
      %v7401 = vsel %vm451, %v7345, 0
      %v7404 = vsel %vm451, %v7346, 0
      %v7407 = vsel %vm451, %v7347, 0
      %v7410 = vsel %vm451, %v7348, 0
      %v7413 = vsel %vm451, %v7349, 0
      %7415 = vmatprep.subr.bf16.mxu0 0
      %7416 = vmatpush1.bf16.msra.mxu0 %v7363
      %7417 = vmatprep.subr.bf16.mxu0 0
      %7418 = vmatpush1.bf16.msra.mxu0 %v7364
      %7419 = vmatprep.subr.bf16.mxu0 0
      %7420 = vmatpush1.bf16.msra.mxu0 0
      %7421 = vmatprep.subr.bf16.mxu0 0
      %7422 = vmatpush1.bf16.msra.mxu0 0
      %7423 = vmatprep.subr.bf16.mxu0 0
      %7424 = vmatpush1.bf16.msra.mxu0 0
      %7425 = vmatprep.subr.bf16.mxu0 0
      %7426 = vmatpush1.bf16.msra.mxu0 0
      %7427 = vmatprep.subr.bf16.mxu0 0
      %7428 = vmatpush1.bf16.msra.mxu0 0
      %7429 = vmatprep.subr.bf16.mxu0 0
      %7430 = vmatpush1.bf16.msra.mxu0 0
      %7431 = vmatprep.subr.bf16.mxu0 0
      %7432 = vmatpush1.bf16.msra.mxu0 0
      %7433 = vmatprep.subr.bf16.mxu0 0
      %7434 = vmatpush1.bf16.msra.mxu0 0
      %7435 = vmatprep.subr.bf16.mxu0 0
      %7436 = vmatpush1.bf16.msra.mxu0 0
      %7437 = vmatprep.subr.bf16.mxu0 0
      %7438 = vmatpush1.bf16.msra.mxu0 0
      %7439 = vmatprep.subr.bf16.mxu0 0
      %7440 = vmatpush1.bf16.msra.mxu0 0
      %7441 = vmatprep.subr.bf16.mxu0 0
      %7442 = vmatpush1.bf16.msra.mxu0 0
      %7443 = vmatprep.subr.bf16.mxu0 0
      %7444 = vmatpush1.bf16.msra.mxu0 0
      %7445 = vmatprep.subr.bf16.mxu0 0
      %7446 = vmatpush1.bf16.msra.mxu0 0
      %7447 = vmatprep.mubr.bf16.mxu0 0
      %7448 = vmatmul.mubr.bf16.gmra.mrb[0].mxu0 %v7368
      %v7449 = vpop.f32.mrb[0].mxu0
      %v7450 = vadd.f32 0.0, %v7449
      %v7451 = vpop.f32.mrb[0].mxu0
      %v7452 = vpop.f32.mrb[0].mxu0
      %v7453 = vadd.f32 0.0, %v7452
      %v7454 = vpop.f32.mrb[0].mxu0
      %7455 = vmatprep.mubr.bf16.mxu0 0
      %7456 = vmatmul.mubr.bf16.gmra.mrb[0].mxu0 %v7371
      %v7457 = vpop.f32.mrb[0].mxu0
      %v7458 = vadd.f32 0.0, %v7457
      %v7459 = vpop.f32.mrb[0].mxu0
      %v7460 = vpop.f32.mrb[0].mxu0
      %v7461 = vadd.f32 0.0, %v7460
      %v7462 = vpop.f32.mrb[0].mxu0
      %7463 = vmatprep.mubr.bf16.mxu0 0
      %7464 = vmatmul.mubr.bf16.gmra.mrb[0].mxu0 %v7374
      %v7465 = vpop.f32.mrb[0].mxu0
      %v7466 = vadd.f32 0.0, %v7465
      %v7467 = vpop.f32.mrb[0].mxu0
      %v7468 = vpop.f32.mrb[0].mxu0
      %v7469 = vadd.f32 0.0, %v7468
      %v7470 = vpop.f32.mrb[0].mxu0
      %7471 = vmatprep.mubr.bf16.mxu0 0
      %7472 = vmatmul.mubr.bf16.gmra.mrb[0].mxu0 %v7377
      %v7473 = vpop.f32.mrb[0].mxu0
      %v7474 = vadd.f32 0.0, %v7473
      %v7475 = vpop.f32.mrb[0].mxu0
      %v7476 = vpop.f32.mrb[0].mxu0
      %v7477 = vadd.f32 0.0, %v7476
      %v7478 = vpop.f32.mrb[0].mxu0
      %7479 = vmatprep.mubr.bf16.mxu0 0
      %7480 = vmatmul.mubr.bf16.gmra.mrb[0].mxu0 %v7380
      %v7481 = vpop.f32.mrb[0].mxu0
      %v7482 = vadd.f32 0.0, %v7481
      %v7483 = vpop.f32.mrb[0].mxu0
      %v7484 = vpop.f32.mrb[0].mxu0
      %v7485 = vadd.f32 0.0, %v7484
      %v7486 = vpop.f32.mrb[0].mxu0
      %7487 = vmatprep.mubr.bf16.mxu0 0
      %7488 = vmatmul.mubr.bf16.gmra.mrb[0].mxu0 %v7383
      %v7489 = vpop.f32.mrb[0].mxu0
      %v7490 = vadd.f32 0.0, %v7489
      %v7491 = vpop.f32.mrb[0].mxu0
      %v7492 = vpop.f32.mrb[0].mxu0
      %v7493 = vadd.f32 0.0, %v7492
      %v7494 = vpop.f32.mrb[0].mxu0
      %7495 = vmatprep.mubr.bf16.mxu0 0
      %7496 = vmatmul.mubr.bf16.gmra.mrb[0].mxu0 %v7386
      %v7497 = vpop.f32.mrb[0].mxu0
      %v7498 = vadd.f32 0.0, %v7497
      %v7499 = vpop.f32.mrb[0].mxu0
      %v7500 = vpop.f32.mrb[0].mxu0
      %v7501 = vadd.f32 0.0, %v7500
      %v7502 = vpop.f32.mrb[0].mxu0
      %7503 = vmatprep.mubr.bf16.mxu0 0
      %7504 = vmatmul.mubr.bf16.gmra.mrb[0].mxu0 %v7389
      %v7505 = vpop.f32.mrb[0].mxu0
      %v7506 = vadd.f32 0.0, %v7505
      %v7507 = vpop.f32.mrb[0].mxu0
      %v7508 = vpop.f32.mrb[0].mxu0
      %v7509 = vadd.f32 0.0, %v7508
      %v7510 = vpop.f32.mrb[0].mxu0
      %7511 = vmatprep.mubr.bf16.mxu0 0
      %7512 = vmatmul.mubr.bf16.gmra.mrb[0].mxu0 %v7392
      %v7513 = vpop.f32.mrb[0].mxu0
      %v7514 = vadd.f32 0.0, %v7513
      %v7515 = vpop.f32.mrb[0].mxu0
      %v7516 = vpop.f32.mrb[0].mxu0
      %v7517 = vadd.f32 0.0, %v7516
      %v7518 = vpop.f32.mrb[0].mxu0
      %7519 = vmatprep.mubr.bf16.mxu0 0
      %7520 = vmatmul.mubr.bf16.gmra.mrb[0].mxu0 %v7395
      %v7521 = vpop.f32.mrb[0].mxu0
      %v7522 = vadd.f32 0.0, %v7521
      %v7523 = vpop.f32.mrb[0].mxu0
      %v7524 = vpop.f32.mrb[0].mxu0
      %v7525 = vadd.f32 0.0, %v7524
      %v7526 = vpop.f32.mrb[0].mxu0
      %7527 = vmatprep.mubr.bf16.mxu0 0
      %7528 = vmatmul.mubr.bf16.gmra.mrb[0].mxu0 %v7398
      %v7529 = vpop.f32.mrb[0].mxu0
      %v7530 = vadd.f32 0.0, %v7529
      %v7531 = vpop.f32.mrb[0].mxu0
      %v7532 = vpop.f32.mrb[0].mxu0
      %v7533 = vadd.f32 0.0, %v7532
      %v7534 = vpop.f32.mrb[0].mxu0
      %7535 = vmatprep.mubr.bf16.mxu0 0
      %7536 = vmatmul.mubr.bf16.gmra.mrb[0].mxu0 %v7401
      %v7537 = vpop.f32.mrb[0].mxu0
      %v7538 = vadd.f32 0.0, %v7537
      %v7539 = vpop.f32.mrb[0].mxu0
      %v7540 = vpop.f32.mrb[0].mxu0
      %v7541 = vadd.f32 0.0, %v7540
      %v7542 = vpop.f32.mrb[0].mxu0
      %7543 = vmatprep.mubr.bf16.mxu0 0
      %7544 = vmatmul.mubr.bf16.gmra.mrb[0].mxu0 %v7404
      %v7545 = vpop.f32.mrb[0].mxu0
      %v7546 = vadd.f32 0.0, %v7545
      %v7547 = vpop.f32.mrb[0].mxu0
      %v7548 = vpop.f32.mrb[0].mxu0
      %v7549 = vadd.f32 0.0, %v7548
      %v7550 = vpop.f32.mrb[0].mxu0
      %7551 = vmatprep.mubr.bf16.mxu0 0
      %7552 = vmatmul.mubr.bf16.gmra.mrb[0].mxu0 %v7407
      %v7553 = vpop.f32.mrb[0].mxu0
      %v7554 = vadd.f32 0.0, %v7553
      %v7555 = vpop.f32.mrb[0].mxu0
      %v7556 = vpop.f32.mrb[0].mxu0
      %v7557 = vadd.f32 0.0, %v7556
      %v7558 = vpop.f32.mrb[0].mxu0
      %7559 = vmatprep.mubr.bf16.mxu0 0
      %7560 = vmatmul.mubr.bf16.gmra.mrb[0].mxu0 %v7410
      %v7561 = vpop.f32.mrb[0].mxu0
      %v7562 = vadd.f32 0.0, %v7561
      %v7563 = vpop.f32.mrb[0].mxu0
      %v7564 = vpop.f32.mrb[0].mxu0
      %v7565 = vadd.f32 0.0, %v7564
      %v7566 = vpop.f32.mrb[0].mxu0
      %7567 = vmatprep.mubr.bf16.mxu0 0
      %7568 = vmatmul.mubr.bf16.gmra.mrb[0].mxu0 %v7413
      %v7569 = vpop.f32.mrb[0].mxu0
      %v7570 = vadd.f32 0.0, %v7569
      %v7571 = vpop.f32.mrb[0].mxu0
      %v7572 = vpop.f32.mrb[0].mxu0
      %v7573 = vadd.f32 0.0, %v7572
      %v7574 = vpop.f32.mrb[0].mxu0
      %7575 = vdwg.mxu0
      %v7576 = vadd.f32 %v5790, %v7450
      %v7577 = vadd.f32 %v5791, %v7453
      %v7578 = vadd.f32 %v5792, %v7458
      %v7579 = vadd.f32 %v5793, %v7461
      %v7580 = vadd.f32 %v5794, %v7466
      %v7581 = vadd.f32 %v5795, %v7469
      %v7582 = vadd.f32 %v5796, %v7474
      %v7583 = vadd.f32 %v5797, %v7477
      %v7584 = vadd.f32 %v5798, %v7482
      %v7585 = vadd.f32 %v5799, %v7485
      %v7586 = vadd.f32 %v5800, %v7490
      %v7587 = vadd.f32 %v5801, %v7493
      %v7588 = vadd.f32 %v5802, %v7498
      %v7589 = vadd.f32 %v5803, %v7501
      %v7590 = vadd.f32 %v5804, %v7506
      %v7591 = vadd.f32 %v5805, %v7509
      %v7592 = vadd.f32 %v5806, %v7514
      %v7593 = vadd.f32 %v5807, %v7517
      %v7594 = vadd.f32 %v5808, %v7522
      %v7595 = vadd.f32 %v5809, %v7525
      %v7596 = vadd.f32 %v5810, %v7530
      %v7597 = vadd.f32 %v5811, %v7533
      %v7598 = vadd.f32 %v5812, %v7538
      %v7599 = vadd.f32 %v5813, %v7541
      %v7600 = vadd.f32 %v5814, %v7546
      %v7601 = vadd.f32 %v5815, %v7549
      %v7602 = vadd.f32 %v5816, %v7554
      %v7603 = vadd.f32 %v5817, %v7557
      %v7604 = vadd.f32 %v5818, %v7562
      %v7605 = vadd.f32 %v5819, %v7565
      %v7606 = vadd.f32 %v5820, %v7570
      %v7607 = vadd.f32 %v5821, %v7573
      %v7608 = vld [vmem:[%s6] sm:$0x1]
      %v7610 = vlaneseq
      %v7611 = vshrl.u32 %v7610, 7
      %v7612 = vsub.s32 0, %v7611
      %v7613 = vrot.slane %v7608, %v7612
      %v7615 = vadd.f32 %v7576, %v7613
      %v7616 = vadd.f32 %v7577, %v7613
      %v7617 = vadd.f32 %v7578, %v7613
      %v7618 = vadd.f32 %v7579, %v7613
      %v7619 = vadd.f32 %v7580, %v7613
      %v7620 = vadd.f32 %v7581, %v7613
      %v7621 = vadd.f32 %v7582, %v7613
      %v7622 = vadd.f32 %v7583, %v7613
      %v7623 = vadd.f32 %v7584, %v7613
      %v7624 = vadd.f32 %v7585, %v7613
      %v7625 = vadd.f32 %v7586, %v7613
      %v7626 = vadd.f32 %v7587, %v7613
      %v7627 = vadd.f32 %v7588, %v7613
      %v7628 = vadd.f32 %v7589, %v7613
      %v7629 = vadd.f32 %v7590, %v7613
      %v7630 = vadd.f32 %v7591, %v7613
      %v7631 = vadd.f32 %v7592, %v7613
      %v7632 = vadd.f32 %v7593, %v7613
      %v7633 = vadd.f32 %v7594, %v7613
      %v7634 = vadd.f32 %v7595, %v7613
      %v7635 = vadd.f32 %v7596, %v7613
      %v7636 = vadd.f32 %v7597, %v7613
      %v7637 = vadd.f32 %v7598, %v7613
      %v7638 = vadd.f32 %v7599, %v7613
      %v7639 = vadd.f32 %v7600, %v7613
      %v7640 = vadd.f32 %v7601, %v7613
      %v7641 = vadd.f32 %v7602, %v7613
      %v7642 = vadd.f32 %v7603, %v7613
      %v7643 = vadd.f32 %v7604, %v7613
      %v7644 = vadd.f32 %v7605, %v7613
      %v7645 = vadd.f32 %v7606, %v7613
      %v7646 = vadd.f32 %v7607, %v7613
      %7647 = vst.msk [vmem:[%s336] sm:$0xff] %vm451, %v7615
      %7648 = vst.msk [vmem:[%s336 + $0x8] sm:$0xff] %vm451, %v7616
      %7649 = vst.msk [vmem:[%s336 + $0x10] sm:$0xff] %vm451, %v7617
      %7650 = vst.msk [vmem:[%s336 + $0x18] sm:$0xff] %vm451, %v7618
      %7651 = vst.msk [vmem:[%s336 + $0x20] sm:$0xff] %vm451, %v7619
      %7652 = vst.msk [vmem:[%s336 + $0x28] sm:$0xff] %vm451, %v7620
      %7653 = vst.msk [vmem:[%s336 + $0x30] sm:$0xff] %vm451, %v7621
      %7654 = vst.msk [vmem:[%s336 + $0x38] sm:$0xff] %vm451, %v7622
      %7655 = vst.msk [vmem:[%s336 + $0x40] sm:$0xff] %vm451, %v7623
      %7656 = vst.msk [vmem:[%s336 + $0x48] sm:$0xff] %vm451, %v7624
      %7657 = vst.msk [vmem:[%s336 + $0x50] sm:$0xff] %vm451, %v7625
      %7658 = vst.msk [vmem:[%s336 + $0x58] sm:$0xff] %vm451, %v7626
      %7659 = vst.msk [vmem:[%s336 + $0x60] sm:$0xff] %vm451, %v7627
      %7660 = vst.msk [vmem:[%s336 + $0x68] sm:$0xff] %vm451, %v7628
      %7661 = vst.msk [vmem:[%s336 + $0x70] sm:$0xff] %vm451, %v7629
      %7662 = vst.msk [vmem:[%s336 + $0x78] sm:$0xff] %vm451, %v7630
      %7663 = vst.msk [vmem:[%s336 + $0x80] sm:$0xff] %vm451, %v7631
      %7664 = vst.msk [vmem:[%s336 + $0x88] sm:$0xff] %vm451, %v7632
      %7665 = vst.msk [vmem:[%s336 + $0x90] sm:$0xff] %vm451, %v7633
      %7666 = vst.msk [vmem:[%s336 + $0x98] sm:$0xff] %vm451, %v7634
      %7667 = vst.msk [vmem:[%s336 + $0xa0] sm:$0xff] %vm451, %v7635
      %7668 = vst.msk [vmem:[%s336 + $0xa8] sm:$0xff] %vm451, %v7636
      %7669 = vst.msk [vmem:[%s336 + $0xb0] sm:$0xff] %vm451, %v7637
      %7670 = vst.msk [vmem:[%s336 + $0xb8] sm:$0xff] %vm451, %v7638
      %7671 = vst.msk [vmem:[%s336 + $0xc0] sm:$0xff] %vm451, %v7639
      %7672 = vst.msk [vmem:[%s336 + $0xc8] sm:$0xff] %vm451, %v7640
      %7673 = vst.msk [vmem:[%s336 + $0xd0] sm:$0xff] %vm451, %v7641
      %7674 = vst.msk [vmem:[%s336 + $0xd8] sm:$0xff] %vm451, %v7642
      %7675 = vst.msk [vmem:[%s336 + $0xe0] sm:$0xff] %vm451, %v7643
      %7676 = vst.msk [vmem:[%s336 + $0xe8] sm:$0xff] %vm451, %v7644
      %7677 = vst.msk [vmem:[%s336 + $0xf0] sm:$0xff] %vm451, %v7645
      %7678 = vst.msk [vmem:[%s336 + $0xf8] sm:$0xff] %vm451, %v7646
      %s7679 = smul.u32 32, %s23
      %p7680 = scmp.lt.s32.totalorder %s22, 1
      %s7681 = scalar_select %p7680, %s22, 1
      %p7682 = scmp.lt.s32.totalorder %s7679, 31
      %s7683 = scalar_select %p7682, %s7679, 31
      %s7684 = smul.addr %s7681, 32
      %s7685 = sadd.s32 %s7683, %s7684
      %s7686 = smul.addr %s7685, 8
      %s7687 = scalar_lea.vmem %s7, %s7686
      // Predicated region
      $region49: #{attention_forward.1} parent=47 // pred_check
        %p7688 = pneg %p209
      $region50: #{attention_forward.1} parent=47 // pred_check_branch
        %7690 = sbr.rel (%p7688) target = $region52
      $region51: #{attention_forward.1} parent=47 // pred_region
        %s7691 = smul.u32 32, %s23
      $region52: #{attention_forward.1} parent=47 // pred_fallthru
        _
    $region48: #{attention_forward.1} parent=5 // pred_fallthru
      _
    %p7692 = scmp.le.s32.totalorder 2, %s13
    // Predicated region
    $region53: #{attention_forward.1} parent=5 // pred_check
      %p7693 = pneg %p7692
    $region54: #{attention_forward.1} parent=5 // pred_check_branch
      %7695 = sbr.rel (%p7693) target = $region56
    $region55: #{attention_forward.1} parent=5 // pred_region
      %s7696 = ssub.s32 %s13, 2
      // Predicated region
      $region57: #{attention_forward.1} parent=55 // pred_check
        %p7697 = pneg %p215
      $region58: #{attention_forward.1} parent=55 // pred_check_branch
        %7699 = sbr.rel (%p7697) target = $region60
      $region59: #{attention_forward.1} parent=55 // pred_region
        %s7700 = smul.u32 32, %s25
        %p7701 = scmp.lt.s32.totalorder %s24, 1
        %s7702 = scalar_select %p7701, %s24, 1
        %p7703 = scmp.lt.s32.totalorder %s7700, 31
        %s7704 = scalar_select %p7703, %s7700, 31
        %s7705 = smul.addr %s7702, 32
        %s7706 = sadd.s32 %s7704, %s7705
        %s7707 = smul.addr %s7706, 8
        %s7708 = scalar_lea.vmem %s7, %s7707
      $region60: #{attention_forward.1} parent=55 // pred_fallthru
        _
    $region56: #{attention_forward.1} parent=5 // pred_fallthru
      _
  $region6: #{attention_forward.1} parent=0 // loop_footer
    %s17 = sadd.s32 1, %s13
  $region7: #{attention_forward.1} parent=0 // loop_footer_branch
    %12 = sbr.rel target = $region3
  $region8: #{attention_forward.1} parent=0 // loop_exit
    _

</llo_original>
